<compile_context>
chip_gen: v5e
topology: v5e:2x2
jax: 0.10.0
libtpu: 0.0.40
codegen_flags: <defaults>
</compile_context>

<pallas_src>
import jax
import jax.numpy as jnp
from jax.experimental import pallas as pl
from jax.experimental.pallas import tpu as pltpu

# ------------------------- static configuration -------------------------
B, N, F = 2, 16, 32            # batch, feature tokens, feature_dim
D = 32                          # object_dim (slot dim)
KVQ = D                         # kvq_dim (default: == dim)
NH = 1                          # n_heads
DH = KVQ // NH                  # dims_per_head
S = 8                           # number of slots
ITERS = 3
EPS = 1e-8                      # slot-attention eps
LN_EPS = 1e-5                   # torch LayerNorm default eps
RANK = 8
LORA_SCALE = 8
LORA_FACTOR = LORA_SCALE / RANK  # TODO(synk): AdaLoRA class not given; standard scale/rank used
E = 16                          # pool.codebook_size
C = E * RANK                    # flattened (entry, rank) axis = 128 lanes
HID = 4 * D                     # ff_mlp hidden = 128
P = N                           # decoder broadcast positions
HD = 64                         # decoder hidden
DEC_W = 128                     # lane-padded fused decoder head width (recon | alpha | pad)
SCALE = DH ** -0.5


# ------------------------------ helpers ---------------------------------
def _ln(x, g, b):
    mu = jnp.mean(x, axis=-1, keepdims=True)
    var = jnp.mean((x - mu) ** 2, axis=-1, keepdims=True)
    return (x - mu) * jax.lax.rsqrt(var + LN_EPS) * g + b


def _bspec(shape):
    tail = (0,) * (len(shape) - 1)
    return pl.BlockSpec((1,) + tuple(shape[1:]), lambda b: (b,) + tail)


def _fspec(shape):
    zeros = (0,) * len(shape)
    return pl.BlockSpec(tuple(shape), lambda b: zeros)


# --------------------------- fused forward kernel ------------------------
def _fused_kernel(
    feat_ref, cond_ref,
    gin_ref, bin_ref, wk_ref, wv_ref, wq_ref,
    gs_ref, bs_ref,
    wih_ref, whh_ref, bih_ref, bhh_ref,
    gf_ref, bf_ref, w1_ref, b1_ref, w2_ref, b2_ref,
    a1_ref, b1l_ref, a2_ref, b2l_ref,
    cb_ref, cbn_ref,
    pos_ref, wd1_ref, bd1_ref, wd2a_ref, bd2a_ref,
    slots_ref, attn_ref, recon_ref, masks_ref, idx_ref, commit_ref,
):
    # ---- shared encodings (computed once per batch element) ----
    x = feat_ref[0]                                              # (N, F)
    xn = _ln(x, gin_ref[...], bin_ref[...])                      # norm_input
    k = jnp.dot(xn, wk_ref[...], preferred_element_type=jnp.float32)   # (N, KVQ)
    v = jnp.dot(xn, wv_ref[...], preferred_element_type=jnp.float32)   # (N, KVQ)
    cond = cond_ref[0]                                           # (S, D)

    gs, bs = gs_ref[...], bs_ref[...]
    wq = wq_ref[...]
    wih, whh, bih, bhh = wih_ref[...], whh_ref[...], bih_ref[...], bhh_ref[...]
    gf, bf = gf_ref[...], bf_ref[...]
    w1, b1 = w1_ref[...], b1_ref[...]
    w2, b2 = w2_ref[...], b2_ref[...]
    a1t, b1t = a1_ref[...], b1l_ref[...]                         # (D, C), (C, HID) [scale folded]
    a2t, b2t = a2_ref[...], b2l_ref[...]                         # (HID, C), (C, D)

    def run_sa(slots, oh_rank):
        """3 slot-attention iterations; oh_rank=None -> plain ff_mlp (no LoRA work at all)."""
        attn_vis = jnp.zeros((S, N), jnp.float32)
        for _ in range(ITERS):
            slots_prev = slots
            sn = _ln(slots, gs, bs)                              # norm_slots
            q = jnp.dot(sn, wq, preferred_element_type=jnp.float32)          # (S, KVQ)
            dots = jax.lax.dot_general(q, k, (((1,), (1,)), ((), ())),
                                       preferred_element_type=jnp.float32) * SCALE  # (S, N)
            # softmax over slots (heads == 1)
            m = jnp.max(dots, axis=0, keepdims=True)
            e = jnp.exp(dots - m)
            attn = e * pl.reciprocal(jnp.sum(e, axis=0, keepdims=True), approx=True)
            attn_vis = attn                                      # attn_before_reweighting
            attn = attn + EPS
            attn = attn * pl.reciprocal(jnp.sum(attn, axis=-1, keepdims=True), approx=True)
            upd = jnp.dot(attn, v, preferred_element_type=jnp.float32)        # (S, KVQ)

            # GRUCell (use_o=False path): torch gate order (r, z, n)
            gi = jnp.dot(upd, wih, preferred_element_type=jnp.float32) + bih
            gh = jnp.dot(slots_prev, whh, preferred_element_type=jnp.float32) + bhh
            r = jax.nn.sigmoid(gi[:, :D] + gh[:, :D])
            zg = jax.nn.sigmoid(gi[:, D:2 * D] + gh[:, D:2 * D])
            ng = jnp.tanh(gi[:, 2 * D:] + r * gh[:, 2 * D:])
            slots = (1.0 - zg) * ng + zg * slots_prev

            # ff_mlp with optional per-slot LoRA (mod_position='f')
            pre_ff = slots
            sn2 = _ln(slots, gf, bf)                             # norm_slots_ff_mlp
            h = jnp.dot(sn2, w1, preferred_element_type=jnp.float32) + b1
            if oh_rank is not None:
                # lane-dense LoRA: contract against the FULL table, mask the rank
                # block of the selected codebook entry, then project.  Exactly
                # equals factor * (sn2 @ A[idx]) @ B[idx].
                u1 = jnp.dot(sn2, a1t, preferred_element_type=jnp.float32) * oh_rank   # (S, C)
                h = h + jnp.dot(u1, b1t, preferred_element_type=jnp.float32)
            h = jnp.maximum(h, 0.0)
            out = jnp.dot(h, w2, preferred_element_type=jnp.float32) + b2
            if oh_rank is not None:
                u2 = jnp.dot(h, a2t, preferred_element_type=jnp.float32) * oh_rank     # (S, C)
                out = out + jnp.dot(u2, b2t, preferred_element_type=jnp.float32)
            slots = out + pre_ff
        return slots, attn_vis

    # ---- pass 1: unmodulated slot attention ----
    pre_slots, pre_attn = run_sa(cond, None)

    # ---- pool: nearest codebook entry (matmul distance form) ----
    cb = cb_ref[...]                                             # (E, D)
    xcb = jax.lax.dot_general(pre_slots, cb, (((1,), (1,)), ((), ())),
                              preferred_element_type=jnp.float32)          # (S, E)
    score = cbn_ref[...] - 2.0 * xcb                             # argmin of ||x-c||^2 (x^2 const)
    smin = jnp.min(score, axis=-1, keepdims=True)
    iota_e = jax.lax.broadcasted_iota(jnp.int32, (S, E), 1)
    idx = jnp.min(jnp.where(score <= smin, iota_e, E), axis=-1, keepdims=True)   # (S, 1)
    onehot = (iota_e == idx).astype(jnp.float32)                 # (S, E)
    quant = jnp.dot(onehot, cb, preferred_element_type=jnp.float32)
    # TODO(synk): pool class not provided; commit synthesized as per-slot MSE(x, codebook[idx]).
    commit = jnp.mean((quant - pre_slots) ** 2, axis=-1, keepdims=True)     # (S, 1)

    # expanded one-hot over the flattened (entry, rank) axis: marks idx[s]'s rank block
    iota_c = jax.lax.broadcasted_iota(jnp.int32, (S, C), 1)
    lo = idx * RANK
    oh_rank = jnp.logical_and(iota_c >= lo, iota_c < lo + RANK).astype(jnp.float32)  # (S, C)

    # ---- pass 2: LoRA-modulated slot attention ----
    slots, attn = run_sa(cond, oh_rank)

    # ---- spatial-broadcast MLP decoder, batched over slots*positions ----
    # TODO(synk): object_decoder is injected in the original code; synthesized here.
    pos = pos_ref[...]                                           # (P, D)
    wd1, bd1 = wd1_ref[...], bd1_ref[...]
    wd2a, bd2a = wd2a_ref[...], bd2a_ref[...]                    # fused [recon | alpha | pad] head

    def decode(sl):
        z = (sl[:, None, :] + pos[None, :, :]).reshape(S * P, D)             # (S*P, D)
        h = jnp.maximum(jnp.dot(z, wd1, preferred_element_type=jnp.float32) + bd1, 0.0)
        big = jnp.dot(h, wd2a, preferred_element_type=jnp.float32) + bd2a     # (S*P, 128)
        big3 = big.reshape(S, P, DEC_W)
        rec3 = big3[:, :, :F]                                                 # (S, P, F)
        al3 = big3[:, :, F:F + 1]                                             # (S, P, 1)
        mx = jnp.max(al3, axis=0, keepdims=True)                              # softmax over slots
        ex = jnp.exp(al3 - mx)
        w3 = ex * pl.reciprocal(jnp.sum(ex, axis=0, keepdims=True), approx=True)
        recon = jnp.sum(w3 * rec3, axis=0)                                    # (P, F)
        return recon, w3

    post_recon, post_m = decode(slots)
    pre_recon, pre_m = decode(pre_slots)

    # ---- write outputs (post in pair-slot 0, pre in pair-slot 1) ----
    slots_ref[0, 0] = slots
    slots_ref[0, 1] = pre_slots
    attn_ref[0, 0] = attn
    attn_ref[0, 1] = pre_attn
    recon_ref[0, 0] = post_recon
    recon_ref[0, 1] = pre_recon
    masks_ref[0, 0] = post_m
    masks_ref[0, 1] = pre_m
    idx_ref[0] = idx
    commit_ref[0] = commit


# --------------------------- full forward pass ---------------------------
def forward(params, feats, cond):
    p = params
    args = (feats, cond,
            p['gin'], p['bin'], p['wk'], p['wv'], p['wq'],
            p['gs'], p['bs'],
            p['wih'], p['whh'], p['bih'], p['bhh'],
            p['gf'], p['bf'], p['w1'], p['b1'], p['w2'], p['b2'],
            p['a1t'], p['b1t'], p['a2t'], p['b2t'],
            p['cb'], p['cbn'],
            p['pos'], p['wd1'], p['bd1'], p['wd2a'], p['bd2a'])
    in_specs = [_bspec(feats.shape), _bspec(cond.shape)] + [_fspec(a.shape) for a in args[2:]]
    out_shape = (
        jax.ShapeDtypeStruct((B, 2, S, D), jnp.float32),      # slots (post, pre)
        jax.ShapeDtypeStruct((B, 2, S, N), jnp.float32),      # attention (post, pre)
        jax.ShapeDtypeStruct((B, 2, P, F), jnp.float32),      # decoder recon (post, pre)
        jax.ShapeDtypeStruct((B, 2, S, P, 1), jnp.float32),   # decoder masks (post, pre)
        jax.ShapeDtypeStruct((B, S, 1), jnp.int32),           # pool indices
        jax.ShapeDtypeStruct((B, S, 1), jnp.float32),         # commit (per slot)
    )
    out_specs = tuple(_bspec(o.shape) for o in out_shape)
    outs = pl.pallas_call(
        _fused_kernel,
        grid=(B,),
        in_specs=in_specs,
        out_specs=out_specs,
        out_shape=out_shape,
        compiler_params=pltpu.CompilerParams(dimension_semantics=("parallel",)),
    )(*args)

    slots_pair, attn_pair, recon_pair, masks_pair, idx_o, commit_o = outs
    slots, pre_slots = slots_pair[:, 0], slots_pair[:, 1]
    attn, pre_attn = attn_pair[:, 0], attn_pair[:, 1]
    post_recon, pre_recon = recon_pair[:, 0], recon_pair[:, 1]
    post_masks, pre_masks = masks_pair[:, 0, :, :, 0], masks_pair[:, 1, :, :, 0]
    idx = idx_o[:, :, 0]
    commit = commit_o[:, :, 0]

    return {
        'slots': slots,
        'dec_to_train_recon': post_recon,
        'object_decoder_recon': post_recon,
        'object_decoder_masks': post_masks,           # (B, S, P) slot-major masks
        'pre_object_decoder_recon': pre_recon,
        'pre_object_decoder_masks': pre_masks,
        'feature_attributions': attn,
        'pool_indices': idx,
        'pool_logit': idx,                            # use_gumbel=False -> logits == indices
        'commit_loss': jnp.sum(commit),
        'pre_slots': pre_slots,
        'pre_attn': pre_attn,
        'gumbel_temp': jnp.float32(1.0),
    }


# ------------------------- deterministic parameters ----------------------
def init_params(key):
    ks = jax.random.split(key, 18)

    def nrm(k, shape, s):
        return jax.random.normal(k, shape, jnp.float32) * s

    p = {}
    p['gin'] = jnp.ones((1, F), jnp.float32); p['bin'] = jnp.zeros((1, F), jnp.float32)
    p['wk'] = nrm(ks[0], (F, KVQ), F ** -0.5)
    p['wv'] = nrm(ks[1], (F, KVQ), F ** -0.5)
    p['wq'] = nrm(ks[2], (D, KVQ), D ** -0.5)
    p['gs'] = jnp.ones((1, D), jnp.float32); p['bs'] = jnp.zeros((1, D), jnp.float32)
    p['wih'] = nrm(ks[3], (KVQ, 3 * D), KVQ ** -0.5)
    p['whh'] = nrm(ks[4], (D, 3 * D), D ** -0.5)
    p['bih'] = nrm(ks[5], (1, 3 * D), 0.01)
    p['bhh'] = nrm(ks[6], (1, 3 * D), 0.01)
    p['gf'] = jnp.ones((1, D), jnp.float32); p['bf'] = jnp.zeros((1, D), jnp.float32)
    p['w1'] = nrm(ks[7], (D, HID), D ** -0.5); p['b1'] = jnp.zeros((1, HID), jnp.float32)
    p['w2'] = nrm(ks[8], (HID, D), HID ** -0.5); p['b2'] = jnp.zeros((1, D), jnp.float32)

    # LoRA tables in "natural" AdaLoRA layout, packed for in-kernel one-hot selection:
    #   a1t[d, e*R + r] = A1[e, d, r];  b1t[e*R + r, h] = B1[e, r, h] * scale/rank
    A1 = nrm(ks[9], (E, D, RANK), 0.05)      # f_lora1.A
    B1 = nrm(ks[10], (E, RANK, HID), 0.05)   # f_lora1.B
    A2 = nrm(ks[11], (E, HID, RANK), 0.05)   # f_lora2.A
    B2 = nrm(ks[12], (E, RANK, D), 0.05)     # f_lora2.B
    p['a1t'] = jnp.transpose(A1, (1, 0, 2)).reshape(D, C)
    p['b1t'] = B1.reshape(C, HID) * LORA_FACTOR
    p['a2t'] = jnp.transpose(A2, (1, 0, 2)).reshape(HID, C)
    p['b2t'] = B2.reshape(C, D) * LORA_FACTOR

    cb = nrm(ks[13], (E, D), 1.0)
    p['cb'] = cb
    p['cbn'] = jnp.sum(cb * cb, axis=-1)[None, :]       # (1, E) precomputed codebook sq-norms

    # Synthesized spatial-broadcast MLP decoder; recon + alpha heads fused, lane-padded to 128.
    p['pos'] = nrm(ks[14], (P, D), 0.1)
    p['wd1'] = nrm(ks[15], (D, HD), D ** -0.5); p['bd1'] = jnp.zeros((1, HD), jnp.float32)
    wd2 = nrm(ks[16], (HD, F), HD ** -0.5)
    wda = nrm(ks[17], (HD, 1), HD ** -0.5)
    wd2a = jnp.zeros((HD, DEC_W), jnp.float32)
    wd2a = wd2a.at[:, :F].set(wd2).at[:, F].set(wda[:, 0])
    p['wd2a'] = wd2a
    p['bd2a'] = jnp.zeros((1, DEC_W), jnp.float32)
    return p


if __name__ == "__main__":
    key = jax.random.PRNGKey(0)
    kp, kf, kc = jax.random.split(key, 3)
    params = init_params(kp)
    feats = jax.random.normal(kf, (B, N, F), jnp.float32)        # feature.features
    cond = jax.random.normal(kc, (B, S, D), jnp.float32)         # conditioning (initial slots)

    out = jax.jit(forward)(params, feats, cond)
    jax.block_until_ready(out)

    assert out['slots'].shape == (B, S, D)
    assert out['pre_slots'].shape == (B, S, D)
    assert out['feature_attributions'].shape == (B, S, N)
    assert out['pool_indices'].shape == (B, S)
    assert out['dec_to_train_recon'].shape == (B, P, F)
    assert out['object_decoder_masks'].shape == (B, S, P)
    assert bool(jnp.all(jnp.isfinite(out['slots'])))
    print("KERNEL_OK")
</pallas_src>

<mosaic_0001>
module attributes {stable_mosaic.version = 11 : i64} {
  func.func @_fused_kernel(%arg0: i32, %arg1: memref<1x16x32xf32, #tpu.memory_space<vmem>>, %arg2: memref<1x8x32xf32, #tpu.memory_space<vmem>>, %arg3: memref<1x32xf32, #tpu.memory_space<vmem>>, %arg4: memref<1x32xf32, #tpu.memory_space<vmem>>, %arg5: memref<32x32xf32, #tpu.memory_space<vmem>>, %arg6: memref<32x32xf32, #tpu.memory_space<vmem>>, %arg7: memref<32x32xf32, #tpu.memory_space<vmem>>, %arg8: memref<1x32xf32, #tpu.memory_space<vmem>>, %arg9: memref<1x32xf32, #tpu.memory_space<vmem>>, %arg10: memref<32x96xf32, #tpu.memory_space<vmem>>, %arg11: memref<32x96xf32, #tpu.memory_space<vmem>>, %arg12: memref<1x96xf32, #tpu.memory_space<vmem>>, %arg13: memref<1x96xf32, #tpu.memory_space<vmem>>, %arg14: memref<1x32xf32, #tpu.memory_space<vmem>>, %arg15: memref<1x32xf32, #tpu.memory_space<vmem>>, %arg16: memref<32x128xf32, #tpu.memory_space<vmem>>, %arg17: memref<1x128xf32, #tpu.memory_space<vmem>>, %arg18: memref<128x32xf32, #tpu.memory_space<vmem>>, %arg19: memref<1x32xf32, #tpu.memory_space<vmem>>, %arg20: memref<32x128xf32, #tpu.memory_space<vmem>>, %arg21: memref<128x128xf32, #tpu.memory_space<vmem>>, %arg22: memref<128x128xf32, #tpu.memory_space<vmem>>, %arg23: memref<128x32xf32, #tpu.memory_space<vmem>>, %arg24: memref<16x32xf32, #tpu.memory_space<vmem>>, %arg25: memref<1x16xf32, #tpu.memory_space<vmem>>, %arg26: memref<16x32xf32, #tpu.memory_space<vmem>>, %arg27: memref<32x64xf32, #tpu.memory_space<vmem>>, %arg28: memref<1x64xf32, #tpu.memory_space<vmem>>, %arg29: memref<64x128xf32, #tpu.memory_space<vmem>>, %arg30: memref<1x128xf32, #tpu.memory_space<vmem>>, %arg31: memref<1x2x8x32xf32, #tpu.memory_space<vmem>>, %arg32: memref<1x2x8x16xf32, #tpu.memory_space<vmem>>, %arg33: memref<1x2x16x32xf32, #tpu.memory_space<vmem>>, %arg34: memref<1x2x8x16x1xf32, #tpu.memory_space<vmem>>, %arg35: memref<1x8x1xi32, #tpu.memory_space<vmem>>, %arg36: memref<1x8x1xf32, #tpu.memory_space<vmem>>) attributes {dimension_semantics = [#tpu.dimension_semantics<parallel>], iteration_bounds = array<i64: 2>, scalar_prefetch = 0 : i64, scratch_operands = 0 : i64, tpu.core_type = #tpu.core_type<tc>, window_params = [{transform_indices = @transform_0, window_bounds = array<i64: 1, 16, 32>}, {transform_indices = @transform_1, window_bounds = array<i64: 1, 8, 32>}, {pipeline_mode = #tpu.pipeline_mode<synchronous>, transform_indices = @transform_2, window_bounds = array<i64: 1, 32>}, {pipeline_mode = #tpu.pipeline_mode<synchronous>, transform_indices = @transform_3, window_bounds = array<i64: 1, 32>}, {pipeline_mode = #tpu.pipeline_mode<synchronous>, transform_indices = @transform_4, window_bounds = array<i64: 32, 32>}, {pipeline_mode = #tpu.pipeline_mode<synchronous>, transform_indices = @transform_5, window_bounds = array<i64: 32, 32>}, {pipeline_mode = #tpu.pipeline_mode<synchronous>, transform_indices = @transform_6, window_bounds = array<i64: 32, 32>}, {pipeline_mode = #tpu.pipeline_mode<synchronous>, transform_indices = @transform_7, window_bounds = array<i64: 1, 32>}, {pipeline_mode = #tpu.pipeline_mode<synchronous>, transform_indices = @transform_8, window_bounds = array<i64: 1, 32>}, {pipeline_mode = #tpu.pipeline_mode<synchronous>, transform_indices = @transform_9, window_bounds = array<i64: 32, 96>}, {pipeline_mode = #tpu.pipeline_mode<synchronous>, transform_indices = @transform_10, window_bounds = array<i64: 32, 96>}, {pipeline_mode = #tpu.pipeline_mode<synchronous>, transform_indices = @transform_11, window_bounds = array<i64: 1, 96>}, {pipeline_mode = #tpu.pipeline_mode<synchronous>, transform_indices = @transform_12, window_bounds = array<i64: 1, 96>}, {pipeline_mode = #tpu.pipeline_mode<synchronous>, transform_indices = @transform_13, window_bounds = array<i64: 1, 32>}, {pipeline_mode = #tpu.pipeline_mode<synchronous>, transform_indices = @transform_14, window_bounds = array<i64: 1, 32>}, {pipeline_mode = #tpu.pipeline_mode<synchronous>, transform_indices = @transform_15, window_bounds = array<i64: 32, 128>}, {pipeline_mode = #tpu.pipeline_mode<synchronous>, transform_indices = @transform_16, window_bounds = array<i64: 1, 128>}, {pipeline_mode = #tpu.pipeline_mode<synchronous>, transform_indices = @transform_17, window_bounds = array<i64: 128, 32>}, {pipeline_mode = #tpu.pipeline_mode<synchronous>, transform_indices = @transform_18, window_bounds = array<i64: 1, 32>}, {pipeline_mode = #tpu.pipeline_mode<synchronous>, transform_indices = @transform_19, window_bounds = array<i64: 32, 128>}, {pipeline_mode = #tpu.pipeline_mode<synchronous>, transform_indices = @transform_20, window_bounds = array<i64: 128, 128>}, {pipeline_mode = #tpu.pipeline_mode<synchronous>, transform_indices = @transform_21, window_bounds = array<i64: 128, 128>}, {pipeline_mode = #tpu.pipeline_mode<synchronous>, transform_indices = @transform_22, window_bounds = array<i64: 128, 32>}, {pipeline_mode = #tpu.pipeline_mode<synchronous>, transform_indices = @transform_23, window_bounds = array<i64: 16, 32>}, {pipeline_mode = #tpu.pipeline_mode<synchronous>, transform_indices = @transform_24, window_bounds = array<i64: 1, 16>}, {pipeline_mode = #tpu.pipeline_mode<synchronous>, transform_indices = @transform_25, window_bounds = array<i64: 16, 32>}, {pipeline_mode = #tpu.pipeline_mode<synchronous>, transform_indices = @transform_26, window_bounds = array<i64: 32, 64>}, {pipeline_mode = #tpu.pipeline_mode<synchronous>, transform_indices = @transform_27, window_bounds = array<i64: 1, 64>}, {pipeline_mode = #tpu.pipeline_mode<synchronous>, transform_indices = @transform_28, window_bounds = array<i64: 64, 128>}, {pipeline_mode = #tpu.pipeline_mode<synchronous>, transform_indices = @transform_29, window_bounds = array<i64: 1, 128>}, {transform_indices = @transform_30, window_bounds = array<i64: 1, 2, 8, 32>}, {transform_indices = @transform_31, window_bounds = array<i64: 1, 2, 8, 16>}, {transform_indices = @transform_32, window_bounds = array<i64: 1, 2, 16, 32>}, {transform_indices = @transform_33, window_bounds = array<i64: 1, 2, 8, 16, 1>}, {transform_indices = @transform_34, window_bounds = array<i64: 1, 8, 1>}, {transform_indices = @transform_35, window_bounds = array<i64: 1, 8, 1>}]} {
    %c0 = arith.constant 0 : index
    %c0_0 = arith.constant 0 : index
    %c0_1 = arith.constant 0 : index
    %0 = vector.load %arg1[%c0, %c0_0, %c0_1] : memref<1x16x32xf32, #tpu.memory_space<vmem>>, vector<1x16x32xf32>
    %1 = vector.shape_cast %0 : vector<1x16x32xf32> to vector<16x32xf32>
    %c0_2 = arith.constant 0 : index
    %c0_3 = arith.constant 0 : index
    %2 = vector.load %arg3[%c0_2, %c0_3] : memref<1x32xf32, #tpu.memory_space<vmem>>, vector<1x32xf32>
    %c0_4 = arith.constant 0 : index
    %c0_5 = arith.constant 0 : index
    %3 = vector.load %arg4[%c0_4, %c0_5] : memref<1x32xf32, #tpu.memory_space<vmem>>, vector<1x32xf32>
    %cst = arith.constant dense<0.000000e+00> : vector<16xf32>
    %4 = vector.multi_reduction <add>, %1, %cst [1] : vector<16x32xf32> to vector<16xf32>
    %5 = vector.shape_cast %4 : vector<16xf32> to vector<16x1xf32>
    %cst_6 = arith.constant 3.200000e+01 : f32
    %6 = vector.broadcast %cst_6 : f32 to vector<16x1xf32>
    %7 = arith.divf %5, %6 : vector<16x1xf32>
    %8 = vector.broadcast %7 : vector<16x1xf32> to vector<16x32xf32>
    %9 = arith.subf %1, %8 : vector<16x32xf32>
    %10 = arith.mulf %9, %9 : vector<16x32xf32>
    %cst_7 = arith.constant dense<0.000000e+00> : vector<16xf32>
    %11 = vector.multi_reduction <add>, %10, %cst_7 [1] : vector<16x32xf32> to vector<16xf32>
    %12 = vector.shape_cast %11 : vector<16xf32> to vector<16x1xf32>
    %cst_8 = arith.constant 3.200000e+01 : f32
    %13 = vector.broadcast %cst_8 : f32 to vector<16x1xf32>
    %14 = arith.divf %12, %13 : vector<16x1xf32>
    %15 = vector.broadcast %7 : vector<16x1xf32> to vector<16x32xf32>
    %16 = arith.subf %1, %15 : vector<16x32xf32>
    %cst_9 = arith.constant 9.99999974E-6 : f32
    %17 = vector.broadcast %cst_9 : f32 to vector<16x1xf32>
    %18 = arith.addf %14, %17 : vector<16x1xf32>
    %19 = math.rsqrt %18 : vector<16x1xf32>
    %20 = vector.broadcast %19 : vector<16x1xf32> to vector<16x32xf32>
    %21 = arith.mulf %16, %20 : vector<16x32xf32>
    %22 = vector.broadcast %2 : vector<1x32xf32> to vector<16x32xf32>
    %23 = arith.mulf %21, %22 : vector<16x32xf32>
    %24 = vector.broadcast %3 : vector<1x32xf32> to vector<16x32xf32>
    %25 = arith.addf %23, %24 : vector<16x32xf32>
    %c0_10 = arith.constant 0 : index
    %c0_11 = arith.constant 0 : index
    %26 = vector.load %arg5[%c0_10, %c0_11] : memref<32x32xf32, #tpu.memory_space<vmem>>, vector<32x32xf32>
    %cst_12 = arith.constant dense<0.000000e+00> : vector<16x32xf32>
    %27 = tpu.matmul %25, %26, %cst_12 {dimension_numbers = #tpu.dot_dimension_numbers<[1], [0], [0], [1], [0, 0, 1, 1], [], []>} : vector<16x32xf32>, vector<32x32xf32>, vector<16x32xf32> -> vector<16x32xf32>
    %c0_13 = arith.constant 0 : index
    %c0_14 = arith.constant 0 : index
    %28 = vector.load %arg6[%c0_13, %c0_14] : memref<32x32xf32, #tpu.memory_space<vmem>>, vector<32x32xf32>
    %cst_15 = arith.constant dense<0.000000e+00> : vector<16x32xf32>
    %29 = tpu.matmul %25, %28, %cst_15 {dimension_numbers = #tpu.dot_dimension_numbers<[1], [0], [0], [1], [0, 0, 1, 1], [], []>} : vector<16x32xf32>, vector<32x32xf32>, vector<16x32xf32> -> vector<16x32xf32>
    %c0_16 = arith.constant 0 : index
    %c0_17 = arith.constant 0 : index
    %c0_18 = arith.constant 0 : index
    %30 = vector.load %arg2[%c0_16, %c0_17, %c0_18] : memref<1x8x32xf32, #tpu.memory_space<vmem>>, vector<1x8x32xf32>
    %31 = vector.shape_cast %30 : vector<1x8x32xf32> to vector<8x32xf32>
    %c0_19 = arith.constant 0 : index
    %c0_20 = arith.constant 0 : index
    %32 = vector.load %arg8[%c0_19, %c0_20] : memref<1x32xf32, #tpu.memory_space<vmem>>, vector<1x32xf32>
    %c0_21 = arith.constant 0 : index
    %c0_22 = arith.constant 0 : index
    %33 = vector.load %arg9[%c0_21, %c0_22] : memref<1x32xf32, #tpu.memory_space<vmem>>, vector<1x32xf32>
    %c0_23 = arith.constant 0 : index
    %c0_24 = arith.constant 0 : index
    %34 = vector.load %arg7[%c0_23, %c0_24] : memref<32x32xf32, #tpu.memory_space<vmem>>, vector<32x32xf32>
    %c0_25 = arith.constant 0 : index
    %c0_26 = arith.constant 0 : index
    %35 = vector.load %arg10[%c0_25, %c0_26] : memref<32x96xf32, #tpu.memory_space<vmem>>, vector<32x96xf32>
    %c0_27 = arith.constant 0 : index
    %c0_28 = arith.constant 0 : index
    %36 = vector.load %arg11[%c0_27, %c0_28] : memref<32x96xf32, #tpu.memory_space<vmem>>, vector<32x96xf32>
    %c0_29 = arith.constant 0 : index
    %c0_30 = arith.constant 0 : index
    %37 = vector.load %arg12[%c0_29, %c0_30] : memref<1x96xf32, #tpu.memory_space<vmem>>, vector<1x96xf32>
    %c0_31 = arith.constant 0 : index
    %c0_32 = arith.constant 0 : index
    %38 = vector.load %arg13[%c0_31, %c0_32] : memref<1x96xf32, #tpu.memory_space<vmem>>, vector<1x96xf32>
    %c0_33 = arith.constant 0 : index
    %c0_34 = arith.constant 0 : index
    %39 = vector.load %arg14[%c0_33, %c0_34] : memref<1x32xf32, #tpu.memory_space<vmem>>, vector<1x32xf32>
    %c0_35 = arith.constant 0 : index
    %c0_36 = arith.constant 0 : index
    %40 = vector.load %arg15[%c0_35, %c0_36] : memref<1x32xf32, #tpu.memory_space<vmem>>, vector<1x32xf32>
    %c0_37 = arith.constant 0 : index
    %c0_38 = arith.constant 0 : index
    %41 = vector.load %arg16[%c0_37, %c0_38] : memref<32x128xf32, #tpu.memory_space<vmem>>, vector<32x128xf32>
    %c0_39 = arith.constant 0 : index
    %c0_40 = arith.constant 0 : index
    %42 = vector.load %arg17[%c0_39, %c0_40] : memref<1x128xf32, #tpu.memory_space<vmem>>, vector<1x128xf32>
    %c0_41 = arith.constant 0 : index
    %c0_42 = arith.constant 0 : index
    %43 = vector.load %arg18[%c0_41, %c0_42] : memref<128x32xf32, #tpu.memory_space<vmem>>, vector<128x32xf32>
    %c0_43 = arith.constant 0 : index
    %c0_44 = arith.constant 0 : index
    %44 = vector.load %arg19[%c0_43, %c0_44] : memref<1x32xf32, #tpu.memory_space<vmem>>, vector<1x32xf32>
    %c0_45 = arith.constant 0 : index
    %c0_46 = arith.constant 0 : index
    %45 = vector.load %arg20[%c0_45, %c0_46] : memref<32x128xf32, #tpu.memory_space<vmem>>, vector<32x128xf32>
    %c0_47 = arith.constant 0 : index
    %c0_48 = arith.constant 0 : index
    %46 = vector.load %arg21[%c0_47, %c0_48] : memref<128x128xf32, #tpu.memory_space<vmem>>, vector<128x128xf32>
    %c0_49 = arith.constant 0 : index
    %c0_50 = arith.constant 0 : index
    %47 = vector.load %arg22[%c0_49, %c0_50] : memref<128x128xf32, #tpu.memory_space<vmem>>, vector<128x128xf32>
    %c0_51 = arith.constant 0 : index
    %c0_52 = arith.constant 0 : index
    %48 = vector.load %arg23[%c0_51, %c0_52] : memref<128x32xf32, #tpu.memory_space<vmem>>, vector<128x32xf32>
    %cst_53 = arith.constant dense<0.000000e+00> : vector<8xf32>
    %49 = vector.multi_reduction <add>, %31, %cst_53 [1] : vector<8x32xf32> to vector<8xf32>
    %50 = vector.shape_cast %49 : vector<8xf32> to vector<8x1xf32>
    %cst_54 = arith.constant 3.200000e+01 : f32
    %51 = vector.broadcast %cst_54 : f32 to vector<8x1xf32>
    %52 = arith.divf %50, %51 : vector<8x1xf32>
    %53 = vector.broadcast %52 : vector<8x1xf32> to vector<8x32xf32>
    %54 = arith.subf %31, %53 : vector<8x32xf32>
    %55 = arith.mulf %54, %54 : vector<8x32xf32>
    %cst_55 = arith.constant dense<0.000000e+00> : vector<8xf32>
    %56 = vector.multi_reduction <add>, %55, %cst_55 [1] : vector<8x32xf32> to vector<8xf32>
    %57 = vector.shape_cast %56 : vector<8xf32> to vector<8x1xf32>
    %cst_56 = arith.constant 3.200000e+01 : f32
    %58 = vector.broadcast %cst_56 : f32 to vector<8x1xf32>
    %59 = arith.divf %57, %58 : vector<8x1xf32>
    %60 = vector.broadcast %52 : vector<8x1xf32> to vector<8x32xf32>
    %61 = arith.subf %31, %60 : vector<8x32xf32>
    %cst_57 = arith.constant 9.99999974E-6 : f32
    %62 = vector.broadcast %cst_57 : f32 to vector<8x1xf32>
    %63 = arith.addf %59, %62 : vector<8x1xf32>
    %64 = math.rsqrt %63 : vector<8x1xf32>
    %65 = vector.broadcast %64 : vector<8x1xf32> to vector<8x32xf32>
    %66 = arith.mulf %61, %65 : vector<8x32xf32>
    %67 = vector.broadcast %32 : vector<1x32xf32> to vector<8x32xf32>
    %68 = arith.mulf %66, %67 : vector<8x32xf32>
    %69 = vector.broadcast %33 : vector<1x32xf32> to vector<8x32xf32>
    %70 = arith.addf %68, %69 : vector<8x32xf32>
    %cst_58 = arith.constant dense<0.000000e+00> : vector<8x32xf32>
    %71 = tpu.matmul %70, %34, %cst_58 {dimension_numbers = #tpu.dot_dimension_numbers<[1], [0], [0], [1], [0, 0, 1, 1], [], []>} : vector<8x32xf32>, vector<32x32xf32>, vector<8x32xf32> -> vector<8x32xf32>
    %cst_59 = arith.constant dense<0.000000e+00> : vector<8x16xf32>
    %72 = tpu.matmul %71, %27, %cst_59 {dimension_numbers = #tpu.dot_dimension_numbers<[1], [1], [0], [0], [0, 0, 1, 0], [], []>} : vector<8x32xf32>, vector<16x32xf32>, vector<8x16xf32> -> vector<8x16xf32>
    %cst_60 = arith.constant 0.176776692 : f32
    %73 = vector.broadcast %cst_60 : f32 to vector<8x16xf32>
    %74 = arith.mulf %72, %73 : vector<8x16xf32>
    %cst_61 = arith.constant dense<0xFF800000> : vector<16xf32>
    %75 = vector.multi_reduction <maximumf>, %74, %cst_61 [0] : vector<8x16xf32> to vector<16xf32>
    %76 = vector.shape_cast %75 : vector<16xf32> to vector<1x16xf32>
    %77 = vector.broadcast %76 : vector<1x16xf32> to vector<8x16xf32>
    %78 = arith.subf %74, %77 : vector<8x16xf32>
    %79 = math.exp %78 : vector<8x16xf32>
    %cst_62 = arith.constant dense<0.000000e+00> : vector<16xf32>
    %80 = vector.multi_reduction <add>, %79, %cst_62 [0] : vector<8x16xf32> to vector<16xf32>
    %81 = vector.shape_cast %80 : vector<16xf32> to vector<1x16xf32>
    %82 = tpu.reciprocal %81 {approx = true} : vector<1x16xf32> -> vector<1x16xf32>
    %83 = vector.broadcast %82 : vector<1x16xf32> to vector<8x16xf32>
    %84 = arith.mulf %79, %83 : vector<8x16xf32>
    %cst_63 = arith.constant 9.99999993E-9 : f32
    %85 = vector.broadcast %cst_63 : f32 to vector<8x16xf32>
    %86 = arith.addf %84, %85 : vector<8x16xf32>
    %cst_64 = arith.constant dense<0.000000e+00> : vector<8xf32>
    %87 = vector.multi_reduction <add>, %86, %cst_64 [1] : vector<8x16xf32> to vector<8xf32>
    %88 = vector.shape_cast %87 : vector<8xf32> to vector<8x1xf32>
    %89 = tpu.reciprocal %88 {approx = true} : vector<8x1xf32> -> vector<8x1xf32>
    %90 = vector.broadcast %89 : vector<8x1xf32> to vector<8x16xf32>
    %91 = arith.mulf %86, %90 : vector<8x16xf32>
    %cst_65 = arith.constant dense<0.000000e+00> : vector<8x32xf32>
    %92 = tpu.matmul %91, %29, %cst_65 {dimension_numbers = #tpu.dot_dimension_numbers<[1], [0], [0], [1], [0, 0, 1, 1], [], []>} : vector<8x16xf32>, vector<16x32xf32>, vector<8x32xf32> -> vector<8x32xf32>
    %cst_66 = arith.constant dense<0.000000e+00> : vector<8x96xf32>
    %93 = tpu.matmul %92, %35, %cst_66 {dimension_numbers = #tpu.dot_dimension_numbers<[1], [0], [0], [1], [0, 0, 1, 1], [], []>} : vector<8x32xf32>, vector<32x96xf32>, vector<8x96xf32> -> vector<8x96xf32>
    %94 = vector.broadcast %37 : vector<1x96xf32> to vector<8x96xf32>
    %95 = arith.addf %93, %94 : vector<8x96xf32>
    %cst_67 = arith.constant dense<0.000000e+00> : vector<8x96xf32>
    %96 = tpu.matmul %31, %36, %cst_67 {dimension_numbers = #tpu.dot_dimension_numbers<[1], [0], [0], [1], [0, 0, 1, 1], [], []>} : vector<8x32xf32>, vector<32x96xf32>, vector<8x96xf32> -> vector<8x96xf32>
    %97 = vector.broadcast %38 : vector<1x96xf32> to vector<8x96xf32>
    %98 = arith.addf %96, %97 : vector<8x96xf32>
    %99 = vector.extract_strided_slice %95 {offsets = [0, 0], sizes = [8, 32], strides = [1, 1]} : vector<8x96xf32> to vector<8x32xf32>
    %100 = vector.extract_strided_slice %98 {offsets = [0, 0], sizes = [8, 32], strides = [1, 1]} : vector<8x96xf32> to vector<8x32xf32>
    %101 = arith.addf %99, %100 : vector<8x32xf32>
    %102 = arith.negf %101 : vector<8x32xf32>
    %103 = math.exp %102 : vector<8x32xf32>
    %cst_68 = arith.constant 1.000000e+00 : f32
    %104 = vector.broadcast %cst_68 : f32 to vector<8x32xf32>
    %105 = arith.addf %104, %103 : vector<8x32xf32>
    %106 = arith.divf %104, %105 : vector<8x32xf32>
    %107 = vector.extract_strided_slice %95 {offsets = [0, 32], sizes = [8, 32], strides = [1, 1]} : vector<8x96xf32> to vector<8x32xf32>
    %108 = vector.extract_strided_slice %98 {offsets = [0, 32], sizes = [8, 32], strides = [1, 1]} : vector<8x96xf32> to vector<8x32xf32>
    %109 = arith.addf %107, %108 : vector<8x32xf32>
    %110 = arith.negf %109 : vector<8x32xf32>
    %111 = math.exp %110 : vector<8x32xf32>
    %cst_69 = arith.constant 1.000000e+00 : f32
    %112 = vector.broadcast %cst_69 : f32 to vector<8x32xf32>
    %113 = arith.addf %112, %111 : vector<8x32xf32>
    %114 = arith.divf %112, %113 : vector<8x32xf32>
    %115 = vector.extract_strided_slice %95 {offsets = [0, 64], sizes = [8, 32], strides = [1, 1]} : vector<8x96xf32> to vector<8x32xf32>
    %116 = vector.extract_strided_slice %98 {offsets = [0, 64], sizes = [8, 32], strides = [1, 1]} : vector<8x96xf32> to vector<8x32xf32>
    %117 = arith.mulf %106, %116 : vector<8x32xf32>
    %118 = arith.addf %115, %117 : vector<8x32xf32>
    %119 = math.tanh %118 : vector<8x32xf32>
    %cst_70 = arith.constant 1.000000e+00 : f32
    %120 = vector.broadcast %cst_70 : f32 to vector<8x32xf32>
    %121 = arith.subf %120, %114 : vector<8x32xf32>
    %122 = arith.mulf %121, %119 : vector<8x32xf32>
    %123 = arith.mulf %114, %31 : vector<8x32xf32>
    %124 = arith.addf %122, %123 : vector<8x32xf32>
    %cst_71 = arith.constant dense<0.000000e+00> : vector<8xf32>
    %125 = vector.multi_reduction <add>, %124, %cst_71 [1] : vector<8x32xf32> to vector<8xf32>
    %126 = vector.shape_cast %125 : vector<8xf32> to vector<8x1xf32>
    %cst_72 = arith.constant 3.200000e+01 : f32
    %127 = vector.broadcast %cst_72 : f32 to vector<8x1xf32>
    %128 = arith.divf %126, %127 : vector<8x1xf32>
    %129 = vector.broadcast %128 : vector<8x1xf32> to vector<8x32xf32>
    %130 = arith.subf %124, %129 : vector<8x32xf32>
    %131 = arith.mulf %130, %130 : vector<8x32xf32>
    %cst_73 = arith.constant dense<0.000000e+00> : vector<8xf32>
    %132 = vector.multi_reduction <add>, %131, %cst_73 [1] : vector<8x32xf32> to vector<8xf32>
    %133 = vector.shape_cast %132 : vector<8xf32> to vector<8x1xf32>
    %cst_74 = arith.constant 3.200000e+01 : f32
    %134 = vector.broadcast %cst_74 : f32 to vector<8x1xf32>
    %135 = arith.divf %133, %134 : vector<8x1xf32>
    %136 = vector.broadcast %128 : vector<8x1xf32> to vector<8x32xf32>
    %137 = arith.subf %124, %136 : vector<8x32xf32>
    %cst_75 = arith.constant 9.99999974E-6 : f32
    %138 = vector.broadcast %cst_75 : f32 to vector<8x1xf32>
    %139 = arith.addf %135, %138 : vector<8x1xf32>
    %140 = math.rsqrt %139 : vector<8x1xf32>
    %141 = vector.broadcast %140 : vector<8x1xf32> to vector<8x32xf32>
    %142 = arith.mulf %137, %141 : vector<8x32xf32>
    %143 = vector.broadcast %39 : vector<1x32xf32> to vector<8x32xf32>
    %144 = arith.mulf %142, %143 : vector<8x32xf32>
    %145 = vector.broadcast %40 : vector<1x32xf32> to vector<8x32xf32>
    %146 = arith.addf %144, %145 : vector<8x32xf32>
    %cst_76 = arith.constant dense<0.000000e+00> : vector<8x128xf32>
    %147 = tpu.matmul %146, %41, %cst_76 {dimension_numbers = #tpu.dot_dimension_numbers<[1], [0], [0], [1], [0, 0, 1, 1], [], []>} : vector<8x32xf32>, vector<32x128xf32>, vector<8x128xf32> -> vector<8x128xf32>
    %148 = vector.broadcast %42 : vector<1x128xf32> to vector<8x128xf32>
    %149 = arith.addf %147, %148 : vector<8x128xf32>
    %cst_77 = arith.constant 0.000000e+00 : f32
    %150 = vector.broadcast %cst_77 : f32 to vector<8x128xf32>
    %151 = arith.maximumf %149, %150 : vector<8x128xf32>
    %cst_78 = arith.constant dense<0.000000e+00> : vector<8x32xf32>
    %152 = tpu.matmul %151, %43, %cst_78 {dimension_numbers = #tpu.dot_dimension_numbers<[1], [0], [0], [1], [0, 0, 1, 1], [], []>} : vector<8x128xf32>, vector<128x32xf32>, vector<8x32xf32> -> vector<8x32xf32>
    %153 = vector.broadcast %44 : vector<1x32xf32> to vector<8x32xf32>
    %154 = arith.addf %152, %153 : vector<8x32xf32>
    %155 = arith.addf %154, %124 : vector<8x32xf32>
    %cst_79 = arith.constant dense<0.000000e+00> : vector<8xf32>
    %156 = vector.multi_reduction <add>, %155, %cst_79 [1] : vector<8x32xf32> to vector<8xf32>
    %157 = vector.shape_cast %156 : vector<8xf32> to vector<8x1xf32>
    %cst_80 = arith.constant 3.200000e+01 : f32
    %158 = vector.broadcast %cst_80 : f32 to vector<8x1xf32>
    %159 = arith.divf %157, %158 : vector<8x1xf32>
    %160 = vector.broadcast %159 : vector<8x1xf32> to vector<8x32xf32>
    %161 = arith.subf %155, %160 : vector<8x32xf32>
    %162 = arith.mulf %161, %161 : vector<8x32xf32>
    %cst_81 = arith.constant dense<0.000000e+00> : vector<8xf32>
    %163 = vector.multi_reduction <add>, %162, %cst_81 [1] : vector<8x32xf32> to vector<8xf32>
    %164 = vector.shape_cast %163 : vector<8xf32> to vector<8x1xf32>
    %cst_82 = arith.constant 3.200000e+01 : f32
    %165 = vector.broadcast %cst_82 : f32 to vector<8x1xf32>
    %166 = arith.divf %164, %165 : vector<8x1xf32>
    %167 = vector.broadcast %159 : vector<8x1xf32> to vector<8x32xf32>
    %168 = arith.subf %155, %167 : vector<8x32xf32>
    %cst_83 = arith.constant 9.99999974E-6 : f32
    %169 = vector.broadcast %cst_83 : f32 to vector<8x1xf32>
    %170 = arith.addf %166, %169 : vector<8x1xf32>
    %171 = math.rsqrt %170 : vector<8x1xf32>
    %172 = vector.broadcast %171 : vector<8x1xf32> to vector<8x32xf32>
    %173 = arith.mulf %168, %172 : vector<8x32xf32>
    %174 = vector.broadcast %32 : vector<1x32xf32> to vector<8x32xf32>
    %175 = arith.mulf %173, %174 : vector<8x32xf32>
    %176 = vector.broadcast %33 : vector<1x32xf32> to vector<8x32xf32>
    %177 = arith.addf %175, %176 : vector<8x32xf32>
    %cst_84 = arith.constant dense<0.000000e+00> : vector<8x32xf32>
    %178 = tpu.matmul %177, %34, %cst_84 {dimension_numbers = #tpu.dot_dimension_numbers<[1], [0], [0], [1], [0, 0, 1, 1], [], []>} : vector<8x32xf32>, vector<32x32xf32>, vector<8x32xf32> -> vector<8x32xf32>
    %cst_85 = arith.constant dense<0.000000e+00> : vector<8x16xf32>
    %179 = tpu.matmul %178, %27, %cst_85 {dimension_numbers = #tpu.dot_dimension_numbers<[1], [1], [0], [0], [0, 0, 1, 0], [], []>} : vector<8x32xf32>, vector<16x32xf32>, vector<8x16xf32> -> vector<8x16xf32>
    %cst_86 = arith.constant 0.176776692 : f32
    %180 = vector.broadcast %cst_86 : f32 to vector<8x16xf32>
    %181 = arith.mulf %179, %180 : vector<8x16xf32>
    %cst_87 = arith.constant dense<0xFF800000> : vector<16xf32>
    %182 = vector.multi_reduction <maximumf>, %181, %cst_87 [0] : vector<8x16xf32> to vector<16xf32>
    %183 = vector.shape_cast %182 : vector<16xf32> to vector<1x16xf32>
    %184 = vector.broadcast %183 : vector<1x16xf32> to vector<8x16xf32>
    %185 = arith.subf %181, %184 : vector<8x16xf32>
    %186 = math.exp %185 : vector<8x16xf32>
    %cst_88 = arith.constant dense<0.000000e+00> : vector<16xf32>
    %187 = vector.multi_reduction <add>, %186, %cst_88 [0] : vector<8x16xf32> to vector<16xf32>
    %188 = vector.shape_cast %187 : vector<16xf32> to vector<1x16xf32>
    %189 = tpu.reciprocal %188 {approx = true} : vector<1x16xf32> -> vector<1x16xf32>
    %190 = vector.broadcast %189 : vector<1x16xf32> to vector<8x16xf32>
    %191 = arith.mulf %186, %190 : vector<8x16xf32>
    %cst_89 = arith.constant 9.99999993E-9 : f32
    %192 = vector.broadcast %cst_89 : f32 to vector<8x16xf32>
    %193 = arith.addf %191, %192 : vector<8x16xf32>
    %cst_90 = arith.constant dense<0.000000e+00> : vector<8xf32>
    %194 = vector.multi_reduction <add>, %193, %cst_90 [1] : vector<8x16xf32> to vector<8xf32>
    %195 = vector.shape_cast %194 : vector<8xf32> to vector<8x1xf32>
    %196 = tpu.reciprocal %195 {approx = true} : vector<8x1xf32> -> vector<8x1xf32>
    %197 = vector.broadcast %196 : vector<8x1xf32> to vector<8x16xf32>
    %198 = arith.mulf %193, %197 : vector<8x16xf32>
    %cst_91 = arith.constant dense<0.000000e+00> : vector<8x32xf32>
    %199 = tpu.matmul %198, %29, %cst_91 {dimension_numbers = #tpu.dot_dimension_numbers<[1], [0], [0], [1], [0, 0, 1, 1], [], []>} : vector<8x16xf32>, vector<16x32xf32>, vector<8x32xf32> -> vector<8x32xf32>
    %cst_92 = arith.constant dense<0.000000e+00> : vector<8x96xf32>
    %200 = tpu.matmul %199, %35, %cst_92 {dimension_numbers = #tpu.dot_dimension_numbers<[1], [0], [0], [1], [0, 0, 1, 1], [], []>} : vector<8x32xf32>, vector<32x96xf32>, vector<8x96xf32> -> vector<8x96xf32>
    %201 = vector.broadcast %37 : vector<1x96xf32> to vector<8x96xf32>
    %202 = arith.addf %200, %201 : vector<8x96xf32>
    %cst_93 = arith.constant dense<0.000000e+00> : vector<8x96xf32>
    %203 = tpu.matmul %155, %36, %cst_93 {dimension_numbers = #tpu.dot_dimension_numbers<[1], [0], [0], [1], [0, 0, 1, 1], [], []>} : vector<8x32xf32>, vector<32x96xf32>, vector<8x96xf32> -> vector<8x96xf32>
    %204 = vector.broadcast %38 : vector<1x96xf32> to vector<8x96xf32>
    %205 = arith.addf %203, %204 : vector<8x96xf32>
    %206 = vector.extract_strided_slice %202 {offsets = [0, 0], sizes = [8, 32], strides = [1, 1]} : vector<8x96xf32> to vector<8x32xf32>
    %207 = vector.extract_strided_slice %205 {offsets = [0, 0], sizes = [8, 32], strides = [1, 1]} : vector<8x96xf32> to vector<8x32xf32>
    %208 = arith.addf %206, %207 : vector<8x32xf32>
    %209 = arith.negf %208 : vector<8x32xf32>
    %210 = math.exp %209 : vector<8x32xf32>
    %cst_94 = arith.constant 1.000000e+00 : f32
    %211 = vector.broadcast %cst_94 : f32 to vector<8x32xf32>
    %212 = arith.addf %211, %210 : vector<8x32xf32>
    %213 = arith.divf %211, %212 : vector<8x32xf32>
    %214 = vector.extract_strided_slice %202 {offsets = [0, 32], sizes = [8, 32], strides = [1, 1]} : vector<8x96xf32> to vector<8x32xf32>
    %215 = vector.extract_strided_slice %205 {offsets = [0, 32], sizes = [8, 32], strides = [1, 1]} : vector<8x96xf32> to vector<8x32xf32>
    %216 = arith.addf %214, %215 : vector<8x32xf32>
    %217 = arith.negf %216 : vector<8x32xf32>
    %218 = math.exp %217 : vector<8x32xf32>
    %cst_95 = arith.constant 1.000000e+00 : f32
    %219 = vector.broadcast %cst_95 : f32 to vector<8x32xf32>
    %220 = arith.addf %219, %218 : vector<8x32xf32>
    %221 = arith.divf %219, %220 : vector<8x32xf32>
    %222 = vector.extract_strided_slice %202 {offsets = [0, 64], sizes = [8, 32], strides = [1, 1]} : vector<8x96xf32> to vector<8x32xf32>
    %223 = vector.extract_strided_slice %205 {offsets = [0, 64], sizes = [8, 32], strides = [1, 1]} : vector<8x96xf32> to vector<8x32xf32>
    %224 = arith.mulf %213, %223 : vector<8x32xf32>
    %225 = arith.addf %222, %224 : vector<8x32xf32>
    %226 = math.tanh %225 : vector<8x32xf32>
    %cst_96 = arith.constant 1.000000e+00 : f32
    %227 = vector.broadcast %cst_96 : f32 to vector<8x32xf32>
    %228 = arith.subf %227, %221 : vector<8x32xf32>
    %229 = arith.mulf %228, %226 : vector<8x32xf32>
    %230 = arith.mulf %221, %155 : vector<8x32xf32>
    %231 = arith.addf %229, %230 : vector<8x32xf32>
    %cst_97 = arith.constant dense<0.000000e+00> : vector<8xf32>
    %232 = vector.multi_reduction <add>, %231, %cst_97 [1] : vector<8x32xf32> to vector<8xf32>
    %233 = vector.shape_cast %232 : vector<8xf32> to vector<8x1xf32>
    %cst_98 = arith.constant 3.200000e+01 : f32
    %234 = vector.broadcast %cst_98 : f32 to vector<8x1xf32>
    %235 = arith.divf %233, %234 : vector<8x1xf32>
    %236 = vector.broadcast %235 : vector<8x1xf32> to vector<8x32xf32>
    %237 = arith.subf %231, %236 : vector<8x32xf32>
    %238 = arith.mulf %237, %237 : vector<8x32xf32>
    %cst_99 = arith.constant dense<0.000000e+00> : vector<8xf32>
    %239 = vector.multi_reduction <add>, %238, %cst_99 [1] : vector<8x32xf32> to vector<8xf32>
    %240 = vector.shape_cast %239 : vector<8xf32> to vector<8x1xf32>
    %cst_100 = arith.constant 3.200000e+01 : f32
    %241 = vector.broadcast %cst_100 : f32 to vector<8x1xf32>
    %242 = arith.divf %240, %241 : vector<8x1xf32>
    %243 = vector.broadcast %235 : vector<8x1xf32> to vector<8x32xf32>
    %244 = arith.subf %231, %243 : vector<8x32xf32>
    %cst_101 = arith.constant 9.99999974E-6 : f32
    %245 = vector.broadcast %cst_101 : f32 to vector<8x1xf32>
    %246 = arith.addf %242, %245 : vector<8x1xf32>
    %247 = math.rsqrt %246 : vector<8x1xf32>
    %248 = vector.broadcast %247 : vector<8x1xf32> to vector<8x32xf32>
    %249 = arith.mulf %244, %248 : vector<8x32xf32>
    %250 = vector.broadcast %39 : vector<1x32xf32> to vector<8x32xf32>
    %251 = arith.mulf %249, %250 : vector<8x32xf32>
    %252 = vector.broadcast %40 : vector<1x32xf32> to vector<8x32xf32>
    %253 = arith.addf %251, %252 : vector<8x32xf32>
    %cst_102 = arith.constant dense<0.000000e+00> : vector<8x128xf32>
    %254 = tpu.matmul %253, %41, %cst_102 {dimension_numbers = #tpu.dot_dimension_numbers<[1], [0], [0], [1], [0, 0, 1, 1], [], []>} : vector<8x32xf32>, vector<32x128xf32>, vector<8x128xf32> -> vector<8x128xf32>
    %255 = vector.broadcast %42 : vector<1x128xf32> to vector<8x128xf32>
    %256 = arith.addf %254, %255 : vector<8x128xf32>
    %cst_103 = arith.constant 0.000000e+00 : f32
    %257 = vector.broadcast %cst_103 : f32 to vector<8x128xf32>
    %258 = arith.maximumf %256, %257 : vector<8x128xf32>
    %cst_104 = arith.constant dense<0.000000e+00> : vector<8x32xf32>
    %259 = tpu.matmul %258, %43, %cst_104 {dimension_numbers = #tpu.dot_dimension_numbers<[1], [0], [0], [1], [0, 0, 1, 1], [], []>} : vector<8x128xf32>, vector<128x32xf32>, vector<8x32xf32> -> vector<8x32xf32>
    %260 = vector.broadcast %44 : vector<1x32xf32> to vector<8x32xf32>
    %261 = arith.addf %259, %260 : vector<8x32xf32>
    %262 = arith.addf %261, %231 : vector<8x32xf32>
    %cst_105 = arith.constant dense<0.000000e+00> : vector<8xf32>
    %263 = vector.multi_reduction <add>, %262, %cst_105 [1] : vector<8x32xf32> to vector<8xf32>
    %264 = vector.shape_cast %263 : vector<8xf32> to vector<8x1xf32>
    %cst_106 = arith.constant 3.200000e+01 : f32
    %265 = vector.broadcast %cst_106 : f32 to vector<8x1xf32>
    %266 = arith.divf %264, %265 : vector<8x1xf32>
    %267 = vector.broadcast %266 : vector<8x1xf32> to vector<8x32xf32>
    %268 = arith.subf %262, %267 : vector<8x32xf32>
    %269 = arith.mulf %268, %268 : vector<8x32xf32>
    %cst_107 = arith.constant dense<0.000000e+00> : vector<8xf32>
    %270 = vector.multi_reduction <add>, %269, %cst_107 [1] : vector<8x32xf32> to vector<8xf32>
    %271 = vector.shape_cast %270 : vector<8xf32> to vector<8x1xf32>
    %cst_108 = arith.constant 3.200000e+01 : f32
    %272 = vector.broadcast %cst_108 : f32 to vector<8x1xf32>
    %273 = arith.divf %271, %272 : vector<8x1xf32>
    %274 = vector.broadcast %266 : vector<8x1xf32> to vector<8x32xf32>
    %275 = arith.subf %262, %274 : vector<8x32xf32>
    %cst_109 = arith.constant 9.99999974E-6 : f32
    %276 = vector.broadcast %cst_109 : f32 to vector<8x1xf32>
    %277 = arith.addf %273, %276 : vector<8x1xf32>
    %278 = math.rsqrt %277 : vector<8x1xf32>
    %279 = vector.broadcast %278 : vector<8x1xf32> to vector<8x32xf32>
    %280 = arith.mulf %275, %279 : vector<8x32xf32>
    %281 = vector.broadcast %32 : vector<1x32xf32> to vector<8x32xf32>
    %282 = arith.mulf %280, %281 : vector<8x32xf32>
    %283 = vector.broadcast %33 : vector<1x32xf32> to vector<8x32xf32>
    %284 = arith.addf %282, %283 : vector<8x32xf32>
    %cst_110 = arith.constant dense<0.000000e+00> : vector<8x32xf32>
    %285 = tpu.matmul %284, %34, %cst_110 {dimension_numbers = #tpu.dot_dimension_numbers<[1], [0], [0], [1], [0, 0, 1, 1], [], []>} : vector<8x32xf32>, vector<32x32xf32>, vector<8x32xf32> -> vector<8x32xf32>
    %cst_111 = arith.constant dense<0.000000e+00> : vector<8x16xf32>
    %286 = tpu.matmul %285, %27, %cst_111 {dimension_numbers = #tpu.dot_dimension_numbers<[1], [1], [0], [0], [0, 0, 1, 0], [], []>} : vector<8x32xf32>, vector<16x32xf32>, vector<8x16xf32> -> vector<8x16xf32>
    %cst_112 = arith.constant 0.176776692 : f32
    %287 = vector.broadcast %cst_112 : f32 to vector<8x16xf32>
    %288 = arith.mulf %286, %287 : vector<8x16xf32>
    %cst_113 = arith.constant dense<0xFF800000> : vector<16xf32>
    %289 = vector.multi_reduction <maximumf>, %288, %cst_113 [0] : vector<8x16xf32> to vector<16xf32>
    %290 = vector.shape_cast %289 : vector<16xf32> to vector<1x16xf32>
    %291 = vector.broadcast %290 : vector<1x16xf32> to vector<8x16xf32>
    %292 = arith.subf %288, %291 : vector<8x16xf32>
    %293 = math.exp %292 : vector<8x16xf32>
    %cst_114 = arith.constant dense<0.000000e+00> : vector<16xf32>
    %294 = vector.multi_reduction <add>, %293, %cst_114 [0] : vector<8x16xf32> to vector<16xf32>
    %295 = vector.shape_cast %294 : vector<16xf32> to vector<1x16xf32>
    %296 = tpu.reciprocal %295 {approx = true} : vector<1x16xf32> -> vector<1x16xf32>
    %297 = vector.broadcast %296 : vector<1x16xf32> to vector<8x16xf32>
    %298 = arith.mulf %293, %297 : vector<8x16xf32>
    %cst_115 = arith.constant 9.99999993E-9 : f32
    %299 = vector.broadcast %cst_115 : f32 to vector<8x16xf32>
    %300 = arith.addf %298, %299 : vector<8x16xf32>
    %cst_116 = arith.constant dense<0.000000e+00> : vector<8xf32>
    %301 = vector.multi_reduction <add>, %300, %cst_116 [1] : vector<8x16xf32> to vector<8xf32>
    %302 = vector.shape_cast %301 : vector<8xf32> to vector<8x1xf32>
    %303 = tpu.reciprocal %302 {approx = true} : vector<8x1xf32> -> vector<8x1xf32>
    %304 = vector.broadcast %303 : vector<8x1xf32> to vector<8x16xf32>
    %305 = arith.mulf %300, %304 : vector<8x16xf32>
    %cst_117 = arith.constant dense<0.000000e+00> : vector<8x32xf32>
    %306 = tpu.matmul %305, %29, %cst_117 {dimension_numbers = #tpu.dot_dimension_numbers<[1], [0], [0], [1], [0, 0, 1, 1], [], []>} : vector<8x16xf32>, vector<16x32xf32>, vector<8x32xf32> -> vector<8x32xf32>
    %cst_118 = arith.constant dense<0.000000e+00> : vector<8x96xf32>
    %307 = tpu.matmul %306, %35, %cst_118 {dimension_numbers = #tpu.dot_dimension_numbers<[1], [0], [0], [1], [0, 0, 1, 1], [], []>} : vector<8x32xf32>, vector<32x96xf32>, vector<8x96xf32> -> vector<8x96xf32>
    %308 = vector.broadcast %37 : vector<1x96xf32> to vector<8x96xf32>
    %309 = arith.addf %307, %308 : vector<8x96xf32>
    %cst_119 = arith.constant dense<0.000000e+00> : vector<8x96xf32>
    %310 = tpu.matmul %262, %36, %cst_119 {dimension_numbers = #tpu.dot_dimension_numbers<[1], [0], [0], [1], [0, 0, 1, 1], [], []>} : vector<8x32xf32>, vector<32x96xf32>, vector<8x96xf32> -> vector<8x96xf32>
    %311 = vector.broadcast %38 : vector<1x96xf32> to vector<8x96xf32>
    %312 = arith.addf %310, %311 : vector<8x96xf32>
    %313 = vector.extract_strided_slice %309 {offsets = [0, 0], sizes = [8, 32], strides = [1, 1]} : vector<8x96xf32> to vector<8x32xf32>
    %314 = vector.extract_strided_slice %312 {offsets = [0, 0], sizes = [8, 32], strides = [1, 1]} : vector<8x96xf32> to vector<8x32xf32>
    %315 = arith.addf %313, %314 : vector<8x32xf32>
    %316 = arith.negf %315 : vector<8x32xf32>
    %317 = math.exp %316 : vector<8x32xf32>
    %cst_120 = arith.constant 1.000000e+00 : f32
    %318 = vector.broadcast %cst_120 : f32 to vector<8x32xf32>
    %319 = arith.addf %318, %317 : vector<8x32xf32>
    %320 = arith.divf %318, %319 : vector<8x32xf32>
    %321 = vector.extract_strided_slice %309 {offsets = [0, 32], sizes = [8, 32], strides = [1, 1]} : vector<8x96xf32> to vector<8x32xf32>
    %322 = vector.extract_strided_slice %312 {offsets = [0, 32], sizes = [8, 32], strides = [1, 1]} : vector<8x96xf32> to vector<8x32xf32>
    %323 = arith.addf %321, %322 : vector<8x32xf32>
    %324 = arith.negf %323 : vector<8x32xf32>
    %325 = math.exp %324 : vector<8x32xf32>
    %cst_121 = arith.constant 1.000000e+00 : f32
    %326 = vector.broadcast %cst_121 : f32 to vector<8x32xf32>
    %327 = arith.addf %326, %325 : vector<8x32xf32>
    %328 = arith.divf %326, %327 : vector<8x32xf32>
    %329 = vector.extract_strided_slice %309 {offsets = [0, 64], sizes = [8, 32], strides = [1, 1]} : vector<8x96xf32> to vector<8x32xf32>
    %330 = vector.extract_strided_slice %312 {offsets = [0, 64], sizes = [8, 32], strides = [1, 1]} : vector<8x96xf32> to vector<8x32xf32>
    %331 = arith.mulf %320, %330 : vector<8x32xf32>
    %332 = arith.addf %329, %331 : vector<8x32xf32>
    %333 = math.tanh %332 : vector<8x32xf32>
    %cst_122 = arith.constant 1.000000e+00 : f32
    %334 = vector.broadcast %cst_122 : f32 to vector<8x32xf32>
    %335 = arith.subf %334, %328 : vector<8x32xf32>
    %336 = arith.mulf %335, %333 : vector<8x32xf32>
    %337 = arith.mulf %328, %262 : vector<8x32xf32>
    %338 = arith.addf %336, %337 : vector<8x32xf32>
    %cst_123 = arith.constant dense<0.000000e+00> : vector<8xf32>
    %339 = vector.multi_reduction <add>, %338, %cst_123 [1] : vector<8x32xf32> to vector<8xf32>
    %340 = vector.shape_cast %339 : vector<8xf32> to vector<8x1xf32>
    %cst_124 = arith.constant 3.200000e+01 : f32
    %341 = vector.broadcast %cst_124 : f32 to vector<8x1xf32>
    %342 = arith.divf %340, %341 : vector<8x1xf32>
    %343 = vector.broadcast %342 : vector<8x1xf32> to vector<8x32xf32>
    %344 = arith.subf %338, %343 : vector<8x32xf32>
    %345 = arith.mulf %344, %344 : vector<8x32xf32>
    %cst_125 = arith.constant dense<0.000000e+00> : vector<8xf32>
    %346 = vector.multi_reduction <add>, %345, %cst_125 [1] : vector<8x32xf32> to vector<8xf32>
    %347 = vector.shape_cast %346 : vector<8xf32> to vector<8x1xf32>
    %cst_126 = arith.constant 3.200000e+01 : f32
    %348 = vector.broadcast %cst_126 : f32 to vector<8x1xf32>
    %349 = arith.divf %347, %348 : vector<8x1xf32>
    %350 = vector.broadcast %342 : vector<8x1xf32> to vector<8x32xf32>
    %351 = arith.subf %338, %350 : vector<8x32xf32>
    %cst_127 = arith.constant 9.99999974E-6 : f32
    %352 = vector.broadcast %cst_127 : f32 to vector<8x1xf32>
    %353 = arith.addf %349, %352 : vector<8x1xf32>
    %354 = math.rsqrt %353 : vector<8x1xf32>
    %355 = vector.broadcast %354 : vector<8x1xf32> to vector<8x32xf32>
    %356 = arith.mulf %351, %355 : vector<8x32xf32>
    %357 = vector.broadcast %39 : vector<1x32xf32> to vector<8x32xf32>
    %358 = arith.mulf %356, %357 : vector<8x32xf32>
    %359 = vector.broadcast %40 : vector<1x32xf32> to vector<8x32xf32>
    %360 = arith.addf %358, %359 : vector<8x32xf32>
    %cst_128 = arith.constant dense<0.000000e+00> : vector<8x128xf32>
    %361 = tpu.matmul %360, %41, %cst_128 {dimension_numbers = #tpu.dot_dimension_numbers<[1], [0], [0], [1], [0, 0, 1, 1], [], []>} : vector<8x32xf32>, vector<32x128xf32>, vector<8x128xf32> -> vector<8x128xf32>
    %362 = vector.broadcast %42 : vector<1x128xf32> to vector<8x128xf32>
    %363 = arith.addf %361, %362 : vector<8x128xf32>
    %cst_129 = arith.constant 0.000000e+00 : f32
    %364 = vector.broadcast %cst_129 : f32 to vector<8x128xf32>
    %365 = arith.maximumf %363, %364 : vector<8x128xf32>
    %cst_130 = arith.constant dense<0.000000e+00> : vector<8x32xf32>
    %366 = tpu.matmul %365, %43, %cst_130 {dimension_numbers = #tpu.dot_dimension_numbers<[1], [0], [0], [1], [0, 0, 1, 1], [], []>} : vector<8x128xf32>, vector<128x32xf32>, vector<8x32xf32> -> vector<8x32xf32>
    %367 = vector.broadcast %44 : vector<1x32xf32> to vector<8x32xf32>
    %368 = arith.addf %366, %367 : vector<8x32xf32>
    %369 = arith.addf %368, %338 : vector<8x32xf32>
    %c0_131 = arith.constant 0 : index
    %c0_132 = arith.constant 0 : index
    %370 = vector.load %arg24[%c0_131, %c0_132] : memref<16x32xf32, #tpu.memory_space<vmem>>, vector<16x32xf32>
    %cst_133 = arith.constant dense<0.000000e+00> : vector<8x16xf32>
    %371 = tpu.matmul %369, %370, %cst_133 {dimension_numbers = #tpu.dot_dimension_numbers<[1], [1], [0], [0], [0, 0, 1, 0], [], []>} : vector<8x32xf32>, vector<16x32xf32>, vector<8x16xf32> -> vector<8x16xf32>
    %c0_134 = arith.constant 0 : index
    %c0_135 = arith.constant 0 : index
    %372 = vector.load %arg25[%c0_134, %c0_135] : memref<1x16xf32, #tpu.memory_space<vmem>>, vector<1x16xf32>
    %cst_136 = arith.constant 2.000000e+00 : f32
    %373 = vector.broadcast %cst_136 : f32 to vector<8x16xf32>
    %374 = arith.mulf %373, %371 : vector<8x16xf32>
    %375 = vector.broadcast %372 : vector<1x16xf32> to vector<8x16xf32>
    %376 = arith.subf %375, %374 : vector<8x16xf32>
    %cst_137 = arith.constant dense<0x7F800000> : vector<8xf32>
    %377 = vector.multi_reduction <minimumf>, %376, %cst_137 [1] : vector<8x16xf32> to vector<8xf32>
    %378 = vector.shape_cast %377 : vector<8xf32> to vector<8x1xf32>
    %379 = tpu.iota {dimensions = array<i32: 1>} : vector<8x16xi32>
    %380 = vector.broadcast %378 : vector<8x1xf32> to vector<8x16xf32>
    %381 = arith.cmpf ole, %376, %380 : vector<8x16xf32>
    %c16_i32 = arith.constant 16 : i32
    %382 = vector.broadcast %c16_i32 : i32 to vector<8x16xi32>
    %383 = arith.select %381, %379, %382 : vector<8x16xi1>, vector<8x16xi32>
    %cst_138 = arith.constant dense<2147483647> : vector<8xi32>
    %384 = vector.multi_reduction <minsi>, %383, %cst_138 [1] : vector<8x16xi32> to vector<8xi32>
    %385 = vector.shape_cast %384 : vector<8xi32> to vector<8x1xi32>
    %386 = vector.broadcast %385 : vector<8x1xi32> to vector<8x16xi32>
    %387 = arith.cmpi eq, %379, %386 : vector<8x16xi32>
    %388 = arith.extui %387 : vector<8x16xi1> to vector<8x16xi32>
    %389 = arith.sitofp %388 : vector<8x16xi32> to vector<8x16xf32>
    %cst_139 = arith.constant dense<0.000000e+00> : vector<8x32xf32>
    %390 = tpu.matmul %389, %370, %cst_139 {dimension_numbers = #tpu.dot_dimension_numbers<[1], [0], [0], [1], [0, 0, 1, 1], [], []>} : vector<8x16xf32>, vector<16x32xf32>, vector<8x32xf32> -> vector<8x32xf32>
    %391 = arith.subf %390, %369 : vector<8x32xf32>
    %392 = arith.mulf %391, %391 : vector<8x32xf32>
    %cst_140 = arith.constant dense<0.000000e+00> : vector<8xf32>
    %393 = vector.multi_reduction <add>, %392, %cst_140 [1] : vector<8x32xf32> to vector<8xf32>
    %394 = vector.shape_cast %393 : vector<8xf32> to vector<8x1xf32>
    %cst_141 = arith.constant 3.200000e+01 : f32
    %395 = vector.broadcast %cst_141 : f32 to vector<8x1xf32>
    %396 = arith.divf %394, %395 : vector<8x1xf32>
    %397 = tpu.iota {dimensions = array<i32: 1>} : vector<8x128xi32>
    %c8_i32 = arith.constant 8 : i32
    %398 = vector.broadcast %c8_i32 : i32 to vector<8x1xi32>
    %399 = arith.muli %385, %398 : vector<8x1xi32>
    %400 = vector.broadcast %399 : vector<8x1xi32> to vector<8x128xi32>
    %401 = arith.cmpi sge, %397, %400 : vector<8x128xi32>
    %c8_i32_142 = arith.constant 8 : i32
    %402 = vector.broadcast %c8_i32_142 : i32 to vector<8x1xi32>
    %403 = arith.addi %399, %402 : vector<8x1xi32>
    %404 = vector.broadcast %403 : vector<8x1xi32> to vector<8x128xi32>
    %405 = arith.cmpi slt, %397, %404 : vector<8x128xi32>
    %406 = arith.andi %401, %405 : vector<8x128xi1>
    %407 = arith.extui %406 : vector<8x128xi1> to vector<8x128xi32>
    %408 = arith.sitofp %407 : vector<8x128xi32> to vector<8x128xf32>
    %cst_143 = arith.constant dense<0.000000e+00> : vector<8xf32>
    %409 = vector.multi_reduction <add>, %31, %cst_143 [1] : vector<8x32xf32> to vector<8xf32>
    %410 = vector.shape_cast %409 : vector<8xf32> to vector<8x1xf32>
    %cst_144 = arith.constant 3.200000e+01 : f32
    %411 = vector.broadcast %cst_144 : f32 to vector<8x1xf32>
    %412 = arith.divf %410, %411 : vector<8x1xf32>
    %413 = vector.broadcast %412 : vector<8x1xf32> to vector<8x32xf32>
    %414 = arith.subf %31, %413 : vector<8x32xf32>
    %415 = arith.mulf %414, %414 : vector<8x32xf32>
    %cst_145 = arith.constant dense<0.000000e+00> : vector<8xf32>
    %416 = vector.multi_reduction <add>, %415, %cst_145 [1] : vector<8x32xf32> to vector<8xf32>
    %417 = vector.shape_cast %416 : vector<8xf32> to vector<8x1xf32>
    %cst_146 = arith.constant 3.200000e+01 : f32
    %418 = vector.broadcast %cst_146 : f32 to vector<8x1xf32>
    %419 = arith.divf %417, %418 : vector<8x1xf32>
    %420 = vector.broadcast %412 : vector<8x1xf32> to vector<8x32xf32>
    %421 = arith.subf %31, %420 : vector<8x32xf32>
    %cst_147 = arith.constant 9.99999974E-6 : f32
    %422 = vector.broadcast %cst_147 : f32 to vector<8x1xf32>
    %423 = arith.addf %419, %422 : vector<8x1xf32>
    %424 = math.rsqrt %423 : vector<8x1xf32>
    %425 = vector.broadcast %424 : vector<8x1xf32> to vector<8x32xf32>
    %426 = arith.mulf %421, %425 : vector<8x32xf32>
    %427 = vector.broadcast %32 : vector<1x32xf32> to vector<8x32xf32>
    %428 = arith.mulf %426, %427 : vector<8x32xf32>
    %429 = vector.broadcast %33 : vector<1x32xf32> to vector<8x32xf32>
    %430 = arith.addf %428, %429 : vector<8x32xf32>
    %cst_148 = arith.constant dense<0.000000e+00> : vector<8x32xf32>
    %431 = tpu.matmul %430, %34, %cst_148 {dimension_numbers = #tpu.dot_dimension_numbers<[1], [0], [0], [1], [0, 0, 1, 1], [], []>} : vector<8x32xf32>, vector<32x32xf32>, vector<8x32xf32> -> vector<8x32xf32>
    %cst_149 = arith.constant dense<0.000000e+00> : vector<8x16xf32>
    %432 = tpu.matmul %431, %27, %cst_149 {dimension_numbers = #tpu.dot_dimension_numbers<[1], [1], [0], [0], [0, 0, 1, 0], [], []>} : vector<8x32xf32>, vector<16x32xf32>, vector<8x16xf32> -> vector<8x16xf32>
    %cst_150 = arith.constant 0.176776692 : f32
    %433 = vector.broadcast %cst_150 : f32 to vector<8x16xf32>
    %434 = arith.mulf %432, %433 : vector<8x16xf32>
    %cst_151 = arith.constant dense<0xFF800000> : vector<16xf32>
    %435 = vector.multi_reduction <maximumf>, %434, %cst_151 [0] : vector<8x16xf32> to vector<16xf32>
    %436 = vector.shape_cast %435 : vector<16xf32> to vector<1x16xf32>
    %437 = vector.broadcast %436 : vector<1x16xf32> to vector<8x16xf32>
    %438 = arith.subf %434, %437 : vector<8x16xf32>
    %439 = math.exp %438 : vector<8x16xf32>
    %cst_152 = arith.constant dense<0.000000e+00> : vector<16xf32>
    %440 = vector.multi_reduction <add>, %439, %cst_152 [0] : vector<8x16xf32> to vector<16xf32>
    %441 = vector.shape_cast %440 : vector<16xf32> to vector<1x16xf32>
    %442 = tpu.reciprocal %441 {approx = true} : vector<1x16xf32> -> vector<1x16xf32>
    %443 = vector.broadcast %442 : vector<1x16xf32> to vector<8x16xf32>
    %444 = arith.mulf %439, %443 : vector<8x16xf32>
    %cst_153 = arith.constant 9.99999993E-9 : f32
    %445 = vector.broadcast %cst_153 : f32 to vector<8x16xf32>
    %446 = arith.addf %444, %445 : vector<8x16xf32>
    %cst_154 = arith.constant dense<0.000000e+00> : vector<8xf32>
    %447 = vector.multi_reduction <add>, %446, %cst_154 [1] : vector<8x16xf32> to vector<8xf32>
    %448 = vector.shape_cast %447 : vector<8xf32> to vector<8x1xf32>
    %449 = tpu.reciprocal %448 {approx = true} : vector<8x1xf32> -> vector<8x1xf32>
    %450 = vector.broadcast %449 : vector<8x1xf32> to vector<8x16xf32>
    %451 = arith.mulf %446, %450 : vector<8x16xf32>
    %cst_155 = arith.constant dense<0.000000e+00> : vector<8x32xf32>
    %452 = tpu.matmul %451, %29, %cst_155 {dimension_numbers = #tpu.dot_dimension_numbers<[1], [0], [0], [1], [0, 0, 1, 1], [], []>} : vector<8x16xf32>, vector<16x32xf32>, vector<8x32xf32> -> vector<8x32xf32>
    %cst_156 = arith.constant dense<0.000000e+00> : vector<8x96xf32>
    %453 = tpu.matmul %452, %35, %cst_156 {dimension_numbers = #tpu.dot_dimension_numbers<[1], [0], [0], [1], [0, 0, 1, 1], [], []>} : vector<8x32xf32>, vector<32x96xf32>, vector<8x96xf32> -> vector<8x96xf32>
    %454 = vector.broadcast %37 : vector<1x96xf32> to vector<8x96xf32>
    %455 = arith.addf %453, %454 : vector<8x96xf32>
    %cst_157 = arith.constant dense<0.000000e+00> : vector<8x96xf32>
    %456 = tpu.matmul %31, %36, %cst_157 {dimension_numbers = #tpu.dot_dimension_numbers<[1], [0], [0], [1], [0, 0, 1, 1], [], []>} : vector<8x32xf32>, vector<32x96xf32>, vector<8x96xf32> -> vector<8x96xf32>
    %457 = vector.broadcast %38 : vector<1x96xf32> to vector<8x96xf32>
    %458 = arith.addf %456, %457 : vector<8x96xf32>
    %459 = vector.extract_strided_slice %455 {offsets = [0, 0], sizes = [8, 32], strides = [1, 1]} : vector<8x96xf32> to vector<8x32xf32>
    %460 = vector.extract_strided_slice %458 {offsets = [0, 0], sizes = [8, 32], strides = [1, 1]} : vector<8x96xf32> to vector<8x32xf32>
    %461 = arith.addf %459, %460 : vector<8x32xf32>
    %462 = arith.negf %461 : vector<8x32xf32>
    %463 = math.exp %462 : vector<8x32xf32>
    %cst_158 = arith.constant 1.000000e+00 : f32
    %464 = vector.broadcast %cst_158 : f32 to vector<8x32xf32>
    %465 = arith.addf %464, %463 : vector<8x32xf32>
    %466 = arith.divf %464, %465 : vector<8x32xf32>
    %467 = vector.extract_strided_slice %455 {offsets = [0, 32], sizes = [8, 32], strides = [1, 1]} : vector<8x96xf32> to vector<8x32xf32>
    %468 = vector.extract_strided_slice %458 {offsets = [0, 32], sizes = [8, 32], strides = [1, 1]} : vector<8x96xf32> to vector<8x32xf32>
    %469 = arith.addf %467, %468 : vector<8x32xf32>
    %470 = arith.negf %469 : vector<8x32xf32>
    %471 = math.exp %470 : vector<8x32xf32>
    %cst_159 = arith.constant 1.000000e+00 : f32
    %472 = vector.broadcast %cst_159 : f32 to vector<8x32xf32>
    %473 = arith.addf %472, %471 : vector<8x32xf32>
    %474 = arith.divf %472, %473 : vector<8x32xf32>
    %475 = vector.extract_strided_slice %455 {offsets = [0, 64], sizes = [8, 32], strides = [1, 1]} : vector<8x96xf32> to vector<8x32xf32>
    %476 = vector.extract_strided_slice %458 {offsets = [0, 64], sizes = [8, 32], strides = [1, 1]} : vector<8x96xf32> to vector<8x32xf32>
    %477 = arith.mulf %466, %476 : vector<8x32xf32>
    %478 = arith.addf %475, %477 : vector<8x32xf32>
    %479 = math.tanh %478 : vector<8x32xf32>
    %cst_160 = arith.constant 1.000000e+00 : f32
    %480 = vector.broadcast %cst_160 : f32 to vector<8x32xf32>
    %481 = arith.subf %480, %474 : vector<8x32xf32>
    %482 = arith.mulf %481, %479 : vector<8x32xf32>
    %483 = arith.mulf %474, %31 : vector<8x32xf32>
    %484 = arith.addf %482, %483 : vector<8x32xf32>
    %cst_161 = arith.constant dense<0.000000e+00> : vector<8xf32>
    %485 = vector.multi_reduction <add>, %484, %cst_161 [1] : vector<8x32xf32> to vector<8xf32>
    %486 = vector.shape_cast %485 : vector<8xf32> to vector<8x1xf32>
    %cst_162 = arith.constant 3.200000e+01 : f32
    %487 = vector.broadcast %cst_162 : f32 to vector<8x1xf32>
    %488 = arith.divf %486, %487 : vector<8x1xf32>
    %489 = vector.broadcast %488 : vector<8x1xf32> to vector<8x32xf32>
    %490 = arith.subf %484, %489 : vector<8x32xf32>
    %491 = arith.mulf %490, %490 : vector<8x32xf32>
    %cst_163 = arith.constant dense<0.000000e+00> : vector<8xf32>
    %492 = vector.multi_reduction <add>, %491, %cst_163 [1] : vector<8x32xf32> to vector<8xf32>
    %493 = vector.shape_cast %492 : vector<8xf32> to vector<8x1xf32>
    %cst_164 = arith.constant 3.200000e+01 : f32
    %494 = vector.broadcast %cst_164 : f32 to vector<8x1xf32>
    %495 = arith.divf %493, %494 : vector<8x1xf32>
    %496 = vector.broadcast %488 : vector<8x1xf32> to vector<8x32xf32>
    %497 = arith.subf %484, %496 : vector<8x32xf32>
    %cst_165 = arith.constant 9.99999974E-6 : f32
    %498 = vector.broadcast %cst_165 : f32 to vector<8x1xf32>
    %499 = arith.addf %495, %498 : vector<8x1xf32>
    %500 = math.rsqrt %499 : vector<8x1xf32>
    %501 = vector.broadcast %500 : vector<8x1xf32> to vector<8x32xf32>
    %502 = arith.mulf %497, %501 : vector<8x32xf32>
    %503 = vector.broadcast %39 : vector<1x32xf32> to vector<8x32xf32>
    %504 = arith.mulf %502, %503 : vector<8x32xf32>
    %505 = vector.broadcast %40 : vector<1x32xf32> to vector<8x32xf32>
    %506 = arith.addf %504, %505 : vector<8x32xf32>
    %cst_166 = arith.constant dense<0.000000e+00> : vector<8x128xf32>
    %507 = tpu.matmul %506, %41, %cst_166 {dimension_numbers = #tpu.dot_dimension_numbers<[1], [0], [0], [1], [0, 0, 1, 1], [], []>} : vector<8x32xf32>, vector<32x128xf32>, vector<8x128xf32> -> vector<8x128xf32>
    %508 = vector.broadcast %42 : vector<1x128xf32> to vector<8x128xf32>
    %509 = arith.addf %507, %508 : vector<8x128xf32>
    %cst_167 = arith.constant dense<0.000000e+00> : vector<8x128xf32>
    %510 = tpu.matmul %506, %45, %cst_167 {dimension_numbers = #tpu.dot_dimension_numbers<[1], [0], [0], [1], [0, 0, 1, 1], [], []>} : vector<8x32xf32>, vector<32x128xf32>, vector<8x128xf32> -> vector<8x128xf32>
    %511 = arith.mulf %510, %408 : vector<8x128xf32>
    %cst_168 = arith.constant dense<0.000000e+00> : vector<8x128xf32>
    %512 = tpu.matmul %511, %46, %cst_168 {dimension_numbers = #tpu.dot_dimension_numbers<[1], [0], [0], [1], [0, 0, 1, 1], [], []>} : vector<8x128xf32>, vector<128x128xf32>, vector<8x128xf32> -> vector<8x128xf32>
    %513 = arith.addf %509, %512 : vector<8x128xf32>
    %cst_169 = arith.constant 0.000000e+00 : f32
    %514 = vector.broadcast %cst_169 : f32 to vector<8x128xf32>
    %515 = arith.maximumf %513, %514 : vector<8x128xf32>
    %cst_170 = arith.constant dense<0.000000e+00> : vector<8x32xf32>
    %516 = tpu.matmul %515, %43, %cst_170 {dimension_numbers = #tpu.dot_dimension_numbers<[1], [0], [0], [1], [0, 0, 1, 1], [], []>} : vector<8x128xf32>, vector<128x32xf32>, vector<8x32xf32> -> vector<8x32xf32>
    %517 = vector.broadcast %44 : vector<1x32xf32> to vector<8x32xf32>
    %518 = arith.addf %516, %517 : vector<8x32xf32>
    %cst_171 = arith.constant dense<0.000000e+00> : vector<8x128xf32>
    %519 = tpu.matmul %515, %47, %cst_171 {dimension_numbers = #tpu.dot_dimension_numbers<[1], [0], [0], [1], [0, 0, 1, 1], [], []>} : vector<8x128xf32>, vector<128x128xf32>, vector<8x128xf32> -> vector<8x128xf32>
    %520 = arith.mulf %519, %408 : vector<8x128xf32>
    %cst_172 = arith.constant dense<0.000000e+00> : vector<8x32xf32>
    %521 = tpu.matmul %520, %48, %cst_172 {dimension_numbers = #tpu.dot_dimension_numbers<[1], [0], [0], [1], [0, 0, 1, 1], [], []>} : vector<8x128xf32>, vector<128x32xf32>, vector<8x32xf32> -> vector<8x32xf32>
    %522 = arith.addf %518, %521 : vector<8x32xf32>
    %523 = arith.addf %522, %484 : vector<8x32xf32>
    %cst_173 = arith.constant dense<0.000000e+00> : vector<8xf32>
    %524 = vector.multi_reduction <add>, %523, %cst_173 [1] : vector<8x32xf32> to vector<8xf32>
    %525 = vector.shape_cast %524 : vector<8xf32> to vector<8x1xf32>
    %cst_174 = arith.constant 3.200000e+01 : f32
    %526 = vector.broadcast %cst_174 : f32 to vector<8x1xf32>
    %527 = arith.divf %525, %526 : vector<8x1xf32>
    %528 = vector.broadcast %527 : vector<8x1xf32> to vector<8x32xf32>
    %529 = arith.subf %523, %528 : vector<8x32xf32>
    %530 = arith.mulf %529, %529 : vector<8x32xf32>
    %cst_175 = arith.constant dense<0.000000e+00> : vector<8xf32>
    %531 = vector.multi_reduction <add>, %530, %cst_175 [1] : vector<8x32xf32> to vector<8xf32>
    %532 = vector.shape_cast %531 : vector<8xf32> to vector<8x1xf32>
    %cst_176 = arith.constant 3.200000e+01 : f32
    %533 = vector.broadcast %cst_176 : f32 to vector<8x1xf32>
    %534 = arith.divf %532, %533 : vector<8x1xf32>
    %535 = vector.broadcast %527 : vector<8x1xf32> to vector<8x32xf32>
    %536 = arith.subf %523, %535 : vector<8x32xf32>
    %cst_177 = arith.constant 9.99999974E-6 : f32
    %537 = vector.broadcast %cst_177 : f32 to vector<8x1xf32>
    %538 = arith.addf %534, %537 : vector<8x1xf32>
    %539 = math.rsqrt %538 : vector<8x1xf32>
    %540 = vector.broadcast %539 : vector<8x1xf32> to vector<8x32xf32>
    %541 = arith.mulf %536, %540 : vector<8x32xf32>
    %542 = vector.broadcast %32 : vector<1x32xf32> to vector<8x32xf32>
    %543 = arith.mulf %541, %542 : vector<8x32xf32>
    %544 = vector.broadcast %33 : vector<1x32xf32> to vector<8x32xf32>
    %545 = arith.addf %543, %544 : vector<8x32xf32>
    %cst_178 = arith.constant dense<0.000000e+00> : vector<8x32xf32>
    %546 = tpu.matmul %545, %34, %cst_178 {dimension_numbers = #tpu.dot_dimension_numbers<[1], [0], [0], [1], [0, 0, 1, 1], [], []>} : vector<8x32xf32>, vector<32x32xf32>, vector<8x32xf32> -> vector<8x32xf32>
    %cst_179 = arith.constant dense<0.000000e+00> : vector<8x16xf32>
    %547 = tpu.matmul %546, %27, %cst_179 {dimension_numbers = #tpu.dot_dimension_numbers<[1], [1], [0], [0], [0, 0, 1, 0], [], []>} : vector<8x32xf32>, vector<16x32xf32>, vector<8x16xf32> -> vector<8x16xf32>
    %cst_180 = arith.constant 0.176776692 : f32
    %548 = vector.broadcast %cst_180 : f32 to vector<8x16xf32>
    %549 = arith.mulf %547, %548 : vector<8x16xf32>
    %cst_181 = arith.constant dense<0xFF800000> : vector<16xf32>
    %550 = vector.multi_reduction <maximumf>, %549, %cst_181 [0] : vector<8x16xf32> to vector<16xf32>
    %551 = vector.shape_cast %550 : vector<16xf32> to vector<1x16xf32>
    %552 = vector.broadcast %551 : vector<1x16xf32> to vector<8x16xf32>
    %553 = arith.subf %549, %552 : vector<8x16xf32>
    %554 = math.exp %553 : vector<8x16xf32>
    %cst_182 = arith.constant dense<0.000000e+00> : vector<16xf32>
    %555 = vector.multi_reduction <add>, %554, %cst_182 [0] : vector<8x16xf32> to vector<16xf32>
    %556 = vector.shape_cast %555 : vector<16xf32> to vector<1x16xf32>
    %557 = tpu.reciprocal %556 {approx = true} : vector<1x16xf32> -> vector<1x16xf32>
    %558 = vector.broadcast %557 : vector<1x16xf32> to vector<8x16xf32>
    %559 = arith.mulf %554, %558 : vector<8x16xf32>
    %cst_183 = arith.constant 9.99999993E-9 : f32
    %560 = vector.broadcast %cst_183 : f32 to vector<8x16xf32>
    %561 = arith.addf %559, %560 : vector<8x16xf32>
    %cst_184 = arith.constant dense<0.000000e+00> : vector<8xf32>
    %562 = vector.multi_reduction <add>, %561, %cst_184 [1] : vector<8x16xf32> to vector<8xf32>
    %563 = vector.shape_cast %562 : vector<8xf32> to vector<8x1xf32>
    %564 = tpu.reciprocal %563 {approx = true} : vector<8x1xf32> -> vector<8x1xf32>
    %565 = vector.broadcast %564 : vector<8x1xf32> to vector<8x16xf32>
    %566 = arith.mulf %561, %565 : vector<8x16xf32>
    %cst_185 = arith.constant dense<0.000000e+00> : vector<8x32xf32>
    %567 = tpu.matmul %566, %29, %cst_185 {dimension_numbers = #tpu.dot_dimension_numbers<[1], [0], [0], [1], [0, 0, 1, 1], [], []>} : vector<8x16xf32>, vector<16x32xf32>, vector<8x32xf32> -> vector<8x32xf32>
    %cst_186 = arith.constant dense<0.000000e+00> : vector<8x96xf32>
    %568 = tpu.matmul %567, %35, %cst_186 {dimension_numbers = #tpu.dot_dimension_numbers<[1], [0], [0], [1], [0, 0, 1, 1], [], []>} : vector<8x32xf32>, vector<32x96xf32>, vector<8x96xf32> -> vector<8x96xf32>
    %569 = vector.broadcast %37 : vector<1x96xf32> to vector<8x96xf32>
    %570 = arith.addf %568, %569 : vector<8x96xf32>
    %cst_187 = arith.constant dense<0.000000e+00> : vector<8x96xf32>
    %571 = tpu.matmul %523, %36, %cst_187 {dimension_numbers = #tpu.dot_dimension_numbers<[1], [0], [0], [1], [0, 0, 1, 1], [], []>} : vector<8x32xf32>, vector<32x96xf32>, vector<8x96xf32> -> vector<8x96xf32>
    %572 = vector.broadcast %38 : vector<1x96xf32> to vector<8x96xf32>
    %573 = arith.addf %571, %572 : vector<8x96xf32>
    %574 = vector.extract_strided_slice %570 {offsets = [0, 0], sizes = [8, 32], strides = [1, 1]} : vector<8x96xf32> to vector<8x32xf32>
    %575 = vector.extract_strided_slice %573 {offsets = [0, 0], sizes = [8, 32], strides = [1, 1]} : vector<8x96xf32> to vector<8x32xf32>
    %576 = arith.addf %574, %575 : vector<8x32xf32>
    %577 = arith.negf %576 : vector<8x32xf32>
    %578 = math.exp %577 : vector<8x32xf32>
    %cst_188 = arith.constant 1.000000e+00 : f32
    %579 = vector.broadcast %cst_188 : f32 to vector<8x32xf32>
    %580 = arith.addf %579, %578 : vector<8x32xf32>
    %581 = arith.divf %579, %580 : vector<8x32xf32>
    %582 = vector.extract_strided_slice %570 {offsets = [0, 32], sizes = [8, 32], strides = [1, 1]} : vector<8x96xf32> to vector<8x32xf32>
    %583 = vector.extract_strided_slice %573 {offsets = [0, 32], sizes = [8, 32], strides = [1, 1]} : vector<8x96xf32> to vector<8x32xf32>
    %584 = arith.addf %582, %583 : vector<8x32xf32>
    %585 = arith.negf %584 : vector<8x32xf32>
    %586 = math.exp %585 : vector<8x32xf32>
    %cst_189 = arith.constant 1.000000e+00 : f32
    %587 = vector.broadcast %cst_189 : f32 to vector<8x32xf32>
    %588 = arith.addf %587, %586 : vector<8x32xf32>
    %589 = arith.divf %587, %588 : vector<8x32xf32>
    %590 = vector.extract_strided_slice %570 {offsets = [0, 64], sizes = [8, 32], strides = [1, 1]} : vector<8x96xf32> to vector<8x32xf32>
    %591 = vector.extract_strided_slice %573 {offsets = [0, 64], sizes = [8, 32], strides = [1, 1]} : vector<8x96xf32> to vector<8x32xf32>
    %592 = arith.mulf %581, %591 : vector<8x32xf32>
    %593 = arith.addf %590, %592 : vector<8x32xf32>
    %594 = math.tanh %593 : vector<8x32xf32>
    %cst_190 = arith.constant 1.000000e+00 : f32
    %595 = vector.broadcast %cst_190 : f32 to vector<8x32xf32>
    %596 = arith.subf %595, %589 : vector<8x32xf32>
    %597 = arith.mulf %596, %594 : vector<8x32xf32>
    %598 = arith.mulf %589, %523 : vector<8x32xf32>
    %599 = arith.addf %597, %598 : vector<8x32xf32>
    %cst_191 = arith.constant dense<0.000000e+00> : vector<8xf32>
    %600 = vector.multi_reduction <add>, %599, %cst_191 [1] : vector<8x32xf32> to vector<8xf32>
    %601 = vector.shape_cast %600 : vector<8xf32> to vector<8x1xf32>
    %cst_192 = arith.constant 3.200000e+01 : f32
    %602 = vector.broadcast %cst_192 : f32 to vector<8x1xf32>
    %603 = arith.divf %601, %602 : vector<8x1xf32>
    %604 = vector.broadcast %603 : vector<8x1xf32> to vector<8x32xf32>
    %605 = arith.subf %599, %604 : vector<8x32xf32>
    %606 = arith.mulf %605, %605 : vector<8x32xf32>
    %cst_193 = arith.constant dense<0.000000e+00> : vector<8xf32>
    %607 = vector.multi_reduction <add>, %606, %cst_193 [1] : vector<8x32xf32> to vector<8xf32>
    %608 = vector.shape_cast %607 : vector<8xf32> to vector<8x1xf32>
    %cst_194 = arith.constant 3.200000e+01 : f32
    %609 = vector.broadcast %cst_194 : f32 to vector<8x1xf32>
    %610 = arith.divf %608, %609 : vector<8x1xf32>
    %611 = vector.broadcast %603 : vector<8x1xf32> to vector<8x32xf32>
    %612 = arith.subf %599, %611 : vector<8x32xf32>
    %cst_195 = arith.constant 9.99999974E-6 : f32
    %613 = vector.broadcast %cst_195 : f32 to vector<8x1xf32>
    %614 = arith.addf %610, %613 : vector<8x1xf32>
    %615 = math.rsqrt %614 : vector<8x1xf32>
    %616 = vector.broadcast %615 : vector<8x1xf32> to vector<8x32xf32>
    %617 = arith.mulf %612, %616 : vector<8x32xf32>
    %618 = vector.broadcast %39 : vector<1x32xf32> to vector<8x32xf32>
    %619 = arith.mulf %617, %618 : vector<8x32xf32>
    %620 = vector.broadcast %40 : vector<1x32xf32> to vector<8x32xf32>
    %621 = arith.addf %619, %620 : vector<8x32xf32>
    %cst_196 = arith.constant dense<0.000000e+00> : vector<8x128xf32>
    %622 = tpu.matmul %621, %41, %cst_196 {dimension_numbers = #tpu.dot_dimension_numbers<[1], [0], [0], [1], [0, 0, 1, 1], [], []>} : vector<8x32xf32>, vector<32x128xf32>, vector<8x128xf32> -> vector<8x128xf32>
    %623 = vector.broadcast %42 : vector<1x128xf32> to vector<8x128xf32>
    %624 = arith.addf %622, %623 : vector<8x128xf32>
    %cst_197 = arith.constant dense<0.000000e+00> : vector<8x128xf32>
    %625 = tpu.matmul %621, %45, %cst_197 {dimension_numbers = #tpu.dot_dimension_numbers<[1], [0], [0], [1], [0, 0, 1, 1], [], []>} : vector<8x32xf32>, vector<32x128xf32>, vector<8x128xf32> -> vector<8x128xf32>
    %626 = arith.mulf %625, %408 : vector<8x128xf32>
    %cst_198 = arith.constant dense<0.000000e+00> : vector<8x128xf32>
    %627 = tpu.matmul %626, %46, %cst_198 {dimension_numbers = #tpu.dot_dimension_numbers<[1], [0], [0], [1], [0, 0, 1, 1], [], []>} : vector<8x128xf32>, vector<128x128xf32>, vector<8x128xf32> -> vector<8x128xf32>
    %628 = arith.addf %624, %627 : vector<8x128xf32>
    %cst_199 = arith.constant 0.000000e+00 : f32
    %629 = vector.broadcast %cst_199 : f32 to vector<8x128xf32>
    %630 = arith.maximumf %628, %629 : vector<8x128xf32>
    %cst_200 = arith.constant dense<0.000000e+00> : vector<8x32xf32>
    %631 = tpu.matmul %630, %43, %cst_200 {dimension_numbers = #tpu.dot_dimension_numbers<[1], [0], [0], [1], [0, 0, 1, 1], [], []>} : vector<8x128xf32>, vector<128x32xf32>, vector<8x32xf32> -> vector<8x32xf32>
    %632 = vector.broadcast %44 : vector<1x32xf32> to vector<8x32xf32>
    %633 = arith.addf %631, %632 : vector<8x32xf32>
    %cst_201 = arith.constant dense<0.000000e+00> : vector<8x128xf32>
    %634 = tpu.matmul %630, %47, %cst_201 {dimension_numbers = #tpu.dot_dimension_numbers<[1], [0], [0], [1], [0, 0, 1, 1], [], []>} : vector<8x128xf32>, vector<128x128xf32>, vector<8x128xf32> -> vector<8x128xf32>
    %635 = arith.mulf %634, %408 : vector<8x128xf32>
    %cst_202 = arith.constant dense<0.000000e+00> : vector<8x32xf32>
    %636 = tpu.matmul %635, %48, %cst_202 {dimension_numbers = #tpu.dot_dimension_numbers<[1], [0], [0], [1], [0, 0, 1, 1], [], []>} : vector<8x128xf32>, vector<128x32xf32>, vector<8x32xf32> -> vector<8x32xf32>
    %637 = arith.addf %633, %636 : vector<8x32xf32>
    %638 = arith.addf %637, %599 : vector<8x32xf32>
    %cst_203 = arith.constant dense<0.000000e+00> : vector<8xf32>
    %639 = vector.multi_reduction <add>, %638, %cst_203 [1] : vector<8x32xf32> to vector<8xf32>
    %640 = vector.shape_cast %639 : vector<8xf32> to vector<8x1xf32>
    %cst_204 = arith.constant 3.200000e+01 : f32
    %641 = vector.broadcast %cst_204 : f32 to vector<8x1xf32>
    %642 = arith.divf %640, %641 : vector<8x1xf32>
    %643 = vector.broadcast %642 : vector<8x1xf32> to vector<8x32xf32>
    %644 = arith.subf %638, %643 : vector<8x32xf32>
    %645 = arith.mulf %644, %644 : vector<8x32xf32>
    %cst_205 = arith.constant dense<0.000000e+00> : vector<8xf32>
    %646 = vector.multi_reduction <add>, %645, %cst_205 [1] : vector<8x32xf32> to vector<8xf32>
    %647 = vector.shape_cast %646 : vector<8xf32> to vector<8x1xf32>
    %cst_206 = arith.constant 3.200000e+01 : f32
    %648 = vector.broadcast %cst_206 : f32 to vector<8x1xf32>
    %649 = arith.divf %647, %648 : vector<8x1xf32>
    %650 = vector.broadcast %642 : vector<8x1xf32> to vector<8x32xf32>
    %651 = arith.subf %638, %650 : vector<8x32xf32>
    %cst_207 = arith.constant 9.99999974E-6 : f32
    %652 = vector.broadcast %cst_207 : f32 to vector<8x1xf32>
    %653 = arith.addf %649, %652 : vector<8x1xf32>
    %654 = math.rsqrt %653 : vector<8x1xf32>
    %655 = vector.broadcast %654 : vector<8x1xf32> to vector<8x32xf32>
    %656 = arith.mulf %651, %655 : vector<8x32xf32>
    %657 = vector.broadcast %32 : vector<1x32xf32> to vector<8x32xf32>
    %658 = arith.mulf %656, %657 : vector<8x32xf32>
    %659 = vector.broadcast %33 : vector<1x32xf32> to vector<8x32xf32>
    %660 = arith.addf %658, %659 : vector<8x32xf32>
    %cst_208 = arith.constant dense<0.000000e+00> : vector<8x32xf32>
    %661 = tpu.matmul %660, %34, %cst_208 {dimension_numbers = #tpu.dot_dimension_numbers<[1], [0], [0], [1], [0, 0, 1, 1], [], []>} : vector<8x32xf32>, vector<32x32xf32>, vector<8x32xf32> -> vector<8x32xf32>
    %cst_209 = arith.constant dense<0.000000e+00> : vector<8x16xf32>
    %662 = tpu.matmul %661, %27, %cst_209 {dimension_numbers = #tpu.dot_dimension_numbers<[1], [1], [0], [0], [0, 0, 1, 0], [], []>} : vector<8x32xf32>, vector<16x32xf32>, vector<8x16xf32> -> vector<8x16xf32>
    %cst_210 = arith.constant 0.176776692 : f32
    %663 = vector.broadcast %cst_210 : f32 to vector<8x16xf32>
    %664 = arith.mulf %662, %663 : vector<8x16xf32>
    %cst_211 = arith.constant dense<0xFF800000> : vector<16xf32>
    %665 = vector.multi_reduction <maximumf>, %664, %cst_211 [0] : vector<8x16xf32> to vector<16xf32>
    %666 = vector.shape_cast %665 : vector<16xf32> to vector<1x16xf32>
    %667 = vector.broadcast %666 : vector<1x16xf32> to vector<8x16xf32>
    %668 = arith.subf %664, %667 : vector<8x16xf32>
    %669 = math.exp %668 : vector<8x16xf32>
    %cst_212 = arith.constant dense<0.000000e+00> : vector<16xf32>
    %670 = vector.multi_reduction <add>, %669, %cst_212 [0] : vector<8x16xf32> to vector<16xf32>
    %671 = vector.shape_cast %670 : vector<16xf32> to vector<1x16xf32>
    %672 = tpu.reciprocal %671 {approx = true} : vector<1x16xf32> -> vector<1x16xf32>
    %673 = vector.broadcast %672 : vector<1x16xf32> to vector<8x16xf32>
    %674 = arith.mulf %669, %673 : vector<8x16xf32>
    %cst_213 = arith.constant 9.99999993E-9 : f32
    %675 = vector.broadcast %cst_213 : f32 to vector<8x16xf32>
    %676 = arith.addf %674, %675 : vector<8x16xf32>
    %cst_214 = arith.constant dense<0.000000e+00> : vector<8xf32>
    %677 = vector.multi_reduction <add>, %676, %cst_214 [1] : vector<8x16xf32> to vector<8xf32>
    %678 = vector.shape_cast %677 : vector<8xf32> to vector<8x1xf32>
    %679 = tpu.reciprocal %678 {approx = true} : vector<8x1xf32> -> vector<8x1xf32>
    %680 = vector.broadcast %679 : vector<8x1xf32> to vector<8x16xf32>
    %681 = arith.mulf %676, %680 : vector<8x16xf32>
    %cst_215 = arith.constant dense<0.000000e+00> : vector<8x32xf32>
    %682 = tpu.matmul %681, %29, %cst_215 {dimension_numbers = #tpu.dot_dimension_numbers<[1], [0], [0], [1], [0, 0, 1, 1], [], []>} : vector<8x16xf32>, vector<16x32xf32>, vector<8x32xf32> -> vector<8x32xf32>
    %cst_216 = arith.constant dense<0.000000e+00> : vector<8x96xf32>
    %683 = tpu.matmul %682, %35, %cst_216 {dimension_numbers = #tpu.dot_dimension_numbers<[1], [0], [0], [1], [0, 0, 1, 1], [], []>} : vector<8x32xf32>, vector<32x96xf32>, vector<8x96xf32> -> vector<8x96xf32>
    %684 = vector.broadcast %37 : vector<1x96xf32> to vector<8x96xf32>
    %685 = arith.addf %683, %684 : vector<8x96xf32>
    %cst_217 = arith.constant dense<0.000000e+00> : vector<8x96xf32>
    %686 = tpu.matmul %638, %36, %cst_217 {dimension_numbers = #tpu.dot_dimension_numbers<[1], [0], [0], [1], [0, 0, 1, 1], [], []>} : vector<8x32xf32>, vector<32x96xf32>, vector<8x96xf32> -> vector<8x96xf32>
    %687 = vector.broadcast %38 : vector<1x96xf32> to vector<8x96xf32>
    %688 = arith.addf %686, %687 : vector<8x96xf32>
    %689 = vector.extract_strided_slice %685 {offsets = [0, 0], sizes = [8, 32], strides = [1, 1]} : vector<8x96xf32> to vector<8x32xf32>
    %690 = vector.extract_strided_slice %688 {offsets = [0, 0], sizes = [8, 32], strides = [1, 1]} : vector<8x96xf32> to vector<8x32xf32>
    %691 = arith.addf %689, %690 : vector<8x32xf32>
    %692 = arith.negf %691 : vector<8x32xf32>
    %693 = math.exp %692 : vector<8x32xf32>
    %cst_218 = arith.constant 1.000000e+00 : f32
    %694 = vector.broadcast %cst_218 : f32 to vector<8x32xf32>
    %695 = arith.addf %694, %693 : vector<8x32xf32>
    %696 = arith.divf %694, %695 : vector<8x32xf32>
    %697 = vector.extract_strided_slice %685 {offsets = [0, 32], sizes = [8, 32], strides = [1, 1]} : vector<8x96xf32> to vector<8x32xf32>
    %698 = vector.extract_strided_slice %688 {offsets = [0, 32], sizes = [8, 32], strides = [1, 1]} : vector<8x96xf32> to vector<8x32xf32>
    %699 = arith.addf %697, %698 : vector<8x32xf32>
    %700 = arith.negf %699 : vector<8x32xf32>
    %701 = math.exp %700 : vector<8x32xf32>
    %cst_219 = arith.constant 1.000000e+00 : f32
    %702 = vector.broadcast %cst_219 : f32 to vector<8x32xf32>
    %703 = arith.addf %702, %701 : vector<8x32xf32>
    %704 = arith.divf %702, %703 : vector<8x32xf32>
    %705 = vector.extract_strided_slice %685 {offsets = [0, 64], sizes = [8, 32], strides = [1, 1]} : vector<8x96xf32> to vector<8x32xf32>
    %706 = vector.extract_strided_slice %688 {offsets = [0, 64], sizes = [8, 32], strides = [1, 1]} : vector<8x96xf32> to vector<8x32xf32>
    %707 = arith.mulf %696, %706 : vector<8x32xf32>
    %708 = arith.addf %705, %707 : vector<8x32xf32>
    %709 = math.tanh %708 : vector<8x32xf32>
    %cst_220 = arith.constant 1.000000e+00 : f32
    %710 = vector.broadcast %cst_220 : f32 to vector<8x32xf32>
    %711 = arith.subf %710, %704 : vector<8x32xf32>
    %712 = arith.mulf %711, %709 : vector<8x32xf32>
    %713 = arith.mulf %704, %638 : vector<8x32xf32>
    %714 = arith.addf %712, %713 : vector<8x32xf32>
    %cst_221 = arith.constant dense<0.000000e+00> : vector<8xf32>
    %715 = vector.multi_reduction <add>, %714, %cst_221 [1] : vector<8x32xf32> to vector<8xf32>
    %716 = vector.shape_cast %715 : vector<8xf32> to vector<8x1xf32>
    %cst_222 = arith.constant 3.200000e+01 : f32
    %717 = vector.broadcast %cst_222 : f32 to vector<8x1xf32>
    %718 = arith.divf %716, %717 : vector<8x1xf32>
    %719 = vector.broadcast %718 : vector<8x1xf32> to vector<8x32xf32>
    %720 = arith.subf %714, %719 : vector<8x32xf32>
    %721 = arith.mulf %720, %720 : vector<8x32xf32>
    %cst_223 = arith.constant dense<0.000000e+00> : vector<8xf32>
    %722 = vector.multi_reduction <add>, %721, %cst_223 [1] : vector<8x32xf32> to vector<8xf32>
    %723 = vector.shape_cast %722 : vector<8xf32> to vector<8x1xf32>
    %cst_224 = arith.constant 3.200000e+01 : f32
    %724 = vector.broadcast %cst_224 : f32 to vector<8x1xf32>
    %725 = arith.divf %723, %724 : vector<8x1xf32>
    %726 = vector.broadcast %718 : vector<8x1xf32> to vector<8x32xf32>
    %727 = arith.subf %714, %726 : vector<8x32xf32>
    %cst_225 = arith.constant 9.99999974E-6 : f32
    %728 = vector.broadcast %cst_225 : f32 to vector<8x1xf32>
    %729 = arith.addf %725, %728 : vector<8x1xf32>
    %730 = math.rsqrt %729 : vector<8x1xf32>
    %731 = vector.broadcast %730 : vector<8x1xf32> to vector<8x32xf32>
    %732 = arith.mulf %727, %731 : vector<8x32xf32>
    %733 = vector.broadcast %39 : vector<1x32xf32> to vector<8x32xf32>
    %734 = arith.mulf %732, %733 : vector<8x32xf32>
    %735 = vector.broadcast %40 : vector<1x32xf32> to vector<8x32xf32>
    %736 = arith.addf %734, %735 : vector<8x32xf32>
    %cst_226 = arith.constant dense<0.000000e+00> : vector<8x128xf32>
    %737 = tpu.matmul %736, %41, %cst_226 {dimension_numbers = #tpu.dot_dimension_numbers<[1], [0], [0], [1], [0, 0, 1, 1], [], []>} : vector<8x32xf32>, vector<32x128xf32>, vector<8x128xf32> -> vector<8x128xf32>
    %738 = vector.broadcast %42 : vector<1x128xf32> to vector<8x128xf32>
    %739 = arith.addf %737, %738 : vector<8x128xf32>
    %cst_227 = arith.constant dense<0.000000e+00> : vector<8x128xf32>
    %740 = tpu.matmul %736, %45, %cst_227 {dimension_numbers = #tpu.dot_dimension_numbers<[1], [0], [0], [1], [0, 0, 1, 1], [], []>} : vector<8x32xf32>, vector<32x128xf32>, vector<8x128xf32> -> vector<8x128xf32>
    %741 = arith.mulf %740, %408 : vector<8x128xf32>
    %cst_228 = arith.constant dense<0.000000e+00> : vector<8x128xf32>
    %742 = tpu.matmul %741, %46, %cst_228 {dimension_numbers = #tpu.dot_dimension_numbers<[1], [0], [0], [1], [0, 0, 1, 1], [], []>} : vector<8x128xf32>, vector<128x128xf32>, vector<8x128xf32> -> vector<8x128xf32>
    %743 = arith.addf %739, %742 : vector<8x128xf32>
    %cst_229 = arith.constant 0.000000e+00 : f32
    %744 = vector.broadcast %cst_229 : f32 to vector<8x128xf32>
    %745 = arith.maximumf %743, %744 : vector<8x128xf32>
    %cst_230 = arith.constant dense<0.000000e+00> : vector<8x32xf32>
    %746 = tpu.matmul %745, %43, %cst_230 {dimension_numbers = #tpu.dot_dimension_numbers<[1], [0], [0], [1], [0, 0, 1, 1], [], []>} : vector<8x128xf32>, vector<128x32xf32>, vector<8x32xf32> -> vector<8x32xf32>
    %747 = vector.broadcast %44 : vector<1x32xf32> to vector<8x32xf32>
    %748 = arith.addf %746, %747 : vector<8x32xf32>
    %cst_231 = arith.constant dense<0.000000e+00> : vector<8x128xf32>
    %749 = tpu.matmul %745, %47, %cst_231 {dimension_numbers = #tpu.dot_dimension_numbers<[1], [0], [0], [1], [0, 0, 1, 1], [], []>} : vector<8x128xf32>, vector<128x128xf32>, vector<8x128xf32> -> vector<8x128xf32>
    %750 = arith.mulf %749, %408 : vector<8x128xf32>
    %cst_232 = arith.constant dense<0.000000e+00> : vector<8x32xf32>
    %751 = tpu.matmul %750, %48, %cst_232 {dimension_numbers = #tpu.dot_dimension_numbers<[1], [0], [0], [1], [0, 0, 1, 1], [], []>} : vector<8x128xf32>, vector<128x32xf32>, vector<8x32xf32> -> vector<8x32xf32>
    %752 = arith.addf %748, %751 : vector<8x32xf32>
    %753 = arith.addf %752, %714 : vector<8x32xf32>
    %c0_233 = arith.constant 0 : index
    %c0_234 = arith.constant 0 : index
    %754 = vector.load %arg26[%c0_233, %c0_234] : memref<16x32xf32, #tpu.memory_space<vmem>>, vector<16x32xf32>
    %c0_235 = arith.constant 0 : index
    %c0_236 = arith.constant 0 : index
    %755 = vector.load %arg27[%c0_235, %c0_236] : memref<32x64xf32, #tpu.memory_space<vmem>>, vector<32x64xf32>
    %c0_237 = arith.constant 0 : index
    %c0_238 = arith.constant 0 : index
    %756 = vector.load %arg28[%c0_237, %c0_238] : memref<1x64xf32, #tpu.memory_space<vmem>>, vector<1x64xf32>
    %c0_239 = arith.constant 0 : index
    %c0_240 = arith.constant 0 : index
    %757 = vector.load %arg29[%c0_239, %c0_240] : memref<64x128xf32, #tpu.memory_space<vmem>>, vector<64x128xf32>
    %c0_241 = arith.constant 0 : index
    %c0_242 = arith.constant 0 : index
    %758 = vector.load %arg30[%c0_241, %c0_242] : memref<1x128xf32, #tpu.memory_space<vmem>>, vector<1x128xf32>
    %759 = vector.shape_cast %753 : vector<8x32xf32> to vector<8x1x32xf32>
    %760 = vector.shape_cast %754 : vector<16x32xf32> to vector<1x16x32xf32>
    %761 = vector.broadcast %759 : vector<8x1x32xf32> to vector<8x16x32xf32>
    %762 = vector.broadcast %760 : vector<1x16x32xf32> to vector<8x16x32xf32>
    %763 = arith.addf %761, %762 : vector<8x16x32xf32>
    %764 = vector.shape_cast %763 : vector<8x16x32xf32> to vector<128x32xf32>
    %cst_243 = arith.constant dense<0.000000e+00> : vector<128x64xf32>
    %765 = tpu.matmul %764, %755, %cst_243 {dimension_numbers = #tpu.dot_dimension_numbers<[1], [0], [0], [1], [0, 0, 1, 1], [], []>} : vector<128x32xf32>, vector<32x64xf32>, vector<128x64xf32> -> vector<128x64xf32>
    %766 = vector.broadcast %756 : vector<1x64xf32> to vector<128x64xf32>
    %767 = arith.addf %765, %766 : vector<128x64xf32>
    %cst_244 = arith.constant 0.000000e+00 : f32
    %768 = vector.broadcast %cst_244 : f32 to vector<128x64xf32>
    %769 = arith.maximumf %767, %768 : vector<128x64xf32>
    %cst_245 = arith.constant dense<0.000000e+00> : vector<128x128xf32>
    %770 = tpu.matmul %769, %757, %cst_245 {dimension_numbers = #tpu.dot_dimension_numbers<[1], [0], [0], [1], [0, 0, 1, 1], [], []>} : vector<128x64xf32>, vector<64x128xf32>, vector<128x128xf32> -> vector<128x128xf32>
    %771 = vector.broadcast %758 : vector<1x128xf32> to vector<128x128xf32>
    %772 = arith.addf %770, %771 : vector<128x128xf32>
    %773 = vector.shape_cast %772 : vector<128x128xf32> to vector<8x16x128xf32>
    %774 = vector.extract_strided_slice %773 {offsets = [0, 0, 0], sizes = [8, 16, 32], strides = [1, 1, 1]} : vector<8x16x128xf32> to vector<8x16x32xf32>
    %775 = vector.extract_strided_slice %773 {offsets = [0, 0, 32], sizes = [8, 16, 1], strides = [1, 1, 1]} : vector<8x16x128xf32> to vector<8x16x1xf32>
    %cst_246 = arith.constant dense<0xFF800000> : vector<16x1xf32>
    %776 = vector.multi_reduction <maximumf>, %775, %cst_246 [0] : vector<8x16x1xf32> to vector<16x1xf32>
    %777 = vector.shape_cast %776 : vector<16x1xf32> to vector<1x16x1xf32>
    %778 = vector.broadcast %777 : vector<1x16x1xf32> to vector<8x16x1xf32>
    %779 = arith.subf %775, %778 : vector<8x16x1xf32>
    %780 = math.exp %779 : vector<8x16x1xf32>
    %cst_247 = arith.constant dense<0.000000e+00> : vector<16x1xf32>
    %781 = vector.multi_reduction <add>, %780, %cst_247 [0] : vector<8x16x1xf32> to vector<16x1xf32>
    %782 = vector.shape_cast %781 : vector<16x1xf32> to vector<1x16x1xf32>
    %783 = tpu.reciprocal %782 {approx = true} : vector<1x16x1xf32> -> vector<1x16x1xf32>
    %784 = vector.broadcast %783 : vector<1x16x1xf32> to vector<8x16x1xf32>
    %785 = arith.mulf %780, %784 : vector<8x16x1xf32>
    %786 = vector.broadcast %785 : vector<8x16x1xf32> to vector<8x16x32xf32>
    %787 = arith.mulf %786, %774 : vector<8x16x32xf32>
    %cst_248 = arith.constant dense<0.000000e+00> : vector<16x32xf32>
    %788 = vector.multi_reduction <add>, %787, %cst_248 [0] : vector<8x16x32xf32> to vector<16x32xf32>
    %789 = vector.shape_cast %369 : vector<8x32xf32> to vector<8x1x32xf32>
    %790 = vector.shape_cast %754 : vector<16x32xf32> to vector<1x16x32xf32>
    %791 = vector.broadcast %789 : vector<8x1x32xf32> to vector<8x16x32xf32>
    %792 = vector.broadcast %790 : vector<1x16x32xf32> to vector<8x16x32xf32>
    %793 = arith.addf %791, %792 : vector<8x16x32xf32>
    %794 = vector.shape_cast %793 : vector<8x16x32xf32> to vector<128x32xf32>
    %cst_249 = arith.constant dense<0.000000e+00> : vector<128x64xf32>
    %795 = tpu.matmul %794, %755, %cst_249 {dimension_numbers = #tpu.dot_dimension_numbers<[1], [0], [0], [1], [0, 0, 1, 1], [], []>} : vector<128x32xf32>, vector<32x64xf32>, vector<128x64xf32> -> vector<128x64xf32>
    %796 = vector.broadcast %756 : vector<1x64xf32> to vector<128x64xf32>
    %797 = arith.addf %795, %796 : vector<128x64xf32>
    %cst_250 = arith.constant 0.000000e+00 : f32
    %798 = vector.broadcast %cst_250 : f32 to vector<128x64xf32>
    %799 = arith.maximumf %797, %798 : vector<128x64xf32>
    %cst_251 = arith.constant dense<0.000000e+00> : vector<128x128xf32>
    %800 = tpu.matmul %799, %757, %cst_251 {dimension_numbers = #tpu.dot_dimension_numbers<[1], [0], [0], [1], [0, 0, 1, 1], [], []>} : vector<128x64xf32>, vector<64x128xf32>, vector<128x128xf32> -> vector<128x128xf32>
    %801 = vector.broadcast %758 : vector<1x128xf32> to vector<128x128xf32>
    %802 = arith.addf %800, %801 : vector<128x128xf32>
    %803 = vector.shape_cast %802 : vector<128x128xf32> to vector<8x16x128xf32>
    %804 = vector.extract_strided_slice %803 {offsets = [0, 0, 0], sizes = [8, 16, 32], strides = [1, 1, 1]} : vector<8x16x128xf32> to vector<8x16x32xf32>
    %805 = vector.extract_strided_slice %803 {offsets = [0, 0, 32], sizes = [8, 16, 1], strides = [1, 1, 1]} : vector<8x16x128xf32> to vector<8x16x1xf32>
    %cst_252 = arith.constant dense<0xFF800000> : vector<16x1xf32>
    %806 = vector.multi_reduction <maximumf>, %805, %cst_252 [0] : vector<8x16x1xf32> to vector<16x1xf32>
    %807 = vector.shape_cast %806 : vector<16x1xf32> to vector<1x16x1xf32>
    %808 = vector.broadcast %807 : vector<1x16x1xf32> to vector<8x16x1xf32>
    %809 = arith.subf %805, %808 : vector<8x16x1xf32>
    %810 = math.exp %809 : vector<8x16x1xf32>
    %cst_253 = arith.constant dense<0.000000e+00> : vector<16x1xf32>
    %811 = vector.multi_reduction <add>, %810, %cst_253 [0] : vector<8x16x1xf32> to vector<16x1xf32>
    %812 = vector.shape_cast %811 : vector<16x1xf32> to vector<1x16x1xf32>
    %813 = tpu.reciprocal %812 {approx = true} : vector<1x16x1xf32> -> vector<1x16x1xf32>
    %814 = vector.broadcast %813 : vector<1x16x1xf32> to vector<8x16x1xf32>
    %815 = arith.mulf %810, %814 : vector<8x16x1xf32>
    %816 = vector.broadcast %815 : vector<8x16x1xf32> to vector<8x16x32xf32>
    %817 = arith.mulf %816, %804 : vector<8x16x32xf32>
    %cst_254 = arith.constant dense<0.000000e+00> : vector<16x32xf32>
    %818 = vector.multi_reduction <add>, %817, %cst_254 [0] : vector<8x16x32xf32> to vector<16x32xf32>
    %c0_255 = arith.constant 0 : index
    %c0_256 = arith.constant 0 : index
    %c0_257 = arith.constant 0 : index
    %c0_258 = arith.constant 0 : index
    %819 = vector.load %arg31[%c0_255, %c0_256, %c0_257, %c0_258] : memref<1x2x8x32xf32, #tpu.memory_space<vmem>>, vector<1x1x8x32xf32>
    %820 = vector.shape_cast %819 : vector<1x1x8x32xf32> to vector<8x32xf32>
    %821 = vector.shape_cast %753 : vector<8x32xf32> to vector<1x1x8x32xf32>
    tpu.vector_store %arg31[%c0_255, %c0_256, %c0_257, %c0_258], %821 {strides = array<i32>} : memref<1x2x8x32xf32, #tpu.memory_space<vmem>>, vector<1x1x8x32xf32>,
    %c0_259 = arith.constant 0 : index
    %c1 = arith.constant 1 : index
    %c0_260 = arith.constant 0 : index
    %c0_261 = arith.constant 0 : index
    %822 = vector.load %arg31[%c0_259, %c1, %c0_260, %c0_261] : memref<1x2x8x32xf32, #tpu.memory_space<vmem>>, vector<1x1x8x32xf32>
    %823 = vector.shape_cast %822 : vector<1x1x8x32xf32> to vector<8x32xf32>
    %824 = vector.shape_cast %369 : vector<8x32xf32> to vector<1x1x8x32xf32>
    tpu.vector_store %arg31[%c0_259, %c1, %c0_260, %c0_261], %824 {strides = array<i32>} : memref<1x2x8x32xf32, #tpu.memory_space<vmem>>, vector<1x1x8x32xf32>,
    %c0_262 = arith.constant 0 : index
    %c0_263 = arith.constant 0 : index
    %c0_264 = arith.constant 0 : index
    %c0_265 = arith.constant 0 : index
    %825 = vector.load %arg32[%c0_262, %c0_263, %c0_264, %c0_265] : memref<1x2x8x16xf32, #tpu.memory_space<vmem>>, vector<1x1x8x16xf32>
    %826 = vector.shape_cast %825 : vector<1x1x8x16xf32> to vector<8x16xf32>
    %827 = vector.shape_cast %674 : vector<8x16xf32> to vector<1x1x8x16xf32>
    tpu.vector_store %arg32[%c0_262, %c0_263, %c0_264, %c0_265], %827 {strides = array<i32>} : memref<1x2x8x16xf32, #tpu.memory_space<vmem>>, vector<1x1x8x16xf32>,
    %c0_266 = arith.constant 0 : index
    %c1_267 = arith.constant 1 : index
    %c0_268 = arith.constant 0 : index
    %c0_269 = arith.constant 0 : index
    %828 = vector.load %arg32[%c0_266, %c1_267, %c0_268, %c0_269] : memref<1x2x8x16xf32, #tpu.memory_space<vmem>>, vector<1x1x8x16xf32>
    %829 = vector.shape_cast %828 : vector<1x1x8x16xf32> to vector<8x16xf32>
    %830 = vector.shape_cast %298 : vector<8x16xf32> to vector<1x1x8x16xf32>
    tpu.vector_store %arg32[%c0_266, %c1_267, %c0_268, %c0_269], %830 {strides = array<i32>} : memref<1x2x8x16xf32, #tpu.memory_space<vmem>>, vector<1x1x8x16xf32>,
    %c0_270 = arith.constant 0 : index
    %c0_271 = arith.constant 0 : index
    %c0_272 = arith.constant 0 : index
    %c0_273 = arith.constant 0 : index
    %831 = vector.load %arg33[%c0_270, %c0_271, %c0_272, %c0_273] : memref<1x2x16x32xf32, #tpu.memory_space<vmem>>, vector<1x1x16x32xf32>
    %832 = vector.shape_cast %831 : vector<1x1x16x32xf32> to vector<16x32xf32>
    %833 = vector.shape_cast %788 : vector<16x32xf32> to vector<1x1x16x32xf32>
    tpu.vector_store %arg33[%c0_270, %c0_271, %c0_272, %c0_273], %833 {strides = array<i32>} : memref<1x2x16x32xf32, #tpu.memory_space<vmem>>, vector<1x1x16x32xf32>,
    %c0_274 = arith.constant 0 : index
    %c1_275 = arith.constant 1 : index
    %c0_276 = arith.constant 0 : index
    %c0_277 = arith.constant 0 : index
    %834 = vector.load %arg33[%c0_274, %c1_275, %c0_276, %c0_277] : memref<1x2x16x32xf32, #tpu.memory_space<vmem>>, vector<1x1x16x32xf32>
    %835 = vector.shape_cast %834 : vector<1x1x16x32xf32> to vector<16x32xf32>
    %836 = vector.shape_cast %818 : vector<16x32xf32> to vector<1x1x16x32xf32>
    tpu.vector_store %arg33[%c0_274, %c1_275, %c0_276, %c0_277], %836 {strides = array<i32>} : memref<1x2x16x32xf32, #tpu.memory_space<vmem>>, vector<1x1x16x32xf32>,
    %c0_278 = arith.constant 0 : index
    %c0_279 = arith.constant 0 : index
    %c0_280 = arith.constant 0 : index
    %c0_281 = arith.constant 0 : index
    %c0_282 = arith.constant 0 : index
    %837 = vector.load %arg34[%c0_278, %c0_279, %c0_280, %c0_281, %c0_282] : memref<1x2x8x16x1xf32, #tpu.memory_space<vmem>>, vector<1x1x8x16x1xf32>
    %838 = vector.shape_cast %837 : vector<1x1x8x16x1xf32> to vector<8x16x1xf32>
    %839 = vector.shape_cast %785 : vector<8x16x1xf32> to vector<1x1x8x16x1xf32>
    tpu.vector_store %arg34[%c0_278, %c0_279, %c0_280, %c0_281, %c0_282], %839 {strides = array<i32>} : memref<1x2x8x16x1xf32, #tpu.memory_space<vmem>>, vector<1x1x8x16x1xf32>,
    %c0_283 = arith.constant 0 : index
    %c1_284 = arith.constant 1 : index
    %c0_285 = arith.constant 0 : index
    %c0_286 = arith.constant 0 : index
    %c0_287 = arith.constant 0 : index
    %840 = vector.load %arg34[%c0_283, %c1_284, %c0_285, %c0_286, %c0_287] : memref<1x2x8x16x1xf32, #tpu.memory_space<vmem>>, vector<1x1x8x16x1xf32>
    %841 = vector.shape_cast %840 : vector<1x1x8x16x1xf32> to vector<8x16x1xf32>
    %842 = vector.shape_cast %815 : vector<8x16x1xf32> to vector<1x1x8x16x1xf32>
    tpu.vector_store %arg34[%c0_283, %c1_284, %c0_285, %c0_286, %c0_287], %842 {strides = array<i32>} : memref<1x2x8x16x1xf32, #tpu.memory_space<vmem>>, vector<1x1x8x16x1xf32>,
    %c0_288 = arith.constant 0 : index
    %c0_289 = arith.constant 0 : index
    %c0_290 = arith.constant 0 : index
    %843 = vector.load %arg35[%c0_288, %c0_289, %c0_290] : memref<1x8x1xi32, #tpu.memory_space<vmem>>, vector<1x8x1xi32>
    %844 = vector.shape_cast %843 : vector<1x8x1xi32> to vector<8x1xi32>
    %845 = vector.shape_cast %385 : vector<8x1xi32> to vector<1x8x1xi32>
    tpu.vector_store %arg35[%c0_288, %c0_289, %c0_290], %845 {strides = array<i32>} : memref<1x8x1xi32, #tpu.memory_space<vmem>>, vector<1x8x1xi32>,
    %c0_291 = arith.constant 0 : index
    %c0_292 = arith.constant 0 : index
    %c0_293 = arith.constant 0 : index
    %846 = vector.load %arg36[%c0_291, %c0_292, %c0_293] : memref<1x8x1xf32, #tpu.memory_space<vmem>>, vector<1x8x1xf32>
    %847 = vector.shape_cast %846 : vector<1x8x1xf32> to vector<8x1xf32>
    %848 = vector.shape_cast %396 : vector<8x1xf32> to vector<1x8x1xf32>
    tpu.vector_store %arg36[%c0_291, %c0_292, %c0_293], %848 {strides = array<i32>} : memref<1x8x1xf32, #tpu.memory_space<vmem>>, vector<1x8x1xf32>,
    return
  }
  func.func @transform_0(%arg0: i32) -> (i32, i32, i32) {
    %c0_i32 = arith.constant 0 : i32
    %c0_i32_0 = arith.constant 0 : i32
    %c0_i32_1 = arith.constant 0 : i32
    return %arg0, %c0_i32, %c0_i32_0 : i32, i32, i32
  }
  func.func @transform_1(%arg0: i32) -> (i32, i32, i32) {
    %c0_i32 = arith.constant 0 : i32
    %c0_i32_0 = arith.constant 0 : i32
    %c0_i32_1 = arith.constant 0 : i32
    return %arg0, %c0_i32, %c0_i32_0 : i32, i32, i32
  }
  func.func @transform_2(%arg0: i32) -> (i32, i32) {
    %c0_i32 = arith.constant 0 : i32
    %c0_i32_0 = arith.constant 0 : i32
    %c0_i32_1 = arith.constant 0 : i32
    return %c0_i32, %c0_i32_0 : i32, i32
  }
  func.func @transform_3(%arg0: i32) -> (i32, i32) {
    %c0_i32 = arith.constant 0 : i32
    %c0_i32_0 = arith.constant 0 : i32
    %c0_i32_1 = arith.constant 0 : i32
    return %c0_i32, %c0_i32_0 : i32, i32
  }
  func.func @transform_4(%arg0: i32) -> (i32, i32) {
    %c0_i32 = arith.constant 0 : i32
    %c0_i32_0 = arith.constant 0 : i32
    %c0_i32_1 = arith.constant 0 : i32
    return %c0_i32, %c0_i32_0 : i32, i32
  }
  func.func @transform_5(%arg0: i32) -> (i32, i32) {
    %c0_i32 = arith.constant 0 : i32
    %c0_i32_0 = arith.constant 0 : i32
    %c0_i32_1 = arith.constant 0 : i32
    return %c0_i32, %c0_i32_0 : i32, i32
  }
  func.func @transform_6(%arg0: i32) -> (i32, i32) {
    %c0_i32 = arith.constant 0 : i32
    %c0_i32_0 = arith.constant 0 : i32
    %c0_i32_1 = arith.constant 0 : i32
    return %c0_i32, %c0_i32_0 : i32, i32
  }
  func.func @transform_7(%arg0: i32) -> (i32, i32) {
    %c0_i32 = arith.constant 0 : i32
    %c0_i32_0 = arith.constant 0 : i32
    %c0_i32_1 = arith.constant 0 : i32
    return %c0_i32, %c0_i32_0 : i32, i32
  }
  func.func @transform_8(%arg0: i32) -> (i32, i32) {
    %c0_i32 = arith.constant 0 : i32
    %c0_i32_0 = arith.constant 0 : i32
    %c0_i32_1 = arith.constant 0 : i32
    return %c0_i32, %c0_i32_0 : i32, i32
  }
  func.func @transform_9(%arg0: i32) -> (i32, i32) {
    %c0_i32 = arith.constant 0 : i32
    %c0_i32_0 = arith.constant 0 : i32
    %c0_i32_1 = arith.constant 0 : i32
    return %c0_i32, %c0_i32_0 : i32, i32
  }
  func.func @transform_10(%arg0: i32) -> (i32, i32) {
    %c0_i32 = arith.constant 0 : i32
    %c0_i32_0 = arith.constant 0 : i32
    %c0_i32_1 = arith.constant 0 : i32
    return %c0_i32, %c0_i32_0 : i32, i32
  }
  func.func @transform_11(%arg0: i32) -> (i32, i32) {
    %c0_i32 = arith.constant 0 : i32
    %c0_i32_0 = arith.constant 0 : i32
    %c0_i32_1 = arith.constant 0 : i32
    return %c0_i32, %c0_i32_0 : i32, i32
  }
  func.func @transform_12(%arg0: i32) -> (i32, i32) {
    %c0_i32 = arith.constant 0 : i32
    %c0_i32_0 = arith.constant 0 : i32
    %c0_i32_1 = arith.constant 0 : i32
    return %c0_i32, %c0_i32_0 : i32, i32
  }
  func.func @transform_13(%arg0: i32) -> (i32, i32) {
    %c0_i32 = arith.constant 0 : i32
    %c0_i32_0 = arith.constant 0 : i32
    %c0_i32_1 = arith.constant 0 : i32
    return %c0_i32, %c0_i32_0 : i32, i32
  }
  func.func @transform_14(%arg0: i32) -> (i32, i32) {
    %c0_i32 = arith.constant 0 : i32
    %c0_i32_0 = arith.constant 0 : i32
    %c0_i32_1 = arith.constant 0 : i32
    return %c0_i32, %c0_i32_0 : i32, i32
  }
  func.func @transform_15(%arg0: i32) -> (i32, i32) {
    %c0_i32 = arith.constant 0 : i32
    %c0_i32_0 = arith.constant 0 : i32
    %c0_i32_1 = arith.constant 0 : i32
    return %c0_i32, %c0_i32_0 : i32, i32
  }
  func.func @transform_16(%arg0: i32) -> (i32, i32) {
    %c0_i32 = arith.constant 0 : i32
    %c0_i32_0 = arith.constant 0 : i32
    %c0_i32_1 = arith.constant 0 : i32
    return %c0_i32, %c0_i32_0 : i32, i32
  }
  func.func @transform_17(%arg0: i32) -> (i32, i32) {
    %c0_i32 = arith.constant 0 : i32
    %c0_i32_0 = arith.constant 0 : i32
    %c0_i32_1 = arith.constant 0 : i32
    return %c0_i32, %c0_i32_0 : i32, i32
  }
  func.func @transform_18(%arg0: i32) -> (i32, i32) {
    %c0_i32 = arith.constant 0 : i32
    %c0_i32_0 = arith.constant 0 : i32
    %c0_i32_1 = arith.constant 0 : i32
    return %c0_i32, %c0_i32_0 : i32, i32
  }
  func.func @transform_19(%arg0: i32) -> (i32, i32) {
    %c0_i32 = arith.constant 0 : i32
    %c0_i32_0 = arith.constant 0 : i32
    %c0_i32_1 = arith.constant 0 : i32
    return %c0_i32, %c0_i32_0 : i32, i32
  }
  func.func @transform_20(%arg0: i32) -> (i32, i32) {
    %c0_i32 = arith.constant 0 : i32
    %c0_i32_0 = arith.constant 0 : i32
    %c0_i32_1 = arith.constant 0 : i32
    return %c0_i32, %c0_i32_0 : i32, i32
  }
  func.func @transform_21(%arg0: i32) -> (i32, i32) {
    %c0_i32 = arith.constant 0 : i32
    %c0_i32_0 = arith.constant 0 : i32
    %c0_i32_1 = arith.constant 0 : i32
    return %c0_i32, %c0_i32_0 : i32, i32
  }
  func.func @transform_22(%arg0: i32) -> (i32, i32) {
    %c0_i32 = arith.constant 0 : i32
    %c0_i32_0 = arith.constant 0 : i32
    %c0_i32_1 = arith.constant 0 : i32
    return %c0_i32, %c0_i32_0 : i32, i32
  }
  func.func @transform_23(%arg0: i32) -> (i32, i32) {
    %c0_i32 = arith.constant 0 : i32
    %c0_i32_0 = arith.constant 0 : i32
    %c0_i32_1 = arith.constant 0 : i32
    return %c0_i32, %c0_i32_0 : i32, i32
  }
  func.func @transform_24(%arg0: i32) -> (i32, i32) {
    %c0_i32 = arith.constant 0 : i32
    %c0_i32_0 = arith.constant 0 : i32
    %c0_i32_1 = arith.constant 0 : i32
    return %c0_i32, %c0_i32_0 : i32, i32
  }
  func.func @transform_25(%arg0: i32) -> (i32, i32) {
    %c0_i32 = arith.constant 0 : i32
    %c0_i32_0 = arith.constant 0 : i32
    %c0_i32_1 = arith.constant 0 : i32
    return %c0_i32, %c0_i32_0 : i32, i32
  }
  func.func @transform_26(%arg0: i32) -> (i32, i32) {
    %c0_i32 = arith.constant 0 : i32
    %c0_i32_0 = arith.constant 0 : i32
    %c0_i32_1 = arith.constant 0 : i32
    return %c0_i32, %c0_i32_0 : i32, i32
  }
  func.func @transform_27(%arg0: i32) -> (i32, i32) {
    %c0_i32 = arith.constant 0 : i32
    %c0_i32_0 = arith.constant 0 : i32
    %c0_i32_1 = arith.constant 0 : i32
    return %c0_i32, %c0_i32_0 : i32, i32
  }
  func.func @transform_28(%arg0: i32) -> (i32, i32) {
    %c0_i32 = arith.constant 0 : i32
    %c0_i32_0 = arith.constant 0 : i32
    %c0_i32_1 = arith.constant 0 : i32
    return %c0_i32, %c0_i32_0 : i32, i32
  }
  func.func @transform_29(%arg0: i32) -> (i32, i32) {
    %c0_i32 = arith.constant 0 : i32
    %c0_i32_0 = arith.constant 0 : i32
    %c0_i32_1 = arith.constant 0 : i32
    return %c0_i32, %c0_i32_0 : i32, i32
  }
  func.func @transform_30(%arg0: i32) -> (i32, i32, i32, i32) {
    %c0_i32 = arith.constant 0 : i32
    %c0_i32_0 = arith.constant 0 : i32
    %c0_i32_1 = arith.constant 0 : i32
    %c0_i32_2 = arith.constant 0 : i32
    return %arg0, %c0_i32, %c0_i32_0, %c0_i32_1 : i32, i32, i32, i32
  }
  func.func @transform_31(%arg0: i32) -> (i32, i32, i32, i32) {
    %c0_i32 = arith.constant 0 : i32
    %c0_i32_0 = arith.constant 0 : i32
    %c0_i32_1 = arith.constant 0 : i32
    %c0_i32_2 = arith.constant 0 : i32
    return %arg0, %c0_i32, %c0_i32_0, %c0_i32_1 : i32, i32, i32, i32
  }
  func.func @transform_32(%arg0: i32) -> (i32, i32, i32, i32) {
    %c0_i32 = arith.constant 0 : i32
    %c0_i32_0 = arith.constant 0 : i32
    %c0_i32_1 = arith.constant 0 : i32
    %c0_i32_2 = arith.constant 0 : i32
    return %arg0, %c0_i32, %c0_i32_0, %c0_i32_1 : i32, i32, i32, i32
  }
  func.func @transform_33(%arg0: i32) -> (i32, i32, i32, i32, i32) {
    %c0_i32 = arith.constant 0 : i32
    %c0_i32_0 = arith.constant 0 : i32
    %c0_i32_1 = arith.constant 0 : i32
    %c0_i32_2 = arith.constant 0 : i32
    %c0_i32_3 = arith.constant 0 : i32
    return %arg0, %c0_i32, %c0_i32_0, %c0_i32_1, %c0_i32_2 : i32, i32, i32, i32, i32
  }
  func.func @transform_34(%arg0: i32) -> (i32, i32, i32) {
    %c0_i32 = arith.constant 0 : i32
    %c0_i32_0 = arith.constant 0 : i32
    %c0_i32_1 = arith.constant 0 : i32
    return %arg0, %c0_i32, %c0_i32_0 : i32, i32, i32
  }
  func.func @transform_35(%arg0: i32) -> (i32, i32, i32) {
    %c0_i32 = arith.constant 0 : i32
    %c0_i32_0 = arith.constant 0 : i32
    %c0_i32_1 = arith.constant 0 : i32
    return %arg0, %c0_i32, %c0_i32_0 : i32, i32, i32
  }
}

</mosaic_0001>

<llo_original>
// kernel: forward.1
$region0: #{forward.1}
  #allocation0 [shape = 'u32[]', space=smem, size = 0x4, offset = 0x4, fixed_abs, tag = 'smem constant byte address 0x4 - core index']
  #allocation1 [shape = 'u32[72,128]{1,0:T(1,128)}', space=vmem, size = 0x9000, scoped, tag = 'internal scratch']
  %s0 = inlined_call_operand.smem [shape: u32[36], index: -1, kind: input, shape index: {}]
  %s1 = sld [smem:[%s0]]
  %s2 = scalar_lea.smem %s0, 1
  %s3 = sld [smem:[%s2]]
  %s4 = scalar_lea.smem %s0, 2
  %s5 = sld [smem:[%s4]]
  %s6 = scalar_lea.smem %s0, 3
  %s7 = sld [smem:[%s6]]
  %s8 = scalar_lea.smem %s0, 4
  %s9 = sld [smem:[%s8]]
  %s10 = scalar_lea.smem %s0, 5
  %s11 = sld [smem:[%s10]]
  %s12 = scalar_lea.smem %s0, 6
  %s13 = sld [smem:[%s12]]
  %s14 = scalar_lea.smem %s0, 7
  %s15 = sld [smem:[%s14]]
  %s16 = scalar_lea.smem %s0, 8
  %s17 = sld [smem:[%s16]]
  %s18 = scalar_lea.smem %s0, 9
  %s19 = sld [smem:[%s18]]
  %s20 = scalar_lea.smem %s0, 10
  %s21 = sld [smem:[%s20]]
  %s22 = scalar_lea.smem %s0, 11
  %s23 = sld [smem:[%s22]]
  %s24 = scalar_lea.smem %s0, 12
  %s25 = sld [smem:[%s24]]
  %s26 = scalar_lea.smem %s0, 13
  %s27 = sld [smem:[%s26]]
  %s28 = scalar_lea.smem %s0, 14
  %s29 = sld [smem:[%s28]]
  %s30 = scalar_lea.smem %s0, 15
  %s31 = sld [smem:[%s30]]
  %s32 = scalar_lea.smem %s0, 16
  %s33 = sld [smem:[%s32]]
  %s34 = scalar_lea.smem %s0, 17
  %s35 = sld [smem:[%s34]]
  %s36 = scalar_lea.smem %s0, 18
  %s37 = sld [smem:[%s36]]
  %s38 = scalar_lea.smem %s0, 19
  %s39 = sld [smem:[%s38]]
  %s40 = scalar_lea.smem %s0, 20
  %s41 = sld [smem:[%s40]]
  %s42 = scalar_lea.smem %s0, 21
  %s43 = sld [smem:[%s42]]
  %s44 = scalar_lea.smem %s0, 22
  %s45 = sld [smem:[%s44]]
  %s46 = scalar_lea.smem %s0, 23
  %s47 = sld [smem:[%s46]]
  %s48 = scalar_lea.smem %s0, 24
  %s49 = sld [smem:[%s48]]
  %s50 = scalar_lea.smem %s0, 25
  %s51 = sld [smem:[%s50]]
  %s52 = scalar_lea.smem %s0, 26
  %s53 = sld [smem:[%s52]]
  %s54 = scalar_lea.smem %s0, 27
  %s55 = sld [smem:[%s54]]
  %s56 = scalar_lea.smem %s0, 28
  %s57 = sld [smem:[%s56]]
  %s58 = scalar_lea.smem %s0, 29
  %s59 = sld [smem:[%s58]]
  %s60 = scalar_lea.smem %s0, 30
  %s61 = sld [smem:[%s60]]
  %s62 = scalar_lea.smem %s0, 31
  %s63 = sld [smem:[%s62]]
  %s64 = scalar_lea.smem %s0, 32
  %s65 = sld [smem:[%s64]]
  %s66 = scalar_lea.smem %s0, 33
  %s67 = sld [smem:[%s66]]
  %s68 = scalar_lea.smem %s0, 34
  %s69 = sld [smem:[%s68]]
  %s70 = scalar_lea.smem %s0, 35
  %s71 = sld [smem:[%s70]]
  %72 = xla_tuple %s61, %s63, %s65, %s67, %s69, %s71
  %s73 = sld [smem:[#allocation0]]
  $region277: #{forward.1} parent=0
    _
  %s75 = ssub.s32 1, %s73
  %s76 = scalar_select 0, %s75, %s73
  $region1: #{forward.1} parent=0
    #allocation2 [shape = 'u8[16384]{0}', space=vmem, size = 0x4000, scoped, tag = 'input window, operand 4, single buffered']
    #allocation3 [shape = 's32[2]{0}', space=sflag, size = 0x8, scoped, tag = 'scoped memory for forward.1']
    #allocation4 [shape = 'u8[16384]{0}', space=vmem, size = 0x4000, scoped, tag = 'input window, operand 5, single buffered']
    #allocation5 [shape = 's32[1]{0}', space=sflag, size = 0x4, scoped, tag = 'scoped memory for forward.1']
    #allocation6 [shape = 'u8[16384]{0}', space=vmem, size = 0x4000, scoped, tag = 'input window, operand 6, single buffered']
    #allocation7 [shape = 'u8[512]{0}', space=vmem, size = 0x400, scoped, tag = 'input window, operand 8, single buffered']
    #allocation8 [shape = 's32[1]{0}', space=sflag, size = 0x4, scoped, tag = 'scoped memory for forward.1']
    #allocation9 [shape = 'u8[16384]{0}', space=vmem, size = 0x4000, scoped, tag = 'input window, operand 9, single buffered']
    #allocation10 [shape = 'u8[16384]{0}', space=vmem, size = 0x4000, scoped, tag = 'input window, operand 10, single buffered']
    #allocation11 [shape = 's32[1]{0}', space=sflag, size = 0x4, scoped, tag = 'scoped memory for forward.1']
    #allocation12 [shape = 'u8[512]{0}', space=vmem, size = 0x400, scoped, tag = 'input window, operand 11, single buffered']
    #allocation13 [shape = 'u8[512]{0}', space=vmem, size = 0x400, scoped, tag = 'input window, operand 12, single buffered']
    #allocation14 [shape = 's32[1]{0}', space=sflag, size = 0x4, scoped, tag = 'scoped memory for forward.1']
    #allocation15 [shape = 'u8[512]{0}', space=vmem, size = 0x400, scoped, tag = 'input window, operand 13, single buffered']
    #allocation16 [shape = 'u8[512]{0}', space=vmem, size = 0x400, scoped, tag = 'input window, operand 14, single buffered']
    #allocation17 [shape = 's32[1]{0}', space=sflag, size = 0x4, scoped, tag = 'scoped memory for forward.1']
    #allocation18 [shape = 'u8[16384]{0}', space=vmem, size = 0x4000, scoped, tag = 'input window, operand 15, single buffered']
    #allocation19 [shape = 'u8[512]{0}', space=vmem, size = 0x400, scoped, tag = 'input window, operand 16, single buffered']
    #allocation20 [shape = 's32[1]{0}', space=sflag, size = 0x4, scoped, tag = 'scoped memory for forward.1']
    #allocation21 [shape = 'u8[512]{0}', space=vmem, size = 0x400, scoped, tag = 'input window, operand 18, single buffered']
    #allocation22 [shape = 'u8[16384]{0}', space=vmem, size = 0x4000, scoped, tag = 'input window, operand 19, single buffered']
    #allocation23 [shape = 's32[1]{0}', space=sflag, size = 0x4, scoped, tag = 'scoped memory for forward.1']
    #allocation24 [shape = 'u8[8192]{0}', space=vmem, size = 0x2000, scoped, tag = 'input window, operand 23, single buffered']
    #allocation25 [shape = 'u8[512]{0}', space=vmem, size = 0x400, scoped, tag = 'input window, operand 24, single buffered']
    #allocation26 [shape = 's32[1]{0}', space=sflag, size = 0x4, scoped, tag = 'scoped memory for forward.1']
    #allocation27 [shape = 'u8[8192]{0}', space=vmem, size = 0x2000, scoped, tag = 'input window, operand 25, single buffered']
    #allocation28 [shape = 'u8[16384]{0}', space=vmem, size = 0x4000, scoped, tag = 'input window, operand 26, single buffered']
    #allocation29 [shape = 's32[1]{0}', space=sflag, size = 0x4, scoped, tag = 'scoped memory for forward.1']
    #allocation30 [shape = 'u8[512]{0}', space=vmem, size = 0x400, scoped, tag = 'input window, operand 27, single buffered']
    #allocation31 [shape = 'u8[32768]{0}', space=vmem, size = 0x8000, scoped, tag = 'input window, operand 28, single buffered']
    #allocation32 [shape = 's32[1]{0}', space=sflag, size = 0x4, scoped, tag = 'scoped memory for forward.1']
    #allocation33 [shape = 'u8[512]{0}', space=vmem, size = 0x400, scoped, tag = 'input window, operand 29, single buffered']
    %77 = vsyncpa [#allocation3], 0
    %78 = vsyncpa [#allocation5], 0
    %79 = vsyncpa [#allocation8], 0
    %80 = vsyncpa [#allocation11], 0
    %81 = vsyncpa [#allocation14], 0
    %82 = vsyncpa [#allocation17], 0
    %83 = vsyncpa [#allocation20], 0
    %84 = vsyncpa [#allocation23], 0
    %85 = vsyncpa [#allocation26], 0
    %86 = vsyncpa [#allocation29], 0
    %87 = vsyncpa [#allocation32], 0
    loop: start=0, step=1, limit=4
    $region2: #{forward.1} parent=1 // loop_pre_header
      _
    $region3: #{forward.1} parent=1 // loop_header
      %s89 = sphi 0, %s93
      %p90 = scmp.ge.s32.totalorder %s89, 4
      %s99 = sphi 0, %s101
      %s102 = sphi 0, %s99
      %s103 = sphi 0, %s102
      %s119 = sphi 0, %s103
      %s125 = sphi 0, %s127
      %s128 = sphi 0, %s125
      %s129 = sphi 0, %s128
      %s145 = sphi 0, %s129
      %s149 = sphi 0, %s149
      %s151 = sphi 0, %s149
      %s152 = sphi 0, %s151
      %s166 = sphi 0, %s152
      %s170 = sphi 0, %s170
      %s172 = sphi 0, %s170
      %s173 = sphi 0, %s172
      %s187 = sphi 0, %s173
      %s191 = sphi 0, %s191
      %s193 = sphi 0, %s191
      %s194 = sphi 0, %s193
      %s208 = sphi 0, %s194
      %s212 = sphi 0, %s212
      %s214 = sphi 0, %s212
      %s215 = sphi 0, %s214
      %s229 = sphi 0, %s215
      %s233 = sphi 0, %s233
      %s235 = sphi 0, %s233
      %s236 = sphi 0, %s235
      %s250 = sphi 0, %s236
      %s254 = sphi 0, %s254
      %s256 = sphi 0, %s254
      %s257 = sphi 0, %s256
      %s271 = sphi 0, %s257
      %s275 = sphi 0, %s275
      %s277 = sphi 0, %s275
      %s278 = sphi 0, %s277
      %s292 = sphi 0, %s278
      %s296 = sphi 0, %s296
      %s298 = sphi 0, %s296
      %s299 = sphi 0, %s298
      %s313 = sphi 0, %s299
      %s317 = sphi 0, %s317
      %s319 = sphi 0, %s317
      %s320 = sphi 0, %s319
      %s334 = sphi 0, %s320
      %s338 = sphi 0, %s338
      %s340 = sphi 0, %s338
      %s341 = sphi 0, %s340
      %s355 = sphi 0, %s341
      %s359 = sphi 0, %s359
      %s361 = sphi 0, %s359
      %s362 = sphi 0, %s361
      %s376 = sphi 0, %s362
      %s380 = sphi 0, %s380
      %s382 = sphi 0, %s380
      %s383 = sphi 0, %s382
      %s397 = sphi 0, %s383
      %s401 = sphi 0, %s401
      %s403 = sphi 0, %s401
      %s404 = sphi 0, %s403
      %s418 = sphi 0, %s404
      %s422 = sphi 0, %s422
      %s424 = sphi 0, %s422
      %s425 = sphi 0, %s424
      %s439 = sphi 0, %s425
      %s443 = sphi 0, %s443
      %s445 = sphi 0, %s443
      %s446 = sphi 0, %s445
      %s460 = sphi 0, %s446
      %s464 = sphi 0, %s464
      %s466 = sphi 0, %s464
      %s467 = sphi 0, %s466
      %s481 = sphi 0, %s467
      %s485 = sphi 0, %s485
      %s487 = sphi 0, %s485
      %s488 = sphi 0, %s487
      %s502 = sphi 0, %s488
      %s506 = sphi 0, %s506
      %s508 = sphi 0, %s506
      %s509 = sphi 0, %s508
      %s523 = sphi 0, %s509
      %s527 = sphi 0, %s527
      %s529 = sphi 0, %s527
      %s530 = sphi 0, %s529
      %s544 = sphi 0, %s530
      %s548 = sphi 0, %s548
      %s550 = sphi 0, %s548
      %s551 = sphi 0, %s550
      %s565 = sphi 0, %s551
      %s569 = sphi 0, %s569
      %s571 = sphi 0, %s569
      %s572 = sphi 0, %s571
      %s586 = sphi 0, %s572
      %s590 = sphi 0, %s590
      %s592 = sphi 0, %s590
      %s593 = sphi 0, %s592
      %s607 = sphi 0, %s593
      %s611 = sphi 0, %s611
      %s613 = sphi 0, %s611
      %s614 = sphi 0, %s613
      %s628 = sphi 0, %s614
      %s632 = sphi 0, %s632
      %s634 = sphi 0, %s632
      %s635 = sphi 0, %s634
      %s649 = sphi 0, %s635
      %s653 = sphi 0, %s653
      %s655 = sphi 0, %s653
      %s656 = sphi 0, %s655
      %s670 = sphi 0, %s656
      %s674 = sphi 0, %s674
      %s676 = sphi 0, %s674
      %s677 = sphi 0, %s676
      %s691 = sphi 0, %s677
      %s695 = sphi 0, %s695
      %s697 = sphi 0, %s695
      %s698 = sphi 0, %s697
      %s712 = sphi 0, %s698
      %s716 = sphi 0, %s716
      %s718 = sphi 0, %s716
      %s719 = sphi 0, %s718
      %s733 = sphi 0, %s719
      %s739 = sphi 0, %s741
      %s742 = sphi 0, %s739
      %s743 = sphi 0, %s742
      %s759 = sphi 0, %s743
      %s765 = sphi 0, %s767
      %s768 = sphi 0, %s765
      %s769 = sphi 0, %s768
      %s785 = sphi 0, %s769
      %s791 = sphi 0, %s793
      %s794 = sphi 0, %s791
      %s795 = sphi 0, %s794
      %s811 = sphi 0, %s795
      %s817 = sphi 0, %s819
      %s820 = sphi 0, %s817
      %s821 = sphi 0, %s820
      %s837 = sphi 0, %s821
      %s843 = sphi 0, %s845
      %s846 = sphi 0, %s843
      %s847 = sphi 0, %s846
      %s863 = sphi 0, %s847
      %s869 = sphi 0, %s871
      %s872 = sphi 0, %s869
      %s873 = sphi 0, %s872
      %s889 = sphi 0, %s873
    $region4: #{forward.1} parent=1 // loop_header_branch
      %92 = sbr.rel (%p90) target = $region8
    $region5: #{forward.1} parent=1 // loop_body
      %s94 = ssub.s32 %s89, 1
      %s95 = ssub.s32 %s89, 2
      %s96 = sadd.s32 %s89, 1
      %s97 = ssub.s32 %s89, %s96
      %p98 = scmp.eq.s32.totalorder %s97, 0
      %s100 = sadd.s32 %s99, 1
      %s101 = scalar_select %p98, %s99, %s100
      %p104 = pneg %p98
      %p105 = scmp.eq.s32.totalorder %s89, 1
      %p106 = por %p104, %p105
      %p107 = scmp.ne.s32.totalorder %s99, %s102
      %p108 = scmp.eq.s32.totalorder %s89, 0
      %p109 = por %p107, %p108
      %p110 = scmp.ne.s32.totalorder %s99, %s102
      %p111 = scmp.eq.s32.totalorder %s94, 1
      %p112 = por %p110, %p111
      %p113 = scmp.ne.s32.totalorder %s102, %s103
      %p114 = scmp.eq.s32.totalorder %s94, 0
      %p115 = por %p113, %p114
      %p116 = scmp.ne.s32.totalorder %s102, %s103
      %p117 = scmp.eq.s32.totalorder %s95, 1
      %p118 = por %p116, %p117
      %p120 = scmp.ne.s32.totalorder %s103, %s119
      %p121 = scmp.eq.s32.totalorder %s95, 0
      %p122 = por %p120, %p121
      %s123 = ssub.s32 %s89, %s96
      %p124 = scmp.eq.s32.totalorder %s123, 0
      %s126 = sadd.s32 %s125, 1
      %s127 = scalar_select %p124, %s125, %s126
      %p130 = pneg %p124
      %p131 = scmp.eq.s32.totalorder %s89, 1
      %p132 = por %p130, %p131
      %p133 = scmp.ne.s32.totalorder %s125, %s128
      %p134 = scmp.eq.s32.totalorder %s89, 0
      %p135 = por %p133, %p134
      %p136 = scmp.ne.s32.totalorder %s125, %s128
      %p137 = scmp.eq.s32.totalorder %s94, 1
      %p138 = por %p136, %p137
      %p139 = scmp.ne.s32.totalorder %s128, %s129
      %p140 = scmp.eq.s32.totalorder %s94, 0
      %p141 = por %p139, %p140
      %p142 = scmp.ne.s32.totalorder %s128, %s129
      %p143 = scmp.eq.s32.totalorder %s95, 1
      %p144 = por %p142, %p143
      %p146 = scmp.ne.s32.totalorder %s129, %s145
      %p147 = scmp.eq.s32.totalorder %s95, 0
      %p148 = por %p146, %p147
      %s150 = sadd.s32 %s149, 1
      %p153 = scmp.eq.s32.totalorder %s89, 1
      %p154 = scmp.ne.s32.totalorder %s149, %s151
      %p155 = scmp.eq.s32.totalorder %s89, 0
      %p156 = por %p154, %p155
      %p157 = scmp.ne.s32.totalorder %s149, %s151
      %p158 = scmp.eq.s32.totalorder %s94, 1
      %p159 = por %p157, %p158
      %p160 = scmp.ne.s32.totalorder %s151, %s152
      %p161 = scmp.eq.s32.totalorder %s94, 0
      %p162 = por %p160, %p161
      %p163 = scmp.ne.s32.totalorder %s151, %s152
      %p164 = scmp.eq.s32.totalorder %s95, 1
      %p165 = por %p163, %p164
      %p167 = scmp.ne.s32.totalorder %s152, %s166
      %p168 = scmp.eq.s32.totalorder %s95, 0
      %p169 = por %p167, %p168
      %s171 = sadd.s32 %s170, 1
      %p174 = scmp.eq.s32.totalorder %s89, 1
      %p175 = scmp.ne.s32.totalorder %s170, %s172
      %p176 = scmp.eq.s32.totalorder %s89, 0
      %p177 = por %p175, %p176
      %p178 = scmp.ne.s32.totalorder %s170, %s172
      %p179 = scmp.eq.s32.totalorder %s94, 1
      %p180 = por %p178, %p179
      %p181 = scmp.ne.s32.totalorder %s172, %s173
      %p182 = scmp.eq.s32.totalorder %s94, 0
      %p183 = por %p181, %p182
      %p184 = scmp.ne.s32.totalorder %s172, %s173
      %p185 = scmp.eq.s32.totalorder %s95, 1
      %p186 = por %p184, %p185
      %p188 = scmp.ne.s32.totalorder %s173, %s187
      %p189 = scmp.eq.s32.totalorder %s95, 0
      %p190 = por %p188, %p189
      %s192 = sadd.s32 %s191, 1
      %p195 = scmp.eq.s32.totalorder %s89, 1
      %p196 = scmp.ne.s32.totalorder %s191, %s193
      %p197 = scmp.eq.s32.totalorder %s89, 0
      %p198 = por %p196, %p197
      %p199 = scmp.ne.s32.totalorder %s191, %s193
      %p200 = scmp.eq.s32.totalorder %s94, 1
      %p201 = por %p199, %p200
      %p202 = scmp.ne.s32.totalorder %s193, %s194
      %p203 = scmp.eq.s32.totalorder %s94, 0
      %p204 = por %p202, %p203
      %p205 = scmp.ne.s32.totalorder %s193, %s194
      %p206 = scmp.eq.s32.totalorder %s95, 1
      %p207 = por %p205, %p206
      %p209 = scmp.ne.s32.totalorder %s194, %s208
      %p210 = scmp.eq.s32.totalorder %s95, 0
      %p211 = por %p209, %p210
      %s213 = sadd.s32 %s212, 1
      %p216 = scmp.eq.s32.totalorder %s89, 1
      %p217 = scmp.ne.s32.totalorder %s212, %s214
      %p218 = scmp.eq.s32.totalorder %s89, 0
      %p219 = por %p217, %p218
      %p220 = scmp.ne.s32.totalorder %s212, %s214
      %p221 = scmp.eq.s32.totalorder %s94, 1
      %p222 = por %p220, %p221
      %p223 = scmp.ne.s32.totalorder %s214, %s215
      %p224 = scmp.eq.s32.totalorder %s94, 0
      %p225 = por %p223, %p224
      %p226 = scmp.ne.s32.totalorder %s214, %s215
      %p227 = scmp.eq.s32.totalorder %s95, 1
      %p228 = por %p226, %p227
      %p230 = scmp.ne.s32.totalorder %s215, %s229
      %p231 = scmp.eq.s32.totalorder %s95, 0
      %p232 = por %p230, %p231
      %s234 = sadd.s32 %s233, 1
      %p237 = scmp.eq.s32.totalorder %s89, 1
      %p238 = scmp.ne.s32.totalorder %s233, %s235
      %p239 = scmp.eq.s32.totalorder %s89, 0
      %p240 = por %p238, %p239
      %p241 = scmp.ne.s32.totalorder %s233, %s235
      %p242 = scmp.eq.s32.totalorder %s94, 1
      %p243 = por %p241, %p242
      %p244 = scmp.ne.s32.totalorder %s235, %s236
      %p245 = scmp.eq.s32.totalorder %s94, 0
      %p246 = por %p244, %p245
      %p247 = scmp.ne.s32.totalorder %s235, %s236
      %p248 = scmp.eq.s32.totalorder %s95, 1
      %p249 = por %p247, %p248
      %p251 = scmp.ne.s32.totalorder %s236, %s250
      %p252 = scmp.eq.s32.totalorder %s95, 0
      %p253 = por %p251, %p252
      %s255 = sadd.s32 %s254, 1
      %p258 = scmp.eq.s32.totalorder %s89, 1
      %p259 = scmp.ne.s32.totalorder %s254, %s256
      %p260 = scmp.eq.s32.totalorder %s89, 0
      %p261 = por %p259, %p260
      %p262 = scmp.ne.s32.totalorder %s254, %s256
      %p263 = scmp.eq.s32.totalorder %s94, 1
      %p264 = por %p262, %p263
      %p265 = scmp.ne.s32.totalorder %s256, %s257
      %p266 = scmp.eq.s32.totalorder %s94, 0
      %p267 = por %p265, %p266
      %p268 = scmp.ne.s32.totalorder %s256, %s257
      %p269 = scmp.eq.s32.totalorder %s95, 1
      %p270 = por %p268, %p269
      %p272 = scmp.ne.s32.totalorder %s257, %s271
      %p273 = scmp.eq.s32.totalorder %s95, 0
      %p274 = por %p272, %p273
      %s276 = sadd.s32 %s275, 1
      %p279 = scmp.eq.s32.totalorder %s89, 1
      %p280 = scmp.ne.s32.totalorder %s275, %s277
      %p281 = scmp.eq.s32.totalorder %s89, 0
      %p282 = por %p280, %p281
      %p283 = scmp.ne.s32.totalorder %s275, %s277
      %p284 = scmp.eq.s32.totalorder %s94, 1
      %p285 = por %p283, %p284
      %p286 = scmp.ne.s32.totalorder %s277, %s278
      %p287 = scmp.eq.s32.totalorder %s94, 0
      %p288 = por %p286, %p287
      %p289 = scmp.ne.s32.totalorder %s277, %s278
      %p290 = scmp.eq.s32.totalorder %s95, 1
      %p291 = por %p289, %p290
      %p293 = scmp.ne.s32.totalorder %s278, %s292
      %p294 = scmp.eq.s32.totalorder %s95, 0
      %p295 = por %p293, %p294
      %s297 = sadd.s32 %s296, 1
      %p300 = scmp.eq.s32.totalorder %s89, 1
      %p301 = scmp.ne.s32.totalorder %s296, %s298
      %p302 = scmp.eq.s32.totalorder %s89, 0
      %p303 = por %p301, %p302
      %p304 = scmp.ne.s32.totalorder %s296, %s298
      %p305 = scmp.eq.s32.totalorder %s94, 1
      %p306 = por %p304, %p305
      %p307 = scmp.ne.s32.totalorder %s298, %s299
      %p308 = scmp.eq.s32.totalorder %s94, 0
      %p309 = por %p307, %p308
      %p310 = scmp.ne.s32.totalorder %s298, %s299
      %p311 = scmp.eq.s32.totalorder %s95, 1
      %p312 = por %p310, %p311
      %p314 = scmp.ne.s32.totalorder %s299, %s313
      %p315 = scmp.eq.s32.totalorder %s95, 0
      %p316 = por %p314, %p315
      %s318 = sadd.s32 %s317, 1
      %p321 = scmp.eq.s32.totalorder %s89, 1
      %p322 = scmp.ne.s32.totalorder %s317, %s319
      %p323 = scmp.eq.s32.totalorder %s89, 0
      %p324 = por %p322, %p323
      %p325 = scmp.ne.s32.totalorder %s317, %s319
      %p326 = scmp.eq.s32.totalorder %s94, 1
      %p327 = por %p325, %p326
      %p328 = scmp.ne.s32.totalorder %s319, %s320
      %p329 = scmp.eq.s32.totalorder %s94, 0
      %p330 = por %p328, %p329
      %p331 = scmp.ne.s32.totalorder %s319, %s320
      %p332 = scmp.eq.s32.totalorder %s95, 1
      %p333 = por %p331, %p332
      %p335 = scmp.ne.s32.totalorder %s320, %s334
      %p336 = scmp.eq.s32.totalorder %s95, 0
      %p337 = por %p335, %p336
      %s339 = sadd.s32 %s338, 1
      %p342 = scmp.eq.s32.totalorder %s89, 1
      %p343 = scmp.ne.s32.totalorder %s338, %s340
      %p344 = scmp.eq.s32.totalorder %s89, 0
      %p345 = por %p343, %p344
      %p346 = scmp.ne.s32.totalorder %s338, %s340
      %p347 = scmp.eq.s32.totalorder %s94, 1
      %p348 = por %p346, %p347
      %p349 = scmp.ne.s32.totalorder %s340, %s341
      %p350 = scmp.eq.s32.totalorder %s94, 0
      %p351 = por %p349, %p350
      %p352 = scmp.ne.s32.totalorder %s340, %s341
      %p353 = scmp.eq.s32.totalorder %s95, 1
      %p354 = por %p352, %p353
      %p356 = scmp.ne.s32.totalorder %s341, %s355
      %p357 = scmp.eq.s32.totalorder %s95, 0
      %p358 = por %p356, %p357
      %s360 = sadd.s32 %s359, 1
      %p363 = scmp.eq.s32.totalorder %s89, 1
      %p364 = scmp.ne.s32.totalorder %s359, %s361
      %p365 = scmp.eq.s32.totalorder %s89, 0
      %p366 = por %p364, %p365
      %p367 = scmp.ne.s32.totalorder %s359, %s361
      %p368 = scmp.eq.s32.totalorder %s94, 1
      %p369 = por %p367, %p368
      %p370 = scmp.ne.s32.totalorder %s361, %s362
      %p371 = scmp.eq.s32.totalorder %s94, 0
      %p372 = por %p370, %p371
      %p373 = scmp.ne.s32.totalorder %s361, %s362
      %p374 = scmp.eq.s32.totalorder %s95, 1
      %p375 = por %p373, %p374
      %p377 = scmp.ne.s32.totalorder %s362, %s376
      %p378 = scmp.eq.s32.totalorder %s95, 0
      %p379 = por %p377, %p378
      %s381 = sadd.s32 %s380, 1
      %p384 = scmp.eq.s32.totalorder %s89, 1
      %p385 = scmp.ne.s32.totalorder %s380, %s382
      %p386 = scmp.eq.s32.totalorder %s89, 0
      %p387 = por %p385, %p386
      %p388 = scmp.ne.s32.totalorder %s380, %s382
      %p389 = scmp.eq.s32.totalorder %s94, 1
      %p390 = por %p388, %p389
      %p391 = scmp.ne.s32.totalorder %s382, %s383
      %p392 = scmp.eq.s32.totalorder %s94, 0
      %p393 = por %p391, %p392
      %p394 = scmp.ne.s32.totalorder %s382, %s383
      %p395 = scmp.eq.s32.totalorder %s95, 1
      %p396 = por %p394, %p395
      %p398 = scmp.ne.s32.totalorder %s383, %s397
      %p399 = scmp.eq.s32.totalorder %s95, 0
      %p400 = por %p398, %p399
      %s402 = sadd.s32 %s401, 1
      %p405 = scmp.eq.s32.totalorder %s89, 1
      %p406 = scmp.ne.s32.totalorder %s401, %s403
      %p407 = scmp.eq.s32.totalorder %s89, 0
      %p408 = por %p406, %p407
      %p409 = scmp.ne.s32.totalorder %s401, %s403
      %p410 = scmp.eq.s32.totalorder %s94, 1
      %p411 = por %p409, %p410
      %p412 = scmp.ne.s32.totalorder %s403, %s404
      %p413 = scmp.eq.s32.totalorder %s94, 0
      %p414 = por %p412, %p413
      %p415 = scmp.ne.s32.totalorder %s403, %s404
      %p416 = scmp.eq.s32.totalorder %s95, 1
      %p417 = por %p415, %p416
      %p419 = scmp.ne.s32.totalorder %s404, %s418
      %p420 = scmp.eq.s32.totalorder %s95, 0
      %p421 = por %p419, %p420
      %s423 = sadd.s32 %s422, 1
      %p426 = scmp.eq.s32.totalorder %s89, 1
      %p427 = scmp.ne.s32.totalorder %s422, %s424
      %p428 = scmp.eq.s32.totalorder %s89, 0
      %p429 = por %p427, %p428
      %p430 = scmp.ne.s32.totalorder %s422, %s424
      %p431 = scmp.eq.s32.totalorder %s94, 1
      %p432 = por %p430, %p431
      %p433 = scmp.ne.s32.totalorder %s424, %s425
      %p434 = scmp.eq.s32.totalorder %s94, 0
      %p435 = por %p433, %p434
      %p436 = scmp.ne.s32.totalorder %s424, %s425
      %p437 = scmp.eq.s32.totalorder %s95, 1
      %p438 = por %p436, %p437
      %p440 = scmp.ne.s32.totalorder %s425, %s439
      %p441 = scmp.eq.s32.totalorder %s95, 0
      %p442 = por %p440, %p441
      %s444 = sadd.s32 %s443, 1
      %p447 = scmp.eq.s32.totalorder %s89, 1
      %p448 = scmp.ne.s32.totalorder %s443, %s445
      %p449 = scmp.eq.s32.totalorder %s89, 0
      %p450 = por %p448, %p449
      %p451 = scmp.ne.s32.totalorder %s443, %s445
      %p452 = scmp.eq.s32.totalorder %s94, 1
      %p453 = por %p451, %p452
      %p454 = scmp.ne.s32.totalorder %s445, %s446
      %p455 = scmp.eq.s32.totalorder %s94, 0
      %p456 = por %p454, %p455
      %p457 = scmp.ne.s32.totalorder %s445, %s446
      %p458 = scmp.eq.s32.totalorder %s95, 1
      %p459 = por %p457, %p458
      %p461 = scmp.ne.s32.totalorder %s446, %s460
      %p462 = scmp.eq.s32.totalorder %s95, 0
      %p463 = por %p461, %p462
      %s465 = sadd.s32 %s464, 1
      %p468 = scmp.eq.s32.totalorder %s89, 1
      %p469 = scmp.ne.s32.totalorder %s464, %s466
      %p470 = scmp.eq.s32.totalorder %s89, 0
      %p471 = por %p469, %p470
      %p472 = scmp.ne.s32.totalorder %s464, %s466
      %p473 = scmp.eq.s32.totalorder %s94, 1
      %p474 = por %p472, %p473
      %p475 = scmp.ne.s32.totalorder %s466, %s467
      %p476 = scmp.eq.s32.totalorder %s94, 0
      %p477 = por %p475, %p476
      %p478 = scmp.ne.s32.totalorder %s466, %s467
      %p479 = scmp.eq.s32.totalorder %s95, 1
      %p480 = por %p478, %p479
      %p482 = scmp.ne.s32.totalorder %s467, %s481
      %p483 = scmp.eq.s32.totalorder %s95, 0
      %p484 = por %p482, %p483
      %s486 = sadd.s32 %s485, 1
      %p489 = scmp.eq.s32.totalorder %s89, 1
      %p490 = scmp.ne.s32.totalorder %s485, %s487
      %p491 = scmp.eq.s32.totalorder %s89, 0
      %p492 = por %p490, %p491
      %p493 = scmp.ne.s32.totalorder %s485, %s487
      %p494 = scmp.eq.s32.totalorder %s94, 1
      %p495 = por %p493, %p494
      %p496 = scmp.ne.s32.totalorder %s487, %s488
      %p497 = scmp.eq.s32.totalorder %s94, 0
      %p498 = por %p496, %p497
      %p499 = scmp.ne.s32.totalorder %s487, %s488
      %p500 = scmp.eq.s32.totalorder %s95, 1
      %p501 = por %p499, %p500
      %p503 = scmp.ne.s32.totalorder %s488, %s502
      %p504 = scmp.eq.s32.totalorder %s95, 0
      %p505 = por %p503, %p504
      %s507 = sadd.s32 %s506, 1
      %p510 = scmp.eq.s32.totalorder %s89, 1
      %p511 = scmp.ne.s32.totalorder %s506, %s508
      %p512 = scmp.eq.s32.totalorder %s89, 0
      %p513 = por %p511, %p512
      %p514 = scmp.ne.s32.totalorder %s506, %s508
      %p515 = scmp.eq.s32.totalorder %s94, 1
      %p516 = por %p514, %p515
      %p517 = scmp.ne.s32.totalorder %s508, %s509
      %p518 = scmp.eq.s32.totalorder %s94, 0
      %p519 = por %p517, %p518
      %p520 = scmp.ne.s32.totalorder %s508, %s509
      %p521 = scmp.eq.s32.totalorder %s95, 1
      %p522 = por %p520, %p521
      %p524 = scmp.ne.s32.totalorder %s509, %s523
      %p525 = scmp.eq.s32.totalorder %s95, 0
      %p526 = por %p524, %p525
      %s528 = sadd.s32 %s527, 1
      %p531 = scmp.eq.s32.totalorder %s89, 1
      %p532 = scmp.ne.s32.totalorder %s527, %s529
      %p533 = scmp.eq.s32.totalorder %s89, 0
      %p534 = por %p532, %p533
      %p535 = scmp.ne.s32.totalorder %s527, %s529
      %p536 = scmp.eq.s32.totalorder %s94, 1
      %p537 = por %p535, %p536
      %p538 = scmp.ne.s32.totalorder %s529, %s530
      %p539 = scmp.eq.s32.totalorder %s94, 0
      %p540 = por %p538, %p539
      %p541 = scmp.ne.s32.totalorder %s529, %s530
      %p542 = scmp.eq.s32.totalorder %s95, 1
      %p543 = por %p541, %p542
      %p545 = scmp.ne.s32.totalorder %s530, %s544
      %p546 = scmp.eq.s32.totalorder %s95, 0
      %p547 = por %p545, %p546
      %s549 = sadd.s32 %s548, 1
      %p552 = scmp.eq.s32.totalorder %s89, 1
      %p553 = scmp.ne.s32.totalorder %s548, %s550
      %p554 = scmp.eq.s32.totalorder %s89, 0
      %p555 = por %p553, %p554
      %p556 = scmp.ne.s32.totalorder %s548, %s550
      %p557 = scmp.eq.s32.totalorder %s94, 1
      %p558 = por %p556, %p557
      %p559 = scmp.ne.s32.totalorder %s550, %s551
      %p560 = scmp.eq.s32.totalorder %s94, 0
      %p561 = por %p559, %p560
      %p562 = scmp.ne.s32.totalorder %s550, %s551
      %p563 = scmp.eq.s32.totalorder %s95, 1
      %p564 = por %p562, %p563
      %p566 = scmp.ne.s32.totalorder %s551, %s565
      %p567 = scmp.eq.s32.totalorder %s95, 0
      %p568 = por %p566, %p567
      %s570 = sadd.s32 %s569, 1
      %p573 = scmp.eq.s32.totalorder %s89, 1
      %p574 = scmp.ne.s32.totalorder %s569, %s571
      %p575 = scmp.eq.s32.totalorder %s89, 0
      %p576 = por %p574, %p575
      %p577 = scmp.ne.s32.totalorder %s569, %s571
      %p578 = scmp.eq.s32.totalorder %s94, 1
      %p579 = por %p577, %p578
      %p580 = scmp.ne.s32.totalorder %s571, %s572
      %p581 = scmp.eq.s32.totalorder %s94, 0
      %p582 = por %p580, %p581
      %p583 = scmp.ne.s32.totalorder %s571, %s572
      %p584 = scmp.eq.s32.totalorder %s95, 1
      %p585 = por %p583, %p584
      %p587 = scmp.ne.s32.totalorder %s572, %s586
      %p588 = scmp.eq.s32.totalorder %s95, 0
      %p589 = por %p587, %p588
      %s591 = sadd.s32 %s590, 1
      %p594 = scmp.eq.s32.totalorder %s89, 1
      %p595 = scmp.ne.s32.totalorder %s590, %s592
      %p596 = scmp.eq.s32.totalorder %s89, 0
      %p597 = por %p595, %p596
      %p598 = scmp.ne.s32.totalorder %s590, %s592
      %p599 = scmp.eq.s32.totalorder %s94, 1
      %p600 = por %p598, %p599
      %p601 = scmp.ne.s32.totalorder %s592, %s593
      %p602 = scmp.eq.s32.totalorder %s94, 0
      %p603 = por %p601, %p602
      %p604 = scmp.ne.s32.totalorder %s592, %s593
      %p605 = scmp.eq.s32.totalorder %s95, 1
      %p606 = por %p604, %p605
      %p608 = scmp.ne.s32.totalorder %s593, %s607
      %p609 = scmp.eq.s32.totalorder %s95, 0
      %p610 = por %p608, %p609
      %s612 = sadd.s32 %s611, 1
      %p615 = scmp.eq.s32.totalorder %s89, 1
      %p616 = scmp.ne.s32.totalorder %s611, %s613
      %p617 = scmp.eq.s32.totalorder %s89, 0
      %p618 = por %p616, %p617
      %p619 = scmp.ne.s32.totalorder %s611, %s613
      %p620 = scmp.eq.s32.totalorder %s94, 1
      %p621 = por %p619, %p620
      %p622 = scmp.ne.s32.totalorder %s613, %s614
      %p623 = scmp.eq.s32.totalorder %s94, 0
      %p624 = por %p622, %p623
      %p625 = scmp.ne.s32.totalorder %s613, %s614
      %p626 = scmp.eq.s32.totalorder %s95, 1
      %p627 = por %p625, %p626
      %p629 = scmp.ne.s32.totalorder %s614, %s628
      %p630 = scmp.eq.s32.totalorder %s95, 0
      %p631 = por %p629, %p630
      %s633 = sadd.s32 %s632, 1
      %p636 = scmp.eq.s32.totalorder %s89, 1
      %p637 = scmp.ne.s32.totalorder %s632, %s634
      %p638 = scmp.eq.s32.totalorder %s89, 0
      %p639 = por %p637, %p638
      %p640 = scmp.ne.s32.totalorder %s632, %s634
      %p641 = scmp.eq.s32.totalorder %s94, 1
      %p642 = por %p640, %p641
      %p643 = scmp.ne.s32.totalorder %s634, %s635
      %p644 = scmp.eq.s32.totalorder %s94, 0
      %p645 = por %p643, %p644
      %p646 = scmp.ne.s32.totalorder %s634, %s635
      %p647 = scmp.eq.s32.totalorder %s95, 1
      %p648 = por %p646, %p647
      %p650 = scmp.ne.s32.totalorder %s635, %s649
      %p651 = scmp.eq.s32.totalorder %s95, 0
      %p652 = por %p650, %p651
      %s654 = sadd.s32 %s653, 1
      %p657 = scmp.eq.s32.totalorder %s89, 1
      %p658 = scmp.ne.s32.totalorder %s653, %s655
      %p659 = scmp.eq.s32.totalorder %s89, 0
      %p660 = por %p658, %p659
      %p661 = scmp.ne.s32.totalorder %s653, %s655
      %p662 = scmp.eq.s32.totalorder %s94, 1
      %p663 = por %p661, %p662
      %p664 = scmp.ne.s32.totalorder %s655, %s656
      %p665 = scmp.eq.s32.totalorder %s94, 0
      %p666 = por %p664, %p665
      %p667 = scmp.ne.s32.totalorder %s655, %s656
      %p668 = scmp.eq.s32.totalorder %s95, 1
      %p669 = por %p667, %p668
      %p671 = scmp.ne.s32.totalorder %s656, %s670
      %p672 = scmp.eq.s32.totalorder %s95, 0
      %p673 = por %p671, %p672
      %s675 = sadd.s32 %s674, 1
      %p678 = scmp.eq.s32.totalorder %s89, 1
      %p679 = scmp.ne.s32.totalorder %s674, %s676
      %p680 = scmp.eq.s32.totalorder %s89, 0
      %p681 = por %p679, %p680
      %p682 = scmp.ne.s32.totalorder %s674, %s676
      %p683 = scmp.eq.s32.totalorder %s94, 1
      %p684 = por %p682, %p683
      %p685 = scmp.ne.s32.totalorder %s676, %s677
      %p686 = scmp.eq.s32.totalorder %s94, 0
      %p687 = por %p685, %p686
      %p688 = scmp.ne.s32.totalorder %s676, %s677
      %p689 = scmp.eq.s32.totalorder %s95, 1
      %p690 = por %p688, %p689
      %p692 = scmp.ne.s32.totalorder %s677, %s691
      %p693 = scmp.eq.s32.totalorder %s95, 0
      %p694 = por %p692, %p693
      %s696 = sadd.s32 %s695, 1
      %p699 = scmp.eq.s32.totalorder %s89, 1
      %p700 = scmp.ne.s32.totalorder %s695, %s697
      %p701 = scmp.eq.s32.totalorder %s89, 0
      %p702 = por %p700, %p701
      %p703 = scmp.ne.s32.totalorder %s695, %s697
      %p704 = scmp.eq.s32.totalorder %s94, 1
      %p705 = por %p703, %p704
      %p706 = scmp.ne.s32.totalorder %s697, %s698
      %p707 = scmp.eq.s32.totalorder %s94, 0
      %p708 = por %p706, %p707
      %p709 = scmp.ne.s32.totalorder %s697, %s698
      %p710 = scmp.eq.s32.totalorder %s95, 1
      %p711 = por %p709, %p710
      %p713 = scmp.ne.s32.totalorder %s698, %s712
      %p714 = scmp.eq.s32.totalorder %s95, 0
      %p715 = por %p713, %p714
      %s717 = sadd.s32 %s716, 1
      %p720 = scmp.eq.s32.totalorder %s89, 1
      %p721 = scmp.ne.s32.totalorder %s716, %s718
      %p722 = scmp.eq.s32.totalorder %s89, 0
      %p723 = por %p721, %p722
      %p724 = scmp.ne.s32.totalorder %s716, %s718
      %p725 = scmp.eq.s32.totalorder %s94, 1
      %p726 = por %p724, %p725
      %p727 = scmp.ne.s32.totalorder %s718, %s719
      %p728 = scmp.eq.s32.totalorder %s94, 0
      %p729 = por %p727, %p728
      %p730 = scmp.ne.s32.totalorder %s718, %s719
      %p731 = scmp.eq.s32.totalorder %s95, 1
      %p732 = por %p730, %p731
      %p734 = scmp.ne.s32.totalorder %s719, %s733
      %p735 = scmp.eq.s32.totalorder %s95, 0
      %p736 = por %p734, %p735
      %s737 = ssub.s32 %s89, %s96
      %p738 = scmp.eq.s32.totalorder %s737, 0
      %s740 = sadd.s32 %s739, 1
      %s741 = scalar_select %p738, %s739, %s740
      %p744 = pneg %p738
      %p745 = scmp.eq.s32.totalorder %s89, 1
      %p746 = por %p744, %p745
      %p747 = scmp.ne.s32.totalorder %s739, %s742
      %p748 = scmp.eq.s32.totalorder %s89, 0
      %p749 = por %p747, %p748
      %p750 = scmp.ne.s32.totalorder %s739, %s742
      %p751 = scmp.eq.s32.totalorder %s94, 1
      %p752 = por %p750, %p751
      %p753 = scmp.ne.s32.totalorder %s742, %s743
      %p754 = scmp.eq.s32.totalorder %s94, 0
      %p755 = por %p753, %p754
      %p756 = scmp.ne.s32.totalorder %s742, %s743
      %p757 = scmp.eq.s32.totalorder %s95, 1
      %p758 = por %p756, %p757
      %p760 = scmp.ne.s32.totalorder %s743, %s759
      %p761 = scmp.eq.s32.totalorder %s95, 0
      %p762 = por %p760, %p761
      %s763 = ssub.s32 %s89, %s96
      %p764 = scmp.eq.s32.totalorder %s763, 0
      %s766 = sadd.s32 %s765, 1
      %s767 = scalar_select %p764, %s765, %s766
      %p770 = pneg %p764
      %p771 = scmp.eq.s32.totalorder %s89, 1
      %p772 = por %p770, %p771
      %p773 = scmp.ne.s32.totalorder %s765, %s768
      %p774 = scmp.eq.s32.totalorder %s89, 0
      %p775 = por %p773, %p774
      %p776 = scmp.ne.s32.totalorder %s765, %s768
      %p777 = scmp.eq.s32.totalorder %s94, 1
      %p778 = por %p776, %p777
      %p779 = scmp.ne.s32.totalorder %s768, %s769
      %p780 = scmp.eq.s32.totalorder %s94, 0
      %p781 = por %p779, %p780
      %p782 = scmp.ne.s32.totalorder %s768, %s769
      %p783 = scmp.eq.s32.totalorder %s95, 1
      %p784 = por %p782, %p783
      %p786 = scmp.ne.s32.totalorder %s769, %s785
      %p787 = scmp.eq.s32.totalorder %s95, 0
      %p788 = por %p786, %p787
      %s789 = ssub.s32 %s89, %s96
      %p790 = scmp.eq.s32.totalorder %s789, 0
      %s792 = sadd.s32 %s791, 1
      %s793 = scalar_select %p790, %s791, %s792
      %p796 = pneg %p790
      %p797 = scmp.eq.s32.totalorder %s89, 1
      %p798 = por %p796, %p797
      %p799 = scmp.ne.s32.totalorder %s791, %s794
      %p800 = scmp.eq.s32.totalorder %s89, 0
      %p801 = por %p799, %p800
      %p802 = scmp.ne.s32.totalorder %s791, %s794
      %p803 = scmp.eq.s32.totalorder %s94, 1
      %p804 = por %p802, %p803
      %p805 = scmp.ne.s32.totalorder %s794, %s795
      %p806 = scmp.eq.s32.totalorder %s94, 0
      %p807 = por %p805, %p806
      %p808 = scmp.ne.s32.totalorder %s794, %s795
      %p809 = scmp.eq.s32.totalorder %s95, 1
      %p810 = por %p808, %p809
      %p812 = scmp.ne.s32.totalorder %s795, %s811
      %p813 = scmp.eq.s32.totalorder %s95, 0
      %p814 = por %p812, %p813
      %s815 = ssub.s32 %s89, %s96
      %p816 = scmp.eq.s32.totalorder %s815, 0
      %s818 = sadd.s32 %s817, 1
      %s819 = scalar_select %p816, %s817, %s818
      %p822 = pneg %p816
      %p823 = scmp.eq.s32.totalorder %s89, 1
      %p824 = por %p822, %p823
      %p825 = scmp.ne.s32.totalorder %s817, %s820
      %p826 = scmp.eq.s32.totalorder %s89, 0
      %p827 = por %p825, %p826
      %p828 = scmp.ne.s32.totalorder %s817, %s820
      %p829 = scmp.eq.s32.totalorder %s94, 1
      %p830 = por %p828, %p829
      %p831 = scmp.ne.s32.totalorder %s820, %s821
      %p832 = scmp.eq.s32.totalorder %s94, 0
      %p833 = por %p831, %p832
      %p834 = scmp.ne.s32.totalorder %s820, %s821
      %p835 = scmp.eq.s32.totalorder %s95, 1
      %p836 = por %p834, %p835
      %p838 = scmp.ne.s32.totalorder %s821, %s837
      %p839 = scmp.eq.s32.totalorder %s95, 0
      %p840 = por %p838, %p839
      %s841 = ssub.s32 %s89, %s96
      %p842 = scmp.eq.s32.totalorder %s841, 0
      %s844 = sadd.s32 %s843, 1
      %s845 = scalar_select %p842, %s843, %s844
      %p848 = pneg %p842
      %p849 = scmp.eq.s32.totalorder %s89, 1
      %p850 = por %p848, %p849
      %p851 = scmp.ne.s32.totalorder %s843, %s846
      %p852 = scmp.eq.s32.totalorder %s89, 0
      %p853 = por %p851, %p852
      %p854 = scmp.ne.s32.totalorder %s843, %s846
      %p855 = scmp.eq.s32.totalorder %s94, 1
      %p856 = por %p854, %p855
      %p857 = scmp.ne.s32.totalorder %s846, %s847
      %p858 = scmp.eq.s32.totalorder %s94, 0
      %p859 = por %p857, %p858
      %p860 = scmp.ne.s32.totalorder %s846, %s847
      %p861 = scmp.eq.s32.totalorder %s95, 1
      %p862 = por %p860, %p861
      %p864 = scmp.ne.s32.totalorder %s847, %s863
      %p865 = scmp.eq.s32.totalorder %s95, 0
      %p866 = por %p864, %p865
      %s867 = ssub.s32 %s89, %s96
      %p868 = scmp.eq.s32.totalorder %s867, 0
      %s870 = sadd.s32 %s869, 1
      %s871 = scalar_select %p868, %s869, %s870
      %p874 = pneg %p868
      %p875 = scmp.eq.s32.totalorder %s89, 1
      %p876 = por %p874, %p875
      %p877 = scmp.ne.s32.totalorder %s869, %s872
      %p878 = scmp.eq.s32.totalorder %s89, 0
      %p879 = por %p877, %p878
      %p880 = scmp.ne.s32.totalorder %s869, %s872
      %p881 = scmp.eq.s32.totalorder %s94, 1
      %p882 = por %p880, %p881
      %p883 = scmp.ne.s32.totalorder %s872, %s873
      %p884 = scmp.eq.s32.totalorder %s94, 0
      %p885 = por %p883, %p884
      %p886 = scmp.ne.s32.totalorder %s872, %s873
      %p887 = scmp.eq.s32.totalorder %s95, 1
      %p888 = por %p886, %p887
      %p890 = scmp.ne.s32.totalorder %s873, %s889
      %p891 = scmp.eq.s32.totalorder %s95, 0
      %p892 = por %p890, %p891
      %p893 = scmp.le.s32.totalorder 1, %s89
      %p894 = scmp.lt.s32.totalorder %s89, 3
      %p895 = pnand %p893, %p894
      %p896 = pneg %p895
      // Predicated region
      $region9: #{forward.1} parent=5 // pred_check
        _
      $region10: #{forward.1} parent=5 // pred_check_branch
        %898 = sbr.rel (%p895) target = $region12
      $region11: #{forward.1} parent=5 // pred_region
        %s899 = ssub.s32 %s89, 1
        // Predicated region
        $region13: #{forward.1} parent=11 // pred_check
          %p900 = pneg %p162
        $region14: #{forward.1} parent=11 // pred_check_branch
          %902 = sbr.rel (%p900) target = $region16
        $region15: #{forward.1} parent=11 // pred_region
          _
        $region16: #{forward.1} parent=11 // pred_fallthru
          _
        // Predicated region
        $region17: #{forward.1} parent=11 // pred_check
          %p903 = pneg %p183
        $region18: #{forward.1} parent=11 // pred_check_branch
          %905 = sbr.rel (%p903) target = $region20
        $region19: #{forward.1} parent=11 // pred_region
          _
        $region20: #{forward.1} parent=11 // pred_fallthru
          _
        // Predicated region
        $region21: #{forward.1} parent=11 // pred_check
          %p906 = pneg %p204
        $region22: #{forward.1} parent=11 // pred_check_branch
          %908 = sbr.rel (%p906) target = $region24
        $region23: #{forward.1} parent=11 // pred_region
          %910 = vsyncadd [#allocation3], 0
          %s911 = sshll.u32 %s9, 4
          %s912 = int_to_ptr.hbm [resolvable:$true] %s911
          %s913 = sshll.u32 [#allocation2], 4
          %s914 = int_to_ptr.vmem [resolvable:$true] %s913
          %919 = dma.hbm_to_vmem [thread:$0]  %s912, 512, %s914, [#allocation3], 128, 128, 8
        $region24: #{forward.1} parent=11 // pred_fallthru
          _
        // Predicated region
        $region25: #{forward.1} parent=11 // pred_check
          %p920 = pneg %p225
        $region26: #{forward.1} parent=11 // pred_check_branch
          %922 = sbr.rel (%p920) target = $region28
        $region27: #{forward.1} parent=11 // pred_region
          %924 = vsyncadd [#allocation5], 0
          %s925 = sshll.u32 %s11, 4
          %s926 = int_to_ptr.hbm [resolvable:$true] %s925
          %s927 = sshll.u32 [#allocation4], 4
          %s928 = int_to_ptr.vmem [resolvable:$true] %s927
          %933 = dma.hbm_to_vmem [thread:$0]  %s926, 512, %s928, [#allocation5], 128, 128, 8
        $region28: #{forward.1} parent=11 // pred_fallthru
          _
        // Predicated region
        $region29: #{forward.1} parent=11 // pred_check
          %p934 = pneg %p246
        $region30: #{forward.1} parent=11 // pred_check_branch
          %936 = sbr.rel (%p934) target = $region32
        $region31: #{forward.1} parent=11 // pred_region
          %938 = vsyncadd [#allocation5], 0
          %s939 = sshll.u32 %s13, 4
          %s940 = int_to_ptr.hbm [resolvable:$true] %s939
          %s941 = sshll.u32 [#allocation6], 4
          %s942 = int_to_ptr.vmem [resolvable:$true] %s941
          %947 = dma.hbm_to_vmem [thread:$0]  %s940, 512, %s942, [#allocation5], 128, 128, 8
        $region32: #{forward.1} parent=11 // pred_fallthru
          _
        // Predicated region
        $region33: #{forward.1} parent=11 // pred_check
          %p948 = pneg %p267
        $region34: #{forward.1} parent=11 // pred_check_branch
          %950 = sbr.rel (%p948) target = $region36
        $region35: #{forward.1} parent=11 // pred_region
          _
        $region36: #{forward.1} parent=11 // pred_fallthru
          _
        // Predicated region
        $region37: #{forward.1} parent=11 // pred_check
          %p951 = pneg %p288
        $region38: #{forward.1} parent=11 // pred_check_branch
          %953 = sbr.rel (%p951) target = $region40
        $region39: #{forward.1} parent=11 // pred_region
          %955 = vsyncadd [#allocation8], 0
          %s957 = sshll.u32 %s17, 4
          %s958 = int_to_ptr.hbm [resolvable:$true] %s957
          %s959 = sshll.u32 [#allocation7], 4
          %s960 = int_to_ptr.vmem [resolvable:$true] %s959
          %962 = dma.hbm_to_vmem [thread:$0]  %s958, 16, %s960, [#allocation8]
        $region40: #{forward.1} parent=11 // pred_fallthru
          _
        // Predicated region
        $region41: #{forward.1} parent=11 // pred_check
          %p963 = pneg %p309
        $region42: #{forward.1} parent=11 // pred_check_branch
          %965 = sbr.rel (%p963) target = $region44
        $region43: #{forward.1} parent=11 // pred_region
          %967 = vsyncadd [#allocation8], 0
          %s968 = sshll.u32 %s19, 4
          %s969 = int_to_ptr.hbm [resolvable:$true] %s968
          %s970 = sshll.u32 [#allocation9], 4
          %s971 = int_to_ptr.vmem [resolvable:$true] %s970
          %976 = dma.hbm_to_vmem [thread:$0]  %s969, 512, %s971, [#allocation8], 128, 128, 8
        $region44: #{forward.1} parent=11 // pred_fallthru
          _
        // Predicated region
        $region45: #{forward.1} parent=11 // pred_check
          %p977 = pneg %p330
        $region46: #{forward.1} parent=11 // pred_check_branch
          %979 = sbr.rel (%p977) target = $region48
        $region47: #{forward.1} parent=11 // pred_region
          %981 = vsyncadd [#allocation11], 0
          %s982 = sshll.u32 %s21, 4
          %s983 = int_to_ptr.hbm [resolvable:$true] %s982
          %s984 = sshll.u32 [#allocation10], 4
          %s985 = int_to_ptr.vmem [resolvable:$true] %s984
          %990 = dma.hbm_to_vmem [thread:$0]  %s983, 512, %s985, [#allocation11], 128, 128, 8
        $region48: #{forward.1} parent=11 // pred_fallthru
          _
        // Predicated region
        $region49: #{forward.1} parent=11 // pred_check
          %p991 = pneg %p351
        $region50: #{forward.1} parent=11 // pred_check_branch
          %993 = sbr.rel (%p991) target = $region52
        $region51: #{forward.1} parent=11 // pred_region
          %995 = vsyncadd [#allocation11], 0
          %s997 = sshll.u32 %s23, 4
          %s998 = int_to_ptr.hbm [resolvable:$true] %s997
          %s999 = sshll.u32 [#allocation12], 4
          %s1000 = int_to_ptr.vmem [resolvable:$true] %s999
          %1002 = dma.hbm_to_vmem [thread:$0]  %s998, 16, %s1000, [#allocation11]
        $region52: #{forward.1} parent=11 // pred_fallthru
          _
        // Predicated region
        $region53: #{forward.1} parent=11 // pred_check
          %p1003 = pneg %p372
        $region54: #{forward.1} parent=11 // pred_check_branch
          %1005 = sbr.rel (%p1003) target = $region56
        $region55: #{forward.1} parent=11 // pred_region
          %1007 = vsyncadd [#allocation14], 0
          %s1009 = sshll.u32 %s25, 4
          %s1010 = int_to_ptr.hbm [resolvable:$true] %s1009
          %s1011 = sshll.u32 [#allocation13], 4
          %s1012 = int_to_ptr.vmem [resolvable:$true] %s1011
          %1014 = dma.hbm_to_vmem [thread:$0]  %s1010, 16, %s1012, [#allocation14]
        $region56: #{forward.1} parent=11 // pred_fallthru
          _
        // Predicated region
        $region57: #{forward.1} parent=11 // pred_check
          %p1015 = pneg %p393
        $region58: #{forward.1} parent=11 // pred_check_branch
          %1017 = sbr.rel (%p1015) target = $region60
        $region59: #{forward.1} parent=11 // pred_region
          %1019 = vsyncadd [#allocation14], 0
          %s1021 = sshll.u32 %s27, 4
          %s1022 = int_to_ptr.hbm [resolvable:$true] %s1021
          %s1023 = sshll.u32 [#allocation15], 4
          %s1024 = int_to_ptr.vmem [resolvable:$true] %s1023
          %1026 = dma.hbm_to_vmem [thread:$0]  %s1022, 16, %s1024, [#allocation14]
        $region60: #{forward.1} parent=11 // pred_fallthru
          _
        // Predicated region
        $region61: #{forward.1} parent=11 // pred_check
          %p1027 = pneg %p414
        $region62: #{forward.1} parent=11 // pred_check_branch
          %1029 = sbr.rel (%p1027) target = $region64
        $region63: #{forward.1} parent=11 // pred_region
          %1031 = vsyncadd [#allocation17], 0
          %s1033 = sshll.u32 %s29, 4
          %s1034 = int_to_ptr.hbm [resolvable:$true] %s1033
          %s1035 = sshll.u32 [#allocation16], 4
          %s1036 = int_to_ptr.vmem [resolvable:$true] %s1035
          %1038 = dma.hbm_to_vmem [thread:$0]  %s1034, 16, %s1036, [#allocation17]
        $region64: #{forward.1} parent=11 // pred_fallthru
          _
        // Predicated region
        $region65: #{forward.1} parent=11 // pred_check
          %p1039 = pneg %p435
        $region66: #{forward.1} parent=11 // pred_check_branch
          %1041 = sbr.rel (%p1039) target = $region68
        $region67: #{forward.1} parent=11 // pred_region
          %1043 = vsyncadd [#allocation17], 0
          %s1044 = sshll.u32 %s31, 4
          %s1045 = int_to_ptr.hbm [resolvable:$true] %s1044
          %s1046 = sshll.u32 [#allocation18], 4
          %s1047 = int_to_ptr.vmem [resolvable:$true] %s1046
          %1052 = dma.hbm_to_vmem [thread:$0]  %s1045, 512, %s1047, [#allocation17], 128, 128, 8
        $region68: #{forward.1} parent=11 // pred_fallthru
          _
        // Predicated region
        $region69: #{forward.1} parent=11 // pred_check
          %p1053 = pneg %p456
        $region70: #{forward.1} parent=11 // pred_check_branch
          %1055 = sbr.rel (%p1053) target = $region72
        $region71: #{forward.1} parent=11 // pred_region
          %1057 = vsyncadd [#allocation20], 0
          %s1059 = sshll.u32 %s33, 4
          %s1060 = int_to_ptr.hbm [resolvable:$true] %s1059
          %s1061 = sshll.u32 [#allocation19], 4
          %s1062 = int_to_ptr.vmem [resolvable:$true] %s1061
          %1064 = dma.hbm_to_vmem [thread:$0]  %s1060, 16, %s1062, [#allocation20]
        $region72: #{forward.1} parent=11 // pred_fallthru
          _
        // Predicated region
        $region73: #{forward.1} parent=11 // pred_check
          %p1065 = pneg %p477
        $region74: #{forward.1} parent=11 // pred_check_branch
          %1067 = sbr.rel (%p1065) target = $region76
        $region75: #{forward.1} parent=11 // pred_region
          _
        $region76: #{forward.1} parent=11 // pred_fallthru
          _
        // Predicated region
        $region77: #{forward.1} parent=11 // pred_check
          %p1068 = pneg %p498
        $region78: #{forward.1} parent=11 // pred_check_branch
          %1070 = sbr.rel (%p1068) target = $region80
        $region79: #{forward.1} parent=11 // pred_region
          %1072 = vsyncadd [#allocation20], 0
          %s1074 = sshll.u32 %s37, 4
          %s1075 = int_to_ptr.hbm [resolvable:$true] %s1074
          %s1076 = sshll.u32 [#allocation21], 4
          %s1077 = int_to_ptr.vmem [resolvable:$true] %s1076
          %1079 = dma.hbm_to_vmem [thread:$0]  %s1075, 16, %s1077, [#allocation20]
        $region80: #{forward.1} parent=11 // pred_fallthru
          _
        // Predicated region
        $region81: #{forward.1} parent=11 // pred_check
          %p1080 = pneg %p519
        $region82: #{forward.1} parent=11 // pred_check_branch
          %1082 = sbr.rel (%p1080) target = $region84
        $region83: #{forward.1} parent=11 // pred_region
          %1084 = vsyncadd [#allocation23], 0
          %s1085 = sshll.u32 %s39, 4
          %s1086 = int_to_ptr.hbm [resolvable:$true] %s1085
          %s1087 = sshll.u32 [#allocation22], 4
          %s1088 = int_to_ptr.vmem [resolvable:$true] %s1087
          %1093 = dma.hbm_to_vmem [thread:$0]  %s1086, 512, %s1088, [#allocation23], 128, 128, 8
        $region84: #{forward.1} parent=11 // pred_fallthru
          _
        // Predicated region
        $region85: #{forward.1} parent=11 // pred_check
          %p1094 = pneg %p540
        $region86: #{forward.1} parent=11 // pred_check_branch
          %1096 = sbr.rel (%p1094) target = $region88
        $region87: #{forward.1} parent=11 // pred_region
          _
        $region88: #{forward.1} parent=11 // pred_fallthru
          _
        // Predicated region
        $region89: #{forward.1} parent=11 // pred_check
          %p1097 = pneg %p561
        $region90: #{forward.1} parent=11 // pred_check_branch
          %1099 = sbr.rel (%p1097) target = $region92
        $region91: #{forward.1} parent=11 // pred_region
          _
        $region92: #{forward.1} parent=11 // pred_fallthru
          _
        // Predicated region
        $region93: #{forward.1} parent=11 // pred_check
          %p1100 = pneg %p582
        $region94: #{forward.1} parent=11 // pred_check_branch
          %1102 = sbr.rel (%p1100) target = $region96
        $region95: #{forward.1} parent=11 // pred_region
          _
        $region96: #{forward.1} parent=11 // pred_fallthru
          _
        // Predicated region
        $region97: #{forward.1} parent=11 // pred_check
          %p1103 = pneg %p603
        $region98: #{forward.1} parent=11 // pred_check_branch
          %1105 = sbr.rel (%p1103) target = $region100
        $region99: #{forward.1} parent=11 // pred_region
          %1107 = vsyncadd [#allocation23], 0
          %s1108 = sshll.u32 %s47, 4
          %s1109 = int_to_ptr.hbm [resolvable:$true] %s1108
          %s1110 = sshll.u32 [#allocation24], 4
          %s1111 = int_to_ptr.vmem [resolvable:$true] %s1110
          %1116 = dma.hbm_to_vmem [thread:$0]  %s1109, 256, %s1111, [#allocation23], 128, 128, 8
        $region100: #{forward.1} parent=11 // pred_fallthru
          _
        // Predicated region
        $region101: #{forward.1} parent=11 // pred_check
          %p1117 = pneg %p624
        $region102: #{forward.1} parent=11 // pred_check_branch
          %1119 = sbr.rel (%p1117) target = $region104
        $region103: #{forward.1} parent=11 // pred_region
          %1121 = vsyncadd [#allocation26], 0
          %s1123 = sshll.u32 %s49, 4
          %s1124 = int_to_ptr.hbm [resolvable:$true] %s1123
          %s1125 = sshll.u32 [#allocation25], 4
          %s1126 = int_to_ptr.vmem [resolvable:$true] %s1125
          %1128 = dma.hbm_to_vmem [thread:$0]  %s1124, 16, %s1126, [#allocation26]
        $region104: #{forward.1} parent=11 // pred_fallthru
          _
        // Predicated region
        $region105: #{forward.1} parent=11 // pred_check
          %p1129 = pneg %p645
        $region106: #{forward.1} parent=11 // pred_check_branch
          %1131 = sbr.rel (%p1129) target = $region108
        $region107: #{forward.1} parent=11 // pred_region
          %1133 = vsyncadd [#allocation26], 0
          %s1134 = sshll.u32 %s51, 4
          %s1135 = int_to_ptr.hbm [resolvable:$true] %s1134
          %s1136 = sshll.u32 [#allocation27], 4
          %s1137 = int_to_ptr.vmem [resolvable:$true] %s1136
          %1142 = dma.hbm_to_vmem [thread:$0]  %s1135, 256, %s1137, [#allocation26], 128, 128, 8
        $region108: #{forward.1} parent=11 // pred_fallthru
          _
        // Predicated region
        $region109: #{forward.1} parent=11 // pred_check
          %p1143 = pneg %p666
        $region110: #{forward.1} parent=11 // pred_check_branch
          %1145 = sbr.rel (%p1143) target = $region112
        $region111: #{forward.1} parent=11 // pred_region
          %1147 = vsyncadd [#allocation29], 0
          %s1148 = sshll.u32 %s53, 4
          %s1149 = int_to_ptr.hbm [resolvable:$true] %s1148
          %s1150 = sshll.u32 [#allocation28], 4
          %s1151 = int_to_ptr.vmem [resolvable:$true] %s1150
          %1156 = dma.hbm_to_vmem [thread:$0]  %s1149, 512, %s1151, [#allocation29], 128, 128, 8
        $region112: #{forward.1} parent=11 // pred_fallthru
          _
        // Predicated region
        $region113: #{forward.1} parent=11 // pred_check
          %p1157 = pneg %p687
        $region114: #{forward.1} parent=11 // pred_check_branch
          %1159 = sbr.rel (%p1157) target = $region116
        $region115: #{forward.1} parent=11 // pred_region
          %1161 = vsyncadd [#allocation29], 0
          %s1163 = sshll.u32 %s55, 4
          %s1164 = int_to_ptr.hbm [resolvable:$true] %s1163
          %s1165 = sshll.u32 [#allocation30], 4
          %s1166 = int_to_ptr.vmem [resolvable:$true] %s1165
          %1168 = dma.hbm_to_vmem [thread:$0]  %s1164, 16, %s1166, [#allocation29]
        $region116: #{forward.1} parent=11 // pred_fallthru
          _
        // Predicated region
        $region117: #{forward.1} parent=11 // pred_check
          %p1169 = pneg %p708
        $region118: #{forward.1} parent=11 // pred_check_branch
          %1171 = sbr.rel (%p1169) target = $region120
        $region119: #{forward.1} parent=11 // pred_region
          %1173 = vsyncadd [#allocation32], 0
          %s1174 = sshll.u32 %s57, 4
          %s1175 = int_to_ptr.hbm [resolvable:$true] %s1174
          %s1176 = sshll.u32 [#allocation31], 4
          %s1177 = int_to_ptr.vmem [resolvable:$true] %s1176
          %1182 = dma.hbm_to_vmem [thread:$0]  %s1175, 1024, %s1177, [#allocation32], 128, 128, 8
        $region120: #{forward.1} parent=11 // pred_fallthru
          _
        // Predicated region
        $region121: #{forward.1} parent=11 // pred_check
          %p1183 = pneg %p729
        $region122: #{forward.1} parent=11 // pred_check_branch
          %1185 = sbr.rel (%p1183) target = $region124
        $region123: #{forward.1} parent=11 // pred_region
          %1187 = vsyncadd [#allocation32], 0
          %s1189 = sshll.u32 %s59, 4
          %s1190 = int_to_ptr.hbm [resolvable:$true] %s1189
          %s1191 = sshll.u32 [#allocation33], 4
          %s1192 = int_to_ptr.vmem [resolvable:$true] %s1191
          %1194 = dma.hbm_to_vmem [thread:$0]  %s1190, 16, %s1192, [#allocation32]
        $region124: #{forward.1} parent=11 // pred_fallthru
          _
      $region12: #{forward.1} parent=5 // pred_fallthru
        _
      %p1195 = scmp.lt.s32.totalorder %s89, 2
      // Predicated region
      $region125: #{forward.1} parent=5 // pred_check
        %p1196 = pneg %p1195
      $region126: #{forward.1} parent=5 // pred_check_branch
        %1198 = sbr.rel (%p1196) target = $region128
      $region127: #{forward.1} parent=5 // pred_region
        // Predicated region
        $region129: #{forward.1} parent=127 // pred_check
          %p1199 = pneg %p109
        $region130: #{forward.1} parent=127 // pred_check_branch
          %1201 = sbr.rel (%p1199) target = $region132
        $region131: #{forward.1} parent=127 // pred_region
          %p1202 = scmp.lt.s32.totalorder %s89, 1
          %s1203 = scalar_select %p1202, %s89, 1
          %s1204 = smul.addr %s1203, 2
          %s1205 = smul.addr %s1204, 8
          %s1206 = scalar_lea.vmem %s1, %s1205
        $region132: #{forward.1} parent=127 // pred_fallthru
          _
        // Predicated region
        $region133: #{forward.1} parent=127 // pred_check
          %p1207 = pneg %p135
        $region134: #{forward.1} parent=127 // pred_check_branch
          %1209 = sbr.rel (%p1207) target = $region136
        $region135: #{forward.1} parent=127 // pred_region
          %p1210 = scmp.lt.s32.totalorder %s89, 1
          %s1211 = scalar_select %p1210, %s89, 1
          %s1212 = smul.addr %s1211, 8
          %s1213 = scalar_lea.vmem %s3, %s1212
        $region136: #{forward.1} parent=127 // pred_fallthru
          _
      $region128: #{forward.1} parent=5 // pred_fallthru
        _
      %p1214 = scmp.le.s32.totalorder 1, %s89
      %p1215 = scmp.lt.s32.totalorder %s89, 3
      %p1216 = pnand %p1214, %p1215
      %p1217 = pneg %p1216
      // Predicated region
      $region137: #{forward.1} parent=5 // pred_check
        _
      $region138: #{forward.1} parent=5 // pred_check_branch
        %1219 = sbr.rel (%p1216) target = $region140
      $region139: #{forward.1} parent=5 // pred_region
        %s1220 = ssub.s32 %s89, 1
        // Predicated region
        $region141: #{forward.1} parent=139 // pred_check
          %p1221 = pneg %p204
        $region142: #{forward.1} parent=139 // pred_check_branch
          %1223 = sbr.rel (%p1221) target = $region144
        $region143: #{forward.1} parent=139 // pred_region
          %1225 = dma.done [#allocation3], 512
        $region144: #{forward.1} parent=139 // pred_fallthru
          _
        // Predicated region
        $region145: #{forward.1} parent=139 // pred_check
          %p1226 = pneg %p225
        $region146: #{forward.1} parent=139 // pred_check_branch
          %1228 = sbr.rel (%p1226) target = $region148
        $region147: #{forward.1} parent=139 // pred_region
          %1230 = dma.done [#allocation5], 512
        $region148: #{forward.1} parent=139 // pred_fallthru
          _
        // Predicated region
        $region149: #{forward.1} parent=139 // pred_check
          %p1231 = pneg %p246
        $region150: #{forward.1} parent=139 // pred_check_branch
          %1233 = sbr.rel (%p1231) target = $region152
        $region151: #{forward.1} parent=139 // pred_region
          %1235 = dma.done [#allocation5], 512
        $region152: #{forward.1} parent=139 // pred_fallthru
          _
        // Predicated region
        $region153: #{forward.1} parent=139 // pred_check
          %p1236 = pneg %p288
        $region154: #{forward.1} parent=139 // pred_check_branch
          %1238 = sbr.rel (%p1236) target = $region156
        $region155: #{forward.1} parent=139 // pred_region
          %1240 = dma.done [#allocation8], 16
        $region156: #{forward.1} parent=139 // pred_fallthru
          _
        // Predicated region
        $region157: #{forward.1} parent=139 // pred_check
          %p1241 = pneg %p309
        $region158: #{forward.1} parent=139 // pred_check_branch
          %1243 = sbr.rel (%p1241) target = $region160
        $region159: #{forward.1} parent=139 // pred_region
          %1245 = dma.done [#allocation8], 512
        $region160: #{forward.1} parent=139 // pred_fallthru
          _
        // Predicated region
        $region161: #{forward.1} parent=139 // pred_check
          %p1246 = pneg %p330
        $region162: #{forward.1} parent=139 // pred_check_branch
          %1248 = sbr.rel (%p1246) target = $region164
        $region163: #{forward.1} parent=139 // pred_region
          %1250 = dma.done [#allocation11], 512
        $region164: #{forward.1} parent=139 // pred_fallthru
          _
        // Predicated region
        $region165: #{forward.1} parent=139 // pred_check
          %p1251 = pneg %p351
        $region166: #{forward.1} parent=139 // pred_check_branch
          %1253 = sbr.rel (%p1251) target = $region168
        $region167: #{forward.1} parent=139 // pred_region
          %1255 = dma.done [#allocation11], 16
        $region168: #{forward.1} parent=139 // pred_fallthru
          _
        // Predicated region
        $region169: #{forward.1} parent=139 // pred_check
          %p1256 = pneg %p372
        $region170: #{forward.1} parent=139 // pred_check_branch
          %1258 = sbr.rel (%p1256) target = $region172
        $region171: #{forward.1} parent=139 // pred_region
          %1260 = dma.done [#allocation14], 16
        $region172: #{forward.1} parent=139 // pred_fallthru
          _
        // Predicated region
        $region173: #{forward.1} parent=139 // pred_check
          %p1261 = pneg %p393
        $region174: #{forward.1} parent=139 // pred_check_branch
          %1263 = sbr.rel (%p1261) target = $region176
        $region175: #{forward.1} parent=139 // pred_region
          %1265 = dma.done [#allocation14], 16
        $region176: #{forward.1} parent=139 // pred_fallthru
          _
        // Predicated region
        $region177: #{forward.1} parent=139 // pred_check
          %p1266 = pneg %p414
        $region178: #{forward.1} parent=139 // pred_check_branch
          %1268 = sbr.rel (%p1266) target = $region180
        $region179: #{forward.1} parent=139 // pred_region
          %1270 = dma.done [#allocation17], 16
        $region180: #{forward.1} parent=139 // pred_fallthru
          _
        // Predicated region
        $region181: #{forward.1} parent=139 // pred_check
          %p1271 = pneg %p435
        $region182: #{forward.1} parent=139 // pred_check_branch
          %1273 = sbr.rel (%p1271) target = $region184
        $region183: #{forward.1} parent=139 // pred_region
          %1275 = dma.done [#allocation17], 512
        $region184: #{forward.1} parent=139 // pred_fallthru
          _
        // Predicated region
        $region185: #{forward.1} parent=139 // pred_check
          %p1276 = pneg %p456
        $region186: #{forward.1} parent=139 // pred_check_branch
          %1278 = sbr.rel (%p1276) target = $region188
        $region187: #{forward.1} parent=139 // pred_region
          %1280 = dma.done [#allocation20], 16
        $region188: #{forward.1} parent=139 // pred_fallthru
          _
        // Predicated region
        $region189: #{forward.1} parent=139 // pred_check
          %p1281 = pneg %p498
        $region190: #{forward.1} parent=139 // pred_check_branch
          %1283 = sbr.rel (%p1281) target = $region192
        $region191: #{forward.1} parent=139 // pred_region
          %1285 = dma.done [#allocation20], 16
        $region192: #{forward.1} parent=139 // pred_fallthru
          _
        // Predicated region
        $region193: #{forward.1} parent=139 // pred_check
          %p1286 = pneg %p519
        $region194: #{forward.1} parent=139 // pred_check_branch
          %1288 = sbr.rel (%p1286) target = $region196
        $region195: #{forward.1} parent=139 // pred_region
          %1290 = dma.done [#allocation23], 512
        $region196: #{forward.1} parent=139 // pred_fallthru
          _
        // Predicated region
        $region197: #{forward.1} parent=139 // pred_check
          %p1291 = pneg %p603
        $region198: #{forward.1} parent=139 // pred_check_branch
          %1293 = sbr.rel (%p1291) target = $region200
        $region199: #{forward.1} parent=139 // pred_region
          %1295 = dma.done [#allocation23], 256
        $region200: #{forward.1} parent=139 // pred_fallthru
          _
        // Predicated region
        $region201: #{forward.1} parent=139 // pred_check
          %p1296 = pneg %p624
        $region202: #{forward.1} parent=139 // pred_check_branch
          %1298 = sbr.rel (%p1296) target = $region204
        $region203: #{forward.1} parent=139 // pred_region
          %1300 = dma.done [#allocation26], 16
        $region204: #{forward.1} parent=139 // pred_fallthru
          _
        // Predicated region
        $region205: #{forward.1} parent=139 // pred_check
          %p1301 = pneg %p645
        $region206: #{forward.1} parent=139 // pred_check_branch
          %1303 = sbr.rel (%p1301) target = $region208
        $region207: #{forward.1} parent=139 // pred_region
          %1305 = dma.done [#allocation26], 256
        $region208: #{forward.1} parent=139 // pred_fallthru
          _
        // Predicated region
        $region209: #{forward.1} parent=139 // pred_check
          %p1306 = pneg %p666
        $region210: #{forward.1} parent=139 // pred_check_branch
          %1308 = sbr.rel (%p1306) target = $region212
        $region211: #{forward.1} parent=139 // pred_region
          %1310 = dma.done [#allocation29], 512
        $region212: #{forward.1} parent=139 // pred_fallthru
          _
        // Predicated region
        $region213: #{forward.1} parent=139 // pred_check
          %p1311 = pneg %p687
        $region214: #{forward.1} parent=139 // pred_check_branch
          %1313 = sbr.rel (%p1311) target = $region216
        $region215: #{forward.1} parent=139 // pred_region
          %1315 = dma.done [#allocation29], 16
        $region216: #{forward.1} parent=139 // pred_fallthru
          _
        // Predicated region
        $region217: #{forward.1} parent=139 // pred_check
          %p1316 = pneg %p708
        $region218: #{forward.1} parent=139 // pred_check_branch
          %1318 = sbr.rel (%p1316) target = $region220
        $region219: #{forward.1} parent=139 // pred_region
          %1320 = dma.done [#allocation32], 1024
        $region220: #{forward.1} parent=139 // pred_fallthru
          _
        // Predicated region
        $region221: #{forward.1} parent=139 // pred_check
          %p1321 = pneg %p729
        $region222: #{forward.1} parent=139 // pred_check_branch
          %1323 = sbr.rel (%p1321) target = $region224
        $region223: #{forward.1} parent=139 // pred_region
          %1325 = dma.done [#allocation32], 16
        $region224: #{forward.1} parent=139 // pred_fallthru
          _
        %p1326 = scmp.lt.s32.totalorder %s94, 1
        %s1327 = scalar_select %p1326, %s94, 1
        %s1328 = smul.addr %s1327, 2
        %s1329 = smul.addr %s1328, 8
        %s1330 = scalar_lea.vmem %s1, %s1329
        %p1331 = pneg %p115
        %p1332 = pneg %p112
        %p1333 = scmp.lt.s32.totalorder %s94, 1
        %s1334 = scalar_select %p1333, %s94, 1
        %s1335 = smul.addr %s1334, 8
        %s1336 = scalar_lea.vmem %s3, %s1335
        %p1337 = pneg %p141
        %p1338 = pneg %p138
        %p1339 = pneg %p162
        %p1340 = pneg %p159
        %p1341 = pneg %p183
        %p1342 = pneg %p180
        %p1343 = pneg %p204
        %p1344 = pneg %p201
        %p1345 = pneg %p225
        %p1346 = pneg %p222
        %p1347 = pneg %p246
        %p1348 = pneg %p243
        %p1349 = pneg %p267
        %p1350 = pneg %p264
        %p1351 = pneg %p288
        %p1352 = pneg %p285
        %p1353 = pneg %p309
        %p1354 = pneg %p306
        %p1355 = pneg %p330
        %p1356 = pneg %p327
        %p1357 = pneg %p351
        %p1358 = pneg %p348
        %p1359 = pneg %p372
        %p1360 = pneg %p369
        %p1361 = pneg %p393
        %p1362 = pneg %p390
        %p1363 = pneg %p414
        %p1364 = pneg %p411
        %p1365 = pneg %p435
        %p1366 = pneg %p432
        %p1367 = pneg %p456
        %p1368 = pneg %p453
        %p1369 = pneg %p477
        %p1370 = pneg %p474
        %p1371 = pneg %p498
        %p1372 = pneg %p495
        %p1373 = pneg %p519
        %p1374 = pneg %p516
        %p1375 = pneg %p540
        %p1376 = pneg %p537
        %p1377 = pneg %p561
        %p1378 = pneg %p558
        %p1379 = pneg %p582
        %p1380 = pneg %p579
        %p1381 = pneg %p603
        %p1382 = pneg %p600
        %p1383 = pneg %p624
        %p1384 = pneg %p621
        %p1385 = pneg %p645
        %p1386 = pneg %p642
        %p1387 = pneg %p666
        %p1388 = pneg %p663
        %p1389 = pneg %p687
        %p1390 = pneg %p684
        %p1391 = pneg %p708
        %p1392 = pneg %p705
        %p1393 = pneg %p729
        %p1394 = pneg %p726
        %p1395 = pneg %p755
        %p1396 = pneg %p752
        %p1397 = scmp.lt.s32.totalorder %s94, 1
        %s1398 = scalar_select %p1397, %s94, 1
        %s1399 = smul.addr %s1398, 2
        %s1400 = smul.addr %s1399, 8
        %s1401 = scalar_lea.vmem %s61, %s1400
        %p1402 = pneg %p781
        %p1403 = pneg %p778
        %p1404 = scmp.lt.s32.totalorder %s94, 1
        %s1405 = scalar_select %p1404, %s94, 1
        %s1406 = smul.addr %s1405, 2
        %s1407 = smul.addr %s1406, 8
        %s1408 = scalar_lea.vmem %s63, %s1407
        %p1409 = pneg %p807
        %p1410 = pneg %p804
        %p1411 = scmp.lt.s32.totalorder %s94, 1
        %s1412 = scalar_select %p1411, %s94, 1
        %s1413 = smul.addr %s1412, 4
        %s1414 = smul.addr %s1413, 8
        %s1415 = scalar_lea.vmem %s65, %s1414
        %p1416 = pneg %p833
        %p1417 = pneg %p830
        %p1418 = scmp.lt.s32.totalorder %s94, 1
        %s1419 = scalar_select %p1418, %s94, 1
        %s1420 = smul.addr %s1419, 32
        %s1421 = smul.addr %s1420, 8
        %s1422 = scalar_lea.vmem %s67, %s1421
        %p1423 = pneg %p859
        %p1424 = pneg %p856
        %p1425 = scmp.lt.s32.totalorder %s94, 1
        %s1426 = scalar_select %p1425, %s94, 1
        %s1427 = smul.addr %s1426, 8
        %s1428 = scalar_lea.vmem %s69, %s1427
        %p1429 = pneg %p885
        %p1430 = pneg %p882
        %p1431 = scmp.lt.s32.totalorder %s94, 1
        %s1432 = scalar_select %p1431, %s94, 1
        %s1433 = smul.addr %s1432, 8
        %s1434 = scalar_lea.vmem %s71, %s1433
        %p1435 = scmp.lt.s32.totalorder %s94, 1
        %s1436 = scalar_select %p1435, %s94, 1
        %s1437 = smul.addr %s1436, 2
        %s1438 = smul.addr %s1437, 8
        %s1439 = scalar_lea.vmem %s1, %s1438
        %p1440 = scmp.lt.s32.totalorder %s94, 1
        %s1441 = scalar_select %p1440, %s94, 1
        %s1442 = smul.addr %s1441, 8
        %s1443 = scalar_lea.vmem %s3, %s1442
        %p1444 = scmp.lt.s32.totalorder %s94, 1
        %s1445 = scalar_select %p1444, %s94, 1
        %s1446 = smul.addr %s1445, 2
        %s1447 = smul.addr %s1446, 8
        %s1448 = scalar_lea.vmem %s61, %s1447
        %p1449 = scmp.lt.s32.totalorder %s94, 1
        %s1450 = scalar_select %p1449, %s94, 1
        %s1451 = smul.addr %s1450, 2
        %s1452 = smul.addr %s1451, 8
        %s1453 = scalar_lea.vmem %s63, %s1452
        %p1454 = scmp.lt.s32.totalorder %s94, 1
        %s1455 = scalar_select %p1454, %s94, 1
        %s1456 = smul.addr %s1455, 4
        %s1457 = smul.addr %s1456, 8
        %s1458 = scalar_lea.vmem %s65, %s1457
        %p1459 = scmp.lt.s32.totalorder %s94, 1
        %s1460 = scalar_select %p1459, %s94, 1
        %s1461 = smul.addr %s1460, 32
        %s1462 = smul.addr %s1461, 8
        %s1463 = scalar_lea.vmem %s67, %s1462
        %p1464 = scmp.lt.s32.totalorder %s94, 1
        %s1465 = scalar_select %p1464, %s94, 1
        %s1466 = smul.addr %s1465, 8
        %s1467 = scalar_lea.vmem %s69, %s1466
        %p1468 = scmp.lt.s32.totalorder %s94, 1
        %s1469 = scalar_select %p1468, %s94, 1
        %s1470 = smul.addr %s1469, 8
        %s1471 = scalar_lea.vmem %s71, %s1470
        %v1472 = vld [vmem:[%s1439] sm:$0xff]
        %v1473 = vld [vmem:[%s1439 + $0x8] sm:$0xff]
        %v1474 = vld [vmem:[%s5] sm:$0x1]
        %v1475 = vld [vmem:[%s7] sm:$0x1]
        %vm1476 = vcmask 261120
        %v1477 = vsel %vm1476, %v1472, 0.0
        %1478 = vadd.xlane.f32.xlu0 %v1477
        %v1479 = vpop.xlane.xlu0 %1478
        %v1480 = vsel %vm1476, %v1473, 0.0
        %1481 = vadd.xlane.f32.xlu0 %v1480
        %v1482 = vpop.xlane.xlu0 %1481
        %v1483 = vrcp.pop 32.0
        %v1484 = vmul.f32 32.0, %v1483
        %v1485 = vsub.f32 1.0, %v1484
        %v1486 = vmul.f32 %v1483, %v1485
        %v1487 = vadd.f32 %v1483, %v1486
        %vm1488 = vweird.f32 %v1483
        %v1489 = vsel %vm1488, %v1483, %v1487
        %v1490 = vmul.f32 %v1479, %v1489
        %v1491 = vmul.f32 %v1482, %v1489
        %v1492 = vsub.f32 %v1472, %v1490
        %v1493 = vsub.f32 %v1473, %v1491
        %v1494 = vmul.f32 %v1492, %v1492
        %v1495 = vmul.f32 %v1493, %v1493
        %v1496 = vsel %vm1476, %v1494, 0.0
        %1497 = vadd.xlane.f32.xlu0 %v1496
        %v1498 = vpop.xlane.xlu0 %1497
        %v1499 = vsel %vm1476, %v1495, 0.0
        %1500 = vadd.xlane.f32.xlu0 %v1499
        %v1501 = vpop.xlane.xlu0 %1500
        %v1502 = vmul.f32 %v1498, %v1489
        %v1503 = vmul.f32 %v1501, %v1489
        %v1504 = vadd.f32 %v1502, 1e-05
        %v1505 = vadd.f32 %v1503, 1e-05
        %v1506 = vrsqrt.pop %v1504
        %v1507 = vmul.f32 %v1506, %v1504
        %v1508 = vmul.f32 %v1507, %v1506
        %v1509 = vmul.f32 0.5, %v1508
        %v1510 = vsub.f32 1.5, %v1509
        %v1511 = vmul.f32 %v1506, %v1510
        %vm1512 = vweird.f32 %v1504
        %vm1513 = vweird.f32 %v1506
        %vm1514 = vmor %vm1512, %vm1513
        %v1515 = vsel %vm1514, %v1506, %v1511
        %v1516 = vrsqrt.pop %v1505
        %v1517 = vmul.f32 %v1516, %v1505
        %v1518 = vmul.f32 %v1517, %v1516
        %v1519 = vmul.f32 0.5, %v1518
        %v1520 = vsub.f32 1.5, %v1519
        %v1521 = vmul.f32 %v1516, %v1520
        %vm1522 = vweird.f32 %v1505
        %vm1523 = vweird.f32 %v1516
        %vm1524 = vmor %vm1522, %vm1523
        %v1525 = vsel %vm1524, %v1516, %v1521
        %v1526 = vmul.f32 %v1492, %v1515
        %v1527 = vmul.f32 %v1493, %v1525
        %v1529 = vperm.slane %v1474, 0
        %v1531 = vmul.f32 %v1526, %v1529
        %v1532 = vmul.f32 %v1527, %v1529
        %v1534 = vperm.slane %v1475, 0
        %v1536 = vadd.f32 %v1531, %v1534
        %v1537 = vadd.f32 %v1532, %v1534
        %v1538 = vld [vmem:[#allocation2] sm:$0xff]
        %v1539 = vld [vmem:[#allocation2 + $0x8] sm:$0xff]
        %v1540 = vld [vmem:[#allocation2 + $0x10] sm:$0xff]
        %v1541 = vld [vmem:[#allocation2 + $0x18] sm:$0xff]
        %v1543 = vsel %vm1476, %v1536, 0
        %v1546 = vsel %vm1476, %v1537, 0
        %1548 = vmatpush.msra.mxu0 0.0
        %1549 = vmatpush.msra.mxu0 0.0
        %1550 = vmatpush.msra.mxu0 0.0
        %1551 = vmatpush.msra.mxu0 0.0
        %1552 = vmatpush.msra.mxu0 0.0
        %1553 = vmatpush.msra.mxu0 0.0
        %1554 = vmatpush.msra.mxu0 0.0
        %1555 = vmatpush.msra.mxu0 0.0
        %1556 = vmatpush.msra.mxu0 0.0
        %1557 = vmatpush.msra.mxu0 0.0
        %1558 = vmatpush.msra.mxu0 0.0
        %1559 = vmatpush.msra.mxu0 0.0
        %1560 = vmatpush.msra.mxu0 %v1541
        %1561 = vmatpush.msra.mxu0 %v1540
        %1562 = vmatpush.msra.mxu0 %v1539
        %1563 = vmatpush.msra.mxu0 %v1538
        %1564 = vmatmul.f32.gmra.mxu0 %v1543
        %v1565 = vpop.f32.mrf.mxu0
        %v1566 = vadd.f32 0.0, %v1565
        %1567 = vmatmul.f32.gmra.mxu0 %v1546
        %v1568 = vpop.f32.mrf.mxu0
        %v1569 = vadd.f32 0.0, %v1568
        %1570 = vdwg.mxu0
        %v1571 = vld [vmem:[#allocation4] sm:$0xff]
        %v1572 = vld [vmem:[#allocation4 + $0x8] sm:$0xff]
        %v1573 = vld [vmem:[#allocation4 + $0x10] sm:$0xff]
        %v1574 = vld [vmem:[#allocation4 + $0x18] sm:$0xff]
        %1575 = vmatpush.msra.mxu0 0.0
        %1576 = vmatpush.msra.mxu0 0.0
        %1577 = vmatpush.msra.mxu0 0.0
        %1578 = vmatpush.msra.mxu0 0.0
        %1579 = vmatpush.msra.mxu0 0.0
        %1580 = vmatpush.msra.mxu0 0.0
        %1581 = vmatpush.msra.mxu0 0.0
        %1582 = vmatpush.msra.mxu0 0.0
        %1583 = vmatpush.msra.mxu0 0.0
        %1584 = vmatpush.msra.mxu0 0.0
        %1585 = vmatpush.msra.mxu0 0.0
        %1586 = vmatpush.msra.mxu0 0.0
        %1587 = vmatpush.msra.mxu0 %v1574
        %1588 = vmatpush.msra.mxu0 %v1573
        %1589 = vmatpush.msra.mxu0 %v1572
        %1590 = vmatpush.msra.mxu0 %v1571
        %1591 = vmatmul.f32.gmra.mxu0 %v1543
        %v1592 = vpop.f32.mrf.mxu0
        %v1593 = vadd.f32 0.0, %v1592
        %1594 = vmatmul.f32.gmra.mxu0 %v1546
        %v1595 = vpop.f32.mrf.mxu0
        %v1596 = vadd.f32 0.0, %v1595
        %1597 = vdwg.mxu0
        %v1598 = vld [vmem:[%s1443] sm:$0xff]
        %v1599 = vld [vmem:[%s15] sm:$0x1]
        %v1600 = vld [vmem:[#allocation7] sm:$0x1]
        %v1601 = vld [vmem:[#allocation6] sm:$0xff]
        %v1602 = vld [vmem:[#allocation6 + $0x8] sm:$0xff]
        %v1603 = vld [vmem:[#allocation6 + $0x10] sm:$0xff]
        %v1604 = vld [vmem:[#allocation6 + $0x18] sm:$0xff]
        %v1605 = vld [vmem:[#allocation9] sm:$0xff]
        %v1606 = vld [vmem:[#allocation9 + $0x8] sm:$0xff]
        %v1607 = vld [vmem:[#allocation9 + $0x10] sm:$0xff]
        %v1608 = vld [vmem:[#allocation9 + $0x18] sm:$0xff]
        %v1609 = vld [vmem:[#allocation10] sm:$0xff]
        %v1610 = vld [vmem:[#allocation10 + $0x8] sm:$0xff]
        %v1611 = vld [vmem:[#allocation10 + $0x10] sm:$0xff]
        %v1612 = vld [vmem:[#allocation10 + $0x18] sm:$0xff]
        %v1613 = vld [vmem:[#allocation12] sm:$0x1]
        %v1614 = vld [vmem:[#allocation13] sm:$0x1]
        %v1615 = vld [vmem:[#allocation15] sm:$0x1]
        %v1616 = vld [vmem:[#allocation16] sm:$0x1]
        %v1617 = vld [vmem:[#allocation18] sm:$0xff]
        %v1618 = vld [vmem:[#allocation18 + $0x8] sm:$0xff]
        %v1619 = vld [vmem:[#allocation18 + $0x10] sm:$0xff]
        %v1620 = vld [vmem:[#allocation18 + $0x18] sm:$0xff]
        %v1621 = vld [vmem:[#allocation19] sm:$0x1]
        %v1622 = vld [vmem:[%s35] sm:$0xff]
        %v1623 = vld [vmem:[%s35 + $0x8] sm:$0xff]
        %v1624 = vld [vmem:[%s35 + $0x10] sm:$0xff]
        %v1625 = vld [vmem:[%s35 + $0x18] sm:$0xff]
        %v1626 = vld [vmem:[%s35 + $0x20] sm:$0xff]
        %v1627 = vld [vmem:[%s35 + $0x28] sm:$0xff]
        %v1628 = vld [vmem:[%s35 + $0x30] sm:$0xff]
        %v1629 = vld [vmem:[%s35 + $0x38] sm:$0xff]
        %v1630 = vld [vmem:[%s35 + $0x40] sm:$0xff]
        %v1631 = vld [vmem:[%s35 + $0x48] sm:$0xff]
        %v1632 = vld [vmem:[%s35 + $0x50] sm:$0xff]
        %v1633 = vld [vmem:[%s35 + $0x58] sm:$0xff]
        %v1634 = vld [vmem:[%s35 + $0x60] sm:$0xff]
        %v1635 = vld [vmem:[%s35 + $0x68] sm:$0xff]
        %v1636 = vld [vmem:[%s35 + $0x70] sm:$0xff]
        %v1637 = vld [vmem:[%s35 + $0x78] sm:$0xff]
        %v1638 = vld [vmem:[#allocation21] sm:$0x1]
        %v1639 = vld [vmem:[#allocation22] sm:$0xff]
        %v1640 = vld [vmem:[#allocation22 + $0x8] sm:$0xff]
        %v1641 = vld [vmem:[#allocation22 + $0x10] sm:$0xff]
        %v1642 = vld [vmem:[#allocation22 + $0x18] sm:$0xff]
        %v1643 = vld [vmem:[%s41] sm:$0xff]
        %v1644 = vld [vmem:[%s41 + $0x8] sm:$0xff]
        %v1645 = vld [vmem:[%s41 + $0x10] sm:$0xff]
        %v1646 = vld [vmem:[%s41 + $0x18] sm:$0xff]
        %v1647 = vld [vmem:[%s41 + $0x20] sm:$0xff]
        %v1648 = vld [vmem:[%s41 + $0x28] sm:$0xff]
        %v1649 = vld [vmem:[%s41 + $0x30] sm:$0xff]
        %v1650 = vld [vmem:[%s41 + $0x38] sm:$0xff]
        %v1651 = vld [vmem:[%s41 + $0x40] sm:$0xff]
        %v1652 = vld [vmem:[%s41 + $0x48] sm:$0xff]
        %v1653 = vld [vmem:[%s41 + $0x50] sm:$0xff]
        %v1654 = vld [vmem:[%s41 + $0x58] sm:$0xff]
        %v1655 = vld [vmem:[%s41 + $0x60] sm:$0xff]
        %v1656 = vld [vmem:[%s41 + $0x68] sm:$0xff]
        %v1657 = vld [vmem:[%s41 + $0x70] sm:$0xff]
        %v1658 = vld [vmem:[%s41 + $0x78] sm:$0xff]
        %v1659 = vld [vmem:[%s43] sm:$0xff]
        %v1660 = vld [vmem:[%s43 + $0x8] sm:$0xff]
        %v1661 = vld [vmem:[%s43 + $0x10] sm:$0xff]
        %v1662 = vld [vmem:[%s43 + $0x18] sm:$0xff]
        %v1663 = vld [vmem:[%s43 + $0x20] sm:$0xff]
        %v1664 = vld [vmem:[%s43 + $0x28] sm:$0xff]
        %v1665 = vld [vmem:[%s43 + $0x30] sm:$0xff]
        %v1666 = vld [vmem:[%s43 + $0x38] sm:$0xff]
        %v1667 = vld [vmem:[%s43 + $0x40] sm:$0xff]
        %v1668 = vld [vmem:[%s43 + $0x48] sm:$0xff]
        %v1669 = vld [vmem:[%s43 + $0x50] sm:$0xff]
        %v1670 = vld [vmem:[%s43 + $0x58] sm:$0xff]
        %v1671 = vld [vmem:[%s43 + $0x60] sm:$0xff]
        %v1672 = vld [vmem:[%s43 + $0x68] sm:$0xff]
        %v1673 = vld [vmem:[%s43 + $0x70] sm:$0xff]
        %v1674 = vld [vmem:[%s43 + $0x78] sm:$0xff]
        %v1675 = vld [vmem:[%s45] sm:$0xff]
        %v1676 = vld [vmem:[%s45 + $0x8] sm:$0xff]
        %v1677 = vld [vmem:[%s45 + $0x10] sm:$0xff]
        %v1678 = vld [vmem:[%s45 + $0x18] sm:$0xff]
        %v1679 = vld [vmem:[%s45 + $0x20] sm:$0xff]
        %v1680 = vld [vmem:[%s45 + $0x28] sm:$0xff]
        %v1681 = vld [vmem:[%s45 + $0x30] sm:$0xff]
        %v1682 = vld [vmem:[%s45 + $0x38] sm:$0xff]
        %v1683 = vld [vmem:[%s45 + $0x40] sm:$0xff]
        %v1684 = vld [vmem:[%s45 + $0x48] sm:$0xff]
        %v1685 = vld [vmem:[%s45 + $0x50] sm:$0xff]
        %v1686 = vld [vmem:[%s45 + $0x58] sm:$0xff]
        %v1687 = vld [vmem:[%s45 + $0x60] sm:$0xff]
        %v1688 = vld [vmem:[%s45 + $0x68] sm:$0xff]
        %v1689 = vld [vmem:[%s45 + $0x70] sm:$0xff]
        %v1690 = vld [vmem:[%s45 + $0x78] sm:$0xff]
        %v1691 = vsel %vm1476, %v1598, 0.0
        %1692 = vadd.xlane.f32.xlu0 %v1691
        %v1693 = vpop.xlane.xlu0 %1692
        %v1694 = vmul.f32 %v1693, %v1489
        %v1695 = vsub.f32 %v1598, %v1694
        %v1696 = vmul.f32 %v1695, %v1695
        %v1697 = vsel %vm1476, %v1696, 0.0
        %1698 = vadd.xlane.f32.xlu0 %v1697
        %v1699 = vpop.xlane.xlu0 %1698
        %v1700 = vmul.f32 %v1699, %v1489
        %v1701 = vadd.f32 %v1700, 1e-05
        %v1702 = vrsqrt.pop %v1701
        %v1703 = vmul.f32 %v1702, %v1701
        %v1704 = vmul.f32 %v1703, %v1702
        %v1705 = vmul.f32 0.5, %v1704
        %v1706 = vsub.f32 1.5, %v1705
        %v1707 = vmul.f32 %v1702, %v1706
        %vm1708 = vweird.f32 %v1701
        %vm1709 = vweird.f32 %v1702
        %vm1710 = vmor %vm1708, %vm1709
        %v1711 = vsel %vm1710, %v1702, %v1707
        %v1712 = vmul.f32 %v1695, %v1711
        %v1714 = vperm.slane %v1599, 0
        %v1716 = vmul.f32 %v1712, %v1714
        %v1718 = vperm.slane %v1600, 0
        %v1720 = vadd.f32 %v1716, %v1718
        %v1722 = vsel %vm1476, %v1720, 0
        %1724 = vmatpush.msra.mxu0 0.0
        %1725 = vmatpush.msra.mxu0 0.0
        %1726 = vmatpush.msra.mxu0 0.0
        %1727 = vmatpush.msra.mxu0 0.0
        %1728 = vmatpush.msra.mxu0 0.0
        %1729 = vmatpush.msra.mxu0 0.0
        %1730 = vmatpush.msra.mxu0 0.0
        %1731 = vmatpush.msra.mxu0 0.0
        %1732 = vmatpush.msra.mxu0 0.0
        %1733 = vmatpush.msra.mxu0 0.0
        %1734 = vmatpush.msra.mxu0 0.0
        %1735 = vmatpush.msra.mxu0 0.0
        %1736 = vmatpush.msra.mxu0 %v1604
        %1737 = vmatpush.msra.mxu0 %v1603
        %1738 = vmatpush.msra.mxu0 %v1602
        %1739 = vmatpush.msra.mxu0 %v1601
        %1740 = vmatmul.f32.gmra.mxu0 %v1722
        %v1741 = vpop.f32.mrf.mxu0
        %v1742 = vadd.f32 0.0, %v1741
        %1743 = vdwg.mxu0
        %v1745 = vsel %vm1476, %v1742, 0
        %v1748 = vsel %vm1476, %v1566, 0
        %v1751 = vsel %vm1476, %v1569, 0
        %1753 = vmatpush.xpose.msra.mxu0 0.0
        %1754 = vmatpush.xpose.msra.mxu0 0.0
        %1755 = vmatpush.xpose.msra.mxu0 0.0
        %1756 = vmatpush.xpose.msra.mxu0 0.0
        %1757 = vmatpush.xpose.msra.mxu0 0.0
        %1758 = vmatpush.xpose.msra.mxu0 0.0
        %1759 = vmatpush.xpose.msra.mxu0 0.0
        %1760 = vmatpush.xpose.msra.mxu0 0.0
        %1761 = vmatpush.xpose.msra.mxu0 0.0
        %1762 = vmatpush.xpose.msra.mxu0 0.0
        %1763 = vmatpush.xpose.msra.mxu0 0.0
        %1764 = vmatpush.xpose.msra.mxu0 0.0
        %1765 = vmatpush.xpose.msra.mxu0 0.0
        %1766 = vmatpush.xpose.msra.mxu0 0.0
        %1767 = vmatpush.xpose.msra.mxu0 %v1751
        %1768 = vmatpush.xpose.msra.mxu0 %v1748
        %1769 = vmatmul.f32.gmra.mxu0 %v1745
        %v1770 = vpop.f32.mrf.mxu0
        %v1771 = vadd.f32 0.0, %v1770
        %1772 = vdwg.mxu0
        %v1773 = vmul.f32 %v1771, 0.17677669
        %vm1774 = vcmask 130048
        %v1775 = vsel %vm1774, %v1773, -inf
        %v1776 = vrot.slane %v1775, 4
        %v1777 = vmax.f32 %v1775, %v1776
        %v1778 = vrot.slane %v1777, 2
        %v1779 = vmax.f32 %v1777, %v1778
        %v1780 = vrot.slane %v1779, 1
        %v1781 = vmax.f32 %v1779, %v1780
        %v1782 = vsub.f32 %v1773, %v1781
        %v1783 = vmul.f32 %v1782, 1.442695
        %v1784 = vpow.pop %v1783
        %v1785 = vsel %vm1774, %v1784, 0.0
        %v1786 = vrot.slane %v1785, 4
        %v1787 = vadd.f32 %v1785, %v1786
        %v1788 = vrot.slane %v1787, 2
        %v1789 = vadd.f32 %v1787, %v1788
        %v1790 = vrot.slane %v1789, 1
        %v1791 = vadd.f32 %v1789, %v1790
        %v1792 = vrcp.pop %v1791
        %v1793 = vmul.f32 %v1784, %v1792
        %v1794 = vadd.f32 %v1793, 1e-08
        %v1795 = vsel %vm1774, %v1794, 0.0
        %1796 = vadd.xlane.f32.xlu0 %v1795
        %v1797 = vpop.xlane.xlu0 %1796
        %v1798 = vrcp.pop %v1797
        %v1799 = vmul.f32 %v1794, %v1798
        %v1801 = vsel %vm1774, %v1799, 0
        %1803 = vmatpush.msra.mxu0 0.0
        %1804 = vmatpush.msra.mxu0 0.0
        %1805 = vmatpush.msra.mxu0 0.0
        %1806 = vmatpush.msra.mxu0 0.0
        %1807 = vmatpush.msra.mxu0 0.0
        %1808 = vmatpush.msra.mxu0 0.0
        %1809 = vmatpush.msra.mxu0 0.0
        %1810 = vmatpush.msra.mxu0 0.0
        %1811 = vmatpush.msra.mxu0 0.0
        %1812 = vmatpush.msra.mxu0 0.0
        %1813 = vmatpush.msra.mxu0 0.0
        %1814 = vmatpush.msra.mxu0 0.0
        %1815 = vmatpush.msra.mxu0 0.0
        %1816 = vmatpush.msra.mxu0 0.0
        %1817 = vmatpush.msra.mxu0 %v1596
        %1818 = vmatpush.msra.mxu0 %v1593
        %1819 = vmatmul.f32.gmra.mxu0 %v1801
        %v1820 = vpop.f32.mrf.mxu0
        %v1821 = vadd.f32 0.0, %v1820
        %1822 = vdwg.mxu0
        %v1824 = vperm.slane %v1613, 0
        %v1827 = vsel %vm1476, %v1821, 0
        %1829 = vmatpush.msra.mxu0 0.0
        %1830 = vmatpush.msra.mxu0 0.0
        %1831 = vmatpush.msra.mxu0 0.0
        %1832 = vmatpush.msra.mxu0 0.0
        %1833 = vmatpush.msra.mxu0 0.0
        %1834 = vmatpush.msra.mxu0 0.0
        %1835 = vmatpush.msra.mxu0 0.0
        %1836 = vmatpush.msra.mxu0 0.0
        %1837 = vmatpush.msra.mxu0 0.0
        %1838 = vmatpush.msra.mxu0 0.0
        %1839 = vmatpush.msra.mxu0 0.0
        %1840 = vmatpush.msra.mxu0 0.0
        %1841 = vmatpush.msra.mxu0 %v1608
        %1842 = vmatpush.msra.mxu0 %v1607
        %1843 = vmatpush.msra.mxu0 %v1606
        %1844 = vmatpush.msra.mxu0 %v1605
        %1845 = vmatmul.f32.gmra.mxu0 %v1827
        %v1846 = vpop.f32.mrf.mxu0
        %v1847 = vadd.f32 %v1824, %v1846
        %1848 = vdwg.mxu0
        %v1850 = vperm.slane %v1614, 0
        %v1853 = vsel %vm1476, %v1598, 0
        %1855 = vmatpush.msra.mxu0 0.0
        %1856 = vmatpush.msra.mxu0 0.0
        %1857 = vmatpush.msra.mxu0 0.0
        %1858 = vmatpush.msra.mxu0 0.0
        %1859 = vmatpush.msra.mxu0 0.0
        %1860 = vmatpush.msra.mxu0 0.0
        %1861 = vmatpush.msra.mxu0 0.0
        %1862 = vmatpush.msra.mxu0 0.0
        %1863 = vmatpush.msra.mxu0 0.0
        %1864 = vmatpush.msra.mxu0 0.0
        %1865 = vmatpush.msra.mxu0 0.0
        %1866 = vmatpush.msra.mxu0 0.0
        %1867 = vmatpush.msra.mxu0 %v1612
        %1868 = vmatpush.msra.mxu0 %v1611
        %1869 = vmatpush.msra.mxu0 %v1610
        %1870 = vmatpush.msra.mxu0 %v1609
        %1871 = vmatmul.f32.gmra.mxu0 %v1853
        %v1872 = vpop.f32.mrf.mxu0
        %v1873 = vadd.f32 %v1850, %v1872
        %1874 = vdwg.mxu0
        %v1875 = vadd.f32 %v1847, %v1873
        %v1876 = vxor.u32 %v1875, 2147483648
        %v1877 = vmul.f32 %v1876, 1.442695
        %v1878 = vpow.pop %v1877
        %v1879 = vadd.f32 %v1878, 1.0
        %v1880 = vrcp.pop %v1879
        %v1881 = vmul.f32 %v1879, %v1880
        %v1882 = vsub.f32 1.0, %v1881
        %v1883 = vmul.f32 %v1880, %v1882
        %v1884 = vadd.f32 %v1880, %v1883
        %vm1885 = vweird.f32 %v1879
        %vm1886 = vweird.f32 %v1880
        %vm1887 = vmor %vm1885, %vm1886
        %v1888 = vsel %vm1887, %v1880, %v1884
        %v1889 = vand.u32 2147483647, %v1879
        %vm1890 = vcmp.eq.f32.partialorder %v1889, 8.507059e+37
        %v1891 = vand.u32 %v1879, 2147483648
        %v1892 = vor.u32 1.1754944e-38, %v1891
        %v1893 = vsel %vm1890, %v1892, %v1888
        %v1894 = vmul.f32 1.0, %v1893
        %1896 = vrot.lane.b32.xlu0 %v1873, 64
        %v1897 = vpop.permute.xlu0 %1896
        %v1899 = vmul.f32 %v1894, %v1897
        %1901 = vrot.lane.b32.xlu0 %v1899, 64
        %v1902 = vpop.permute.xlu0 %1901
        %v1904 = vadd.f32 %v1847, %v1902
        %v1905 = vtanh.pop %v1904
        %v1906 = vsub.f32 1.0, %v1894
        %1908 = vrot.lane.b32.xlu0 %v1905, 96
        %v1909 = vpop.permute.xlu0 %1908
        %v1911 = vmul.f32 %v1906, %v1909
        %1912 = vrot.lane.b32.xlu0 %v1598, 32
        %v1913 = vpop.permute.xlu0 %1912
        %v1915 = vmul.f32 %v1894, %v1913
        %v1916 = vadd.f32 %v1911, %v1915
        %1918 = vrot.lane.b32.xlu0 %v1916, 96
        %v1919 = vpop.permute.xlu0 %1918
        %v1921 = vsel %vm1476, %v1919, 0.0
        %1922 = vadd.xlane.f32.xlu0 %v1921
        %v1923 = vpop.xlane.xlu0 %1922
        %v1924 = vmul.f32 %v1923, %v1489
        %v1925 = vsub.f32 %v1916, %v1924
        %v1926 = vmul.f32 %v1925, %v1925
        %1928 = vrot.lane.b32.xlu0 %v1926, 96
        %v1929 = vpop.permute.xlu0 %1928
        %v1931 = vsel %vm1476, %v1929, 0.0
        %1932 = vadd.xlane.f32.xlu0 %v1931
        %v1933 = vpop.xlane.xlu0 %1932
        %v1934 = vmul.f32 %v1933, %v1489
        %v1935 = vadd.f32 %v1934, 1e-05
        %v1936 = vrsqrt.pop %v1935
        %v1937 = vmul.f32 %v1936, %v1935
        %v1938 = vmul.f32 %v1937, %v1936
        %v1939 = vmul.f32 0.5, %v1938
        %v1940 = vsub.f32 1.5, %v1939
        %v1941 = vmul.f32 %v1936, %v1940
        %vm1942 = vweird.f32 %v1935
        %vm1943 = vweird.f32 %v1936
        %vm1944 = vmor %vm1942, %vm1943
        %v1945 = vsel %vm1944, %v1936, %v1941
        %v1946 = vmul.f32 %v1925, %v1945
        %v1948 = vperm.slane %v1615, 0
        %1949 = vrot.lane.b32.xlu0 %v1948, 32
        %v1950 = vpop.permute.xlu0 %1949
        %v1952 = vmul.f32 %v1946, %v1950
        %v1954 = vperm.slane %v1616, 0
        %1955 = vrot.lane.b32.xlu0 %v1954, 32
        %v1956 = vpop.permute.xlu0 %1955
        %v1958 = vadd.f32 %v1952, %v1956
        %v1960 = vperm.slane %v1621, 0
        %1963 = vrot.lane.b32.xlu0 %v1958, 96
        %v1964 = vpop.permute.xlu0 %1963
        %v1965 = vsel %vm1476, %v1964, 0
        %1967 = vmatpush.msra.mxu0 0.0
        %1968 = vmatpush.msra.mxu0 0.0
        %1969 = vmatpush.msra.mxu0 0.0
        %1970 = vmatpush.msra.mxu0 0.0
        %1971 = vmatpush.msra.mxu0 0.0
        %1972 = vmatpush.msra.mxu0 0.0
        %1973 = vmatpush.msra.mxu0 0.0
        %1974 = vmatpush.msra.mxu0 0.0
        %1975 = vmatpush.msra.mxu0 0.0
        %1976 = vmatpush.msra.mxu0 0.0
        %1977 = vmatpush.msra.mxu0 0.0
        %1978 = vmatpush.msra.mxu0 0.0
        %1979 = vmatpush.msra.mxu0 %v1620
        %1980 = vmatpush.msra.mxu0 %v1619
        %1981 = vmatpush.msra.mxu0 %v1618
        %1982 = vmatpush.msra.mxu0 %v1617
        %1983 = vmatmul.f32.gmra.mxu0 %v1965
        %v1984 = vpop.f32.mrf.mxu0
        %v1985 = vadd.f32 %v1960, %v1984
        %1986 = vdwg.mxu0
        %v1987 = vmax.f32 %v1985, 0.0
        %v1989 = vperm.slane %v1638, 0
        %1991 = vmatpush.msra.mxu0 %v1637
        %1992 = vmatpush.msra.mxu0 %v1636
        %1993 = vmatpush.msra.mxu0 %v1635
        %1994 = vmatpush.msra.mxu0 %v1634
        %1995 = vmatpush.msra.mxu0 %v1633
        %1996 = vmatpush.msra.mxu0 %v1632
        %1997 = vmatpush.msra.mxu0 %v1631
        %1998 = vmatpush.msra.mxu0 %v1630
        %1999 = vmatpush.msra.mxu0 %v1629
        %2000 = vmatpush.msra.mxu0 %v1628
        %2001 = vmatpush.msra.mxu0 %v1627
        %2002 = vmatpush.msra.mxu0 %v1626
        %2003 = vmatpush.msra.mxu0 %v1625
        %2004 = vmatpush.msra.mxu0 %v1624
        %2005 = vmatpush.msra.mxu0 %v1623
        %2006 = vmatpush.msra.mxu0 %v1622
        %2007 = vmatmul.f32.gmra.mxu0 %v1987
        %v2008 = vpop.f32.mrf.mxu0
        %v2009 = vadd.f32 %v1989, %v2008
        %2010 = vdwg.mxu0
        %v2011 = vadd.f32 %v2009, %v1919
        %v2012 = vsel %vm1476, %v2011, 0.0
        %2013 = vadd.xlane.f32.xlu0 %v2012
        %v2014 = vpop.xlane.xlu0 %2013
        %v2015 = vmul.f32 %v2014, %v1489
        %v2016 = vsub.f32 %v2011, %v2015
        %v2017 = vmul.f32 %v2016, %v2016
        %v2018 = vsel %vm1476, %v2017, 0.0
        %2019 = vadd.xlane.f32.xlu0 %v2018
        %v2020 = vpop.xlane.xlu0 %2019
        %v2021 = vmul.f32 %v2020, %v1489
        %v2022 = vadd.f32 %v2021, 1e-05
        %v2023 = vrsqrt.pop %v2022
        %v2024 = vmul.f32 %v2023, %v2022
        %v2025 = vmul.f32 %v2024, %v2023
        %v2026 = vmul.f32 0.5, %v2025
        %v2027 = vsub.f32 1.5, %v2026
        %v2028 = vmul.f32 %v2023, %v2027
        %vm2029 = vweird.f32 %v2022
        %vm2030 = vweird.f32 %v2023
        %vm2031 = vmor %vm2029, %vm2030
        %v2032 = vsel %vm2031, %v2023, %v2028
        %v2033 = vmul.f32 %v2016, %v2032
        %v2034 = vmul.f32 %v2033, %v1714
        %v2035 = vadd.f32 %v2034, %v1718
        %v2037 = vsel %vm1476, %v2035, 0
        %2039 = vmatpush.msra.mxu0 0.0
        %2040 = vmatpush.msra.mxu0 0.0
        %2041 = vmatpush.msra.mxu0 0.0
        %2042 = vmatpush.msra.mxu0 0.0
        %2043 = vmatpush.msra.mxu0 0.0
        %2044 = vmatpush.msra.mxu0 0.0
        %2045 = vmatpush.msra.mxu0 0.0
        %2046 = vmatpush.msra.mxu0 0.0
        %2047 = vmatpush.msra.mxu0 0.0
        %2048 = vmatpush.msra.mxu0 0.0
        %2049 = vmatpush.msra.mxu0 0.0
        %2050 = vmatpush.msra.mxu0 0.0
        %2051 = vmatpush.msra.mxu0 %v1604
        %2052 = vmatpush.msra.mxu0 %v1603
        %2053 = vmatpush.msra.mxu0 %v1602
        %2054 = vmatpush.msra.mxu0 %v1601
        %2055 = vmatmul.f32.gmra.mxu0 %v2037
        %v2056 = vpop.f32.mrf.mxu0
        %v2057 = vadd.f32 0.0, %v2056
        %2058 = vdwg.mxu0
        %v2060 = vsel %vm1476, %v2057, 0
        %2062 = vmatpush.xpose.msra.mxu0 0.0
        %2063 = vmatpush.xpose.msra.mxu0 0.0
        %2064 = vmatpush.xpose.msra.mxu0 0.0
        %2065 = vmatpush.xpose.msra.mxu0 0.0
        %2066 = vmatpush.xpose.msra.mxu0 0.0
        %2067 = vmatpush.xpose.msra.mxu0 0.0
        %2068 = vmatpush.xpose.msra.mxu0 0.0
        %2069 = vmatpush.xpose.msra.mxu0 0.0
        %2070 = vmatpush.xpose.msra.mxu0 0.0
        %2071 = vmatpush.xpose.msra.mxu0 0.0
        %2072 = vmatpush.xpose.msra.mxu0 0.0
        %2073 = vmatpush.xpose.msra.mxu0 0.0
        %2074 = vmatpush.xpose.msra.mxu0 0.0
        %2075 = vmatpush.xpose.msra.mxu0 0.0
        %2076 = vmatpush.xpose.msra.mxu0 %v1751
        %2077 = vmatpush.xpose.msra.mxu0 %v1748
        %2078 = vmatmul.f32.gmra.mxu0 %v2060
        %v2079 = vpop.f32.mrf.mxu0
        %v2080 = vadd.f32 0.0, %v2079
        %2081 = vdwg.mxu0
        %v2082 = vmul.f32 %v2080, 0.17677669
        %v2083 = vsel %vm1774, %v2082, -inf
        %v2084 = vrot.slane %v2083, 4
        %v2085 = vmax.f32 %v2083, %v2084
        %v2086 = vrot.slane %v2085, 2
        %v2087 = vmax.f32 %v2085, %v2086
        %v2088 = vrot.slane %v2087, 1
        %v2089 = vmax.f32 %v2087, %v2088
        %v2090 = vsub.f32 %v2082, %v2089
        %v2091 = vmul.f32 %v2090, 1.442695
        %v2092 = vpow.pop %v2091
        %v2093 = vsel %vm1774, %v2092, 0.0
        %v2094 = vrot.slane %v2093, 4
        %v2095 = vadd.f32 %v2093, %v2094
        %v2096 = vrot.slane %v2095, 2
        %v2097 = vadd.f32 %v2095, %v2096
        %v2098 = vrot.slane %v2097, 1
        %v2099 = vadd.f32 %v2097, %v2098
        %v2100 = vrcp.pop %v2099
        %v2101 = vmul.f32 %v2092, %v2100
        %v2102 = vadd.f32 %v2101, 1e-08
        %v2103 = vsel %vm1774, %v2102, 0.0
        %2104 = vadd.xlane.f32.xlu0 %v2103
        %v2105 = vpop.xlane.xlu0 %2104
        %v2106 = vrcp.pop %v2105
        %v2107 = vmul.f32 %v2102, %v2106
        %v2109 = vsel %vm1774, %v2107, 0
        %2111 = vmatpush.msra.mxu0 0.0
        %2112 = vmatpush.msra.mxu0 0.0
        %2113 = vmatpush.msra.mxu0 0.0
        %2114 = vmatpush.msra.mxu0 0.0
        %2115 = vmatpush.msra.mxu0 0.0
        %2116 = vmatpush.msra.mxu0 0.0
        %2117 = vmatpush.msra.mxu0 0.0
        %2118 = vmatpush.msra.mxu0 0.0
        %2119 = vmatpush.msra.mxu0 0.0
        %2120 = vmatpush.msra.mxu0 0.0
        %2121 = vmatpush.msra.mxu0 0.0
        %2122 = vmatpush.msra.mxu0 0.0
        %2123 = vmatpush.msra.mxu0 0.0
        %2124 = vmatpush.msra.mxu0 0.0
        %2125 = vmatpush.msra.mxu0 %v1596
        %2126 = vmatpush.msra.mxu0 %v1593
        %2127 = vmatmul.f32.gmra.mxu0 %v2109
        %v2128 = vpop.f32.mrf.mxu0
        %v2129 = vadd.f32 0.0, %v2128
        %2130 = vdwg.mxu0
        %v2132 = vsel %vm1476, %v2129, 0
        %2134 = vmatpush.msra.mxu0 0.0
        %2135 = vmatpush.msra.mxu0 0.0
        %2136 = vmatpush.msra.mxu0 0.0
        %2137 = vmatpush.msra.mxu0 0.0
        %2138 = vmatpush.msra.mxu0 0.0
        %2139 = vmatpush.msra.mxu0 0.0
        %2140 = vmatpush.msra.mxu0 0.0
        %2141 = vmatpush.msra.mxu0 0.0
        %2142 = vmatpush.msra.mxu0 0.0
        %2143 = vmatpush.msra.mxu0 0.0
        %2144 = vmatpush.msra.mxu0 0.0
        %2145 = vmatpush.msra.mxu0 0.0
        %2146 = vmatpush.msra.mxu0 %v1608
        %2147 = vmatpush.msra.mxu0 %v1607
        %2148 = vmatpush.msra.mxu0 %v1606
        %2149 = vmatpush.msra.mxu0 %v1605
        %2150 = vmatmul.f32.gmra.mxu0 %v2132
        %v2151 = vpop.f32.mrf.mxu0
        %v2152 = vadd.f32 %v1824, %v2151
        %2153 = vdwg.mxu0
        %v2155 = vsel %vm1476, %v2011, 0
        %2157 = vmatpush.msra.mxu0 0.0
        %2158 = vmatpush.msra.mxu0 0.0
        %2159 = vmatpush.msra.mxu0 0.0
        %2160 = vmatpush.msra.mxu0 0.0
        %2161 = vmatpush.msra.mxu0 0.0
        %2162 = vmatpush.msra.mxu0 0.0
        %2163 = vmatpush.msra.mxu0 0.0
        %2164 = vmatpush.msra.mxu0 0.0
        %2165 = vmatpush.msra.mxu0 0.0
        %2166 = vmatpush.msra.mxu0 0.0
        %2167 = vmatpush.msra.mxu0 0.0
        %2168 = vmatpush.msra.mxu0 0.0
        %2169 = vmatpush.msra.mxu0 %v1612
        %2170 = vmatpush.msra.mxu0 %v1611
        %2171 = vmatpush.msra.mxu0 %v1610
        %2172 = vmatpush.msra.mxu0 %v1609
        %2173 = vmatmul.f32.gmra.mxu0 %v2155
        %v2174 = vpop.f32.mrf.mxu0
        %v2175 = vadd.f32 %v1850, %v2174
        %2176 = vdwg.mxu0
        %v2177 = vadd.f32 %v2152, %v2175
        %v2178 = vxor.u32 %v2177, 2147483648
        %v2179 = vmul.f32 %v2178, 1.442695
        %v2180 = vpow.pop %v2179
        %v2181 = vadd.f32 %v2180, 1.0
        %v2182 = vrcp.pop %v2181
        %v2183 = vmul.f32 %v2181, %v2182
        %v2184 = vsub.f32 1.0, %v2183
        %v2185 = vmul.f32 %v2182, %v2184
        %v2186 = vadd.f32 %v2182, %v2185
        %vm2187 = vweird.f32 %v2181
        %vm2188 = vweird.f32 %v2182
        %vm2189 = vmor %vm2187, %vm2188
        %v2190 = vsel %vm2189, %v2182, %v2186
        %v2191 = vand.u32 2147483647, %v2181
        %vm2192 = vcmp.eq.f32.partialorder %v2191, 8.507059e+37
        %v2193 = vand.u32 %v2181, 2147483648
        %v2194 = vor.u32 1.1754944e-38, %v2193
        %v2195 = vsel %vm2192, %v2194, %v2190
        %v2196 = vmul.f32 1.0, %v2195
        %2198 = vrot.lane.b32.xlu0 %v2175, 64
        %v2199 = vpop.permute.xlu0 %2198
        %v2201 = vmul.f32 %v2196, %v2199
        %2203 = vrot.lane.b32.xlu0 %v2201, 64
        %v2204 = vpop.permute.xlu0 %2203
        %v2206 = vadd.f32 %v2152, %v2204
        %v2207 = vtanh.pop %v2206
        %v2208 = vsub.f32 1.0, %v2196
        %2210 = vrot.lane.b32.xlu0 %v2207, 96
        %v2211 = vpop.permute.xlu0 %2210
        %v2213 = vmul.f32 %v2208, %v2211
        %2214 = vrot.lane.b32.xlu0 %v2011, 32
        %v2215 = vpop.permute.xlu0 %2214
        %v2217 = vmul.f32 %v2196, %v2215
        %v2218 = vadd.f32 %v2213, %v2217
        %2220 = vrot.lane.b32.xlu0 %v2218, 96
        %v2221 = vpop.permute.xlu0 %2220
        %v2223 = vsel %vm1476, %v2221, 0.0
        %2224 = vadd.xlane.f32.xlu0 %v2223
        %v2225 = vpop.xlane.xlu0 %2224
        %v2226 = vmul.f32 %v2225, %v1489
        %v2227 = vsub.f32 %v2218, %v2226
        %v2228 = vmul.f32 %v2227, %v2227
        %2230 = vrot.lane.b32.xlu0 %v2228, 96
        %v2231 = vpop.permute.xlu0 %2230
        %v2233 = vsel %vm1476, %v2231, 0.0
        %2234 = vadd.xlane.f32.xlu0 %v2233
        %v2235 = vpop.xlane.xlu0 %2234
        %v2236 = vmul.f32 %v2235, %v1489
        %v2237 = vadd.f32 %v2236, 1e-05
        %v2238 = vrsqrt.pop %v2237
        %v2239 = vmul.f32 %v2238, %v2237
        %v2240 = vmul.f32 %v2239, %v2238
        %v2241 = vmul.f32 0.5, %v2240
        %v2242 = vsub.f32 1.5, %v2241
        %v2243 = vmul.f32 %v2238, %v2242
        %vm2244 = vweird.f32 %v2237
        %vm2245 = vweird.f32 %v2238
        %vm2246 = vmor %vm2244, %vm2245
        %v2247 = vsel %vm2246, %v2238, %v2243
        %v2248 = vmul.f32 %v2227, %v2247
        %v2249 = vmul.f32 %v2248, %v1950
        %v2250 = vadd.f32 %v2249, %v1956
        %2252 = vrot.lane.b32.xlu0 %v2250, 96
        %v2253 = vpop.permute.xlu0 %2252
        %v2254 = vsel %vm1476, %v2253, 0
        %2256 = vmatpush.msra.mxu0 0.0
        %2257 = vmatpush.msra.mxu0 0.0
        %2258 = vmatpush.msra.mxu0 0.0
        %2259 = vmatpush.msra.mxu0 0.0
        %2260 = vmatpush.msra.mxu0 0.0
        %2261 = vmatpush.msra.mxu0 0.0
        %2262 = vmatpush.msra.mxu0 0.0
        %2263 = vmatpush.msra.mxu0 0.0
        %2264 = vmatpush.msra.mxu0 0.0
        %2265 = vmatpush.msra.mxu0 0.0
        %2266 = vmatpush.msra.mxu0 0.0
        %2267 = vmatpush.msra.mxu0 0.0
        %2268 = vmatpush.msra.mxu0 %v1620
        %2269 = vmatpush.msra.mxu0 %v1619
        %2270 = vmatpush.msra.mxu0 %v1618
        %2271 = vmatpush.msra.mxu0 %v1617
        %2272 = vmatmul.f32.gmra.mxu0 %v2254
        %v2273 = vpop.f32.mrf.mxu0
        %v2274 = vadd.f32 %v1960, %v2273
        %2275 = vdwg.mxu0
        %v2276 = vmax.f32 %v2274, 0.0
        %2277 = vmatpush.msra.mxu0 %v1637
        %2278 = vmatpush.msra.mxu0 %v1636
        %2279 = vmatpush.msra.mxu0 %v1635
        %2280 = vmatpush.msra.mxu0 %v1634
        %2281 = vmatpush.msra.mxu0 %v1633
        %2282 = vmatpush.msra.mxu0 %v1632
        %2283 = vmatpush.msra.mxu0 %v1631
        %2284 = vmatpush.msra.mxu0 %v1630
        %2285 = vmatpush.msra.mxu0 %v1629
        %2286 = vmatpush.msra.mxu0 %v1628
        %2287 = vmatpush.msra.mxu0 %v1627
        %2288 = vmatpush.msra.mxu0 %v1626
        %2289 = vmatpush.msra.mxu0 %v1625
        %2290 = vmatpush.msra.mxu0 %v1624
        %2291 = vmatpush.msra.mxu0 %v1623
        %2292 = vmatpush.msra.mxu0 %v1622
        %2293 = vmatmul.f32.gmra.mxu0 %v2276
        %v2294 = vpop.f32.mrf.mxu0
        %v2295 = vadd.f32 %v1989, %v2294
        %2296 = vdwg.mxu0
        %v2297 = vadd.f32 %v2295, %v2221
        %v2298 = vsel %vm1476, %v2297, 0.0
        %2299 = vadd.xlane.f32.xlu0 %v2298
        %v2300 = vpop.xlane.xlu0 %2299
        %v2301 = vmul.f32 %v2300, %v1489
        %v2302 = vsub.f32 %v2297, %v2301
        %v2303 = vmul.f32 %v2302, %v2302
        %v2304 = vsel %vm1476, %v2303, 0.0
        %2305 = vadd.xlane.f32.xlu0 %v2304
        %v2306 = vpop.xlane.xlu0 %2305
        %v2307 = vmul.f32 %v2306, %v1489
        %v2308 = vadd.f32 %v2307, 1e-05
        %v2309 = vrsqrt.pop %v2308
        %v2310 = vmul.f32 %v2309, %v2308
        %v2311 = vmul.f32 %v2310, %v2309
        %v2312 = vmul.f32 0.5, %v2311
        %v2313 = vsub.f32 1.5, %v2312
        %v2314 = vmul.f32 %v2309, %v2313
        %vm2315 = vweird.f32 %v2308
        %vm2316 = vweird.f32 %v2309
        %vm2317 = vmor %vm2315, %vm2316
        %v2318 = vsel %vm2317, %v2309, %v2314
        %v2319 = vmul.f32 %v2302, %v2318
        %v2320 = vmul.f32 %v2319, %v1714
        %v2321 = vadd.f32 %v2320, %v1718
        %v2323 = vsel %vm1476, %v2321, 0
        %2325 = vmatpush.msra.mxu0 0.0
        %2326 = vmatpush.msra.mxu0 0.0
        %2327 = vmatpush.msra.mxu0 0.0
        %2328 = vmatpush.msra.mxu0 0.0
        %2329 = vmatpush.msra.mxu0 0.0
        %2330 = vmatpush.msra.mxu0 0.0
        %2331 = vmatpush.msra.mxu0 0.0
        %2332 = vmatpush.msra.mxu0 0.0
        %2333 = vmatpush.msra.mxu0 0.0
        %2334 = vmatpush.msra.mxu0 0.0
        %2335 = vmatpush.msra.mxu0 0.0
        %2336 = vmatpush.msra.mxu0 0.0
        %2337 = vmatpush.msra.mxu0 %v1604
        %2338 = vmatpush.msra.mxu0 %v1603
        %2339 = vmatpush.msra.mxu0 %v1602
        %2340 = vmatpush.msra.mxu0 %v1601
        %2341 = vmatmul.f32.gmra.mxu0 %v2323
        %v2342 = vpop.f32.mrf.mxu0
        %v2343 = vadd.f32 0.0, %v2342
        %2344 = vdwg.mxu0
        %v2346 = vsel %vm1476, %v2343, 0
        %2348 = vmatpush.xpose.msra.mxu0 0.0
        %2349 = vmatpush.xpose.msra.mxu0 0.0
        %2350 = vmatpush.xpose.msra.mxu0 0.0
        %2351 = vmatpush.xpose.msra.mxu0 0.0
        %2352 = vmatpush.xpose.msra.mxu0 0.0
        %2353 = vmatpush.xpose.msra.mxu0 0.0
        %2354 = vmatpush.xpose.msra.mxu0 0.0
        %2355 = vmatpush.xpose.msra.mxu0 0.0
        %2356 = vmatpush.xpose.msra.mxu0 0.0
        %2357 = vmatpush.xpose.msra.mxu0 0.0
        %2358 = vmatpush.xpose.msra.mxu0 0.0
        %2359 = vmatpush.xpose.msra.mxu0 0.0
        %2360 = vmatpush.xpose.msra.mxu0 0.0
        %2361 = vmatpush.xpose.msra.mxu0 0.0
        %2362 = vmatpush.xpose.msra.mxu0 %v1751
        %2363 = vmatpush.xpose.msra.mxu0 %v1748
        %2364 = vmatmul.f32.gmra.mxu0 %v2346
        %v2365 = vpop.f32.mrf.mxu0
        %v2366 = vadd.f32 0.0, %v2365
        %2367 = vdwg.mxu0
        %v2368 = vmul.f32 %v2366, 0.17677669
        %v2369 = vsel %vm1774, %v2368, -inf
        %v2370 = vrot.slane %v2369, 4
        %v2371 = vmax.f32 %v2369, %v2370
        %v2372 = vrot.slane %v2371, 2
        %v2373 = vmax.f32 %v2371, %v2372
        %v2374 = vrot.slane %v2373, 1
        %v2375 = vmax.f32 %v2373, %v2374
        %v2376 = vsub.f32 %v2368, %v2375
        %v2377 = vmul.f32 %v2376, 1.442695
        %v2378 = vpow.pop %v2377
        %v2379 = vsel %vm1774, %v2378, 0.0
        %v2380 = vrot.slane %v2379, 4
        %v2381 = vadd.f32 %v2379, %v2380
        %v2382 = vrot.slane %v2381, 2
        %v2383 = vadd.f32 %v2381, %v2382
        %v2384 = vrot.slane %v2383, 1
        %v2385 = vadd.f32 %v2383, %v2384
        %v2386 = vrcp.pop %v2385
        %v2387 = vmul.f32 %v2378, %v2386
        %v2388 = vadd.f32 %v2387, 1e-08
        %v2389 = vsel %vm1774, %v2388, 0.0
        %2390 = vadd.xlane.f32.xlu0 %v2389
        %v2391 = vpop.xlane.xlu0 %2390
        %v2392 = vrcp.pop %v2391
        %v2393 = vmul.f32 %v2388, %v2392
        %v2395 = vsel %vm1774, %v2393, 0
        %2397 = vmatpush.msra.mxu0 0.0
        %2398 = vmatpush.msra.mxu0 0.0
        %2399 = vmatpush.msra.mxu0 0.0
        %2400 = vmatpush.msra.mxu0 0.0
        %2401 = vmatpush.msra.mxu0 0.0
        %2402 = vmatpush.msra.mxu0 0.0
        %2403 = vmatpush.msra.mxu0 0.0
        %2404 = vmatpush.msra.mxu0 0.0
        %2405 = vmatpush.msra.mxu0 0.0
        %2406 = vmatpush.msra.mxu0 0.0
        %2407 = vmatpush.msra.mxu0 0.0
        %2408 = vmatpush.msra.mxu0 0.0
        %2409 = vmatpush.msra.mxu0 0.0
        %2410 = vmatpush.msra.mxu0 0.0
        %2411 = vmatpush.msra.mxu0 %v1596
        %2412 = vmatpush.msra.mxu0 %v1593
        %2413 = vmatmul.f32.gmra.mxu0 %v2395
        %v2414 = vpop.f32.mrf.mxu0
        %v2415 = vadd.f32 0.0, %v2414
        %2416 = vdwg.mxu0
        %v2418 = vsel %vm1476, %v2415, 0
        %2420 = vmatpush.msra.mxu0 0.0
        %2421 = vmatpush.msra.mxu0 0.0
        %2422 = vmatpush.msra.mxu0 0.0
        %2423 = vmatpush.msra.mxu0 0.0
        %2424 = vmatpush.msra.mxu0 0.0
        %2425 = vmatpush.msra.mxu0 0.0
        %2426 = vmatpush.msra.mxu0 0.0
        %2427 = vmatpush.msra.mxu0 0.0
        %2428 = vmatpush.msra.mxu0 0.0
        %2429 = vmatpush.msra.mxu0 0.0
        %2430 = vmatpush.msra.mxu0 0.0
        %2431 = vmatpush.msra.mxu0 0.0
        %2432 = vmatpush.msra.mxu0 %v1608
        %2433 = vmatpush.msra.mxu0 %v1607
        %2434 = vmatpush.msra.mxu0 %v1606
        %2435 = vmatpush.msra.mxu0 %v1605
        %2436 = vmatmul.f32.gmra.mxu0 %v2418
        %v2437 = vpop.f32.mrf.mxu0
        %v2438 = vadd.f32 %v1824, %v2437
        %2439 = vdwg.mxu0
        %v2441 = vsel %vm1476, %v2297, 0
        %2443 = vmatpush.msra.mxu0 0.0
        %2444 = vmatpush.msra.mxu0 0.0
        %2445 = vmatpush.msra.mxu0 0.0
        %2446 = vmatpush.msra.mxu0 0.0
        %2447 = vmatpush.msra.mxu0 0.0
        %2448 = vmatpush.msra.mxu0 0.0
        %2449 = vmatpush.msra.mxu0 0.0
        %2450 = vmatpush.msra.mxu0 0.0
        %2451 = vmatpush.msra.mxu0 0.0
        %2452 = vmatpush.msra.mxu0 0.0
        %2453 = vmatpush.msra.mxu0 0.0
        %2454 = vmatpush.msra.mxu0 0.0
        %2455 = vmatpush.msra.mxu0 %v1612
        %2456 = vmatpush.msra.mxu0 %v1611
        %2457 = vmatpush.msra.mxu0 %v1610
        %2458 = vmatpush.msra.mxu0 %v1609
        %2459 = vmatmul.f32.gmra.mxu0 %v2441
        %v2460 = vpop.f32.mrf.mxu0
        %v2461 = vadd.f32 %v1850, %v2460
        %2462 = vdwg.mxu0
        %v2463 = vadd.f32 %v2438, %v2461
        %v2464 = vxor.u32 %v2463, 2147483648
        %v2465 = vmul.f32 %v2464, 1.442695
        %v2466 = vpow.pop %v2465
        %v2467 = vadd.f32 %v2466, 1.0
        %v2468 = vrcp.pop %v2467
        %v2469 = vmul.f32 %v2467, %v2468
        %v2470 = vsub.f32 1.0, %v2469
        %v2471 = vmul.f32 %v2468, %v2470
        %v2472 = vadd.f32 %v2468, %v2471
        %vm2473 = vweird.f32 %v2467
        %vm2474 = vweird.f32 %v2468
        %vm2475 = vmor %vm2473, %vm2474
        %v2476 = vsel %vm2475, %v2468, %v2472
        %v2477 = vand.u32 2147483647, %v2467
        %vm2478 = vcmp.eq.f32.partialorder %v2477, 8.507059e+37
        %v2479 = vand.u32 %v2467, 2147483648
        %v2480 = vor.u32 1.1754944e-38, %v2479
        %v2481 = vsel %vm2478, %v2480, %v2476
        %v2482 = vmul.f32 1.0, %v2481
        %2484 = vrot.lane.b32.xlu0 %v2461, 64
        %v2485 = vpop.permute.xlu0 %2484
        %v2487 = vmul.f32 %v2482, %v2485
        %2489 = vrot.lane.b32.xlu0 %v2487, 64
        %v2490 = vpop.permute.xlu0 %2489
        %v2492 = vadd.f32 %v2438, %v2490
        %v2493 = vtanh.pop %v2492
        %v2494 = vsub.f32 1.0, %v2482
        %2496 = vrot.lane.b32.xlu0 %v2493, 96
        %v2497 = vpop.permute.xlu0 %2496
        %v2499 = vmul.f32 %v2494, %v2497
        %2500 = vrot.lane.b32.xlu0 %v2297, 32
        %v2501 = vpop.permute.xlu0 %2500
        %v2503 = vmul.f32 %v2482, %v2501
        %v2504 = vadd.f32 %v2499, %v2503
        %2506 = vrot.lane.b32.xlu0 %v2504, 96
        %v2507 = vpop.permute.xlu0 %2506
        %v2509 = vsel %vm1476, %v2507, 0.0
        %2510 = vadd.xlane.f32.xlu0 %v2509
        %v2511 = vpop.xlane.xlu0 %2510
        %v2512 = vmul.f32 %v2511, %v1489
        %v2513 = vsub.f32 %v2504, %v2512
        %v2514 = vmul.f32 %v2513, %v2513
        %2516 = vrot.lane.b32.xlu0 %v2514, 96
        %v2517 = vpop.permute.xlu0 %2516
        %v2519 = vsel %vm1476, %v2517, 0.0
        %2520 = vadd.xlane.f32.xlu0 %v2519
        %v2521 = vpop.xlane.xlu0 %2520
        %v2522 = vmul.f32 %v2521, %v1489
        %v2523 = vadd.f32 %v2522, 1e-05
        %v2524 = vrsqrt.pop %v2523
        %v2525 = vmul.f32 %v2524, %v2523
        %v2526 = vmul.f32 %v2525, %v2524
        %v2527 = vmul.f32 0.5, %v2526
        %v2528 = vsub.f32 1.5, %v2527
        %v2529 = vmul.f32 %v2524, %v2528
        %vm2530 = vweird.f32 %v2523
        %vm2531 = vweird.f32 %v2524
        %vm2532 = vmor %vm2530, %vm2531
        %v2533 = vsel %vm2532, %v2524, %v2529
        %v2534 = vmul.f32 %v2513, %v2533
        %v2535 = vmul.f32 %v2534, %v1950
        %v2536 = vadd.f32 %v2535, %v1956
        %2538 = vrot.lane.b32.xlu0 %v2536, 96
        %v2539 = vpop.permute.xlu0 %2538
        %v2540 = vsel %vm1476, %v2539, 0
        %2542 = vmatpush.msra.mxu0 0.0
        %2543 = vmatpush.msra.mxu0 0.0
        %2544 = vmatpush.msra.mxu0 0.0
        %2545 = vmatpush.msra.mxu0 0.0
        %2546 = vmatpush.msra.mxu0 0.0
        %2547 = vmatpush.msra.mxu0 0.0
        %2548 = vmatpush.msra.mxu0 0.0
        %2549 = vmatpush.msra.mxu0 0.0
        %2550 = vmatpush.msra.mxu0 0.0
        %2551 = vmatpush.msra.mxu0 0.0
        %2552 = vmatpush.msra.mxu0 0.0
        %2553 = vmatpush.msra.mxu0 0.0
        %2554 = vmatpush.msra.mxu0 %v1620
        %2555 = vmatpush.msra.mxu0 %v1619
        %2556 = vmatpush.msra.mxu0 %v1618
        %2557 = vmatpush.msra.mxu0 %v1617
        %2558 = vmatmul.f32.gmra.mxu0 %v2540
        %v2559 = vpop.f32.mrf.mxu0
        %v2560 = vadd.f32 %v1960, %v2559
        %2561 = vdwg.mxu0
        %v2562 = vmax.f32 %v2560, 0.0
        %2563 = vmatpush.msra.mxu0 %v1637
        %2564 = vmatpush.msra.mxu0 %v1636
        %2565 = vmatpush.msra.mxu0 %v1635
        %2566 = vmatpush.msra.mxu0 %v1634
        %2567 = vmatpush.msra.mxu0 %v1633
        %2568 = vmatpush.msra.mxu0 %v1632
        %2569 = vmatpush.msra.mxu0 %v1631
        %2570 = vmatpush.msra.mxu0 %v1630
        %2571 = vmatpush.msra.mxu0 %v1629
        %2572 = vmatpush.msra.mxu0 %v1628
        %2573 = vmatpush.msra.mxu0 %v1627
        %2574 = vmatpush.msra.mxu0 %v1626
        %2575 = vmatpush.msra.mxu0 %v1625
        %2576 = vmatpush.msra.mxu0 %v1624
        %2577 = vmatpush.msra.mxu0 %v1623
        %2578 = vmatpush.msra.mxu0 %v1622
        %2579 = vmatmul.f32.gmra.mxu0 %v2562
        %v2580 = vpop.f32.mrf.mxu0
        %v2581 = vadd.f32 %v1989, %v2580
        %2582 = vdwg.mxu0
        %v2583 = vadd.f32 %v2581, %v2507
        %v2584 = vld [vmem:[#allocation24] sm:$0xff]
        %v2585 = vld [vmem:[#allocation24 + $0x8] sm:$0xff]
        %v2587 = vsel %vm1476, %v2583, 0
        %v2590 = vsel %vm1476, %v2584, 0
        %v2593 = vsel %vm1476, %v2585, 0
        %2595 = vmatpush.xpose.msra.mxu0 0.0
        %2596 = vmatpush.xpose.msra.mxu0 0.0
        %2597 = vmatpush.xpose.msra.mxu0 0.0
        %2598 = vmatpush.xpose.msra.mxu0 0.0
        %2599 = vmatpush.xpose.msra.mxu0 0.0
        %2600 = vmatpush.xpose.msra.mxu0 0.0
        %2601 = vmatpush.xpose.msra.mxu0 0.0
        %2602 = vmatpush.xpose.msra.mxu0 0.0
        %2603 = vmatpush.xpose.msra.mxu0 0.0
        %2604 = vmatpush.xpose.msra.mxu0 0.0
        %2605 = vmatpush.xpose.msra.mxu0 0.0
        %2606 = vmatpush.xpose.msra.mxu0 0.0
        %2607 = vmatpush.xpose.msra.mxu0 0.0
        %2608 = vmatpush.xpose.msra.mxu0 0.0
        %2609 = vmatpush.xpose.msra.mxu0 %v2593
        %2610 = vmatpush.xpose.msra.mxu0 %v2590
        %2611 = vmatmul.f32.gmra.mxu0 %v2587
        %v2612 = vpop.f32.mrf.mxu0
        %v2613 = vadd.f32 0.0, %v2612
        %2614 = vdwg.mxu0
        %v2615 = vld [vmem:[#allocation25] sm:$0x1]
        %v2616 = vmul.f32 %v2613, 2.0
        %v2618 = vperm.slane %v2615, 0
        %v2620 = vsub.f32 %v2618, %v2616
        %v2621 = vsel %vm1774, %v2620, inf
        %2622 = vmin.xlane.f32.xlu0 %v2621
        %v2623 = vpop.xlane.xlu0 %2622
        %v2624 = vlaneseq
        %v2625 = vand.u32 %v2624, 127
        %vm2626 = vcmp.le.f32.partialorder %v2620, %v2623
        %v2627 = vsel %vm2626, %v2625, 16
        %v2628 = vsel %vm1774, %v2627, 2147483647
        %v2629 = vand.u32 %v2628, 65535
        %v2630 = vshra.s32 %v2628, 16
        %v2631 = vcvt.s32.f32 %v2629
        %v2632 = vcvt.s32.f32 %v2630
        %2633 = vmin.xlane.f32.xlu0 %v2632
        %v2634 = vpop.xlane.xlu0 %2633
        %vm2635 = vcmp.eq.f32.partialorder %v2632, %v2634
        %v2636 = vsel %vm2635, %v2631, inf
        %2637 = vmin.xlane.f32.xlu0 %v2636
        %v2638 = vpop.xlane.xlu0 %2637
        %v2639 = vcvt.f32.s32 %v2638
        %v2640 = vcvt.f32.s32 %v2634
        %v2641 = vshll.u32 %v2640, 16
        %v2642 = vadd.s32 %v2641, %v2639
        %vm2643 = vcmp.eq.s32.totalorder %v2625, %v2642
        %v2644 = vsel %vm2643, 1, 0
        %v2645 = vcvt.s32.f32 %v2644
        %v2647 = vsel %vm1774, %v2645, 0
        %2649 = vmatpush.msra.mxu0 0.0
        %2650 = vmatpush.msra.mxu0 0.0
        %2651 = vmatpush.msra.mxu0 0.0
        %2652 = vmatpush.msra.mxu0 0.0
        %2653 = vmatpush.msra.mxu0 0.0
        %2654 = vmatpush.msra.mxu0 0.0
        %2655 = vmatpush.msra.mxu0 0.0
        %2656 = vmatpush.msra.mxu0 0.0
        %2657 = vmatpush.msra.mxu0 0.0
        %2658 = vmatpush.msra.mxu0 0.0
        %2659 = vmatpush.msra.mxu0 0.0
        %2660 = vmatpush.msra.mxu0 0.0
        %2661 = vmatpush.msra.mxu0 0.0
        %2662 = vmatpush.msra.mxu0 0.0
        %2663 = vmatpush.msra.mxu0 %v2585
        %2664 = vmatpush.msra.mxu0 %v2584
        %2665 = vmatmul.f32.gmra.mxu0 %v2647
        %v2666 = vpop.f32.mrf.mxu0
        %v2667 = vadd.f32 0.0, %v2666
        %2668 = vdwg.mxu0
        %v2669 = vsub.f32 %v2667, %v2583
        %v2670 = vmul.f32 %v2669, %v2669
        %v2671 = vsel %vm1476, %v2670, 0.0
        %2672 = vadd.xlane.f32.xlu0 %v2671
        %v2673 = vpop.xlane.xlu0 %2672
        %v2674 = vmul.f32 %v2673, %v1489
        %v2675 = vmul.u32 %v2642, 8
        %vm2676 = vcmp.ge.s32.totalorder %v2625, %v2675
        %v2677 = vadd.s32 %v2675, 8
        %vm2678 = vcmp.lt.s32.totalorder %v2625, %v2677
        %vm2679 = vmand %vm2676, %vm2678
        %v2680 = vsel %vm2679, 1, 0
        %v2681 = vcvt.s32.f32 %v2680
        %2682 = vmatpush.msra.mxu0 0.0
        %2683 = vmatpush.msra.mxu0 0.0
        %2684 = vmatpush.msra.mxu0 0.0
        %2685 = vmatpush.msra.mxu0 0.0
        %2686 = vmatpush.msra.mxu0 0.0
        %2687 = vmatpush.msra.mxu0 0.0
        %2688 = vmatpush.msra.mxu0 0.0
        %2689 = vmatpush.msra.mxu0 0.0
        %2690 = vmatpush.msra.mxu0 0.0
        %2691 = vmatpush.msra.mxu0 0.0
        %2692 = vmatpush.msra.mxu0 0.0
        %2693 = vmatpush.msra.mxu0 0.0
        %2694 = vmatpush.msra.mxu0 %v1642
        %2695 = vmatpush.msra.mxu0 %v1641
        %2696 = vmatpush.msra.mxu0 %v1640
        %2697 = vmatpush.msra.mxu0 %v1639
        %2698 = vmatmul.f32.gmra.mxu0 %v1965
        %v2699 = vpop.f32.mrf.mxu0
        %v2700 = vadd.f32 0.0, %v2699
        %2701 = vdwg.mxu0
        %v2702 = vmul.f32 %v2700, %v2681
        %2703 = vmatpush.msra.mxu0 %v1658
        %2704 = vmatpush.msra.mxu0 %v1657
        %2705 = vmatpush.msra.mxu0 %v1656
        %2706 = vmatpush.msra.mxu0 %v1655
        %2707 = vmatpush.msra.mxu0 %v1654
        %2708 = vmatpush.msra.mxu0 %v1653
        %2709 = vmatpush.msra.mxu0 %v1652
        %2710 = vmatpush.msra.mxu0 %v1651
        %2711 = vmatpush.msra.mxu0 %v1650
        %2712 = vmatpush.msra.mxu0 %v1649
        %2713 = vmatpush.msra.mxu0 %v1648
        %2714 = vmatpush.msra.mxu0 %v1647
        %2715 = vmatpush.msra.mxu0 %v1646
        %2716 = vmatpush.msra.mxu0 %v1645
        %2717 = vmatpush.msra.mxu0 %v1644
        %2718 = vmatpush.msra.mxu0 %v1643
        %2719 = vmatmul.f32.gmra.mxu0 %v2702
        %v2720 = vpop.f32.mrf.mxu0
        %v2721 = vadd.f32 0.0, %v2720
        %2722 = vdwg.mxu0
        %v2723 = vadd.f32 %v1985, %v2721
        %v2724 = vmax.f32 %v2723, 0.0
        %2725 = vmatpush.msra.mxu0 %v1637
        %2726 = vmatpush.msra.mxu0 %v1636
        %2727 = vmatpush.msra.mxu0 %v1635
        %2728 = vmatpush.msra.mxu0 %v1634
        %2729 = vmatpush.msra.mxu0 %v1633
        %2730 = vmatpush.msra.mxu0 %v1632
        %2731 = vmatpush.msra.mxu0 %v1631
        %2732 = vmatpush.msra.mxu0 %v1630
        %2733 = vmatpush.msra.mxu0 %v1629
        %2734 = vmatpush.msra.mxu0 %v1628
        %2735 = vmatpush.msra.mxu0 %v1627
        %2736 = vmatpush.msra.mxu0 %v1626
        %2737 = vmatpush.msra.mxu0 %v1625
        %2738 = vmatpush.msra.mxu0 %v1624
        %2739 = vmatpush.msra.mxu0 %v1623
        %2740 = vmatpush.msra.mxu0 %v1622
        %2741 = vmatmul.f32.gmra.mxu0 %v2724
        %v2742 = vpop.f32.mrf.mxu0
        %v2743 = vadd.f32 %v1989, %v2742
        %2744 = vdwg.mxu0
        %2745 = vmatpush.msra.mxu0 %v1674
        %2746 = vmatpush.msra.mxu0 %v1673
        %2747 = vmatpush.msra.mxu0 %v1672
        %2748 = vmatpush.msra.mxu0 %v1671
        %2749 = vmatpush.msra.mxu0 %v1670
        %2750 = vmatpush.msra.mxu0 %v1669
        %2751 = vmatpush.msra.mxu0 %v1668
        %2752 = vmatpush.msra.mxu0 %v1667
        %2753 = vmatpush.msra.mxu0 %v1666
        %2754 = vmatpush.msra.mxu0 %v1665
        %2755 = vmatpush.msra.mxu0 %v1664
        %2756 = vmatpush.msra.mxu0 %v1663
        %2757 = vmatpush.msra.mxu0 %v1662
        %2758 = vmatpush.msra.mxu0 %v1661
        %2759 = vmatpush.msra.mxu0 %v1660
        %2760 = vmatpush.msra.mxu0 %v1659
        %2761 = vmatmul.f32.gmra.mxu0 %v2724
        %v2762 = vpop.f32.mrf.mxu0
        %v2763 = vadd.f32 0.0, %v2762
        %2764 = vdwg.mxu0
        %v2765 = vmul.f32 %v2763, %v2681
        %2766 = vmatpush.msra.mxu0 %v1690
        %2767 = vmatpush.msra.mxu0 %v1689
        %2768 = vmatpush.msra.mxu0 %v1688
        %2769 = vmatpush.msra.mxu0 %v1687
        %2770 = vmatpush.msra.mxu0 %v1686
        %2771 = vmatpush.msra.mxu0 %v1685
        %2772 = vmatpush.msra.mxu0 %v1684
        %2773 = vmatpush.msra.mxu0 %v1683
        %2774 = vmatpush.msra.mxu0 %v1682
        %2775 = vmatpush.msra.mxu0 %v1681
        %2776 = vmatpush.msra.mxu0 %v1680
        %2777 = vmatpush.msra.mxu0 %v1679
        %2778 = vmatpush.msra.mxu0 %v1678
        %2779 = vmatpush.msra.mxu0 %v1677
        %2780 = vmatpush.msra.mxu0 %v1676
        %2781 = vmatpush.msra.mxu0 %v1675
        %2782 = vmatmul.f32.gmra.mxu0 %v2765
        %v2783 = vpop.f32.mrf.mxu0
        %v2784 = vadd.f32 0.0, %v2783
        %2785 = vdwg.mxu0
        %v2786 = vadd.f32 %v2743, %v2784
        %v2787 = vadd.f32 %v2786, %v1919
        %v2788 = vsel %vm1476, %v2787, 0.0
        %2789 = vadd.xlane.f32.xlu0 %v2788
        %v2790 = vpop.xlane.xlu0 %2789
        %v2791 = vmul.f32 %v2790, %v1489
        %v2792 = vsub.f32 %v2787, %v2791
        %v2793 = vmul.f32 %v2792, %v2792
        %v2794 = vsel %vm1476, %v2793, 0.0
        %2795 = vadd.xlane.f32.xlu0 %v2794
        %v2796 = vpop.xlane.xlu0 %2795
        %v2797 = vmul.f32 %v2796, %v1489
        %v2798 = vadd.f32 %v2797, 1e-05
        %v2799 = vrsqrt.pop %v2798
        %v2800 = vmul.f32 %v2799, %v2798
        %v2801 = vmul.f32 %v2800, %v2799
        %v2802 = vmul.f32 0.5, %v2801
        %v2803 = vsub.f32 1.5, %v2802
        %v2804 = vmul.f32 %v2799, %v2803
        %vm2805 = vweird.f32 %v2798
        %vm2806 = vweird.f32 %v2799
        %vm2807 = vmor %vm2805, %vm2806
        %v2808 = vsel %vm2807, %v2799, %v2804
        %v2809 = vmul.f32 %v2792, %v2808
        %v2810 = vmul.f32 %v2809, %v1714
        %v2811 = vadd.f32 %v2810, %v1718
        %v2813 = vsel %vm1476, %v2811, 0
        %2815 = vmatpush.msra.mxu0 0.0
        %2816 = vmatpush.msra.mxu0 0.0
        %2817 = vmatpush.msra.mxu0 0.0
        %2818 = vmatpush.msra.mxu0 0.0
        %2819 = vmatpush.msra.mxu0 0.0
        %2820 = vmatpush.msra.mxu0 0.0
        %2821 = vmatpush.msra.mxu0 0.0
        %2822 = vmatpush.msra.mxu0 0.0
        %2823 = vmatpush.msra.mxu0 0.0
        %2824 = vmatpush.msra.mxu0 0.0
        %2825 = vmatpush.msra.mxu0 0.0
        %2826 = vmatpush.msra.mxu0 0.0
        %2827 = vmatpush.msra.mxu0 %v1604
        %2828 = vmatpush.msra.mxu0 %v1603
        %2829 = vmatpush.msra.mxu0 %v1602
        %2830 = vmatpush.msra.mxu0 %v1601
        %2831 = vmatmul.f32.gmra.mxu0 %v2813
        %v2832 = vpop.f32.mrf.mxu0
        %v2833 = vadd.f32 0.0, %v2832
        %2834 = vdwg.mxu0
        %v2836 = vsel %vm1476, %v2833, 0
        %2838 = vmatpush.xpose.msra.mxu0 0.0
        %2839 = vmatpush.xpose.msra.mxu0 0.0
        %2840 = vmatpush.xpose.msra.mxu0 0.0
        %2841 = vmatpush.xpose.msra.mxu0 0.0
        %2842 = vmatpush.xpose.msra.mxu0 0.0
        %2843 = vmatpush.xpose.msra.mxu0 0.0
        %2844 = vmatpush.xpose.msra.mxu0 0.0
        %2845 = vmatpush.xpose.msra.mxu0 0.0
        %2846 = vmatpush.xpose.msra.mxu0 0.0
        %2847 = vmatpush.xpose.msra.mxu0 0.0
        %2848 = vmatpush.xpose.msra.mxu0 0.0
        %2849 = vmatpush.xpose.msra.mxu0 0.0
        %2850 = vmatpush.xpose.msra.mxu0 0.0
        %2851 = vmatpush.xpose.msra.mxu0 0.0
        %2852 = vmatpush.xpose.msra.mxu0 %v1751
        %2853 = vmatpush.xpose.msra.mxu0 %v1748
        %2854 = vmatmul.f32.gmra.mxu0 %v2836
        %v2855 = vpop.f32.mrf.mxu0
        %v2856 = vadd.f32 0.0, %v2855
        %2857 = vdwg.mxu0
        %v2858 = vmul.f32 %v2856, 0.17677669
        %v2859 = vsel %vm1774, %v2858, -inf
        %v2860 = vrot.slane %v2859, 4
        %v2861 = vmax.f32 %v2859, %v2860
        %v2862 = vrot.slane %v2861, 2
        %v2863 = vmax.f32 %v2861, %v2862
        %v2864 = vrot.slane %v2863, 1
        %v2865 = vmax.f32 %v2863, %v2864
        %v2866 = vsub.f32 %v2858, %v2865
        %v2867 = vmul.f32 %v2866, 1.442695
        %v2868 = vpow.pop %v2867
        %v2869 = vsel %vm1774, %v2868, 0.0
        %v2870 = vrot.slane %v2869, 4
        %v2871 = vadd.f32 %v2869, %v2870
        %v2872 = vrot.slane %v2871, 2
        %v2873 = vadd.f32 %v2871, %v2872
        %v2874 = vrot.slane %v2873, 1
        %v2875 = vadd.f32 %v2873, %v2874
        %v2876 = vrcp.pop %v2875
        %v2877 = vmul.f32 %v2868, %v2876
        %v2878 = vadd.f32 %v2877, 1e-08
        %v2879 = vsel %vm1774, %v2878, 0.0
        %2880 = vadd.xlane.f32.xlu0 %v2879
        %v2881 = vpop.xlane.xlu0 %2880
        %v2882 = vrcp.pop %v2881
        %v2883 = vmul.f32 %v2878, %v2882
        %v2885 = vsel %vm1774, %v2883, 0
        %2887 = vmatpush.msra.mxu0 0.0
        %2888 = vmatpush.msra.mxu0 0.0
        %2889 = vmatpush.msra.mxu0 0.0
        %2890 = vmatpush.msra.mxu0 0.0
        %2891 = vmatpush.msra.mxu0 0.0
        %2892 = vmatpush.msra.mxu0 0.0
        %2893 = vmatpush.msra.mxu0 0.0
        %2894 = vmatpush.msra.mxu0 0.0
        %2895 = vmatpush.msra.mxu0 0.0
        %2896 = vmatpush.msra.mxu0 0.0
        %2897 = vmatpush.msra.mxu0 0.0
        %2898 = vmatpush.msra.mxu0 0.0
        %2899 = vmatpush.msra.mxu0 0.0
        %2900 = vmatpush.msra.mxu0 0.0
        %2901 = vmatpush.msra.mxu0 %v1596
        %2902 = vmatpush.msra.mxu0 %v1593
        %2903 = vmatmul.f32.gmra.mxu0 %v2885
        %v2904 = vpop.f32.mrf.mxu0
        %v2905 = vadd.f32 0.0, %v2904
        %2906 = vdwg.mxu0
        %v2908 = vsel %vm1476, %v2905, 0
        %2910 = vmatpush.msra.mxu0 0.0
        %2911 = vmatpush.msra.mxu0 0.0
        %2912 = vmatpush.msra.mxu0 0.0
        %2913 = vmatpush.msra.mxu0 0.0
        %2914 = vmatpush.msra.mxu0 0.0
        %2915 = vmatpush.msra.mxu0 0.0
        %2916 = vmatpush.msra.mxu0 0.0
        %2917 = vmatpush.msra.mxu0 0.0
        %2918 = vmatpush.msra.mxu0 0.0
        %2919 = vmatpush.msra.mxu0 0.0
        %2920 = vmatpush.msra.mxu0 0.0
        %2921 = vmatpush.msra.mxu0 0.0
        %2922 = vmatpush.msra.mxu0 %v1608
        %2923 = vmatpush.msra.mxu0 %v1607
        %2924 = vmatpush.msra.mxu0 %v1606
        %2925 = vmatpush.msra.mxu0 %v1605
        %2926 = vmatmul.f32.gmra.mxu0 %v2908
        %v2927 = vpop.f32.mrf.mxu0
        %v2928 = vadd.f32 %v1824, %v2927
        %2929 = vdwg.mxu0
        %v2931 = vsel %vm1476, %v2787, 0
        %2933 = vmatpush.msra.mxu0 0.0
        %2934 = vmatpush.msra.mxu0 0.0
        %2935 = vmatpush.msra.mxu0 0.0
        %2936 = vmatpush.msra.mxu0 0.0
        %2937 = vmatpush.msra.mxu0 0.0
        %2938 = vmatpush.msra.mxu0 0.0
        %2939 = vmatpush.msra.mxu0 0.0
        %2940 = vmatpush.msra.mxu0 0.0
        %2941 = vmatpush.msra.mxu0 0.0
        %2942 = vmatpush.msra.mxu0 0.0
        %2943 = vmatpush.msra.mxu0 0.0
        %2944 = vmatpush.msra.mxu0 0.0
        %2945 = vmatpush.msra.mxu0 %v1612
        %2946 = vmatpush.msra.mxu0 %v1611
        %2947 = vmatpush.msra.mxu0 %v1610
        %2948 = vmatpush.msra.mxu0 %v1609
        %2949 = vmatmul.f32.gmra.mxu0 %v2931
        %v2950 = vpop.f32.mrf.mxu0
        %v2951 = vadd.f32 %v1850, %v2950
        %2952 = vdwg.mxu0
        %v2953 = vadd.f32 %v2928, %v2951
        %v2954 = vxor.u32 %v2953, 2147483648
        %v2955 = vmul.f32 %v2954, 1.442695
        %v2956 = vpow.pop %v2955
        %v2957 = vadd.f32 %v2956, 1.0
        %v2958 = vrcp.pop %v2957
        %v2959 = vmul.f32 %v2957, %v2958
        %v2960 = vsub.f32 1.0, %v2959
        %v2961 = vmul.f32 %v2958, %v2960
        %v2962 = vadd.f32 %v2958, %v2961
        %vm2963 = vweird.f32 %v2957
        %vm2964 = vweird.f32 %v2958
        %vm2965 = vmor %vm2963, %vm2964
        %v2966 = vsel %vm2965, %v2958, %v2962
        %v2967 = vand.u32 2147483647, %v2957
        %vm2968 = vcmp.eq.f32.partialorder %v2967, 8.507059e+37
        %v2969 = vand.u32 %v2957, 2147483648
        %v2970 = vor.u32 1.1754944e-38, %v2969
        %v2971 = vsel %vm2968, %v2970, %v2966
        %v2972 = vmul.f32 1.0, %v2971
        %2974 = vrot.lane.b32.xlu0 %v2951, 64
        %v2975 = vpop.permute.xlu0 %2974
        %v2977 = vmul.f32 %v2972, %v2975
        %2979 = vrot.lane.b32.xlu0 %v2977, 64
        %v2980 = vpop.permute.xlu0 %2979
        %v2982 = vadd.f32 %v2928, %v2980
        %v2983 = vtanh.pop %v2982
        %v2984 = vsub.f32 1.0, %v2972
        %2986 = vrot.lane.b32.xlu0 %v2983, 96
        %v2987 = vpop.permute.xlu0 %2986
        %v2989 = vmul.f32 %v2984, %v2987
        %2990 = vrot.lane.b32.xlu0 %v2787, 32
        %v2991 = vpop.permute.xlu0 %2990
        %v2993 = vmul.f32 %v2972, %v2991
        %v2994 = vadd.f32 %v2989, %v2993
        %2996 = vrot.lane.b32.xlu0 %v2994, 96
        %v2997 = vpop.permute.xlu0 %2996
        %v2999 = vsel %vm1476, %v2997, 0.0
        %3000 = vadd.xlane.f32.xlu0 %v2999
        %v3001 = vpop.xlane.xlu0 %3000
        %v3002 = vmul.f32 %v3001, %v1489
        %v3003 = vsub.f32 %v2994, %v3002
        %v3004 = vmul.f32 %v3003, %v3003
        %3006 = vrot.lane.b32.xlu0 %v3004, 96
        %v3007 = vpop.permute.xlu0 %3006
        %v3009 = vsel %vm1476, %v3007, 0.0
        %3010 = vadd.xlane.f32.xlu0 %v3009
        %v3011 = vpop.xlane.xlu0 %3010
        %v3012 = vmul.f32 %v3011, %v1489
        %v3013 = vadd.f32 %v3012, 1e-05
        %v3014 = vrsqrt.pop %v3013
        %v3015 = vmul.f32 %v3014, %v3013
        %v3016 = vmul.f32 %v3015, %v3014
        %v3017 = vmul.f32 0.5, %v3016
        %v3018 = vsub.f32 1.5, %v3017
        %v3019 = vmul.f32 %v3014, %v3018
        %vm3020 = vweird.f32 %v3013
        %vm3021 = vweird.f32 %v3014
        %vm3022 = vmor %vm3020, %vm3021
        %v3023 = vsel %vm3022, %v3014, %v3019
        %v3024 = vmul.f32 %v3003, %v3023
        %v3025 = vmul.f32 %v3024, %v1950
        %v3026 = vadd.f32 %v3025, %v1956
        %3028 = vrot.lane.b32.xlu0 %v3026, 96
        %v3029 = vpop.permute.xlu0 %3028
        %v3030 = vsel %vm1476, %v3029, 0
        %3032 = vmatpush.msra.mxu0 0.0
        %3033 = vmatpush.msra.mxu0 0.0
        %3034 = vmatpush.msra.mxu0 0.0
        %3035 = vmatpush.msra.mxu0 0.0
        %3036 = vmatpush.msra.mxu0 0.0
        %3037 = vmatpush.msra.mxu0 0.0
        %3038 = vmatpush.msra.mxu0 0.0
        %3039 = vmatpush.msra.mxu0 0.0
        %3040 = vmatpush.msra.mxu0 0.0
        %3041 = vmatpush.msra.mxu0 0.0
        %3042 = vmatpush.msra.mxu0 0.0
        %3043 = vmatpush.msra.mxu0 0.0
        %3044 = vmatpush.msra.mxu0 %v1620
        %3045 = vmatpush.msra.mxu0 %v1619
        %3046 = vmatpush.msra.mxu0 %v1618
        %3047 = vmatpush.msra.mxu0 %v1617
        %3048 = vmatmul.f32.gmra.mxu0 %v3030
        %v3049 = vpop.f32.mrf.mxu0
        %v3050 = vadd.f32 %v1960, %v3049
        %3051 = vdwg.mxu0
        %3052 = vmatpush.msra.mxu0 0.0
        %3053 = vmatpush.msra.mxu0 0.0
        %3054 = vmatpush.msra.mxu0 0.0
        %3055 = vmatpush.msra.mxu0 0.0
        %3056 = vmatpush.msra.mxu0 0.0
        %3057 = vmatpush.msra.mxu0 0.0
        %3058 = vmatpush.msra.mxu0 0.0
        %3059 = vmatpush.msra.mxu0 0.0
        %3060 = vmatpush.msra.mxu0 0.0
        %3061 = vmatpush.msra.mxu0 0.0
        %3062 = vmatpush.msra.mxu0 0.0
        %3063 = vmatpush.msra.mxu0 0.0
        %3064 = vmatpush.msra.mxu0 %v1642
        %3065 = vmatpush.msra.mxu0 %v1641
        %3066 = vmatpush.msra.mxu0 %v1640
        %3067 = vmatpush.msra.mxu0 %v1639
        %3068 = vmatmul.f32.gmra.mxu0 %v3030
        %v3069 = vpop.f32.mrf.mxu0
        %v3070 = vadd.f32 0.0, %v3069
        %3071 = vdwg.mxu0
        %v3072 = vmul.f32 %v3070, %v2681
        %3073 = vmatpush.msra.mxu0 %v1658
        %3074 = vmatpush.msra.mxu0 %v1657
        %3075 = vmatpush.msra.mxu0 %v1656
        %3076 = vmatpush.msra.mxu0 %v1655
        %3077 = vmatpush.msra.mxu0 %v1654
        %3078 = vmatpush.msra.mxu0 %v1653
        %3079 = vmatpush.msra.mxu0 %v1652
        %3080 = vmatpush.msra.mxu0 %v1651
        %3081 = vmatpush.msra.mxu0 %v1650
        %3082 = vmatpush.msra.mxu0 %v1649
        %3083 = vmatpush.msra.mxu0 %v1648
        %3084 = vmatpush.msra.mxu0 %v1647
        %3085 = vmatpush.msra.mxu0 %v1646
        %3086 = vmatpush.msra.mxu0 %v1645
        %3087 = vmatpush.msra.mxu0 %v1644
        %3088 = vmatpush.msra.mxu0 %v1643
        %3089 = vmatmul.f32.gmra.mxu0 %v3072
        %v3090 = vpop.f32.mrf.mxu0
        %v3091 = vadd.f32 0.0, %v3090
        %3092 = vdwg.mxu0
        %v3093 = vadd.f32 %v3050, %v3091
        %v3094 = vmax.f32 %v3093, 0.0
        %3095 = vmatpush.msra.mxu0 %v1637
        %3096 = vmatpush.msra.mxu0 %v1636
        %3097 = vmatpush.msra.mxu0 %v1635
        %3098 = vmatpush.msra.mxu0 %v1634
        %3099 = vmatpush.msra.mxu0 %v1633
        %3100 = vmatpush.msra.mxu0 %v1632
        %3101 = vmatpush.msra.mxu0 %v1631
        %3102 = vmatpush.msra.mxu0 %v1630
        %3103 = vmatpush.msra.mxu0 %v1629
        %3104 = vmatpush.msra.mxu0 %v1628
        %3105 = vmatpush.msra.mxu0 %v1627
        %3106 = vmatpush.msra.mxu0 %v1626
        %3107 = vmatpush.msra.mxu0 %v1625
        %3108 = vmatpush.msra.mxu0 %v1624
        %3109 = vmatpush.msra.mxu0 %v1623
        %3110 = vmatpush.msra.mxu0 %v1622
        %3111 = vmatmul.f32.gmra.mxu0 %v3094
        %v3112 = vpop.f32.mrf.mxu0
        %v3113 = vadd.f32 %v1989, %v3112
        %3114 = vdwg.mxu0
        %3115 = vmatpush.msra.mxu0 %v1674
        %3116 = vmatpush.msra.mxu0 %v1673
        %3117 = vmatpush.msra.mxu0 %v1672
        %3118 = vmatpush.msra.mxu0 %v1671
        %3119 = vmatpush.msra.mxu0 %v1670
        %3120 = vmatpush.msra.mxu0 %v1669
        %3121 = vmatpush.msra.mxu0 %v1668
        %3122 = vmatpush.msra.mxu0 %v1667
        %3123 = vmatpush.msra.mxu0 %v1666
        %3124 = vmatpush.msra.mxu0 %v1665
        %3125 = vmatpush.msra.mxu0 %v1664
        %3126 = vmatpush.msra.mxu0 %v1663
        %3127 = vmatpush.msra.mxu0 %v1662
        %3128 = vmatpush.msra.mxu0 %v1661
        %3129 = vmatpush.msra.mxu0 %v1660
        %3130 = vmatpush.msra.mxu0 %v1659
        %3131 = vmatmul.f32.gmra.mxu0 %v3094
        %v3132 = vpop.f32.mrf.mxu0
        %v3133 = vadd.f32 0.0, %v3132
        %3134 = vdwg.mxu0
        %v3135 = vmul.f32 %v3133, %v2681
        %3136 = vmatpush.msra.mxu0 %v1690
        %3137 = vmatpush.msra.mxu0 %v1689
        %3138 = vmatpush.msra.mxu0 %v1688
        %3139 = vmatpush.msra.mxu0 %v1687
        %3140 = vmatpush.msra.mxu0 %v1686
        %3141 = vmatpush.msra.mxu0 %v1685
        %3142 = vmatpush.msra.mxu0 %v1684
        %3143 = vmatpush.msra.mxu0 %v1683
        %3144 = vmatpush.msra.mxu0 %v1682
        %3145 = vmatpush.msra.mxu0 %v1681
        %3146 = vmatpush.msra.mxu0 %v1680
        %3147 = vmatpush.msra.mxu0 %v1679
        %3148 = vmatpush.msra.mxu0 %v1678
        %3149 = vmatpush.msra.mxu0 %v1677
        %3150 = vmatpush.msra.mxu0 %v1676
        %3151 = vmatpush.msra.mxu0 %v1675
        %3152 = vmatmul.f32.gmra.mxu0 %v3135
        %v3153 = vpop.f32.mrf.mxu0
        %v3154 = vadd.f32 0.0, %v3153
        %3155 = vdwg.mxu0
        %v3156 = vadd.f32 %v3113, %v3154
        %v3157 = vadd.f32 %v3156, %v2997
        %v3158 = vsel %vm1476, %v3157, 0.0
        %3159 = vadd.xlane.f32.xlu0 %v3158
        %v3160 = vpop.xlane.xlu0 %3159
        %v3161 = vmul.f32 %v3160, %v1489
        %v3162 = vsub.f32 %v3157, %v3161
        %v3163 = vmul.f32 %v3162, %v3162
        %v3164 = vsel %vm1476, %v3163, 0.0
        %3165 = vadd.xlane.f32.xlu0 %v3164
        %v3166 = vpop.xlane.xlu0 %3165
        %v3167 = vmul.f32 %v3166, %v1489
        %v3168 = vadd.f32 %v3167, 1e-05
        %v3169 = vrsqrt.pop %v3168
        %v3170 = vmul.f32 %v3169, %v3168
        %v3171 = vmul.f32 %v3170, %v3169
        %v3172 = vmul.f32 0.5, %v3171
        %v3173 = vsub.f32 1.5, %v3172
        %v3174 = vmul.f32 %v3169, %v3173
        %vm3175 = vweird.f32 %v3168
        %vm3176 = vweird.f32 %v3169
        %vm3177 = vmor %vm3175, %vm3176
        %v3178 = vsel %vm3177, %v3169, %v3174
        %v3179 = vmul.f32 %v3162, %v3178
        %v3180 = vmul.f32 %v3179, %v1714
        %v3181 = vadd.f32 %v3180, %v1718
        %v3183 = vsel %vm1476, %v3181, 0
        %3185 = vmatpush.msra.mxu0 0.0
        %3186 = vmatpush.msra.mxu0 0.0
        %3187 = vmatpush.msra.mxu0 0.0
        %3188 = vmatpush.msra.mxu0 0.0
        %3189 = vmatpush.msra.mxu0 0.0
        %3190 = vmatpush.msra.mxu0 0.0
        %3191 = vmatpush.msra.mxu0 0.0
        %3192 = vmatpush.msra.mxu0 0.0
        %3193 = vmatpush.msra.mxu0 0.0
        %3194 = vmatpush.msra.mxu0 0.0
        %3195 = vmatpush.msra.mxu0 0.0
        %3196 = vmatpush.msra.mxu0 0.0
        %3197 = vmatpush.msra.mxu0 %v1604
        %3198 = vmatpush.msra.mxu0 %v1603
        %3199 = vmatpush.msra.mxu0 %v1602
        %3200 = vmatpush.msra.mxu0 %v1601
        %3201 = vmatmul.f32.gmra.mxu0 %v3183
        %v3202 = vpop.f32.mrf.mxu0
        %v3203 = vadd.f32 0.0, %v3202
        %3204 = vdwg.mxu0
        %v3206 = vsel %vm1476, %v3203, 0
        %3208 = vmatpush.xpose.msra.mxu0 0.0
        %3209 = vmatpush.xpose.msra.mxu0 0.0
        %3210 = vmatpush.xpose.msra.mxu0 0.0
        %3211 = vmatpush.xpose.msra.mxu0 0.0
        %3212 = vmatpush.xpose.msra.mxu0 0.0
        %3213 = vmatpush.xpose.msra.mxu0 0.0
        %3214 = vmatpush.xpose.msra.mxu0 0.0
        %3215 = vmatpush.xpose.msra.mxu0 0.0
        %3216 = vmatpush.xpose.msra.mxu0 0.0
        %3217 = vmatpush.xpose.msra.mxu0 0.0
        %3218 = vmatpush.xpose.msra.mxu0 0.0
        %3219 = vmatpush.xpose.msra.mxu0 0.0
        %3220 = vmatpush.xpose.msra.mxu0 0.0
        %3221 = vmatpush.xpose.msra.mxu0 0.0
        %3222 = vmatpush.xpose.msra.mxu0 %v1751
        %3223 = vmatpush.xpose.msra.mxu0 %v1748
        %3224 = vmatmul.f32.gmra.mxu0 %v3206
        %v3225 = vpop.f32.mrf.mxu0
        %v3226 = vadd.f32 0.0, %v3225
        %3227 = vdwg.mxu0
        %v3228 = vmul.f32 %v3226, 0.17677669
        %v3229 = vsel %vm1774, %v3228, -inf
        %v3230 = vrot.slane %v3229, 4
        %v3231 = vmax.f32 %v3229, %v3230
        %v3232 = vrot.slane %v3231, 2
        %v3233 = vmax.f32 %v3231, %v3232
        %v3234 = vrot.slane %v3233, 1
        %v3235 = vmax.f32 %v3233, %v3234
        %v3236 = vsub.f32 %v3228, %v3235
        %v3237 = vmul.f32 %v3236, 1.442695
        %v3238 = vpow.pop %v3237
        %v3239 = vsel %vm1774, %v3238, 0.0
        %v3240 = vrot.slane %v3239, 4
        %v3241 = vadd.f32 %v3239, %v3240
        %v3242 = vrot.slane %v3241, 2
        %v3243 = vadd.f32 %v3241, %v3242
        %v3244 = vrot.slane %v3243, 1
        %v3245 = vadd.f32 %v3243, %v3244
        %v3246 = vrcp.pop %v3245
        %v3247 = vmul.f32 %v3238, %v3246
        %v3248 = vadd.f32 %v3247, 1e-08
        %v3249 = vsel %vm1774, %v3248, 0.0
        %3250 = vadd.xlane.f32.xlu0 %v3249
        %v3251 = vpop.xlane.xlu0 %3250
        %v3252 = vrcp.pop %v3251
        %v3253 = vmul.f32 %v3248, %v3252
        %v3255 = vsel %vm1774, %v3253, 0
        %3257 = vmatpush.msra.mxu0 0.0
        %3258 = vmatpush.msra.mxu0 0.0
        %3259 = vmatpush.msra.mxu0 0.0
        %3260 = vmatpush.msra.mxu0 0.0
        %3261 = vmatpush.msra.mxu0 0.0
        %3262 = vmatpush.msra.mxu0 0.0
        %3263 = vmatpush.msra.mxu0 0.0
        %3264 = vmatpush.msra.mxu0 0.0
        %3265 = vmatpush.msra.mxu0 0.0
        %3266 = vmatpush.msra.mxu0 0.0
        %3267 = vmatpush.msra.mxu0 0.0
        %3268 = vmatpush.msra.mxu0 0.0
        %3269 = vmatpush.msra.mxu0 0.0
        %3270 = vmatpush.msra.mxu0 0.0
        %3271 = vmatpush.msra.mxu0 %v1596
        %3272 = vmatpush.msra.mxu0 %v1593
        %3273 = vmatmul.f32.gmra.mxu0 %v3255
        %v3274 = vpop.f32.mrf.mxu0
        %v3275 = vadd.f32 0.0, %v3274
        %3276 = vdwg.mxu0
        %v3278 = vsel %vm1476, %v3275, 0
        %3280 = vmatpush.msra.mxu0 0.0
        %3281 = vmatpush.msra.mxu0 0.0
        %3282 = vmatpush.msra.mxu0 0.0
        %3283 = vmatpush.msra.mxu0 0.0
        %3284 = vmatpush.msra.mxu0 0.0
        %3285 = vmatpush.msra.mxu0 0.0
        %3286 = vmatpush.msra.mxu0 0.0
        %3287 = vmatpush.msra.mxu0 0.0
        %3288 = vmatpush.msra.mxu0 0.0
        %3289 = vmatpush.msra.mxu0 0.0
        %3290 = vmatpush.msra.mxu0 0.0
        %3291 = vmatpush.msra.mxu0 0.0
        %3292 = vmatpush.msra.mxu0 %v1608
        %3293 = vmatpush.msra.mxu0 %v1607
        %3294 = vmatpush.msra.mxu0 %v1606
        %3295 = vmatpush.msra.mxu0 %v1605
        %3296 = vmatmul.f32.gmra.mxu0 %v3278
        %v3297 = vpop.f32.mrf.mxu0
        %v3298 = vadd.f32 %v1824, %v3297
        %3299 = vdwg.mxu0
        %v3301 = vsel %vm1476, %v3157, 0
        %3303 = vmatpush.msra.mxu0 0.0
        %3304 = vmatpush.msra.mxu0 0.0
        %3305 = vmatpush.msra.mxu0 0.0
        %3306 = vmatpush.msra.mxu0 0.0
        %3307 = vmatpush.msra.mxu0 0.0
        %3308 = vmatpush.msra.mxu0 0.0
        %3309 = vmatpush.msra.mxu0 0.0
        %3310 = vmatpush.msra.mxu0 0.0
        %3311 = vmatpush.msra.mxu0 0.0
        %3312 = vmatpush.msra.mxu0 0.0
        %3313 = vmatpush.msra.mxu0 0.0
        %3314 = vmatpush.msra.mxu0 0.0
        %3315 = vmatpush.msra.mxu0 %v1612
        %3316 = vmatpush.msra.mxu0 %v1611
        %3317 = vmatpush.msra.mxu0 %v1610
        %3318 = vmatpush.msra.mxu0 %v1609
        %3319 = vmatmul.f32.gmra.mxu0 %v3301
        %v3320 = vpop.f32.mrf.mxu0
        %v3321 = vadd.f32 %v1850, %v3320
        %3322 = vdwg.mxu0
        %v3323 = vadd.f32 %v3298, %v3321
        %v3324 = vxor.u32 %v3323, 2147483648
        %v3325 = vmul.f32 %v3324, 1.442695
        %v3326 = vpow.pop %v3325
        %v3327 = vadd.f32 %v3326, 1.0
        %v3328 = vrcp.pop %v3327
        %v3329 = vmul.f32 %v3327, %v3328
        %v3330 = vsub.f32 1.0, %v3329
        %v3331 = vmul.f32 %v3328, %v3330
        %v3332 = vadd.f32 %v3328, %v3331
        %vm3333 = vweird.f32 %v3327
        %vm3334 = vweird.f32 %v3328
        %vm3335 = vmor %vm3333, %vm3334
        %v3336 = vsel %vm3335, %v3328, %v3332
        %v3337 = vand.u32 2147483647, %v3327
        %vm3338 = vcmp.eq.f32.partialorder %v3337, 8.507059e+37
        %v3339 = vand.u32 %v3327, 2147483648
        %v3340 = vor.u32 1.1754944e-38, %v3339
        %v3341 = vsel %vm3338, %v3340, %v3336
        %v3342 = vmul.f32 1.0, %v3341
        %3344 = vrot.lane.b32.xlu0 %v3321, 64
        %v3345 = vpop.permute.xlu0 %3344
        %v3347 = vmul.f32 %v3342, %v3345
        %3349 = vrot.lane.b32.xlu0 %v3347, 64
        %v3350 = vpop.permute.xlu0 %3349
        %v3352 = vadd.f32 %v3298, %v3350
        %v3353 = vtanh.pop %v3352
        %v3354 = vsub.f32 1.0, %v3342
        %3356 = vrot.lane.b32.xlu0 %v3353, 96
        %v3357 = vpop.permute.xlu0 %3356
        %v3359 = vmul.f32 %v3354, %v3357
        %3360 = vrot.lane.b32.xlu0 %v3157, 32
        %v3361 = vpop.permute.xlu0 %3360
        %v3363 = vmul.f32 %v3342, %v3361
        %v3364 = vadd.f32 %v3359, %v3363
        %3366 = vrot.lane.b32.xlu0 %v3364, 96
        %v3367 = vpop.permute.xlu0 %3366
        %v3369 = vsel %vm1476, %v3367, 0.0
        %3370 = vadd.xlane.f32.xlu0 %v3369
        %v3371 = vpop.xlane.xlu0 %3370
        %v3372 = vmul.f32 %v3371, %v1489
        %v3373 = vsub.f32 %v3364, %v3372
        %v3374 = vmul.f32 %v3373, %v3373
        %3376 = vrot.lane.b32.xlu0 %v3374, 96
        %v3377 = vpop.permute.xlu0 %3376
        %v3379 = vsel %vm1476, %v3377, 0.0
        %3380 = vadd.xlane.f32.xlu0 %v3379
        %v3381 = vpop.xlane.xlu0 %3380
        %v3382 = vmul.f32 %v3381, %v1489
        %v3383 = vadd.f32 %v3382, 1e-05
        %v3384 = vrsqrt.pop %v3383
        %v3385 = vmul.f32 %v3384, %v3383
        %v3386 = vmul.f32 %v3385, %v3384
        %v3387 = vmul.f32 0.5, %v3386
        %v3388 = vsub.f32 1.5, %v3387
        %v3389 = vmul.f32 %v3384, %v3388
        %vm3390 = vweird.f32 %v3383
        %vm3391 = vweird.f32 %v3384
        %vm3392 = vmor %vm3390, %vm3391
        %v3393 = vsel %vm3392, %v3384, %v3389
        %v3394 = vmul.f32 %v3373, %v3393
        %v3395 = vmul.f32 %v3394, %v1950
        %v3396 = vadd.f32 %v3395, %v1956
        %3398 = vrot.lane.b32.xlu0 %v3396, 96
        %v3399 = vpop.permute.xlu0 %3398
        %v3400 = vsel %vm1476, %v3399, 0
        %3402 = vmatpush.msra.mxu0 0.0
        %3403 = vmatpush.msra.mxu0 0.0
        %3404 = vmatpush.msra.mxu0 0.0
        %3405 = vmatpush.msra.mxu0 0.0
        %3406 = vmatpush.msra.mxu0 0.0
        %3407 = vmatpush.msra.mxu0 0.0
        %3408 = vmatpush.msra.mxu0 0.0
        %3409 = vmatpush.msra.mxu0 0.0
        %3410 = vmatpush.msra.mxu0 0.0
        %3411 = vmatpush.msra.mxu0 0.0
        %3412 = vmatpush.msra.mxu0 0.0
        %3413 = vmatpush.msra.mxu0 0.0
        %3414 = vmatpush.msra.mxu0 %v1620
        %3415 = vmatpush.msra.mxu0 %v1619
        %3416 = vmatpush.msra.mxu0 %v1618
        %3417 = vmatpush.msra.mxu0 %v1617
        %3418 = vmatmul.f32.gmra.mxu0 %v3400
        %v3419 = vpop.f32.mrf.mxu0
        %v3420 = vadd.f32 %v1960, %v3419
        %3421 = vdwg.mxu0
        %3422 = vmatpush.msra.mxu0 0.0
        %3423 = vmatpush.msra.mxu0 0.0
        %3424 = vmatpush.msra.mxu0 0.0
        %3425 = vmatpush.msra.mxu0 0.0
        %3426 = vmatpush.msra.mxu0 0.0
        %3427 = vmatpush.msra.mxu0 0.0
        %3428 = vmatpush.msra.mxu0 0.0
        %3429 = vmatpush.msra.mxu0 0.0
        %3430 = vmatpush.msra.mxu0 0.0
        %3431 = vmatpush.msra.mxu0 0.0
        %3432 = vmatpush.msra.mxu0 0.0
        %3433 = vmatpush.msra.mxu0 0.0
        %3434 = vmatpush.msra.mxu0 %v1642
        %3435 = vmatpush.msra.mxu0 %v1641
        %3436 = vmatpush.msra.mxu0 %v1640
        %3437 = vmatpush.msra.mxu0 %v1639
        %3438 = vmatmul.f32.gmra.mxu0 %v3400
        %v3439 = vpop.f32.mrf.mxu0
        %v3440 = vadd.f32 0.0, %v3439
        %3441 = vdwg.mxu0
        %v3442 = vmul.f32 %v3440, %v2681
        %3443 = vmatpush.msra.mxu0 %v1658
        %3444 = vmatpush.msra.mxu0 %v1657
        %3445 = vmatpush.msra.mxu0 %v1656
        %3446 = vmatpush.msra.mxu0 %v1655
        %3447 = vmatpush.msra.mxu0 %v1654
        %3448 = vmatpush.msra.mxu0 %v1653
        %3449 = vmatpush.msra.mxu0 %v1652
        %3450 = vmatpush.msra.mxu0 %v1651
        %3451 = vmatpush.msra.mxu0 %v1650
        %3452 = vmatpush.msra.mxu0 %v1649
        %3453 = vmatpush.msra.mxu0 %v1648
        %3454 = vmatpush.msra.mxu0 %v1647
        %3455 = vmatpush.msra.mxu0 %v1646
        %3456 = vmatpush.msra.mxu0 %v1645
        %3457 = vmatpush.msra.mxu0 %v1644
        %3458 = vmatpush.msra.mxu0 %v1643
        %3459 = vmatmul.f32.gmra.mxu0 %v3442
        %v3460 = vpop.f32.mrf.mxu0
        %v3461 = vadd.f32 0.0, %v3460
        %3462 = vdwg.mxu0
        %v3463 = vadd.f32 %v3420, %v3461
        %v3464 = vmax.f32 %v3463, 0.0
        %3465 = vmatpush.msra.mxu0 %v1637
        %3466 = vmatpush.msra.mxu0 %v1636
        %3467 = vmatpush.msra.mxu0 %v1635
        %3468 = vmatpush.msra.mxu0 %v1634
        %3469 = vmatpush.msra.mxu0 %v1633
        %3470 = vmatpush.msra.mxu0 %v1632
        %3471 = vmatpush.msra.mxu0 %v1631
        %3472 = vmatpush.msra.mxu0 %v1630
        %3473 = vmatpush.msra.mxu0 %v1629
        %3474 = vmatpush.msra.mxu0 %v1628
        %3475 = vmatpush.msra.mxu0 %v1627
        %3476 = vmatpush.msra.mxu0 %v1626
        %3477 = vmatpush.msra.mxu0 %v1625
        %3478 = vmatpush.msra.mxu0 %v1624
        %3479 = vmatpush.msra.mxu0 %v1623
        %3480 = vmatpush.msra.mxu0 %v1622
        %3481 = vmatmul.f32.gmra.mxu0 %v3464
        %v3482 = vpop.f32.mrf.mxu0
        %v3483 = vadd.f32 %v1989, %v3482
        %3484 = vdwg.mxu0
        %3485 = vmatpush.msra.mxu0 %v1674
        %3486 = vmatpush.msra.mxu0 %v1673
        %3487 = vmatpush.msra.mxu0 %v1672
        %3488 = vmatpush.msra.mxu0 %v1671
        %3489 = vmatpush.msra.mxu0 %v1670
        %3490 = vmatpush.msra.mxu0 %v1669
        %3491 = vmatpush.msra.mxu0 %v1668
        %3492 = vmatpush.msra.mxu0 %v1667
        %3493 = vmatpush.msra.mxu0 %v1666
        %3494 = vmatpush.msra.mxu0 %v1665
        %3495 = vmatpush.msra.mxu0 %v1664
        %3496 = vmatpush.msra.mxu0 %v1663
        %3497 = vmatpush.msra.mxu0 %v1662
        %3498 = vmatpush.msra.mxu0 %v1661
        %3499 = vmatpush.msra.mxu0 %v1660
        %3500 = vmatpush.msra.mxu0 %v1659
        %3501 = vmatmul.f32.gmra.mxu0 %v3464
        %v3502 = vpop.f32.mrf.mxu0
        %v3503 = vadd.f32 0.0, %v3502
        %3504 = vdwg.mxu0
        %v3505 = vmul.f32 %v3503, %v2681
        %3506 = vmatpush.msra.mxu0 %v1690
        %3507 = vmatpush.msra.mxu0 %v1689
        %3508 = vmatpush.msra.mxu0 %v1688
        %3509 = vmatpush.msra.mxu0 %v1687
        %3510 = vmatpush.msra.mxu0 %v1686
        %3511 = vmatpush.msra.mxu0 %v1685
        %3512 = vmatpush.msra.mxu0 %v1684
        %3513 = vmatpush.msra.mxu0 %v1683
        %3514 = vmatpush.msra.mxu0 %v1682
        %3515 = vmatpush.msra.mxu0 %v1681
        %3516 = vmatpush.msra.mxu0 %v1680
        %3517 = vmatpush.msra.mxu0 %v1679
        %3518 = vmatpush.msra.mxu0 %v1678
        %3519 = vmatpush.msra.mxu0 %v1677
        %3520 = vmatpush.msra.mxu0 %v1676
        %3521 = vmatpush.msra.mxu0 %v1675
        %3522 = vmatmul.f32.gmra.mxu0 %v3505
        %v3523 = vpop.f32.mrf.mxu0
        %v3524 = vadd.f32 0.0, %v3523
        %3525 = vdwg.mxu0
        %v3526 = vadd.f32 %v3483, %v3524
        %v3527 = vadd.f32 %v3526, %v3367
        %v3528 = vld [vmem:[#allocation27] sm:$0xff]
        %v3529 = vld [vmem:[#allocation27 + $0x8] sm:$0xff]
        %v3530 = vld [vmem:[#allocation28] sm:$0xff]
        %v3531 = vld [vmem:[#allocation28 + $0x8] sm:$0xff]
        %v3532 = vld [vmem:[#allocation28 + $0x10] sm:$0xff]
        %v3533 = vld [vmem:[#allocation28 + $0x18] sm:$0xff]
        %v3534 = vld [vmem:[#allocation30] sm:$0x1]
        %v3535 = vld [vmem:[#allocation31] sm:$0xff]
        %v3536 = vld [vmem:[#allocation31 + $0x8] sm:$0xff]
        %v3537 = vld [vmem:[#allocation31 + $0x10] sm:$0xff]
        %v3538 = vld [vmem:[#allocation31 + $0x18] sm:$0xff]
        %v3539 = vld [vmem:[#allocation31 + $0x20] sm:$0xff]
        %v3540 = vld [vmem:[#allocation31 + $0x28] sm:$0xff]
        %v3541 = vld [vmem:[#allocation31 + $0x30] sm:$0xff]
        %v3542 = vld [vmem:[#allocation31 + $0x38] sm:$0xff]
        %v3543 = vld [vmem:[#allocation33] sm:$0x1]
        %v3545 = vrot.slane %v3527, 1
        %v3546 = vrot.slane %v3527, 2
        %v3547 = vrot.slane %v3527, 3
        %v3548 = vrot.slane %v3527, 4
        %v3549 = vrot.slane %v3527, 5
        %v3550 = vrot.slane %v3527, 6
        %v3551 = vrot.slane %v3527, 7
        %v3552 = vperm.slane %v3527, 0
        %v3553 = vperm.slane %v3545, 0
        %v3554 = vperm.slane %v3546, 0
        %v3555 = vperm.slane %v3547, 0
        %v3556 = vperm.slane %v3548, 0
        %v3557 = vperm.slane %v3549, 0
        %v3558 = vperm.slane %v3550, 0
        %v3559 = vperm.slane %v3551, 0
        %v3568 = vadd.f32 %v3552, %v3528
        %v3569 = vadd.f32 %v3552, %v3529
        %v3570 = vadd.f32 %v3553, %v3528
        %v3571 = vadd.f32 %v3553, %v3529
        %v3572 = vadd.f32 %v3554, %v3528
        %v3573 = vadd.f32 %v3554, %v3529
        %v3574 = vadd.f32 %v3555, %v3528
        %v3575 = vadd.f32 %v3555, %v3529
        %v3576 = vadd.f32 %v3556, %v3528
        %v3577 = vadd.f32 %v3556, %v3529
        %v3578 = vadd.f32 %v3557, %v3528
        %v3579 = vadd.f32 %v3557, %v3529
        %v3580 = vadd.f32 %v3558, %v3528
        %v3581 = vadd.f32 %v3558, %v3529
        %v3582 = vadd.f32 %v3559, %v3528
        %v3583 = vadd.f32 %v3559, %v3529
        %v3585 = vperm.slane %v3534, 0
        %v3588 = vsel %vm1476, %v3568, 0
        %v3591 = vsel %vm1476, %v3569, 0
        %v3594 = vsel %vm1476, %v3570, 0
        %v3597 = vsel %vm1476, %v3571, 0
        %v3600 = vsel %vm1476, %v3572, 0
        %v3603 = vsel %vm1476, %v3573, 0
        %v3606 = vsel %vm1476, %v3574, 0
        %v3609 = vsel %vm1476, %v3575, 0
        %v3612 = vsel %vm1476, %v3576, 0
        %v3615 = vsel %vm1476, %v3577, 0
        %v3618 = vsel %vm1476, %v3578, 0
        %v3621 = vsel %vm1476, %v3579, 0
        %v3624 = vsel %vm1476, %v3580, 0
        %v3627 = vsel %vm1476, %v3581, 0
        %v3630 = vsel %vm1476, %v3582, 0
        %v3633 = vsel %vm1476, %v3583, 0
        %3635 = vmatpush.msra.mxu0 0.0
        %3636 = vmatpush.msra.mxu0 0.0
        %3637 = vmatpush.msra.mxu0 0.0
        %3638 = vmatpush.msra.mxu0 0.0
        %3639 = vmatpush.msra.mxu0 0.0
        %3640 = vmatpush.msra.mxu0 0.0
        %3641 = vmatpush.msra.mxu0 0.0
        %3642 = vmatpush.msra.mxu0 0.0
        %3643 = vmatpush.msra.mxu0 0.0
        %3644 = vmatpush.msra.mxu0 0.0
        %3645 = vmatpush.msra.mxu0 0.0
        %3646 = vmatpush.msra.mxu0 0.0
        %3647 = vmatpush.msra.mxu0 %v3533
        %3648 = vmatpush.msra.mxu0 %v3532
        %3649 = vmatpush.msra.mxu0 %v3531
        %3650 = vmatpush.msra.mxu0 %v3530
        %3651 = vmatmul.f32.gmra.mxu0 %v3588
        %v3652 = vpop.f32.mrf.mxu0
        %v3653 = vadd.f32 %v3585, %v3652
        %3654 = vmatmul.f32.gmra.mxu0 %v3591
        %v3655 = vpop.f32.mrf.mxu0
        %v3656 = vadd.f32 %v3585, %v3655
        %3657 = vmatmul.f32.gmra.mxu0 %v3594
        %v3658 = vpop.f32.mrf.mxu0
        %v3659 = vadd.f32 %v3585, %v3658
        %3660 = vmatmul.f32.gmra.mxu0 %v3597
        %v3661 = vpop.f32.mrf.mxu0
        %v3662 = vadd.f32 %v3585, %v3661
        %3663 = vmatmul.f32.gmra.mxu0 %v3600
        %v3664 = vpop.f32.mrf.mxu0
        %v3665 = vadd.f32 %v3585, %v3664
        %3666 = vmatmul.f32.gmra.mxu0 %v3603
        %v3667 = vpop.f32.mrf.mxu0
        %v3668 = vadd.f32 %v3585, %v3667
        %3669 = vmatmul.f32.gmra.mxu0 %v3606
        %v3670 = vpop.f32.mrf.mxu0
        %v3671 = vadd.f32 %v3585, %v3670
        %3672 = vmatmul.f32.gmra.mxu0 %v3609
        %v3673 = vpop.f32.mrf.mxu0
        %v3674 = vadd.f32 %v3585, %v3673
        %3675 = vmatmul.f32.gmra.mxu0 %v3612
        %v3676 = vpop.f32.mrf.mxu0
        %v3677 = vadd.f32 %v3585, %v3676
        %3678 = vmatmul.f32.gmra.mxu0 %v3615
        %v3679 = vpop.f32.mrf.mxu0
        %v3680 = vadd.f32 %v3585, %v3679
        %3681 = vmatmul.f32.gmra.mxu0 %v3618
        %v3682 = vpop.f32.mrf.mxu0
        %v3683 = vadd.f32 %v3585, %v3682
        %3684 = vmatmul.f32.gmra.mxu0 %v3621
        %v3685 = vpop.f32.mrf.mxu0
        %v3686 = vadd.f32 %v3585, %v3685
        %3687 = vmatmul.f32.gmra.mxu0 %v3624
        %v3688 = vpop.f32.mrf.mxu0
        %v3689 = vadd.f32 %v3585, %v3688
        %3690 = vmatmul.f32.gmra.mxu0 %v3627
        %v3691 = vpop.f32.mrf.mxu0
        %v3692 = vadd.f32 %v3585, %v3691
        %3693 = vmatmul.f32.gmra.mxu0 %v3630
        %v3694 = vpop.f32.mrf.mxu0
        %v3695 = vadd.f32 %v3585, %v3694
        %3696 = vmatmul.f32.gmra.mxu0 %v3633
        %v3697 = vpop.f32.mrf.mxu0
        %v3698 = vadd.f32 %v3585, %v3697
        %3699 = vdwg.mxu0
        %v3700 = vmax.f32 %v3653, 0.0
        %v3701 = vmax.f32 %v3656, 0.0
        %v3702 = vmax.f32 %v3659, 0.0
        %v3703 = vmax.f32 %v3662, 0.0
        %v3704 = vmax.f32 %v3665, 0.0
        %v3705 = vmax.f32 %v3668, 0.0
        %v3706 = vmax.f32 %v3671, 0.0
        %v3707 = vmax.f32 %v3674, 0.0
        %v3708 = vmax.f32 %v3677, 0.0
        %v3709 = vmax.f32 %v3680, 0.0
        %v3710 = vmax.f32 %v3683, 0.0
        %v3711 = vmax.f32 %v3686, 0.0
        %v3712 = vmax.f32 %v3689, 0.0
        %v3713 = vmax.f32 %v3692, 0.0
        %v3714 = vmax.f32 %v3695, 0.0
        %v3715 = vmax.f32 %v3698, 0.0
        %v3717 = vperm.slane %v3543, 0
        %vm3719 = vcmask 523264
        %v3721 = vsel %vm3719, %v3700, 0
        %v3724 = vsel %vm3719, %v3701, 0
        %v3727 = vsel %vm3719, %v3702, 0
        %v3730 = vsel %vm3719, %v3703, 0
        %v3733 = vsel %vm3719, %v3704, 0
        %v3736 = vsel %vm3719, %v3705, 0
        %v3739 = vsel %vm3719, %v3706, 0
        %v3742 = vsel %vm3719, %v3707, 0
        %v3745 = vsel %vm3719, %v3708, 0
        %v3748 = vsel %vm3719, %v3709, 0
        %v3751 = vsel %vm3719, %v3710, 0
        %v3754 = vsel %vm3719, %v3711, 0
        %v3757 = vsel %vm3719, %v3712, 0
        %v3760 = vsel %vm3719, %v3713, 0
        %v3763 = vsel %vm3719, %v3714, 0
        %v3766 = vsel %vm3719, %v3715, 0
        %3768 = vmatpush.msra.mxu0 0.0
        %3769 = vmatpush.msra.mxu0 0.0
        %3770 = vmatpush.msra.mxu0 0.0
        %3771 = vmatpush.msra.mxu0 0.0
        %3772 = vmatpush.msra.mxu0 0.0
        %3773 = vmatpush.msra.mxu0 0.0
        %3774 = vmatpush.msra.mxu0 0.0
        %3775 = vmatpush.msra.mxu0 0.0
        %3776 = vmatpush.msra.mxu0 %v3542
        %3777 = vmatpush.msra.mxu0 %v3541
        %3778 = vmatpush.msra.mxu0 %v3540
        %3779 = vmatpush.msra.mxu0 %v3539
        %3780 = vmatpush.msra.mxu0 %v3538
        %3781 = vmatpush.msra.mxu0 %v3537
        %3782 = vmatpush.msra.mxu0 %v3536
        %3783 = vmatpush.msra.mxu0 %v3535
        %3784 = vmatmul.f32.gmra.mxu0 %v3721
        %v3785 = vpop.f32.mrf.mxu0
        %v3786 = vadd.f32 %v3717, %v3785
        %3787 = vmatmul.f32.gmra.mxu0 %v3724
        %v3788 = vpop.f32.mrf.mxu0
        %v3789 = vadd.f32 %v3717, %v3788
        %3790 = vmatmul.f32.gmra.mxu0 %v3727
        %v3791 = vpop.f32.mrf.mxu0
        %v3792 = vadd.f32 %v3717, %v3791
        %3793 = vmatmul.f32.gmra.mxu0 %v3730
        %v3794 = vpop.f32.mrf.mxu0
        %v3795 = vadd.f32 %v3717, %v3794
        %3796 = vmatmul.f32.gmra.mxu0 %v3733
        %v3797 = vpop.f32.mrf.mxu0
        %v3798 = vadd.f32 %v3717, %v3797
        %3799 = vmatmul.f32.gmra.mxu0 %v3736
        %v3800 = vpop.f32.mrf.mxu0
        %v3801 = vadd.f32 %v3717, %v3800
        %3802 = vmatmul.f32.gmra.mxu0 %v3739
        %v3803 = vpop.f32.mrf.mxu0
        %v3804 = vadd.f32 %v3717, %v3803
        %3805 = vmatmul.f32.gmra.mxu0 %v3742
        %v3806 = vpop.f32.mrf.mxu0
        %v3807 = vadd.f32 %v3717, %v3806
        %3808 = vmatmul.f32.gmra.mxu0 %v3745
        %v3809 = vpop.f32.mrf.mxu0
        %v3810 = vadd.f32 %v3717, %v3809
        %3811 = vmatmul.f32.gmra.mxu0 %v3748
        %v3812 = vpop.f32.mrf.mxu0
        %v3813 = vadd.f32 %v3717, %v3812
        %3814 = vmatmul.f32.gmra.mxu0 %v3751
        %v3815 = vpop.f32.mrf.mxu0
        %v3816 = vadd.f32 %v3717, %v3815
        %3817 = vmatmul.f32.gmra.mxu0 %v3754
        %v3818 = vpop.f32.mrf.mxu0
        %v3819 = vadd.f32 %v3717, %v3818
        %3820 = vmatmul.f32.gmra.mxu0 %v3757
        %v3821 = vpop.f32.mrf.mxu0
        %v3822 = vadd.f32 %v3717, %v3821
        %3823 = vmatmul.f32.gmra.mxu0 %v3760
        %v3824 = vpop.f32.mrf.mxu0
        %v3825 = vadd.f32 %v3717, %v3824
        %3826 = vmatmul.f32.gmra.mxu0 %v3763
        %v3827 = vpop.f32.mrf.mxu0
        %v3828 = vadd.f32 %v3717, %v3827
        %3829 = vmatmul.f32.gmra.mxu0 %v3766
        %v3830 = vpop.f32.mrf.mxu0
        %v3831 = vadd.f32 %v3717, %v3830
        %3832 = vdwg.mxu0
        %vm3833 = vcmask 269568
        %v3834 = vsel %vm3833, %v3786, -inf
        %v3835 = vsel %vm3833, %v3792, -inf
        %v3836 = vsel %vm3833, %v3798, -inf
        %v3837 = vmax.f32 %v3834, %v3836
        %v3838 = vsel %vm3833, %v3804, -inf
        %v3839 = vmax.f32 %v3835, %v3838
        %v3840 = vsel %vm3833, %v3810, -inf
        %v3841 = vmax.f32 %v3837, %v3840
        %v3842 = vsel %vm3833, %v3816, -inf
        %v3843 = vmax.f32 %v3839, %v3842
        %v3844 = vsel %vm3833, %v3822, -inf
        %v3845 = vmax.f32 %v3841, %v3844
        %v3846 = vsel %vm3833, %v3828, -inf
        %v3847 = vmax.f32 %v3843, %v3846
        %v3848 = vmax.f32 %v3845, %v3847
        %v3849 = vsel %vm3833, %v3789, -inf
        %v3850 = vsel %vm3833, %v3795, -inf
        %v3851 = vsel %vm3833, %v3801, -inf
        %v3852 = vmax.f32 %v3849, %v3851
        %v3853 = vsel %vm3833, %v3807, -inf
        %v3854 = vmax.f32 %v3850, %v3853
        %v3855 = vsel %vm3833, %v3813, -inf
        %v3856 = vmax.f32 %v3852, %v3855
        %v3857 = vsel %vm3833, %v3819, -inf
        %v3858 = vmax.f32 %v3854, %v3857
        %v3859 = vsel %vm3833, %v3825, -inf
        %v3860 = vmax.f32 %v3856, %v3859
        %v3861 = vsel %vm3833, %v3831, -inf
        %v3862 = vmax.f32 %v3858, %v3861
        %v3863 = vmax.f32 %v3860, %v3862
        %v3864 = vsub.f32 %v3786, %v3848
        %v3865 = vsub.f32 %v3789, %v3863
        %v3866 = vsub.f32 %v3792, %v3848
        %v3867 = vsub.f32 %v3795, %v3863
        %v3868 = vsub.f32 %v3798, %v3848
        %v3869 = vsub.f32 %v3801, %v3863
        %v3870 = vsub.f32 %v3804, %v3848
        %v3871 = vsub.f32 %v3807, %v3863
        %v3872 = vsub.f32 %v3810, %v3848
        %v3873 = vsub.f32 %v3813, %v3863
        %v3874 = vsub.f32 %v3816, %v3848
        %v3875 = vsub.f32 %v3819, %v3863
        %v3876 = vsub.f32 %v3822, %v3848
        %v3877 = vsub.f32 %v3825, %v3863
        %v3878 = vsub.f32 %v3828, %v3848
        %v3879 = vsub.f32 %v3831, %v3863
        %v3880 = vmul.f32 %v3864, 1.442695
        %v3881 = vpow.pop %v3880
        %v3882 = vmul.f32 %v3865, 1.442695
        %v3883 = vpow.pop %v3882
        %v3884 = vmul.f32 %v3866, 1.442695
        %v3885 = vpow.pop %v3884
        %v3886 = vmul.f32 %v3867, 1.442695
        %v3887 = vpow.pop %v3886
        %v3888 = vmul.f32 %v3868, 1.442695
        %v3889 = vpow.pop %v3888
        %v3890 = vmul.f32 %v3869, 1.442695
        %v3891 = vpow.pop %v3890
        %v3892 = vmul.f32 %v3870, 1.442695
        %v3893 = vpow.pop %v3892
        %v3894 = vmul.f32 %v3871, 1.442695
        %v3895 = vpow.pop %v3894
        %v3896 = vmul.f32 %v3872, 1.442695
        %v3897 = vpow.pop %v3896
        %v3898 = vmul.f32 %v3873, 1.442695
        %v3899 = vpow.pop %v3898
        %v3900 = vmul.f32 %v3874, 1.442695
        %v3901 = vpow.pop %v3900
        %v3902 = vmul.f32 %v3875, 1.442695
        %v3903 = vpow.pop %v3902
        %v3904 = vmul.f32 %v3876, 1.442695
        %v3905 = vpow.pop %v3904
        %v3906 = vmul.f32 %v3877, 1.442695
        %v3907 = vpow.pop %v3906
        %v3908 = vmul.f32 %v3878, 1.442695
        %v3909 = vpow.pop %v3908
        %v3910 = vmul.f32 %v3879, 1.442695
        %v3911 = vpow.pop %v3910
        %v3912 = vsel %vm3833, %v3881, 0.0
        %v3913 = vsel %vm3833, %v3885, 0.0
        %v3914 = vadd.f32 %v3912, %v3913
        %v3915 = vsel %vm3833, %v3889, 0.0
        %v3916 = vadd.f32 %v3914, %v3915
        %v3917 = vsel %vm3833, %v3893, 0.0
        %v3918 = vadd.f32 %v3916, %v3917
        %v3919 = vsel %vm3833, %v3897, 0.0
        %v3920 = vadd.f32 %v3918, %v3919
        %v3921 = vsel %vm3833, %v3901, 0.0
        %v3922 = vadd.f32 %v3920, %v3921
        %v3923 = vsel %vm3833, %v3905, 0.0
        %v3924 = vadd.f32 %v3922, %v3923
        %v3925 = vsel %vm3833, %v3909, 0.0
        %v3926 = vadd.f32 %v3924, %v3925
        %v3927 = vsel %vm3833, %v3883, 0.0
        %v3928 = vsel %vm3833, %v3887, 0.0
        %v3929 = vadd.f32 %v3927, %v3928
        %v3930 = vsel %vm3833, %v3891, 0.0
        %v3931 = vadd.f32 %v3929, %v3930
        %v3932 = vsel %vm3833, %v3895, 0.0
        %v3933 = vadd.f32 %v3931, %v3932
        %v3934 = vsel %vm3833, %v3899, 0.0
        %v3935 = vadd.f32 %v3933, %v3934
        %v3936 = vsel %vm3833, %v3903, 0.0
        %v3937 = vadd.f32 %v3935, %v3936
        %v3938 = vsel %vm3833, %v3907, 0.0
        %v3939 = vadd.f32 %v3937, %v3938
        %v3940 = vsel %vm3833, %v3911, 0.0
        %v3941 = vadd.f32 %v3939, %v3940
        %v3942 = vrcp.pop %v3926
        %v3943 = vrcp.pop %v3941
        %v3944 = vmul.f32 %v3881, %v3942
        %v3945 = vmul.f32 %v3883, %v3943
        %v3946 = vmul.f32 %v3885, %v3942
        %v3947 = vmul.f32 %v3887, %v3943
        %v3948 = vmul.f32 %v3889, %v3942
        %v3949 = vmul.f32 %v3891, %v3943
        %v3950 = vmul.f32 %v3893, %v3942
        %v3951 = vmul.f32 %v3895, %v3943
        %v3952 = vmul.f32 %v3897, %v3942
        %v3953 = vmul.f32 %v3899, %v3943
        %v3954 = vmul.f32 %v3901, %v3942
        %v3955 = vmul.f32 %v3903, %v3943
        %v3956 = vmul.f32 %v3905, %v3942
        %v3957 = vmul.f32 %v3907, %v3943
        %v3958 = vmul.f32 %v3909, %v3942
        %v3959 = vmul.f32 %v3911, %v3943
        %3961 = vset.pattern.permute.xlu0 32
        %3962 = vperm.xlu0 %3961, %v3944
        %v3963 = vpop.permute.xlu0 %3962
        %3966 = vset.pattern.permute.xlu0 32
        %3967 = vperm.xlu0 %3966, %v3945
        %v3968 = vpop.permute.xlu0 %3967
        %3971 = vset.pattern.permute.xlu0 32
        %3972 = vperm.xlu0 %3971, %v3946
        %v3973 = vpop.permute.xlu0 %3972
        %3976 = vset.pattern.permute.xlu0 32
        %3977 = vperm.xlu0 %3976, %v3947
        %v3978 = vpop.permute.xlu0 %3977
        %3981 = vset.pattern.permute.xlu0 32
        %3982 = vperm.xlu0 %3981, %v3948
        %v3983 = vpop.permute.xlu0 %3982
        %3986 = vset.pattern.permute.xlu0 32
        %3987 = vperm.xlu0 %3986, %v3949
        %v3988 = vpop.permute.xlu0 %3987
        %3991 = vset.pattern.permute.xlu0 32
        %3992 = vperm.xlu0 %3991, %v3950
        %v3993 = vpop.permute.xlu0 %3992
        %3996 = vset.pattern.permute.xlu0 32
        %3997 = vperm.xlu0 %3996, %v3951
        %v3998 = vpop.permute.xlu0 %3997
        %4001 = vset.pattern.permute.xlu0 32
        %4002 = vperm.xlu0 %4001, %v3952
        %v4003 = vpop.permute.xlu0 %4002
        %4006 = vset.pattern.permute.xlu0 32
        %4007 = vperm.xlu0 %4006, %v3953
        %v4008 = vpop.permute.xlu0 %4007
        %4011 = vset.pattern.permute.xlu0 32
        %4012 = vperm.xlu0 %4011, %v3954
        %v4013 = vpop.permute.xlu0 %4012
        %4016 = vset.pattern.permute.xlu0 32
        %4017 = vperm.xlu0 %4016, %v3955
        %v4018 = vpop.permute.xlu0 %4017
        %4021 = vset.pattern.permute.xlu0 32
        %4022 = vperm.xlu0 %4021, %v3956
        %v4023 = vpop.permute.xlu0 %4022
        %4026 = vset.pattern.permute.xlu0 32
        %4027 = vperm.xlu0 %4026, %v3957
        %v4028 = vpop.permute.xlu0 %4027
        %4031 = vset.pattern.permute.xlu0 32
        %4032 = vperm.xlu0 %4031, %v3958
        %v4033 = vpop.permute.xlu0 %4032
        %4036 = vset.pattern.permute.xlu0 32
        %4037 = vperm.xlu0 %4036, %v3959
        %v4038 = vpop.permute.xlu0 %4037
        %v4040 = vmul.f32 %v3963, %v3786
        %v4041 = vmul.f32 %v3968, %v3789
        %v4042 = vmul.f32 %v3973, %v3792
        %v4043 = vmul.f32 %v3978, %v3795
        %v4044 = vmul.f32 %v3983, %v3798
        %v4045 = vmul.f32 %v3988, %v3801
        %v4046 = vmul.f32 %v3993, %v3804
        %v4047 = vmul.f32 %v3998, %v3807
        %v4048 = vmul.f32 %v4003, %v3810
        %v4049 = vmul.f32 %v4008, %v3813
        %v4050 = vmul.f32 %v4013, %v3816
        %v4051 = vmul.f32 %v4018, %v3819
        %v4052 = vmul.f32 %v4023, %v3822
        %v4053 = vmul.f32 %v4028, %v3825
        %v4054 = vmul.f32 %v4033, %v3828
        %v4055 = vmul.f32 %v4038, %v3831
        %v4056 = vsel %vm1476, %v4040, 0.0
        %v4057 = vsel %vm1476, %v4042, 0.0
        %v4058 = vadd.f32 %v4056, %v4057
        %v4059 = vsel %vm1476, %v4044, 0.0
        %v4060 = vadd.f32 %v4058, %v4059
        %v4061 = vsel %vm1476, %v4046, 0.0
        %v4062 = vadd.f32 %v4060, %v4061
        %v4063 = vsel %vm1476, %v4048, 0.0
        %v4064 = vadd.f32 %v4062, %v4063
        %v4065 = vsel %vm1476, %v4050, 0.0
        %v4066 = vadd.f32 %v4064, %v4065
        %v4067 = vsel %vm1476, %v4052, 0.0
        %v4068 = vadd.f32 %v4066, %v4067
        %v4069 = vsel %vm1476, %v4054, 0.0
        %v4070 = vadd.f32 %v4068, %v4069
        %v4071 = vsel %vm1476, %v4041, 0.0
        %v4072 = vsel %vm1476, %v4043, 0.0
        %v4073 = vadd.f32 %v4071, %v4072
        %v4074 = vsel %vm1476, %v4045, 0.0
        %v4075 = vadd.f32 %v4073, %v4074
        %v4076 = vsel %vm1476, %v4047, 0.0
        %v4077 = vadd.f32 %v4075, %v4076
        %v4078 = vsel %vm1476, %v4049, 0.0
        %v4079 = vadd.f32 %v4077, %v4078
        %v4080 = vsel %vm1476, %v4051, 0.0
        %v4081 = vadd.f32 %v4079, %v4080
        %v4082 = vsel %vm1476, %v4053, 0.0
        %v4083 = vadd.f32 %v4081, %v4082
        %v4084 = vsel %vm1476, %v4055, 0.0
        %v4085 = vadd.f32 %v4083, %v4084
        %v4086 = vrot.slane %v2583, 1
        %v4087 = vrot.slane %v2583, 2
        %v4088 = vrot.slane %v2583, 3
        %v4089 = vrot.slane %v2583, 4
        %v4090 = vrot.slane %v2583, 5
        %v4091 = vrot.slane %v2583, 6
        %v4092 = vrot.slane %v2583, 7
        %v4093 = vperm.slane %v2583, 0
        %v4094 = vperm.slane %v4086, 0
        %v4095 = vperm.slane %v4087, 0
        %v4096 = vperm.slane %v4088, 0
        %v4097 = vperm.slane %v4089, 0
        %v4098 = vperm.slane %v4090, 0
        %v4099 = vperm.slane %v4091, 0
        %v4100 = vperm.slane %v4092, 0
        %v4109 = vadd.f32 %v4093, %v3528
        %v4110 = vadd.f32 %v4093, %v3529
        %v4111 = vadd.f32 %v4094, %v3528
        %v4112 = vadd.f32 %v4094, %v3529
        %v4113 = vadd.f32 %v4095, %v3528
        %v4114 = vadd.f32 %v4095, %v3529
        %v4115 = vadd.f32 %v4096, %v3528
        %v4116 = vadd.f32 %v4096, %v3529
        %v4117 = vadd.f32 %v4097, %v3528
        %v4118 = vadd.f32 %v4097, %v3529
        %v4119 = vadd.f32 %v4098, %v3528
        %v4120 = vadd.f32 %v4098, %v3529
        %v4121 = vadd.f32 %v4099, %v3528
        %v4122 = vadd.f32 %v4099, %v3529
        %v4123 = vadd.f32 %v4100, %v3528
        %v4124 = vadd.f32 %v4100, %v3529
        %v4126 = vsel %vm1476, %v4109, 0
        %v4129 = vsel %vm1476, %v4110, 0
        %v4132 = vsel %vm1476, %v4111, 0
        %v4135 = vsel %vm1476, %v4112, 0
        %v4138 = vsel %vm1476, %v4113, 0
        %v4141 = vsel %vm1476, %v4114, 0
        %v4144 = vsel %vm1476, %v4115, 0
        %v4147 = vsel %vm1476, %v4116, 0
        %v4150 = vsel %vm1476, %v4117, 0
        %v4153 = vsel %vm1476, %v4118, 0
        %v4156 = vsel %vm1476, %v4119, 0
        %v4159 = vsel %vm1476, %v4120, 0
        %v4162 = vsel %vm1476, %v4121, 0
        %v4165 = vsel %vm1476, %v4122, 0
        %v4168 = vsel %vm1476, %v4123, 0
        %v4171 = vsel %vm1476, %v4124, 0
        %4173 = vmatpush.msra.mxu0 0.0
        %4174 = vmatpush.msra.mxu0 0.0
        %4175 = vmatpush.msra.mxu0 0.0
        %4176 = vmatpush.msra.mxu0 0.0
        %4177 = vmatpush.msra.mxu0 0.0
        %4178 = vmatpush.msra.mxu0 0.0
        %4179 = vmatpush.msra.mxu0 0.0
        %4180 = vmatpush.msra.mxu0 0.0
        %4181 = vmatpush.msra.mxu0 0.0
        %4182 = vmatpush.msra.mxu0 0.0
        %4183 = vmatpush.msra.mxu0 0.0
        %4184 = vmatpush.msra.mxu0 0.0
        %4185 = vmatpush.msra.mxu0 %v3533
        %4186 = vmatpush.msra.mxu0 %v3532
        %4187 = vmatpush.msra.mxu0 %v3531
        %4188 = vmatpush.msra.mxu0 %v3530
        %4189 = vmatmul.f32.gmra.mxu0 %v4126
        %v4190 = vpop.f32.mrf.mxu0
        %v4191 = vadd.f32 %v3585, %v4190
        %4192 = vmatmul.f32.gmra.mxu0 %v4129
        %v4193 = vpop.f32.mrf.mxu0
        %v4194 = vadd.f32 %v3585, %v4193
        %4195 = vmatmul.f32.gmra.mxu0 %v4132
        %v4196 = vpop.f32.mrf.mxu0
        %v4197 = vadd.f32 %v3585, %v4196
        %4198 = vmatmul.f32.gmra.mxu0 %v4135
        %v4199 = vpop.f32.mrf.mxu0
        %v4200 = vadd.f32 %v3585, %v4199
        %4201 = vmatmul.f32.gmra.mxu0 %v4138
        %v4202 = vpop.f32.mrf.mxu0
        %v4203 = vadd.f32 %v3585, %v4202
        %4204 = vmatmul.f32.gmra.mxu0 %v4141
        %v4205 = vpop.f32.mrf.mxu0
        %v4206 = vadd.f32 %v3585, %v4205
        %4207 = vmatmul.f32.gmra.mxu0 %v4144
        %v4208 = vpop.f32.mrf.mxu0
        %v4209 = vadd.f32 %v3585, %v4208
        %4210 = vmatmul.f32.gmra.mxu0 %v4147
        %v4211 = vpop.f32.mrf.mxu0
        %v4212 = vadd.f32 %v3585, %v4211
        %4213 = vmatmul.f32.gmra.mxu0 %v4150
        %v4214 = vpop.f32.mrf.mxu0
        %v4215 = vadd.f32 %v3585, %v4214
        %4216 = vmatmul.f32.gmra.mxu0 %v4153
        %v4217 = vpop.f32.mrf.mxu0
        %v4218 = vadd.f32 %v3585, %v4217
        %4219 = vmatmul.f32.gmra.mxu0 %v4156
        %v4220 = vpop.f32.mrf.mxu0
        %v4221 = vadd.f32 %v3585, %v4220
        %4222 = vmatmul.f32.gmra.mxu0 %v4159
        %v4223 = vpop.f32.mrf.mxu0
        %v4224 = vadd.f32 %v3585, %v4223
        %4225 = vmatmul.f32.gmra.mxu0 %v4162
        %v4226 = vpop.f32.mrf.mxu0
        %v4227 = vadd.f32 %v3585, %v4226
        %4228 = vmatmul.f32.gmra.mxu0 %v4165
        %v4229 = vpop.f32.mrf.mxu0
        %v4230 = vadd.f32 %v3585, %v4229
        %4231 = vmatmul.f32.gmra.mxu0 %v4168
        %v4232 = vpop.f32.mrf.mxu0
        %v4233 = vadd.f32 %v3585, %v4232
        %4234 = vmatmul.f32.gmra.mxu0 %v4171
        %v4235 = vpop.f32.mrf.mxu0
        %v4236 = vadd.f32 %v3585, %v4235
        %4237 = vdwg.mxu0
        %v4238 = vmax.f32 %v4191, 0.0
        %v4239 = vmax.f32 %v4194, 0.0
        %v4240 = vmax.f32 %v4197, 0.0
        %v4241 = vmax.f32 %v4200, 0.0
        %v4242 = vmax.f32 %v4203, 0.0
        %v4243 = vmax.f32 %v4206, 0.0
        %v4244 = vmax.f32 %v4209, 0.0
        %v4245 = vmax.f32 %v4212, 0.0
        %v4246 = vmax.f32 %v4215, 0.0
        %v4247 = vmax.f32 %v4218, 0.0
        %v4248 = vmax.f32 %v4221, 0.0
        %v4249 = vmax.f32 %v4224, 0.0
        %v4250 = vmax.f32 %v4227, 0.0
        %v4251 = vmax.f32 %v4230, 0.0
        %v4252 = vmax.f32 %v4233, 0.0
        %v4253 = vmax.f32 %v4236, 0.0
        %v4255 = vsel %vm3719, %v4238, 0
        %v4258 = vsel %vm3719, %v4239, 0
        %v4261 = vsel %vm3719, %v4240, 0
        %v4264 = vsel %vm3719, %v4241, 0
        %v4267 = vsel %vm3719, %v4242, 0
        %v4270 = vsel %vm3719, %v4243, 0
        %v4273 = vsel %vm3719, %v4244, 0
        %v4276 = vsel %vm3719, %v4245, 0
        %v4279 = vsel %vm3719, %v4246, 0
        %v4282 = vsel %vm3719, %v4247, 0
        %v4285 = vsel %vm3719, %v4248, 0
        %v4288 = vsel %vm3719, %v4249, 0
        %v4291 = vsel %vm3719, %v4250, 0
        %v4294 = vsel %vm3719, %v4251, 0
        %v4297 = vsel %vm3719, %v4252, 0
        %v4300 = vsel %vm3719, %v4253, 0
        %4302 = vmatpush.msra.mxu0 0.0
        %4303 = vmatpush.msra.mxu0 0.0
        %4304 = vmatpush.msra.mxu0 0.0
        %4305 = vmatpush.msra.mxu0 0.0
        %4306 = vmatpush.msra.mxu0 0.0
        %4307 = vmatpush.msra.mxu0 0.0
        %4308 = vmatpush.msra.mxu0 0.0
        %4309 = vmatpush.msra.mxu0 0.0
        %4310 = vmatpush.msra.mxu0 %v3542
        %4311 = vmatpush.msra.mxu0 %v3541
        %4312 = vmatpush.msra.mxu0 %v3540
        %4313 = vmatpush.msra.mxu0 %v3539
        %4314 = vmatpush.msra.mxu0 %v3538
        %4315 = vmatpush.msra.mxu0 %v3537
        %4316 = vmatpush.msra.mxu0 %v3536
        %4317 = vmatpush.msra.mxu0 %v3535
        %4318 = vmatmul.f32.gmra.mxu0 %v4255
        %v4319 = vpop.f32.mrf.mxu0
        %v4320 = vadd.f32 %v3717, %v4319
        %4321 = vmatmul.f32.gmra.mxu0 %v4258
        %v4322 = vpop.f32.mrf.mxu0
        %v4323 = vadd.f32 %v3717, %v4322
        %4324 = vmatmul.f32.gmra.mxu0 %v4261
        %v4325 = vpop.f32.mrf.mxu0
        %v4326 = vadd.f32 %v3717, %v4325
        %4327 = vmatmul.f32.gmra.mxu0 %v4264
        %v4328 = vpop.f32.mrf.mxu0
        %v4329 = vadd.f32 %v3717, %v4328
        %4330 = vmatmul.f32.gmra.mxu0 %v4267
        %v4331 = vpop.f32.mrf.mxu0
        %v4332 = vadd.f32 %v3717, %v4331
        %4333 = vmatmul.f32.gmra.mxu0 %v4270
        %v4334 = vpop.f32.mrf.mxu0
        %v4335 = vadd.f32 %v3717, %v4334
        %4336 = vmatmul.f32.gmra.mxu0 %v4273
        %v4337 = vpop.f32.mrf.mxu0
        %v4338 = vadd.f32 %v3717, %v4337
        %4339 = vmatmul.f32.gmra.mxu0 %v4276
        %v4340 = vpop.f32.mrf.mxu0
        %v4341 = vadd.f32 %v3717, %v4340
        %4342 = vmatmul.f32.gmra.mxu0 %v4279
        %v4343 = vpop.f32.mrf.mxu0
        %v4344 = vadd.f32 %v3717, %v4343
        %4345 = vmatmul.f32.gmra.mxu0 %v4282
        %v4346 = vpop.f32.mrf.mxu0
        %v4347 = vadd.f32 %v3717, %v4346
        %4348 = vmatmul.f32.gmra.mxu0 %v4285
        %v4349 = vpop.f32.mrf.mxu0
        %v4350 = vadd.f32 %v3717, %v4349
        %4351 = vmatmul.f32.gmra.mxu0 %v4288
        %v4352 = vpop.f32.mrf.mxu0
        %v4353 = vadd.f32 %v3717, %v4352
        %4354 = vmatmul.f32.gmra.mxu0 %v4291
        %v4355 = vpop.f32.mrf.mxu0
        %v4356 = vadd.f32 %v3717, %v4355
        %4357 = vmatmul.f32.gmra.mxu0 %v4294
        %v4358 = vpop.f32.mrf.mxu0
        %v4359 = vadd.f32 %v3717, %v4358
        %4360 = vmatmul.f32.gmra.mxu0 %v4297
        %v4361 = vpop.f32.mrf.mxu0
        %v4362 = vadd.f32 %v3717, %v4361
        %4363 = vmatmul.f32.gmra.mxu0 %v4300
        %v4364 = vpop.f32.mrf.mxu0
        %v4365 = vadd.f32 %v3717, %v4364
        %4366 = vdwg.mxu0
        %v4367 = vsel %vm3833, %v4320, -inf
        %v4368 = vsel %vm3833, %v4326, -inf
        %v4369 = vsel %vm3833, %v4332, -inf
        %v4370 = vmax.f32 %v4367, %v4369
        %v4371 = vsel %vm3833, %v4338, -inf
        %v4372 = vmax.f32 %v4368, %v4371
        %v4373 = vsel %vm3833, %v4344, -inf
        %v4374 = vmax.f32 %v4370, %v4373
        %v4375 = vsel %vm3833, %v4350, -inf
        %v4376 = vmax.f32 %v4372, %v4375
        %v4377 = vsel %vm3833, %v4356, -inf
        %v4378 = vmax.f32 %v4374, %v4377
        %v4379 = vsel %vm3833, %v4362, -inf
        %v4380 = vmax.f32 %v4376, %v4379
        %v4381 = vmax.f32 %v4378, %v4380
        %v4382 = vsel %vm3833, %v4323, -inf
        %v4383 = vsel %vm3833, %v4329, -inf
        %v4384 = vsel %vm3833, %v4335, -inf
        %v4385 = vmax.f32 %v4382, %v4384
        %v4386 = vsel %vm3833, %v4341, -inf
        %v4387 = vmax.f32 %v4383, %v4386
        %v4388 = vsel %vm3833, %v4347, -inf
        %v4389 = vmax.f32 %v4385, %v4388
        %v4390 = vsel %vm3833, %v4353, -inf
        %v4391 = vmax.f32 %v4387, %v4390
        %v4392 = vsel %vm3833, %v4359, -inf
        %v4393 = vmax.f32 %v4389, %v4392
        %v4394 = vsel %vm3833, %v4365, -inf
        %v4395 = vmax.f32 %v4391, %v4394
        %v4396 = vmax.f32 %v4393, %v4395
        %v4397 = vsub.f32 %v4320, %v4381
        %v4398 = vsub.f32 %v4323, %v4396
        %v4399 = vsub.f32 %v4326, %v4381
        %v4400 = vsub.f32 %v4329, %v4396
        %v4401 = vsub.f32 %v4332, %v4381
        %v4402 = vsub.f32 %v4335, %v4396
        %v4403 = vsub.f32 %v4338, %v4381
        %v4404 = vsub.f32 %v4341, %v4396
        %v4405 = vsub.f32 %v4344, %v4381
        %v4406 = vsub.f32 %v4347, %v4396
        %v4407 = vsub.f32 %v4350, %v4381
        %v4408 = vsub.f32 %v4353, %v4396
        %v4409 = vsub.f32 %v4356, %v4381
        %v4410 = vsub.f32 %v4359, %v4396
        %v4411 = vsub.f32 %v4362, %v4381
        %v4412 = vsub.f32 %v4365, %v4396
        %v4413 = vmul.f32 %v4397, 1.442695
        %v4414 = vpow.pop %v4413
        %v4415 = vmul.f32 %v4398, 1.442695
        %v4416 = vpow.pop %v4415
        %v4417 = vmul.f32 %v4399, 1.442695
        %v4418 = vpow.pop %v4417
        %v4419 = vmul.f32 %v4400, 1.442695
        %v4420 = vpow.pop %v4419
        %v4421 = vmul.f32 %v4401, 1.442695
        %v4422 = vpow.pop %v4421
        %v4423 = vmul.f32 %v4402, 1.442695
        %v4424 = vpow.pop %v4423
        %v4425 = vmul.f32 %v4403, 1.442695
        %v4426 = vpow.pop %v4425
        %v4427 = vmul.f32 %v4404, 1.442695
        %v4428 = vpow.pop %v4427
        %v4429 = vmul.f32 %v4405, 1.442695
        %v4430 = vpow.pop %v4429
        %v4431 = vmul.f32 %v4406, 1.442695
        %v4432 = vpow.pop %v4431
        %v4433 = vmul.f32 %v4407, 1.442695
        %v4434 = vpow.pop %v4433
        %v4435 = vmul.f32 %v4408, 1.442695
        %v4436 = vpow.pop %v4435
        %v4437 = vmul.f32 %v4409, 1.442695
        %v4438 = vpow.pop %v4437
        %v4439 = vmul.f32 %v4410, 1.442695
        %v4440 = vpow.pop %v4439
        %v4441 = vmul.f32 %v4411, 1.442695
        %v4442 = vpow.pop %v4441
        %v4443 = vmul.f32 %v4412, 1.442695
        %v4444 = vpow.pop %v4443
        %v4445 = vsel %vm3833, %v4414, 0.0
        %v4446 = vsel %vm3833, %v4418, 0.0
        %v4447 = vadd.f32 %v4445, %v4446
        %v4448 = vsel %vm3833, %v4422, 0.0
        %v4449 = vadd.f32 %v4447, %v4448
        %v4450 = vsel %vm3833, %v4426, 0.0
        %v4451 = vadd.f32 %v4449, %v4450
        %v4452 = vsel %vm3833, %v4430, 0.0
        %v4453 = vadd.f32 %v4451, %v4452
        %v4454 = vsel %vm3833, %v4434, 0.0
        %v4455 = vadd.f32 %v4453, %v4454
        %v4456 = vsel %vm3833, %v4438, 0.0
        %v4457 = vadd.f32 %v4455, %v4456
        %v4458 = vsel %vm3833, %v4442, 0.0
        %v4459 = vadd.f32 %v4457, %v4458
        %v4460 = vsel %vm3833, %v4416, 0.0
        %v4461 = vsel %vm3833, %v4420, 0.0
        %v4462 = vadd.f32 %v4460, %v4461
        %v4463 = vsel %vm3833, %v4424, 0.0
        %v4464 = vadd.f32 %v4462, %v4463
        %v4465 = vsel %vm3833, %v4428, 0.0
        %v4466 = vadd.f32 %v4464, %v4465
        %v4467 = vsel %vm3833, %v4432, 0.0
        %v4468 = vadd.f32 %v4466, %v4467
        %v4469 = vsel %vm3833, %v4436, 0.0
        %v4470 = vadd.f32 %v4468, %v4469
        %v4471 = vsel %vm3833, %v4440, 0.0
        %v4472 = vadd.f32 %v4470, %v4471
        %v4473 = vsel %vm3833, %v4444, 0.0
        %v4474 = vadd.f32 %v4472, %v4473
        %v4475 = vrcp.pop %v4459
        %v4476 = vrcp.pop %v4474
        %v4477 = vmul.f32 %v4414, %v4475
        %v4478 = vmul.f32 %v4416, %v4476
        %v4479 = vmul.f32 %v4418, %v4475
        %v4480 = vmul.f32 %v4420, %v4476
        %v4481 = vmul.f32 %v4422, %v4475
        %v4482 = vmul.f32 %v4424, %v4476
        %v4483 = vmul.f32 %v4426, %v4475
        %v4484 = vmul.f32 %v4428, %v4476
        %v4485 = vmul.f32 %v4430, %v4475
        %v4486 = vmul.f32 %v4432, %v4476
        %v4487 = vmul.f32 %v4434, %v4475
        %v4488 = vmul.f32 %v4436, %v4476
        %v4489 = vmul.f32 %v4438, %v4475
        %v4490 = vmul.f32 %v4440, %v4476
        %v4491 = vmul.f32 %v4442, %v4475
        %v4492 = vmul.f32 %v4444, %v4476
        %4494 = vset.pattern.permute.xlu0 32
        %4495 = vperm.xlu0 %4494, %v4477
        %v4496 = vpop.permute.xlu0 %4495
        %4499 = vset.pattern.permute.xlu0 32
        %4500 = vperm.xlu0 %4499, %v4478
        %v4501 = vpop.permute.xlu0 %4500
        %4504 = vset.pattern.permute.xlu0 32
        %4505 = vperm.xlu0 %4504, %v4479
        %v4506 = vpop.permute.xlu0 %4505
        %4509 = vset.pattern.permute.xlu0 32
        %4510 = vperm.xlu0 %4509, %v4480
        %v4511 = vpop.permute.xlu0 %4510
        %4514 = vset.pattern.permute.xlu0 32
        %4515 = vperm.xlu0 %4514, %v4481
        %v4516 = vpop.permute.xlu0 %4515
        %4519 = vset.pattern.permute.xlu0 32
        %4520 = vperm.xlu0 %4519, %v4482
        %v4521 = vpop.permute.xlu0 %4520
        %4524 = vset.pattern.permute.xlu0 32
        %4525 = vperm.xlu0 %4524, %v4483
        %v4526 = vpop.permute.xlu0 %4525
        %4529 = vset.pattern.permute.xlu0 32
        %4530 = vperm.xlu0 %4529, %v4484
        %v4531 = vpop.permute.xlu0 %4530
        %4534 = vset.pattern.permute.xlu0 32
        %4535 = vperm.xlu0 %4534, %v4485
        %v4536 = vpop.permute.xlu0 %4535
        %4539 = vset.pattern.permute.xlu0 32
        %4540 = vperm.xlu0 %4539, %v4486
        %v4541 = vpop.permute.xlu0 %4540
        %4544 = vset.pattern.permute.xlu0 32
        %4545 = vperm.xlu0 %4544, %v4487
        %v4546 = vpop.permute.xlu0 %4545
        %4549 = vset.pattern.permute.xlu0 32
        %4550 = vperm.xlu0 %4549, %v4488
        %v4551 = vpop.permute.xlu0 %4550
        %4554 = vset.pattern.permute.xlu0 32
        %4555 = vperm.xlu0 %4554, %v4489
        %v4556 = vpop.permute.xlu0 %4555
        %4559 = vset.pattern.permute.xlu0 32
        %4560 = vperm.xlu0 %4559, %v4490
        %v4561 = vpop.permute.xlu0 %4560
        %4564 = vset.pattern.permute.xlu0 32
        %4565 = vperm.xlu0 %4564, %v4491
        %v4566 = vpop.permute.xlu0 %4565
        %4569 = vset.pattern.permute.xlu0 32
        %4570 = vperm.xlu0 %4569, %v4492
        %v4571 = vpop.permute.xlu0 %4570
        %v4573 = vmul.f32 %v4496, %v4320
        %v4574 = vmul.f32 %v4501, %v4323
        %v4575 = vmul.f32 %v4506, %v4326
        %v4576 = vmul.f32 %v4511, %v4329
        %v4577 = vmul.f32 %v4516, %v4332
        %v4578 = vmul.f32 %v4521, %v4335
        %v4579 = vmul.f32 %v4526, %v4338
        %v4580 = vmul.f32 %v4531, %v4341
        %v4581 = vmul.f32 %v4536, %v4344
        %v4582 = vmul.f32 %v4541, %v4347
        %v4583 = vmul.f32 %v4546, %v4350
        %v4584 = vmul.f32 %v4551, %v4353
        %v4585 = vmul.f32 %v4556, %v4356
        %v4586 = vmul.f32 %v4561, %v4359
        %v4587 = vmul.f32 %v4566, %v4362
        %v4588 = vmul.f32 %v4571, %v4365
        %v4589 = vsel %vm1476, %v4573, 0.0
        %v4590 = vsel %vm1476, %v4575, 0.0
        %v4591 = vadd.f32 %v4589, %v4590
        %v4592 = vsel %vm1476, %v4577, 0.0
        %v4593 = vadd.f32 %v4591, %v4592
        %v4594 = vsel %vm1476, %v4579, 0.0
        %v4595 = vadd.f32 %v4593, %v4594
        %v4596 = vsel %vm1476, %v4581, 0.0
        %v4597 = vadd.f32 %v4595, %v4596
        %v4598 = vsel %vm1476, %v4583, 0.0
        %v4599 = vadd.f32 %v4597, %v4598
        %v4600 = vsel %vm1476, %v4585, 0.0
        %v4601 = vadd.f32 %v4599, %v4600
        %v4602 = vsel %vm1476, %v4587, 0.0
        %v4603 = vadd.f32 %v4601, %v4602
        %v4604 = vsel %vm1476, %v4574, 0.0
        %v4605 = vsel %vm1476, %v4576, 0.0
        %v4606 = vadd.f32 %v4604, %v4605
        %v4607 = vsel %vm1476, %v4578, 0.0
        %v4608 = vadd.f32 %v4606, %v4607
        %v4609 = vsel %vm1476, %v4580, 0.0
        %v4610 = vadd.f32 %v4608, %v4609
        %v4611 = vsel %vm1476, %v4582, 0.0
        %v4612 = vadd.f32 %v4610, %v4611
        %v4613 = vsel %vm1476, %v4584, 0.0
        %v4614 = vadd.f32 %v4612, %v4613
        %v4615 = vsel %vm1476, %v4586, 0.0
        %v4616 = vadd.f32 %v4614, %v4615
        %v4617 = vsel %vm1476, %v4588, 0.0
        %v4618 = vadd.f32 %v4616, %v4617
        %4619 = vst.msk [vmem:[%s1448] sm:$0xff] %vm1476, %v3527
        %s4620 = scalar_lea.vmem %s1448, 8
        %4621 = vst.msk [vmem:[%s4620] sm:$0xff] %vm1476, %v2583
        %4622 = vst.msk [vmem:[%s1453] sm:$0xff] %vm1774, %v3247
        %s4623 = scalar_lea.vmem %s1453, 8
        %4624 = vst.msk [vmem:[%s4623] sm:$0xff] %vm1774, %v2387
        %4625 = vst.msk [vmem:[%s1458] sm:$0xff] %vm1476, %v4070
        %4626 = vst.msk [vmem:[%s1458 + $0x8] sm:$0xff] %vm1476, %v4085
        %s4627 = scalar_lea.vmem %s1458, 16
        %4628 = vst.msk [vmem:[%s4627] sm:$0xff] %vm1476, %v4603
        %4629 = vst.msk [vmem:[%s4627 + $0x8] sm:$0xff] %vm1476, %v4618
        %4630 = vrot.lane.b32.xlu0 %v3944, 96
        %v4631 = vpop.permute.xlu0 %4630
        %4632 = vrot.lane.b32.xlu0 %v3945, 96
        %v4633 = vpop.permute.xlu0 %4632
        %4634 = vrot.lane.b32.xlu0 %v3946, 96
        %v4635 = vpop.permute.xlu0 %4634
        %4636 = vrot.lane.b32.xlu0 %v3947, 96
        %v4637 = vpop.permute.xlu0 %4636
        %4638 = vrot.lane.b32.xlu0 %v3948, 96
        %v4639 = vpop.permute.xlu0 %4638
        %4640 = vrot.lane.b32.xlu0 %v3949, 96
        %v4641 = vpop.permute.xlu0 %4640
        %4642 = vrot.lane.b32.xlu0 %v3950, 96
        %v4643 = vpop.permute.xlu0 %4642
        %4644 = vrot.lane.b32.xlu0 %v3951, 96
        %v4645 = vpop.permute.xlu0 %4644
        %4646 = vrot.lane.b32.xlu0 %v3952, 96
        %v4647 = vpop.permute.xlu0 %4646
        %4648 = vrot.lane.b32.xlu0 %v3953, 96
        %v4649 = vpop.permute.xlu0 %4648
        %4650 = vrot.lane.b32.xlu0 %v3954, 96
        %v4651 = vpop.permute.xlu0 %4650
        %4652 = vrot.lane.b32.xlu0 %v3955, 96
        %v4653 = vpop.permute.xlu0 %4652
        %4654 = vrot.lane.b32.xlu0 %v3956, 96
        %v4655 = vpop.permute.xlu0 %4654
        %4656 = vrot.lane.b32.xlu0 %v3957, 96
        %v4657 = vpop.permute.xlu0 %4656
        %4658 = vrot.lane.b32.xlu0 %v3958, 96
        %v4659 = vpop.permute.xlu0 %4658
        %4660 = vrot.lane.b32.xlu0 %v3959, 96
        %v4661 = vpop.permute.xlu0 %4660
        %vm4678 = vcmask 7168
        %4679 = vst.msk [vmem:[%s1463] sm:$0xff] %vm4678, %v4631
        %4680 = vst.msk [vmem:[%s1463 + $0x8] sm:$0xff] %vm4678, %v4633
        %4681 = vst.msk [vmem:[%s1463 + $0x10] sm:$0xff] %vm4678, %v4635
        %4682 = vst.msk [vmem:[%s1463 + $0x18] sm:$0xff] %vm4678, %v4637
        %4683 = vst.msk [vmem:[%s1463 + $0x20] sm:$0xff] %vm4678, %v4639
        %4684 = vst.msk [vmem:[%s1463 + $0x28] sm:$0xff] %vm4678, %v4641
        %4685 = vst.msk [vmem:[%s1463 + $0x30] sm:$0xff] %vm4678, %v4643
        %4686 = vst.msk [vmem:[%s1463 + $0x38] sm:$0xff] %vm4678, %v4645
        %4687 = vst.msk [vmem:[%s1463 + $0x40] sm:$0xff] %vm4678, %v4647
        %4688 = vst.msk [vmem:[%s1463 + $0x48] sm:$0xff] %vm4678, %v4649
        %4689 = vst.msk [vmem:[%s1463 + $0x50] sm:$0xff] %vm4678, %v4651
        %4690 = vst.msk [vmem:[%s1463 + $0x58] sm:$0xff] %vm4678, %v4653
        %4691 = vst.msk [vmem:[%s1463 + $0x60] sm:$0xff] %vm4678, %v4655
        %4692 = vst.msk [vmem:[%s1463 + $0x68] sm:$0xff] %vm4678, %v4657
        %4693 = vst.msk [vmem:[%s1463 + $0x70] sm:$0xff] %vm4678, %v4659
        %4694 = vst.msk [vmem:[%s1463 + $0x78] sm:$0xff] %vm4678, %v4661
        %4695 = vrot.lane.b32.xlu0 %v4477, 96
        %v4696 = vpop.permute.xlu0 %4695
        %4697 = vrot.lane.b32.xlu0 %v4478, 96
        %v4698 = vpop.permute.xlu0 %4697
        %4699 = vrot.lane.b32.xlu0 %v4479, 96
        %v4700 = vpop.permute.xlu0 %4699
        %4701 = vrot.lane.b32.xlu0 %v4480, 96
        %v4702 = vpop.permute.xlu0 %4701
        %4703 = vrot.lane.b32.xlu0 %v4481, 96
        %v4704 = vpop.permute.xlu0 %4703
        %4705 = vrot.lane.b32.xlu0 %v4482, 96
        %v4706 = vpop.permute.xlu0 %4705
        %4707 = vrot.lane.b32.xlu0 %v4483, 96
        %v4708 = vpop.permute.xlu0 %4707
        %4709 = vrot.lane.b32.xlu0 %v4484, 96
        %v4710 = vpop.permute.xlu0 %4709
        %4711 = vrot.lane.b32.xlu0 %v4485, 96
        %v4712 = vpop.permute.xlu0 %4711
        %4713 = vrot.lane.b32.xlu0 %v4486, 96
        %v4714 = vpop.permute.xlu0 %4713
        %4715 = vrot.lane.b32.xlu0 %v4487, 96
        %v4716 = vpop.permute.xlu0 %4715
        %4717 = vrot.lane.b32.xlu0 %v4488, 96
        %v4718 = vpop.permute.xlu0 %4717
        %4719 = vrot.lane.b32.xlu0 %v4489, 96
        %v4720 = vpop.permute.xlu0 %4719
        %4721 = vrot.lane.b32.xlu0 %v4490, 96
        %v4722 = vpop.permute.xlu0 %4721
        %4723 = vrot.lane.b32.xlu0 %v4491, 96
        %v4724 = vpop.permute.xlu0 %4723
        %4725 = vrot.lane.b32.xlu0 %v4492, 96
        %v4726 = vpop.permute.xlu0 %4725
        %s4743 = scalar_lea.vmem %s1463, 128
        %4744 = vst.msk [vmem:[%s4743] sm:$0xff] %vm4678, %v4696
        %4745 = vst.msk [vmem:[%s4743 + $0x8] sm:$0xff] %vm4678, %v4698
        %4746 = vst.msk [vmem:[%s4743 + $0x10] sm:$0xff] %vm4678, %v4700
        %4747 = vst.msk [vmem:[%s4743 + $0x18] sm:$0xff] %vm4678, %v4702
        %4748 = vst.msk [vmem:[%s4743 + $0x20] sm:$0xff] %vm4678, %v4704
        %4749 = vst.msk [vmem:[%s4743 + $0x28] sm:$0xff] %vm4678, %v4706
        %4750 = vst.msk [vmem:[%s4743 + $0x30] sm:$0xff] %vm4678, %v4708
        %4751 = vst.msk [vmem:[%s4743 + $0x38] sm:$0xff] %vm4678, %v4710
        %4752 = vst.msk [vmem:[%s4743 + $0x40] sm:$0xff] %vm4678, %v4712
        %4753 = vst.msk [vmem:[%s4743 + $0x48] sm:$0xff] %vm4678, %v4714
        %4754 = vst.msk [vmem:[%s4743 + $0x50] sm:$0xff] %vm4678, %v4716
        %4755 = vst.msk [vmem:[%s4743 + $0x58] sm:$0xff] %vm4678, %v4718
        %4756 = vst.msk [vmem:[%s4743 + $0x60] sm:$0xff] %vm4678, %v4720
        %4757 = vst.msk [vmem:[%s4743 + $0x68] sm:$0xff] %vm4678, %v4722
        %4758 = vst.msk [vmem:[%s4743 + $0x70] sm:$0xff] %vm4678, %v4724
        %4759 = vst.msk [vmem:[%s4743 + $0x78] sm:$0xff] %vm4678, %v4726
        %4760 = vst.msk [vmem:[%s1467] sm:$0xff] %vm4678, %v2642
        %4761 = vst.msk [vmem:[%s1471] sm:$0xff] %vm4678, %v2674
        %p4762 = scmp.lt.s32.totalorder %s94, 1
        %s4763 = scalar_select %p4762, %s94, 1
        %s4764 = smul.addr %s4763, 2
        %s4765 = smul.addr %s4764, 8
        %s4766 = scalar_lea.vmem %s61, %s4765
        %p4767 = scmp.lt.s32.totalorder %s94, 1
        %s4768 = scalar_select %p4767, %s94, 1
        %s4769 = smul.addr %s4768, 2
        %s4770 = smul.addr %s4769, 8
        %s4771 = scalar_lea.vmem %s63, %s4770
        %p4772 = scmp.lt.s32.totalorder %s94, 1
        %s4773 = scalar_select %p4772, %s94, 1
        %s4774 = smul.addr %s4773, 4
        %s4775 = smul.addr %s4774, 8
        %s4776 = scalar_lea.vmem %s65, %s4775
        %p4777 = scmp.lt.s32.totalorder %s94, 1
        %s4778 = scalar_select %p4777, %s94, 1
        %s4779 = smul.addr %s4778, 32
        %s4780 = smul.addr %s4779, 8
        %s4781 = scalar_lea.vmem %s67, %s4780
        %p4782 = scmp.lt.s32.totalorder %s94, 1
        %s4783 = scalar_select %p4782, %s94, 1
        %s4784 = smul.addr %s4783, 8
        %s4785 = scalar_lea.vmem %s69, %s4784
        %p4786 = scmp.lt.s32.totalorder %s94, 1
        %s4787 = scalar_select %p4786, %s94, 1
        %s4788 = smul.addr %s4787, 8
        %s4789 = scalar_lea.vmem %s71, %s4788
        // Predicated region
        $region225: #{forward.1} parent=139 // pred_check
          %p4790 = pneg %p752
        $region226: #{forward.1} parent=139 // pred_check_branch
          %4792 = sbr.rel (%p4790) target = $region228
        $region227: #{forward.1} parent=139 // pred_region
          _
        $region228: #{forward.1} parent=139 // pred_fallthru
          _
        // Predicated region
        $region229: #{forward.1} parent=139 // pred_check
          %p4793 = pneg %p778
        $region230: #{forward.1} parent=139 // pred_check_branch
          %4795 = sbr.rel (%p4793) target = $region232
        $region231: #{forward.1} parent=139 // pred_region
          _
        $region232: #{forward.1} parent=139 // pred_fallthru
          _
        // Predicated region
        $region233: #{forward.1} parent=139 // pred_check
          %p4796 = pneg %p804
        $region234: #{forward.1} parent=139 // pred_check_branch
          %4798 = sbr.rel (%p4796) target = $region236
        $region235: #{forward.1} parent=139 // pred_region
          _
        $region236: #{forward.1} parent=139 // pred_fallthru
          _
        // Predicated region
        $region237: #{forward.1} parent=139 // pred_check
          %p4799 = pneg %p830
        $region238: #{forward.1} parent=139 // pred_check_branch
          %4801 = sbr.rel (%p4799) target = $region240
        $region239: #{forward.1} parent=139 // pred_region
          _
        $region240: #{forward.1} parent=139 // pred_fallthru
          _
        // Predicated region
        $region241: #{forward.1} parent=139 // pred_check
          %p4802 = pneg %p856
        $region242: #{forward.1} parent=139 // pred_check_branch
          %4804 = sbr.rel (%p4802) target = $region244
        $region243: #{forward.1} parent=139 // pred_region
          _
        $region244: #{forward.1} parent=139 // pred_fallthru
          _
        // Predicated region
        $region245: #{forward.1} parent=139 // pred_check
          %p4805 = pneg %p882
        $region246: #{forward.1} parent=139 // pred_check_branch
          %4807 = sbr.rel (%p4805) target = $region248
        $region247: #{forward.1} parent=139 // pred_region
          _
        $region248: #{forward.1} parent=139 // pred_fallthru
          _
      $region140: #{forward.1} parent=5 // pred_fallthru
        _
      %p4808 = scmp.le.s32.totalorder 2, %s89
      // Predicated region
      $region249: #{forward.1} parent=5 // pred_check
        %p4809 = pneg %p4808
      $region250: #{forward.1} parent=5 // pred_check_branch
        %4811 = sbr.rel (%p4809) target = $region252
      $region251: #{forward.1} parent=5 // pred_region
        %s4812 = ssub.s32 %s89, 2
        // Predicated region
        $region253: #{forward.1} parent=251 // pred_check
          %p4813 = pneg %p758
        $region254: #{forward.1} parent=251 // pred_check_branch
          %4815 = sbr.rel (%p4813) target = $region256
        $region255: #{forward.1} parent=251 // pred_region
          %p4816 = scmp.lt.s32.totalorder %s95, 1
          %s4817 = scalar_select %p4816, %s95, 1
          %s4818 = smul.addr %s4817, 2
          %s4819 = smul.addr %s4818, 8
          %s4820 = scalar_lea.vmem %s61, %s4819
        $region256: #{forward.1} parent=251 // pred_fallthru
          _
        // Predicated region
        $region257: #{forward.1} parent=251 // pred_check
          %p4821 = pneg %p784
        $region258: #{forward.1} parent=251 // pred_check_branch
          %4823 = sbr.rel (%p4821) target = $region260
        $region259: #{forward.1} parent=251 // pred_region
          %p4824 = scmp.lt.s32.totalorder %s95, 1
          %s4825 = scalar_select %p4824, %s95, 1
          %s4826 = smul.addr %s4825, 2
          %s4827 = smul.addr %s4826, 8
          %s4828 = scalar_lea.vmem %s63, %s4827
        $region260: #{forward.1} parent=251 // pred_fallthru
          _
        // Predicated region
        $region261: #{forward.1} parent=251 // pred_check
          %p4829 = pneg %p810
        $region262: #{forward.1} parent=251 // pred_check_branch
          %4831 = sbr.rel (%p4829) target = $region264
        $region263: #{forward.1} parent=251 // pred_region
          %p4832 = scmp.lt.s32.totalorder %s95, 1
          %s4833 = scalar_select %p4832, %s95, 1
          %s4834 = smul.addr %s4833, 4
          %s4835 = smul.addr %s4834, 8
          %s4836 = scalar_lea.vmem %s65, %s4835
        $region264: #{forward.1} parent=251 // pred_fallthru
          _
        // Predicated region
        $region265: #{forward.1} parent=251 // pred_check
          %p4837 = pneg %p836
        $region266: #{forward.1} parent=251 // pred_check_branch
          %4839 = sbr.rel (%p4837) target = $region268
        $region267: #{forward.1} parent=251 // pred_region
          %p4840 = scmp.lt.s32.totalorder %s95, 1
          %s4841 = scalar_select %p4840, %s95, 1
          %s4842 = smul.addr %s4841, 32
          %s4843 = smul.addr %s4842, 8
          %s4844 = scalar_lea.vmem %s67, %s4843
        $region268: #{forward.1} parent=251 // pred_fallthru
          _
        // Predicated region
        $region269: #{forward.1} parent=251 // pred_check
          %p4845 = pneg %p862
        $region270: #{forward.1} parent=251 // pred_check_branch
          %4847 = sbr.rel (%p4845) target = $region272
        $region271: #{forward.1} parent=251 // pred_region
          %p4848 = scmp.lt.s32.totalorder %s95, 1
          %s4849 = scalar_select %p4848, %s95, 1
          %s4850 = smul.addr %s4849, 8
          %s4851 = scalar_lea.vmem %s69, %s4850
        $region272: #{forward.1} parent=251 // pred_fallthru
          _
        // Predicated region
        $region273: #{forward.1} parent=251 // pred_check
          %p4852 = pneg %p888
        $region274: #{forward.1} parent=251 // pred_check_branch
          %4854 = sbr.rel (%p4852) target = $region276
        $region275: #{forward.1} parent=251 // pred_region
          %p4855 = scmp.lt.s32.totalorder %s95, 1
          %s4856 = scalar_select %p4855, %s95, 1
          %s4857 = smul.addr %s4856, 8
          %s4858 = scalar_lea.vmem %s71, %s4857
        $region276: #{forward.1} parent=251 // pred_fallthru
          _
      $region252: #{forward.1} parent=5 // pred_fallthru
        _
    $region6: #{forward.1} parent=1 // loop_footer
      %s93 = sadd.s32 1, %s89
    $region7: #{forward.1} parent=1 // loop_footer_branch
      %88 = sbr.rel target = $region3
    $region8: #{forward.1} parent=1 // loop_exit
      _
    %4859 = vsyncpa [#allocation3], 1
    %s4860 = scalar_lea.sflag [#allocation3], 1
    %4861 = vsyncpa %s4860, 1
    %4862 = vsyncpa [#allocation5], 1
    %4863 = vsyncpa [#allocation8], 1
    %4864 = vsyncpa [#allocation11], 1
    %4865 = vsyncpa [#allocation14], 1
    %4866 = vsyncpa [#allocation17], 1
    %4867 = vsyncpa [#allocation20], 1
    %4868 = vsyncpa [#allocation23], 1
    %4869 = vsyncpa [#allocation26], 1
    %4870 = vsyncpa [#allocation29], 1
    %4871 = vsyncpa [#allocation32], 1

</llo_original>
